<compile_context>
chip_gen: v7x
topology: tpu7x:2x2x1
jax: 0.10.0
libtpu: 0.0.40
codegen_flags: <defaults>
</compile_context>

<pallas_src>
import numpy as np
import jax
import jax.numpy as jnp
from jax.experimental import pallas as pl
from jax.experimental.pallas import tpu as pltpu

EPS = 1e-6

# Matmul operand dtype for the weight-bearing matmuls.  jnp.bfloat16 gives
# more MXU throughput on v6e/v7x (accumulation stays f32); kept f32 here so
# numerics stay close to the HIGHEST-precision pure-JAX reference.
_MXU_DTYPE = jnp.float32


# ----------------------------------------------------------------------------
# In-kernel helpers (all operate on lane-dense (H, W*C) tiles)
# ----------------------------------------------------------------------------
def _wdot(a, b):
    """Weight matmul on the MXU (f32 accumulate)."""
    return jnp.dot(a.astype(_MXU_DTYPE), b.astype(_MXU_DTYPE),
                   preferred_element_type=jnp.float32)


def _sdot(a, b):
    """Structural (0/1 / averaging matrix) matmul, kept in f32."""
    return jnp.dot(a, b, preferred_element_type=jnp.float32)


def _conv3x3_banded(x2d, bw_ref):
    """3x3 same-padding conv as 3 banded matmuls on a lane-dense tile.

    x2d:    (H, W*Cin) f32 value.
    bw_ref: (3, W*Cin, W*Cout) ref, one band matrix per vertical tap dy
            (horizontal taps + zero padding baked into the band structure).
    Returns (H, W*Cout) f32, bias not added.
    """
    H = x2d.shape[0]
    zrow = jnp.zeros((1, x2d.shape[1]), jnp.float32)
    xv = jnp.concatenate([zrow, x2d, zrow], axis=0)        # vertical zero pad
    out = _wdot(xv[0:H], bw_ref[0])
    out = out + _wdot(xv[1:H + 1], bw_ref[1])
    out = out + _wdot(xv[2:H + 2], bw_ref[2])
    return out


def _layernorm_dense(a, mc_ref, w_t, b_t):
    """Per-pixel LayerNorm over channels on the lane-dense (H, W*C) layout.

    mc_ref is the (W*C, W*C) block-diagonal channel-averaging matrix, so each
    pixel's channel mean / variance land back on that pixel's own lanes."""
    mc = mc_ref[...]
    mu = _sdot(a, mc)
    xc = a - mu
    var = _sdot(xc * xc, mc)
    return xc * jax.lax.rsqrt(var + EPS) * w_t + b_t


# ----------------------------------------------------------------------------
# Fused kernel
# ----------------------------------------------------------------------------
_BLK_KEYS = ('bd1', 'b1t', 'dwbw', 'b2t', 'n1wt', 'n1bt', 'scaw', 'scab',
             'bd3', 'b3t', 'n2wt', 'n2bt', 'bd4', 'b4t', 'bd5', 'b5t',
             'betat', 'gammat')


def _make_fused_kernel(n_blocks):
    n_shared = 10   # x + intro(2) + ending(2) + mc + s1 + s2 + tavg + ttile

    def kernel(*refs):
        (x_ref, intro_bw, intro_bt, end_bw, end_bt,
         mc_ref, s1_ref, s2_ref, tavg_ref, ttile_ref) = refs[:n_shared]
        blk_refs = refs[n_shared:n_shared + 18 * n_blocks]
        o_ref = refs[n_shared + 18 * n_blocks]

        inp = x_ref[0].astype(jnp.float32)                  # (H, W*Cimg)

        # ---- intro: 3x3 conv, Cimg -> C --------------------------------
        a = _conv3x3_banded(inp, intro_bw) + intro_bt[...]  # (H, W*C)

        # ---- middle NAFBlocks ------------------------------------------
        for i in range(n_blocks):
            (bd1, b1t, dwbw, b2t, n1wt, n1bt, scaw, scab, bd3, b3t,
             n2wt, n2bt, bd4, b4t, bd5, b5t, betat,
             gammat) = blk_refs[18 * i:18 * (i + 1)]
            a_in = a
            # norm1 -> conv1 (1x1, C -> 2C)
            xn = _layernorm_dense(a_in, mc_ref, n1wt[...], n1bt[...])
            h = _wdot(xn, bd1[...]) + b1t[...]               # (H, W*2C)
            # conv2: depthwise 3x3 on 2C channels (banded matmuls)
            h = _conv3x3_banded(h, dwbw) + b2t[...]
            # SimpleGate: per-pixel first-half * second-half channels
            g = _sdot(h, s1_ref[...]) * _sdot(h, s2_ref[...])   # (H, W*C)
            # SCA: global average pool -> 1x1 conv -> channel scale
            colmean = jnp.mean(g, axis=0, keepdims=True)     # (1, W*C)
            pooled = _sdot(colmean, tavg_ref[...])           # (1, C)
            sca = _wdot(pooled, scaw[...]) + scab[...]       # (1, C)
            g = g * _sdot(sca, ttile_ref[...])               # per-pixel scale
            # conv3 (1x1, C -> C), residual scaled by beta
            h3 = _wdot(g, bd3[...]) + b3t[...]
            y = a_in + h3 * betat[...]
            # norm2 -> conv4 -> SimpleGate -> conv5, residual scaled by gamma
            yn = _layernorm_dense(y, mc_ref, n2wt[...], n2bt[...])
            h4 = _wdot(yn, bd4[...]) + b4t[...]
            g2 = _sdot(h4, s1_ref[...]) * _sdot(h4, s2_ref[...])
            h5 = _wdot(g2, bd5[...]) + b5t[...]
            a = y + h5 * gammat[...]

        # ---- ending: 3x3 conv C -> Cimg, plus input residual -----------
        out = _conv3x3_banded(a, end_bw) + end_bt[...] + inp
        o_ref[0] = out.astype(o_ref.dtype)

    return kernel


# ----------------------------------------------------------------------------
# Host-side precompute of lane-dense weights (runs once, outside jit)
# ----------------------------------------------------------------------------
def _np32(x):
    return np.asarray(x, np.float32)


def _kron_eye(w, W):
    return np.kron(np.eye(W, dtype=np.float32), _np32(w))


def _tile_vec(v, W):
    return np.tile(_np32(v).reshape(-1), W)[None, :]


def _band3x3(w9, W):
    """(9, Cin, Cout) taps -> (3, W*Cin, W*Cout) band matrices (one per dy)."""
    w9 = _np32(w9)
    Cin, Cout = w9.shape[1], w9.shape[2]
    w = w9.reshape(3, 3, Cin, Cout)
    bw = np.zeros((3, W * Cin, W * Cout), np.float32)
    for dy in range(3):
        for j in range(W):
            for dx in range(3):
                s = j + dx - 1
                if 0 <= s < W:
                    bw[dy, s * Cin:(s + 1) * Cin,
                       j * Cout:(j + 1) * Cout] = w[dy, dx]
    return bw


def prepare_kernel_params(params, W):
    """Precompute banded / block-diagonal / tiled weights for image width W."""
    intro_w = _np32(params['intro_w'])            # (9, Cimg, C)
    ending_w = _np32(params['ending_w'])          # (9, C, Cimg)
    C = intro_w.shape[2]
    dw = 2 * C

    s1 = np.zeros((W * dw, W * C), np.float32)    # gate: first-half channels
    s2 = np.zeros((W * dw, W * C), np.float32)    # gate: second-half channels
    tavg = np.zeros((W * C, C), np.float32)       # SCA: average over width
    ttile = np.zeros((C, W * C), np.float32)      # SCA: broadcast to pixels
    for j in range(W):
        for c in range(C):
            s1[j * dw + c, j * C + c] = 1.0
            s2[j * dw + C + c, j * C + c] = 1.0
            tavg[j * C + c, c] = 1.0 / W
            ttile[c, j * C + c] = 1.0

    kp = {
        'intro_bw': jnp.asarray(_band3x3(intro_w, W)),
        'intro_bt': jnp.asarray(_tile_vec(params['intro_b'], W)),
        'ending_bw': jnp.asarray(_band3x3(ending_w, W)),
        'ending_bt': jnp.asarray(_tile_vec(params['ending_b'], W)),
        'mc': jnp.asarray(_kron_eye(np.full((C, C), 1.0 / C, np.float32), W)),
        's1': jnp.asarray(s1),
        's2': jnp.asarray(s2),
        'tavg': jnp.asarray(tavg),
        'ttile': jnp.asarray(ttile),
        'blocks': [],
    }

    for blk in params['middle_blocks']:
        w2 = _np32(blk['w2'])                     # (9, 2C) depthwise taps
        w2d = np.stack([np.diag(w2[t]) for t in range(9)])   # (9, 2C, 2C)
        kp['blocks'].append({
            'bd1': jnp.asarray(_kron_eye(blk['w1'], W)),
            'b1t': jnp.asarray(_tile_vec(blk['b1'], W)),
            'dwbw': jnp.asarray(_band3x3(w2d, W)),
            'b2t': jnp.asarray(_tile_vec(blk['b2'], W)),
            'n1wt': jnp.asarray(_tile_vec(blk['n1w'], W)),
            'n1bt': jnp.asarray(_tile_vec(blk['n1b'], W)),
            'scaw': jnp.asarray(_np32(blk['scaw'])),
            'scab': jnp.asarray(_np32(blk['scab'])),
            'bd3': jnp.asarray(_kron_eye(blk['w3'], W)),
            'b3t': jnp.asarray(_tile_vec(blk['b3'], W)),
            'n2wt': jnp.asarray(_tile_vec(blk['n2w'], W)),
            'n2bt': jnp.asarray(_tile_vec(blk['n2b'], W)),
            'bd4': jnp.asarray(_kron_eye(blk['w4'], W)),
            'b4t': jnp.asarray(_tile_vec(blk['b4'], W)),
            'bd5': jnp.asarray(_kron_eye(blk['w5'], W)),
            'b5t': jnp.asarray(_tile_vec(blk['b5'], W)),
            'betat': jnp.asarray(_tile_vec(blk['beta'], W)),
            'gammat': jnp.asarray(_tile_vec(blk['gamma'], W)),
        })
    return kp


# ----------------------------------------------------------------------------
# Full NAFNet forward (default config) -- one fused pallas_call
# ----------------------------------------------------------------------------
def nafnet_forward(inp_nchw, kp):
    B, Cimg, H, W = inp_nchw.shape
    # padder_size = 2 ** len(enc_blk_nums) = 1 for the default config, so the
    # check_image_size() padding is a no-op here.
    x = jnp.transpose(inp_nchw, (0, 2, 3, 1)).reshape(B, H, W * Cimg)
    assert kp['intro_bw'].shape[1] == W * Cimg, "params prepared for other W"

    n_blocks = len(kp['blocks'])
    weights = [kp['intro_bw'], kp['intro_bt'], kp['ending_bw'],
               kp['ending_bt'], kp['mc'], kp['s1'], kp['s2'],
               kp['tavg'], kp['ttile']]
    for blk in kp['blocks']:
        weights += [blk[k] for k in _BLK_KEYS]

    def _wspec(w):
        return pl.BlockSpec(w.shape, lambda b, n=w.ndim: (0,) * n)

    in_specs = [pl.BlockSpec((1, H, W * Cimg), lambda b: (b, 0, 0))]
    in_specs += [_wspec(w) for w in weights]

    out = pl.pallas_call(
        _make_fused_kernel(n_blocks),
        out_shape=jax.ShapeDtypeStruct((B, H, W * Cimg), inp_nchw.dtype),
        grid=(B,),
        in_specs=in_specs,
        out_specs=pl.BlockSpec((1, H, W * Cimg), lambda b: (b, 0, 0)),
        compiler_params=pltpu.CompilerParams(
            dimension_semantics=("parallel",),        # megacore on v7x
            vmem_limit_bytes=32 * 1024 * 1024),
    )(x, *weights)

    out = out.reshape(B, H, W, Cimg)
    return {'output': jnp.transpose(out, (0, 3, 1, 2))}


# ----------------------------------------------------------------------------
# Parameters (deterministic, synthetic)
# ----------------------------------------------------------------------------
def init_params(key, img_channel=3, width=16, middle_blk_num=1):
    keys = iter(jax.random.split(key, 64))

    def rnd(shape, scale):
        return scale * jax.random.normal(next(keys), shape, jnp.float32)

    c = width
    params = {
        'intro_w': rnd((9, img_channel, width), 1.0 / np.sqrt(9 * img_channel)),
        'intro_b': rnd((1, width), 0.02),
        'ending_w': rnd((9, width, img_channel), 1.0 / np.sqrt(9 * width)),
        'ending_b': rnd((1, img_channel), 0.02),
        'middle_blocks': [],
    }
    for _ in range(middle_blk_num):
        dw = 2 * c    # DW_Expand = 2 ; ffn_channel = FFN_Expand * c = 2c
        blk = {
            'n1w': jnp.ones((1, c), jnp.float32),
            'n1b': jnp.zeros((1, c), jnp.float32),
            'w1': rnd((c, dw), 1.0 / np.sqrt(c)),
            'b1': rnd((1, dw), 0.02),
            'w2': rnd((9, dw), 1.0 / 3.0),           # depthwise 3x3 (tap, chan)
            'b2': rnd((1, dw), 0.02),
            'scaw': rnd((c, c), 1.0 / np.sqrt(c)),
            'scab': rnd((1, c), 0.02),
            'w3': rnd((c, c), 1.0 / np.sqrt(c)),
            'b3': rnd((1, c), 0.02),
            'n2w': jnp.ones((1, c), jnp.float32),
            'n2b': jnp.zeros((1, c), jnp.float32),
            'w4': rnd((c, dw), 1.0 / np.sqrt(c)),
            'b4': rnd((1, dw), 0.02),
            'w5': rnd((c, c), 1.0 / np.sqrt(c)),
            'b5': rnd((1, c), 0.02),
            # zeros in the PyTorch __init__; nonzero here to exercise the path
            'beta': rnd((1, c), 0.1),
            'gamma': rnd((1, c), 0.1),
        }
        params['middle_blocks'].append(blk)
    return params


# ----------------------------------------------------------------------------
# Pure-JAX reference (independent code path, verification only)
# ----------------------------------------------------------------------------
def _conv2d_ref(x, w_hwio, b=None, groups=1):
    out = jax.lax.conv_general_dilated(
        x, w_hwio, window_strides=(1, 1), padding='SAME',
        dimension_numbers=('NHWC', 'HWIO', 'NHWC'),
        feature_group_count=groups,
        precision=jax.lax.Precision.HIGHEST)
    if b is not None:
        out = out + b
    return out


def _ln_ref(x, w, b):
    mu = x.mean(-1, keepdims=True)
    var = ((x - mu) ** 2).mean(-1, keepdims=True)
    return (x - mu) / jnp.sqrt(var + EPS) * w + b


def _mm_ref(x, w):
    return jnp.einsum('bhwc,cd->bhwd', x, w, precision=jax.lax.Precision.HIGHEST)


def _nafblock_ref(x, p):
    inp = x
    x = _ln_ref(x, p['n1w'][0], p['n1b'][0])
    x = _mm_ref(x, p['w1']) + p['b1'][0]
    dw = x.shape[-1]
    x = _conv2d_ref(x, p['w2'].reshape(3, 3, 1, dw), p['b2'][0], groups=dw)
    x = x[..., :dw // 2] * x[..., dw // 2:]
    pooled = x.mean(axis=(1, 2), keepdims=True)
    sca = _mm_ref(pooled, p['scaw']) + p['scab'][0]
    x = x * sca
    x = _mm_ref(x, p['w3']) + p['b3'][0]
    y = inp + x * p['beta'][0]
    x = _ln_ref(y, p['n2w'][0], p['n2b'][0])
    x = _mm_ref(x, p['w4']) + p['b4'][0]
    ff = x.shape[-1]
    x = x[..., :ff // 2] * x[..., ff // 2:]
    x = _mm_ref(x, p['w5']) + p['b5'][0]
    return y + x * p['gamma'][0]


def nafnet_ref(inp_nchw, params):
    B, C, H, W = inp_nchw.shape
    x = jnp.transpose(inp_nchw, (0, 2, 3, 1))
    inp_pad = x
    cin = params['intro_w'].shape[1]
    cw = params['intro_w'].shape[2]
    x = _conv2d_ref(x, params['intro_w'].reshape(3, 3, cin, cw),
                    params['intro_b'][0])
    for blk in params['middle_blocks']:
        x = _nafblock_ref(x, blk)
    x = _conv2d_ref(x, params['ending_w'].reshape(3, 3, cw, cin),
                    params['ending_b'][0]) + inp_pad
    x = x[:, :H, :W, :]
    return {'output': jnp.transpose(x, (0, 3, 1, 2))}


# ----------------------------------------------------------------------------
if __name__ == "__main__":
    key = jax.random.PRNGKey(0)
    x = jax.random.normal(key, (2, 3, 16, 16), jnp.float32)   # NCHW, like torch
    params = init_params(jax.random.PRNGKey(1), img_channel=3, width=16,
                         middle_blk_num=1)
    kparams = prepare_kernel_params(params, W=x.shape[3])

    fwd = jax.jit(nafnet_forward)
    out = fwd(x, kparams)
    jax.block_until_ready(out)

    ref = nafnet_ref(x, params)
    # Kernel matmuls run at MXU precision; the reference uses Precision.HIGHEST.
    np.testing.assert_allclose(np.asarray(out['output']),
                               np.asarray(ref['output']),
                               rtol=2e-2, atol=2e-2)
    assert out['output'].shape == (2, 3, 16, 16)
    print("KERNEL_OK")
</pallas_src>

<mosaic_0001>
module attributes {stable_mosaic.version = 11 : i64} {
  func.func @kernel(%arg0: i32, %arg1: memref<1x16x48xf32, #tpu.memory_space<vmem>>, %arg2: memref<3x48x256xf32, #tpu.memory_space<vmem>>, %arg3: memref<1x256xf32, #tpu.memory_space<vmem>>, %arg4: memref<3x256x48xf32, #tpu.memory_space<vmem>>, %arg5: memref<1x48xf32, #tpu.memory_space<vmem>>, %arg6: memref<256x256xf32, #tpu.memory_space<vmem>>, %arg7: memref<512x256xf32, #tpu.memory_space<vmem>>, %arg8: memref<512x256xf32, #tpu.memory_space<vmem>>, %arg9: memref<256x16xf32, #tpu.memory_space<vmem>>, %arg10: memref<16x256xf32, #tpu.memory_space<vmem>>, %arg11: memref<256x512xf32, #tpu.memory_space<vmem>>, %arg12: memref<1x512xf32, #tpu.memory_space<vmem>>, %arg13: memref<3x512x512xf32, #tpu.memory_space<vmem>>, %arg14: memref<1x512xf32, #tpu.memory_space<vmem>>, %arg15: memref<1x256xf32, #tpu.memory_space<vmem>>, %arg16: memref<1x256xf32, #tpu.memory_space<vmem>>, %arg17: memref<16x16xf32, #tpu.memory_space<vmem>>, %arg18: memref<1x16xf32, #tpu.memory_space<vmem>>, %arg19: memref<256x256xf32, #tpu.memory_space<vmem>>, %arg20: memref<1x256xf32, #tpu.memory_space<vmem>>, %arg21: memref<1x256xf32, #tpu.memory_space<vmem>>, %arg22: memref<1x256xf32, #tpu.memory_space<vmem>>, %arg23: memref<256x512xf32, #tpu.memory_space<vmem>>, %arg24: memref<1x512xf32, #tpu.memory_space<vmem>>, %arg25: memref<256x256xf32, #tpu.memory_space<vmem>>, %arg26: memref<1x256xf32, #tpu.memory_space<vmem>>, %arg27: memref<1x256xf32, #tpu.memory_space<vmem>>, %arg28: memref<1x256xf32, #tpu.memory_space<vmem>>, %arg29: memref<1x16x48xf32, #tpu.memory_space<vmem>>) attributes {dimension_semantics = [#tpu.dimension_semantics<parallel>], iteration_bounds = array<i64: 2>, scalar_prefetch = 0 : i64, scratch_operands = 0 : i64, tpu.core_type = #tpu.core_type<tc>, window_params = [{transform_indices = @transform_0, window_bounds = array<i64: 1, 16, 48>}, {pipeline_mode = #tpu.pipeline_mode<synchronous>, transform_indices = @transform_1, window_bounds = array<i64: 3, 48, 256>}, {pipeline_mode = #tpu.pipeline_mode<synchronous>, transform_indices = @transform_2, window_bounds = array<i64: 1, 256>}, {pipeline_mode = #tpu.pipeline_mode<synchronous>, transform_indices = @transform_3, window_bounds = array<i64: 3, 256, 48>}, {pipeline_mode = #tpu.pipeline_mode<synchronous>, transform_indices = @transform_4, window_bounds = array<i64: 1, 48>}, {pipeline_mode = #tpu.pipeline_mode<synchronous>, transform_indices = @transform_5, window_bounds = array<i64: 256, 256>}, {pipeline_mode = #tpu.pipeline_mode<synchronous>, transform_indices = @transform_6, window_bounds = array<i64: 512, 256>}, {pipeline_mode = #tpu.pipeline_mode<synchronous>, transform_indices = @transform_7, window_bounds = array<i64: 512, 256>}, {pipeline_mode = #tpu.pipeline_mode<synchronous>, transform_indices = @transform_8, window_bounds = array<i64: 256, 16>}, {pipeline_mode = #tpu.pipeline_mode<synchronous>, transform_indices = @transform_9, window_bounds = array<i64: 16, 256>}, {pipeline_mode = #tpu.pipeline_mode<synchronous>, transform_indices = @transform_10, window_bounds = array<i64: 256, 512>}, {pipeline_mode = #tpu.pipeline_mode<synchronous>, transform_indices = @transform_11, window_bounds = array<i64: 1, 512>}, {pipeline_mode = #tpu.pipeline_mode<synchronous>, transform_indices = @transform_12, window_bounds = array<i64: 3, 512, 512>}, {pipeline_mode = #tpu.pipeline_mode<synchronous>, transform_indices = @transform_13, window_bounds = array<i64: 1, 512>}, {pipeline_mode = #tpu.pipeline_mode<synchronous>, transform_indices = @transform_14, window_bounds = array<i64: 1, 256>}, {pipeline_mode = #tpu.pipeline_mode<synchronous>, transform_indices = @transform_15, window_bounds = array<i64: 1, 256>}, {pipeline_mode = #tpu.pipeline_mode<synchronous>, transform_indices = @transform_16, window_bounds = array<i64: 16, 16>}, {pipeline_mode = #tpu.pipeline_mode<synchronous>, transform_indices = @transform_17, window_bounds = array<i64: 1, 16>}, {pipeline_mode = #tpu.pipeline_mode<synchronous>, transform_indices = @transform_18, window_bounds = array<i64: 256, 256>}, {pipeline_mode = #tpu.pipeline_mode<synchronous>, transform_indices = @transform_19, window_bounds = array<i64: 1, 256>}, {pipeline_mode = #tpu.pipeline_mode<synchronous>, transform_indices = @transform_20, window_bounds = array<i64: 1, 256>}, {pipeline_mode = #tpu.pipeline_mode<synchronous>, transform_indices = @transform_21, window_bounds = array<i64: 1, 256>}, {pipeline_mode = #tpu.pipeline_mode<synchronous>, transform_indices = @transform_22, window_bounds = array<i64: 256, 512>}, {pipeline_mode = #tpu.pipeline_mode<synchronous>, transform_indices = @transform_23, window_bounds = array<i64: 1, 512>}, {pipeline_mode = #tpu.pipeline_mode<synchronous>, transform_indices = @transform_24, window_bounds = array<i64: 256, 256>}, {pipeline_mode = #tpu.pipeline_mode<synchronous>, transform_indices = @transform_25, window_bounds = array<i64: 1, 256>}, {pipeline_mode = #tpu.pipeline_mode<synchronous>, transform_indices = @transform_26, window_bounds = array<i64: 1, 256>}, {pipeline_mode = #tpu.pipeline_mode<synchronous>, transform_indices = @transform_27, window_bounds = array<i64: 1, 256>}, {transform_indices = @transform_28, window_bounds = array<i64: 1, 16, 48>}]} {
    %c0 = arith.constant 0 : index
    %c0_0 = arith.constant 0 : index
    %c0_1 = arith.constant 0 : index
    %0 = vector.load %arg1[%c0, %c0_0, %c0_1] : memref<1x16x48xf32, #tpu.memory_space<vmem>>, vector<1x16x48xf32>
    %1 = vector.shape_cast %0 : vector<1x16x48xf32> to vector<16x48xf32>
    %cst = arith.constant 0.000000e+00 : f32
    %2 = vector.broadcast %cst : f32 to vector<1x48xf32>
    %3 = tpu.concatenate %2, %1, %2 in 0 : vector<1x48xf32>, vector<16x48xf32>, vector<1x48xf32> -> vector<18x48xf32>
    %4 = vector.extract_strided_slice %3 {offsets = [0, 0], sizes = [16, 48], strides = [1, 1]} : vector<18x48xf32> to vector<16x48xf32>
    %c0_2 = arith.constant 0 : index
    %c0_3 = arith.constant 0 : index
    %c0_4 = arith.constant 0 : index
    %5 = vector.load %arg2[%c0_2, %c0_3, %c0_4] : memref<3x48x256xf32, #tpu.memory_space<vmem>>, vector<1x48x256xf32>
    %6 = vector.shape_cast %5 : vector<1x48x256xf32> to vector<48x256xf32>
    %cst_5 = arith.constant dense<0.000000e+00> : vector<16x256xf32>
    %7 = tpu.matmul %4, %6, %cst_5 {dimension_numbers = #tpu.dot_dimension_numbers<[1], [0], [0], [1], [0, 0, 1, 1], [], []>} : vector<16x48xf32>, vector<48x256xf32>, vector<16x256xf32> -> vector<16x256xf32>
    %8 = vector.extract_strided_slice %3 {offsets = [1, 0], sizes = [16, 48], strides = [1, 1]} : vector<18x48xf32> to vector<16x48xf32>
    %c1 = arith.constant 1 : index
    %c0_6 = arith.constant 0 : index
    %c0_7 = arith.constant 0 : index
    %9 = vector.load %arg2[%c1, %c0_6, %c0_7] : memref<3x48x256xf32, #tpu.memory_space<vmem>>, vector<1x48x256xf32>
    %10 = vector.shape_cast %9 : vector<1x48x256xf32> to vector<48x256xf32>
    %cst_8 = arith.constant dense<0.000000e+00> : vector<16x256xf32>
    %11 = tpu.matmul %8, %10, %cst_8 {dimension_numbers = #tpu.dot_dimension_numbers<[1], [0], [0], [1], [0, 0, 1, 1], [], []>} : vector<16x48xf32>, vector<48x256xf32>, vector<16x256xf32> -> vector<16x256xf32>
    %12 = arith.addf %7, %11 : vector<16x256xf32>
    %13 = vector.extract_strided_slice %3 {offsets = [2, 0], sizes = [16, 48], strides = [1, 1]} : vector<18x48xf32> to vector<16x48xf32>
    %c2 = arith.constant 2 : index
    %c0_9 = arith.constant 0 : index
    %c0_10 = arith.constant 0 : index
    %14 = vector.load %arg2[%c2, %c0_9, %c0_10] : memref<3x48x256xf32, #tpu.memory_space<vmem>>, vector<1x48x256xf32>
    %15 = vector.shape_cast %14 : vector<1x48x256xf32> to vector<48x256xf32>
    %cst_11 = arith.constant dense<0.000000e+00> : vector<16x256xf32>
    %16 = tpu.matmul %13, %15, %cst_11 {dimension_numbers = #tpu.dot_dimension_numbers<[1], [0], [0], [1], [0, 0, 1, 1], [], []>} : vector<16x48xf32>, vector<48x256xf32>, vector<16x256xf32> -> vector<16x256xf32>
    %17 = arith.addf %12, %16 : vector<16x256xf32>
    %c0_12 = arith.constant 0 : index
    %c0_13 = arith.constant 0 : index
    %18 = vector.load %arg3[%c0_12, %c0_13] : memref<1x256xf32, #tpu.memory_space<vmem>>, vector<1x256xf32>
    %19 = vector.broadcast %18 : vector<1x256xf32> to vector<16x256xf32>
    %20 = arith.addf %17, %19 : vector<16x256xf32>
    %c0_14 = arith.constant 0 : index
    %c0_15 = arith.constant 0 : index
    %21 = vector.load %arg15[%c0_14, %c0_15] : memref<1x256xf32, #tpu.memory_space<vmem>>, vector<1x256xf32>
    %c0_16 = arith.constant 0 : index
    %c0_17 = arith.constant 0 : index
    %22 = vector.load %arg16[%c0_16, %c0_17] : memref<1x256xf32, #tpu.memory_space<vmem>>, vector<1x256xf32>
    %c0_18 = arith.constant 0 : index
    %c0_19 = arith.constant 0 : index
    %23 = vector.load %arg6[%c0_18, %c0_19] : memref<256x256xf32, #tpu.memory_space<vmem>>, vector<256x256xf32>
    %cst_20 = arith.constant dense<0.000000e+00> : vector<16x256xf32>
    %24 = tpu.matmul %20, %23, %cst_20 {dimension_numbers = #tpu.dot_dimension_numbers<[1], [0], [0], [1], [0, 0, 1, 1], [], []>} : vector<16x256xf32>, vector<256x256xf32>, vector<16x256xf32> -> vector<16x256xf32>
    %25 = arith.subf %20, %24 : vector<16x256xf32>
    %26 = arith.mulf %25, %25 : vector<16x256xf32>
    %cst_21 = arith.constant dense<0.000000e+00> : vector<16x256xf32>
    %27 = tpu.matmul %26, %23, %cst_21 {dimension_numbers = #tpu.dot_dimension_numbers<[1], [0], [0], [1], [0, 0, 1, 1], [], []>} : vector<16x256xf32>, vector<256x256xf32>, vector<16x256xf32> -> vector<16x256xf32>
    %cst_22 = arith.constant 9.99999997E-7 : f32
    %28 = vector.broadcast %cst_22 : f32 to vector<16x256xf32>
    %29 = arith.addf %27, %28 : vector<16x256xf32>
    %30 = math.rsqrt %29 : vector<16x256xf32>
    %31 = arith.mulf %25, %30 : vector<16x256xf32>
    %32 = vector.broadcast %21 : vector<1x256xf32> to vector<16x256xf32>
    %33 = arith.mulf %31, %32 : vector<16x256xf32>
    %34 = vector.broadcast %22 : vector<1x256xf32> to vector<16x256xf32>
    %35 = arith.addf %33, %34 : vector<16x256xf32>
    %c0_23 = arith.constant 0 : index
    %c0_24 = arith.constant 0 : index
    %36 = vector.load %arg11[%c0_23, %c0_24] : memref<256x512xf32, #tpu.memory_space<vmem>>, vector<256x512xf32>
    %cst_25 = arith.constant dense<0.000000e+00> : vector<16x512xf32>
    %37 = tpu.matmul %35, %36, %cst_25 {dimension_numbers = #tpu.dot_dimension_numbers<[1], [0], [0], [1], [0, 0, 1, 1], [], []>} : vector<16x256xf32>, vector<256x512xf32>, vector<16x512xf32> -> vector<16x512xf32>
    %c0_26 = arith.constant 0 : index
    %c0_27 = arith.constant 0 : index
    %38 = vector.load %arg12[%c0_26, %c0_27] : memref<1x512xf32, #tpu.memory_space<vmem>>, vector<1x512xf32>
    %39 = vector.broadcast %38 : vector<1x512xf32> to vector<16x512xf32>
    %40 = arith.addf %37, %39 : vector<16x512xf32>
    %cst_28 = arith.constant 0.000000e+00 : f32
    %41 = vector.broadcast %cst_28 : f32 to vector<1x512xf32>
    %42 = tpu.concatenate %41, %40, %41 in 0 : vector<1x512xf32>, vector<16x512xf32>, vector<1x512xf32> -> vector<18x512xf32>
    %43 = vector.extract_strided_slice %42 {offsets = [0, 0], sizes = [16, 512], strides = [1, 1]} : vector<18x512xf32> to vector<16x512xf32>
    %c0_29 = arith.constant 0 : index
    %c0_30 = arith.constant 0 : index
    %c0_31 = arith.constant 0 : index
    %44 = vector.load %arg13[%c0_29, %c0_30, %c0_31] : memref<3x512x512xf32, #tpu.memory_space<vmem>>, vector<1x512x512xf32>
    %45 = vector.shape_cast %44 : vector<1x512x512xf32> to vector<512x512xf32>
    %cst_32 = arith.constant dense<0.000000e+00> : vector<16x512xf32>
    %46 = tpu.matmul %43, %45, %cst_32 {dimension_numbers = #tpu.dot_dimension_numbers<[1], [0], [0], [1], [0, 0, 1, 1], [], []>} : vector<16x512xf32>, vector<512x512xf32>, vector<16x512xf32> -> vector<16x512xf32>
    %47 = vector.extract_strided_slice %42 {offsets = [1, 0], sizes = [16, 512], strides = [1, 1]} : vector<18x512xf32> to vector<16x512xf32>
    %c1_33 = arith.constant 1 : index
    %c0_34 = arith.constant 0 : index
    %c0_35 = arith.constant 0 : index
    %48 = vector.load %arg13[%c1_33, %c0_34, %c0_35] : memref<3x512x512xf32, #tpu.memory_space<vmem>>, vector<1x512x512xf32>
    %49 = vector.shape_cast %48 : vector<1x512x512xf32> to vector<512x512xf32>
    %cst_36 = arith.constant dense<0.000000e+00> : vector<16x512xf32>
    %50 = tpu.matmul %47, %49, %cst_36 {dimension_numbers = #tpu.dot_dimension_numbers<[1], [0], [0], [1], [0, 0, 1, 1], [], []>} : vector<16x512xf32>, vector<512x512xf32>, vector<16x512xf32> -> vector<16x512xf32>
    %51 = arith.addf %46, %50 : vector<16x512xf32>
    %52 = vector.extract_strided_slice %42 {offsets = [2, 0], sizes = [16, 512], strides = [1, 1]} : vector<18x512xf32> to vector<16x512xf32>
    %c2_37 = arith.constant 2 : index
    %c0_38 = arith.constant 0 : index
    %c0_39 = arith.constant 0 : index
    %53 = vector.load %arg13[%c2_37, %c0_38, %c0_39] : memref<3x512x512xf32, #tpu.memory_space<vmem>>, vector<1x512x512xf32>
    %54 = vector.shape_cast %53 : vector<1x512x512xf32> to vector<512x512xf32>
    %cst_40 = arith.constant dense<0.000000e+00> : vector<16x512xf32>
    %55 = tpu.matmul %52, %54, %cst_40 {dimension_numbers = #tpu.dot_dimension_numbers<[1], [0], [0], [1], [0, 0, 1, 1], [], []>} : vector<16x512xf32>, vector<512x512xf32>, vector<16x512xf32> -> vector<16x512xf32>
    %56 = arith.addf %51, %55 : vector<16x512xf32>
    %c0_41 = arith.constant 0 : index
    %c0_42 = arith.constant 0 : index
    %57 = vector.load %arg14[%c0_41, %c0_42] : memref<1x512xf32, #tpu.memory_space<vmem>>, vector<1x512xf32>
    %58 = vector.broadcast %57 : vector<1x512xf32> to vector<16x512xf32>
    %59 = arith.addf %56, %58 : vector<16x512xf32>
    %c0_43 = arith.constant 0 : index
    %c0_44 = arith.constant 0 : index
    %60 = vector.load %arg7[%c0_43, %c0_44] : memref<512x256xf32, #tpu.memory_space<vmem>>, vector<512x256xf32>
    %cst_45 = arith.constant dense<0.000000e+00> : vector<16x256xf32>
    %61 = tpu.matmul %59, %60, %cst_45 {dimension_numbers = #tpu.dot_dimension_numbers<[1], [0], [0], [1], [0, 0, 1, 1], [], []>} : vector<16x512xf32>, vector<512x256xf32>, vector<16x256xf32> -> vector<16x256xf32>
    %c0_46 = arith.constant 0 : index
    %c0_47 = arith.constant 0 : index
    %62 = vector.load %arg8[%c0_46, %c0_47] : memref<512x256xf32, #tpu.memory_space<vmem>>, vector<512x256xf32>
    %cst_48 = arith.constant dense<0.000000e+00> : vector<16x256xf32>
    %63 = tpu.matmul %59, %62, %cst_48 {dimension_numbers = #tpu.dot_dimension_numbers<[1], [0], [0], [1], [0, 0, 1, 1], [], []>} : vector<16x512xf32>, vector<512x256xf32>, vector<16x256xf32> -> vector<16x256xf32>
    %64 = arith.mulf %61, %63 : vector<16x256xf32>
    %cst_49 = arith.constant dense<0.000000e+00> : vector<256xf32>
    %65 = vector.multi_reduction <add>, %64, %cst_49 [0] : vector<16x256xf32> to vector<256xf32>
    %66 = vector.shape_cast %65 : vector<256xf32> to vector<1x256xf32>
    %cst_50 = arith.constant 1.600000e+01 : f32
    %67 = vector.broadcast %cst_50 : f32 to vector<1x256xf32>
    %68 = arith.divf %66, %67 : vector<1x256xf32>
    %c0_51 = arith.constant 0 : index
    %c0_52 = arith.constant 0 : index
    %69 = vector.load %arg9[%c0_51, %c0_52] : memref<256x16xf32, #tpu.memory_space<vmem>>, vector<256x16xf32>
    %cst_53 = arith.constant dense<0.000000e+00> : vector<1x16xf32>
    %70 = tpu.matmul %68, %69, %cst_53 {dimension_numbers = #tpu.dot_dimension_numbers<[1], [0], [0], [1], [0, 0, 1, 1], [], []>} : vector<1x256xf32>, vector<256x16xf32>, vector<1x16xf32> -> vector<1x16xf32>
    %c0_54 = arith.constant 0 : index
    %c0_55 = arith.constant 0 : index
    %71 = vector.load %arg17[%c0_54, %c0_55] : memref<16x16xf32, #tpu.memory_space<vmem>>, vector<16x16xf32>
    %cst_56 = arith.constant dense<0.000000e+00> : vector<1x16xf32>
    %72 = tpu.matmul %70, %71, %cst_56 {dimension_numbers = #tpu.dot_dimension_numbers<[1], [0], [0], [1], [0, 0, 1, 1], [], []>} : vector<1x16xf32>, vector<16x16xf32>, vector<1x16xf32> -> vector<1x16xf32>
    %c0_57 = arith.constant 0 : index
    %c0_58 = arith.constant 0 : index
    %73 = vector.load %arg18[%c0_57, %c0_58] : memref<1x16xf32, #tpu.memory_space<vmem>>, vector<1x16xf32>
    %74 = arith.addf %72, %73 : vector<1x16xf32>
    %c0_59 = arith.constant 0 : index
    %c0_60 = arith.constant 0 : index
    %75 = vector.load %arg10[%c0_59, %c0_60] : memref<16x256xf32, #tpu.memory_space<vmem>>, vector<16x256xf32>
    %cst_61 = arith.constant dense<0.000000e+00> : vector<1x256xf32>
    %76 = tpu.matmul %74, %75, %cst_61 {dimension_numbers = #tpu.dot_dimension_numbers<[1], [0], [0], [1], [0, 0, 1, 1], [], []>} : vector<1x16xf32>, vector<16x256xf32>, vector<1x256xf32> -> vector<1x256xf32>
    %77 = vector.broadcast %76 : vector<1x256xf32> to vector<16x256xf32>
    %78 = arith.mulf %64, %77 : vector<16x256xf32>
    %c0_62 = arith.constant 0 : index
    %c0_63 = arith.constant 0 : index
    %79 = vector.load %arg19[%c0_62, %c0_63] : memref<256x256xf32, #tpu.memory_space<vmem>>, vector<256x256xf32>
    %cst_64 = arith.constant dense<0.000000e+00> : vector<16x256xf32>
    %80 = tpu.matmul %78, %79, %cst_64 {dimension_numbers = #tpu.dot_dimension_numbers<[1], [0], [0], [1], [0, 0, 1, 1], [], []>} : vector<16x256xf32>, vector<256x256xf32>, vector<16x256xf32> -> vector<16x256xf32>
    %c0_65 = arith.constant 0 : index
    %c0_66 = arith.constant 0 : index
    %81 = vector.load %arg20[%c0_65, %c0_66] : memref<1x256xf32, #tpu.memory_space<vmem>>, vector<1x256xf32>
    %82 = vector.broadcast %81 : vector<1x256xf32> to vector<16x256xf32>
    %83 = arith.addf %80, %82 : vector<16x256xf32>
    %c0_67 = arith.constant 0 : index
    %c0_68 = arith.constant 0 : index
    %84 = vector.load %arg27[%c0_67, %c0_68] : memref<1x256xf32, #tpu.memory_space<vmem>>, vector<1x256xf32>
    %85 = vector.broadcast %84 : vector<1x256xf32> to vector<16x256xf32>
    %86 = arith.mulf %83, %85 : vector<16x256xf32>
    %87 = arith.addf %20, %86 : vector<16x256xf32>
    %c0_69 = arith.constant 0 : index
    %c0_70 = arith.constant 0 : index
    %88 = vector.load %arg21[%c0_69, %c0_70] : memref<1x256xf32, #tpu.memory_space<vmem>>, vector<1x256xf32>
    %c0_71 = arith.constant 0 : index
    %c0_72 = arith.constant 0 : index
    %89 = vector.load %arg22[%c0_71, %c0_72] : memref<1x256xf32, #tpu.memory_space<vmem>>, vector<1x256xf32>
    %c0_73 = arith.constant 0 : index
    %c0_74 = arith.constant 0 : index
    %90 = vector.load %arg6[%c0_73, %c0_74] : memref<256x256xf32, #tpu.memory_space<vmem>>, vector<256x256xf32>
    %cst_75 = arith.constant dense<0.000000e+00> : vector<16x256xf32>
    %91 = tpu.matmul %87, %90, %cst_75 {dimension_numbers = #tpu.dot_dimension_numbers<[1], [0], [0], [1], [0, 0, 1, 1], [], []>} : vector<16x256xf32>, vector<256x256xf32>, vector<16x256xf32> -> vector<16x256xf32>
    %92 = arith.subf %87, %91 : vector<16x256xf32>
    %93 = arith.mulf %92, %92 : vector<16x256xf32>
    %cst_76 = arith.constant dense<0.000000e+00> : vector<16x256xf32>
    %94 = tpu.matmul %93, %90, %cst_76 {dimension_numbers = #tpu.dot_dimension_numbers<[1], [0], [0], [1], [0, 0, 1, 1], [], []>} : vector<16x256xf32>, vector<256x256xf32>, vector<16x256xf32> -> vector<16x256xf32>
    %cst_77 = arith.constant 9.99999997E-7 : f32
    %95 = vector.broadcast %cst_77 : f32 to vector<16x256xf32>
    %96 = arith.addf %94, %95 : vector<16x256xf32>
    %97 = math.rsqrt %96 : vector<16x256xf32>
    %98 = arith.mulf %92, %97 : vector<16x256xf32>
    %99 = vector.broadcast %88 : vector<1x256xf32> to vector<16x256xf32>
    %100 = arith.mulf %98, %99 : vector<16x256xf32>
    %101 = vector.broadcast %89 : vector<1x256xf32> to vector<16x256xf32>
    %102 = arith.addf %100, %101 : vector<16x256xf32>
    %c0_78 = arith.constant 0 : index
    %c0_79 = arith.constant 0 : index
    %103 = vector.load %arg23[%c0_78, %c0_79] : memref<256x512xf32, #tpu.memory_space<vmem>>, vector<256x512xf32>
    %cst_80 = arith.constant dense<0.000000e+00> : vector<16x512xf32>
    %104 = tpu.matmul %102, %103, %cst_80 {dimension_numbers = #tpu.dot_dimension_numbers<[1], [0], [0], [1], [0, 0, 1, 1], [], []>} : vector<16x256xf32>, vector<256x512xf32>, vector<16x512xf32> -> vector<16x512xf32>
    %c0_81 = arith.constant 0 : index
    %c0_82 = arith.constant 0 : index
    %105 = vector.load %arg24[%c0_81, %c0_82] : memref<1x512xf32, #tpu.memory_space<vmem>>, vector<1x512xf32>
    %106 = vector.broadcast %105 : vector<1x512xf32> to vector<16x512xf32>
    %107 = arith.addf %104, %106 : vector<16x512xf32>
    %c0_83 = arith.constant 0 : index
    %c0_84 = arith.constant 0 : index
    %108 = vector.load %arg7[%c0_83, %c0_84] : memref<512x256xf32, #tpu.memory_space<vmem>>, vector<512x256xf32>
    %cst_85 = arith.constant dense<0.000000e+00> : vector<16x256xf32>
    %109 = tpu.matmul %107, %108, %cst_85 {dimension_numbers = #tpu.dot_dimension_numbers<[1], [0], [0], [1], [0, 0, 1, 1], [], []>} : vector<16x512xf32>, vector<512x256xf32>, vector<16x256xf32> -> vector<16x256xf32>
    %c0_86 = arith.constant 0 : index
    %c0_87 = arith.constant 0 : index
    %110 = vector.load %arg8[%c0_86, %c0_87] : memref<512x256xf32, #tpu.memory_space<vmem>>, vector<512x256xf32>
    %cst_88 = arith.constant dense<0.000000e+00> : vector<16x256xf32>
    %111 = tpu.matmul %107, %110, %cst_88 {dimension_numbers = #tpu.dot_dimension_numbers<[1], [0], [0], [1], [0, 0, 1, 1], [], []>} : vector<16x512xf32>, vector<512x256xf32>, vector<16x256xf32> -> vector<16x256xf32>
    %112 = arith.mulf %109, %111 : vector<16x256xf32>
    %c0_89 = arith.constant 0 : index
    %c0_90 = arith.constant 0 : index
    %113 = vector.load %arg25[%c0_89, %c0_90] : memref<256x256xf32, #tpu.memory_space<vmem>>, vector<256x256xf32>
    %cst_91 = arith.constant dense<0.000000e+00> : vector<16x256xf32>
    %114 = tpu.matmul %112, %113, %cst_91 {dimension_numbers = #tpu.dot_dimension_numbers<[1], [0], [0], [1], [0, 0, 1, 1], [], []>} : vector<16x256xf32>, vector<256x256xf32>, vector<16x256xf32> -> vector<16x256xf32>
    %c0_92 = arith.constant 0 : index
    %c0_93 = arith.constant 0 : index
    %115 = vector.load %arg26[%c0_92, %c0_93] : memref<1x256xf32, #tpu.memory_space<vmem>>, vector<1x256xf32>
    %116 = vector.broadcast %115 : vector<1x256xf32> to vector<16x256xf32>
    %117 = arith.addf %114, %116 : vector<16x256xf32>
    %c0_94 = arith.constant 0 : index
    %c0_95 = arith.constant 0 : index
    %118 = vector.load %arg28[%c0_94, %c0_95] : memref<1x256xf32, #tpu.memory_space<vmem>>, vector<1x256xf32>
    %119 = vector.broadcast %118 : vector<1x256xf32> to vector<16x256xf32>
    %120 = arith.mulf %117, %119 : vector<16x256xf32>
    %121 = arith.addf %87, %120 : vector<16x256xf32>
    %cst_96 = arith.constant 0.000000e+00 : f32
    %122 = vector.broadcast %cst_96 : f32 to vector<1x256xf32>
    %123 = tpu.concatenate %122, %121, %122 in 0 : vector<1x256xf32>, vector<16x256xf32>, vector<1x256xf32> -> vector<18x256xf32>
    %124 = vector.extract_strided_slice %123 {offsets = [0, 0], sizes = [16, 256], strides = [1, 1]} : vector<18x256xf32> to vector<16x256xf32>
    %c0_97 = arith.constant 0 : index
    %c0_98 = arith.constant 0 : index
    %c0_99 = arith.constant 0 : index
    %125 = vector.load %arg4[%c0_97, %c0_98, %c0_99] : memref<3x256x48xf32, #tpu.memory_space<vmem>>, vector<1x256x48xf32>
    %126 = vector.shape_cast %125 : vector<1x256x48xf32> to vector<256x48xf32>
    %cst_100 = arith.constant dense<0.000000e+00> : vector<16x48xf32>
    %127 = tpu.matmul %124, %126, %cst_100 {dimension_numbers = #tpu.dot_dimension_numbers<[1], [0], [0], [1], [0, 0, 1, 1], [], []>} : vector<16x256xf32>, vector<256x48xf32>, vector<16x48xf32> -> vector<16x48xf32>
    %128 = vector.extract_strided_slice %123 {offsets = [1, 0], sizes = [16, 256], strides = [1, 1]} : vector<18x256xf32> to vector<16x256xf32>
    %c1_101 = arith.constant 1 : index
    %c0_102 = arith.constant 0 : index
    %c0_103 = arith.constant 0 : index
    %129 = vector.load %arg4[%c1_101, %c0_102, %c0_103] : memref<3x256x48xf32, #tpu.memory_space<vmem>>, vector<1x256x48xf32>
    %130 = vector.shape_cast %129 : vector<1x256x48xf32> to vector<256x48xf32>
    %cst_104 = arith.constant dense<0.000000e+00> : vector<16x48xf32>
    %131 = tpu.matmul %128, %130, %cst_104 {dimension_numbers = #tpu.dot_dimension_numbers<[1], [0], [0], [1], [0, 0, 1, 1], [], []>} : vector<16x256xf32>, vector<256x48xf32>, vector<16x48xf32> -> vector<16x48xf32>
    %132 = arith.addf %127, %131 : vector<16x48xf32>
    %133 = vector.extract_strided_slice %123 {offsets = [2, 0], sizes = [16, 256], strides = [1, 1]} : vector<18x256xf32> to vector<16x256xf32>
    %c2_105 = arith.constant 2 : index
    %c0_106 = arith.constant 0 : index
    %c0_107 = arith.constant 0 : index
    %134 = vector.load %arg4[%c2_105, %c0_106, %c0_107] : memref<3x256x48xf32, #tpu.memory_space<vmem>>, vector<1x256x48xf32>
    %135 = vector.shape_cast %134 : vector<1x256x48xf32> to vector<256x48xf32>
    %cst_108 = arith.constant dense<0.000000e+00> : vector<16x48xf32>
    %136 = tpu.matmul %133, %135, %cst_108 {dimension_numbers = #tpu.dot_dimension_numbers<[1], [0], [0], [1], [0, 0, 1, 1], [], []>} : vector<16x256xf32>, vector<256x48xf32>, vector<16x48xf32> -> vector<16x48xf32>
    %137 = arith.addf %132, %136 : vector<16x48xf32>
    %c0_109 = arith.constant 0 : index
    %c0_110 = arith.constant 0 : index
    %138 = vector.load %arg5[%c0_109, %c0_110] : memref<1x48xf32, #tpu.memory_space<vmem>>, vector<1x48xf32>
    %139 = vector.broadcast %138 : vector<1x48xf32> to vector<16x48xf32>
    %140 = arith.addf %137, %139 : vector<16x48xf32>
    %141 = arith.addf %140, %1 : vector<16x48xf32>
    %c0_111 = arith.constant 0 : index
    %c0_112 = arith.constant 0 : index
    %c0_113 = arith.constant 0 : index
    %142 = vector.load %arg29[%c0_111, %c0_112, %c0_113] : memref<1x16x48xf32, #tpu.memory_space<vmem>>, vector<1x16x48xf32>
    %143 = vector.shape_cast %142 : vector<1x16x48xf32> to vector<16x48xf32>
    %144 = vector.shape_cast %141 : vector<16x48xf32> to vector<1x16x48xf32>
    tpu.vector_store %arg29[%c0_111, %c0_112, %c0_113], %144 {strides = array<i32>} : memref<1x16x48xf32, #tpu.memory_space<vmem>>, vector<1x16x48xf32>,
    return
  }
  func.func @transform_0(%arg0: i32) -> (i32, i32, i32) {
    %c0_i32 = arith.constant 0 : i32
    %c0_i32_0 = arith.constant 0 : i32
    %c0_i32_1 = arith.constant 0 : i32
    return %arg0, %c0_i32, %c0_i32_0 : i32, i32, i32
  }
  func.func @transform_1(%arg0: i32) -> (i32, i32, i32) {
    %c0_i32 = arith.constant 0 : i32
    %c0_i32_0 = arith.constant 0 : i32
    %c0_i32_1 = arith.constant 0 : i32
    %c0_i32_2 = arith.constant 0 : i32
    return %c0_i32, %c0_i32_0, %c0_i32_1 : i32, i32, i32
  }
  func.func @transform_2(%arg0: i32) -> (i32, i32) {
    %c0_i32 = arith.constant 0 : i32
    %c0_i32_0 = arith.constant 0 : i32
    %c0_i32_1 = arith.constant 0 : i32
    return %c0_i32, %c0_i32_0 : i32, i32
  }
  func.func @transform_3(%arg0: i32) -> (i32, i32, i32) {
    %c0_i32 = arith.constant 0 : i32
    %c0_i32_0 = arith.constant 0 : i32
    %c0_i32_1 = arith.constant 0 : i32
    %c0_i32_2 = arith.constant 0 : i32
    return %c0_i32, %c0_i32_0, %c0_i32_1 : i32, i32, i32
  }
  func.func @transform_4(%arg0: i32) -> (i32, i32) {
    %c0_i32 = arith.constant 0 : i32
    %c0_i32_0 = arith.constant 0 : i32
    %c0_i32_1 = arith.constant 0 : i32
    return %c0_i32, %c0_i32_0 : i32, i32
  }
  func.func @transform_5(%arg0: i32) -> (i32, i32) {
    %c0_i32 = arith.constant 0 : i32
    %c0_i32_0 = arith.constant 0 : i32
    %c0_i32_1 = arith.constant 0 : i32
    return %c0_i32, %c0_i32_0 : i32, i32
  }
  func.func @transform_6(%arg0: i32) -> (i32, i32) {
    %c0_i32 = arith.constant 0 : i32
    %c0_i32_0 = arith.constant 0 : i32
    %c0_i32_1 = arith.constant 0 : i32
    return %c0_i32, %c0_i32_0 : i32, i32
  }
  func.func @transform_7(%arg0: i32) -> (i32, i32) {
    %c0_i32 = arith.constant 0 : i32
    %c0_i32_0 = arith.constant 0 : i32
    %c0_i32_1 = arith.constant 0 : i32
    return %c0_i32, %c0_i32_0 : i32, i32
  }
  func.func @transform_8(%arg0: i32) -> (i32, i32) {
    %c0_i32 = arith.constant 0 : i32
    %c0_i32_0 = arith.constant 0 : i32
    %c0_i32_1 = arith.constant 0 : i32
    return %c0_i32, %c0_i32_0 : i32, i32
  }
  func.func @transform_9(%arg0: i32) -> (i32, i32) {
    %c0_i32 = arith.constant 0 : i32
    %c0_i32_0 = arith.constant 0 : i32
    %c0_i32_1 = arith.constant 0 : i32
    return %c0_i32, %c0_i32_0 : i32, i32
  }
  func.func @transform_10(%arg0: i32) -> (i32, i32) {
    %c0_i32 = arith.constant 0 : i32
    %c0_i32_0 = arith.constant 0 : i32
    %c0_i32_1 = arith.constant 0 : i32
    return %c0_i32, %c0_i32_0 : i32, i32
  }
  func.func @transform_11(%arg0: i32) -> (i32, i32) {
    %c0_i32 = arith.constant 0 : i32
    %c0_i32_0 = arith.constant 0 : i32
    %c0_i32_1 = arith.constant 0 : i32
    return %c0_i32, %c0_i32_0 : i32, i32
  }
  func.func @transform_12(%arg0: i32) -> (i32, i32, i32) {
    %c0_i32 = arith.constant 0 : i32
    %c0_i32_0 = arith.constant 0 : i32
    %c0_i32_1 = arith.constant 0 : i32
    %c0_i32_2 = arith.constant 0 : i32
    return %c0_i32, %c0_i32_0, %c0_i32_1 : i32, i32, i32
  }
  func.func @transform_13(%arg0: i32) -> (i32, i32) {
    %c0_i32 = arith.constant 0 : i32
    %c0_i32_0 = arith.constant 0 : i32
    %c0_i32_1 = arith.constant 0 : i32
    return %c0_i32, %c0_i32_0 : i32, i32
  }
  func.func @transform_14(%arg0: i32) -> (i32, i32) {
    %c0_i32 = arith.constant 0 : i32
    %c0_i32_0 = arith.constant 0 : i32
    %c0_i32_1 = arith.constant 0 : i32
    return %c0_i32, %c0_i32_0 : i32, i32
  }
  func.func @transform_15(%arg0: i32) -> (i32, i32) {
    %c0_i32 = arith.constant 0 : i32
    %c0_i32_0 = arith.constant 0 : i32
    %c0_i32_1 = arith.constant 0 : i32
    return %c0_i32, %c0_i32_0 : i32, i32
  }
  func.func @transform_16(%arg0: i32) -> (i32, i32) {
    %c0_i32 = arith.constant 0 : i32
    %c0_i32_0 = arith.constant 0 : i32
    %c0_i32_1 = arith.constant 0 : i32
    return %c0_i32, %c0_i32_0 : i32, i32
  }
  func.func @transform_17(%arg0: i32) -> (i32, i32) {
    %c0_i32 = arith.constant 0 : i32
    %c0_i32_0 = arith.constant 0 : i32
    %c0_i32_1 = arith.constant 0 : i32
    return %c0_i32, %c0_i32_0 : i32, i32
  }
  func.func @transform_18(%arg0: i32) -> (i32, i32) {
    %c0_i32 = arith.constant 0 : i32
    %c0_i32_0 = arith.constant 0 : i32
    %c0_i32_1 = arith.constant 0 : i32
    return %c0_i32, %c0_i32_0 : i32, i32
  }
  func.func @transform_19(%arg0: i32) -> (i32, i32) {
    %c0_i32 = arith.constant 0 : i32
    %c0_i32_0 = arith.constant 0 : i32
    %c0_i32_1 = arith.constant 0 : i32
    return %c0_i32, %c0_i32_0 : i32, i32
  }
  func.func @transform_20(%arg0: i32) -> (i32, i32) {
    %c0_i32 = arith.constant 0 : i32
    %c0_i32_0 = arith.constant 0 : i32
    %c0_i32_1 = arith.constant 0 : i32
    return %c0_i32, %c0_i32_0 : i32, i32
  }
  func.func @transform_21(%arg0: i32) -> (i32, i32) {
    %c0_i32 = arith.constant 0 : i32
    %c0_i32_0 = arith.constant 0 : i32
    %c0_i32_1 = arith.constant 0 : i32
    return %c0_i32, %c0_i32_0 : i32, i32
  }
  func.func @transform_22(%arg0: i32) -> (i32, i32) {
    %c0_i32 = arith.constant 0 : i32
    %c0_i32_0 = arith.constant 0 : i32
    %c0_i32_1 = arith.constant 0 : i32
    return %c0_i32, %c0_i32_0 : i32, i32
  }
  func.func @transform_23(%arg0: i32) -> (i32, i32) {
    %c0_i32 = arith.constant 0 : i32
    %c0_i32_0 = arith.constant 0 : i32
    %c0_i32_1 = arith.constant 0 : i32
    return %c0_i32, %c0_i32_0 : i32, i32
  }
  func.func @transform_24(%arg0: i32) -> (i32, i32) {
    %c0_i32 = arith.constant 0 : i32
    %c0_i32_0 = arith.constant 0 : i32
    %c0_i32_1 = arith.constant 0 : i32
    return %c0_i32, %c0_i32_0 : i32, i32
  }
  func.func @transform_25(%arg0: i32) -> (i32, i32) {
    %c0_i32 = arith.constant 0 : i32
    %c0_i32_0 = arith.constant 0 : i32
    %c0_i32_1 = arith.constant 0 : i32
    return %c0_i32, %c0_i32_0 : i32, i32
  }
  func.func @transform_26(%arg0: i32) -> (i32, i32) {
    %c0_i32 = arith.constant 0 : i32
    %c0_i32_0 = arith.constant 0 : i32
    %c0_i32_1 = arith.constant 0 : i32
    return %c0_i32, %c0_i32_0 : i32, i32
  }
  func.func @transform_27(%arg0: i32) -> (i32, i32) {
    %c0_i32 = arith.constant 0 : i32
    %c0_i32_0 = arith.constant 0 : i32
    %c0_i32_1 = arith.constant 0 : i32
    return %c0_i32, %c0_i32_0 : i32, i32
  }
  func.func @transform_28(%arg0: i32) -> (i32, i32, i32) {
    %c0_i32 = arith.constant 0 : i32
    %c0_i32_0 = arith.constant 0 : i32
    %c0_i32_1 = arith.constant 0 : i32
    return %arg0, %c0_i32, %c0_i32_0 : i32, i32, i32
  }
}

</mosaic_0001>

<llo_original>
// kernel: nafnet_forward.1
$region0: #{nafnet_forward.1}
  #allocation0 [shape = 'u32[]', space=smem, size = 0x4, offset = 0x4, fixed_abs, tag = 'smem constant byte address 0x4 - core index']
  #allocation1 [shape = 'u32[144,128]{1,0:T(1,128)}', space=vmem, size = 0x12000, scoped, tag = 'internal scratch']
  %s0 = inlined_call_operand.vmem [shape: f32[2,16,48], index: 0, kind: input, shape index: {}]
  %s1 = inlined_call_operand.hbm [shape: f32[3,48,256], index: 1, kind: input, shape index: {}]
  %s2 = inlined_call_operand.hbm [shape: f32[1,256], index: 2, kind: input, shape index: {}]
  %s3 = inlined_call_operand.vmem [shape: f32[3,256,48], index: 3, kind: input, shape index: {}]
  %s4 = inlined_call_operand.hbm [shape: f32[1,48], index: 4, kind: input, shape index: {}]
  %s5 = inlined_call_operand.hbm [shape: f32[256,256], index: 5, kind: input, shape index: {}]
  %s6 = inlined_call_operand.hbm [shape: f32[512,256], index: 6, kind: input, shape index: {}]
  %s7 = inlined_call_operand.hbm [shape: f32[512,256], index: 7, kind: input, shape index: {}]
  %s8 = inlined_call_operand.vmem [shape: f32[256,16], index: 8, kind: input, shape index: {}]
  %s9 = inlined_call_operand.hbm [shape: f32[16,256], index: 9, kind: input, shape index: {}]
  %s10 = inlined_call_operand.hbm [shape: f32[256,512], index: 10, kind: input, shape index: {}]
  %s11 = inlined_call_operand.hbm [shape: f32[1,512], index: 11, kind: input, shape index: {}]
  %s12 = inlined_call_operand.hbm [shape: f32[3,512,512], index: 12, kind: input, shape index: {}]
  %s13 = inlined_call_operand.hbm [shape: f32[1,512], index: 13, kind: input, shape index: {}]
  %s14 = inlined_call_operand.hbm [shape: f32[1,256], index: 14, kind: input, shape index: {}]
  %s15 = inlined_call_operand.hbm [shape: f32[1,256], index: 15, kind: input, shape index: {}]
  %s16 = inlined_call_operand.hbm [shape: f32[16,16], index: 16, kind: input, shape index: {}]
  %s17 = inlined_call_operand.hbm [shape: f32[1,16], index: 17, kind: input, shape index: {}]
  %s18 = inlined_call_operand.hbm [shape: f32[256,256], index: 18, kind: input, shape index: {}]
  %s19 = inlined_call_operand.hbm [shape: f32[1,256], index: 19, kind: input, shape index: {}]
  %s20 = inlined_call_operand.hbm [shape: f32[1,256], index: 20, kind: input, shape index: {}]
  %s21 = inlined_call_operand.hbm [shape: f32[1,256], index: 21, kind: input, shape index: {}]
  %s22 = inlined_call_operand.hbm [shape: f32[256,512], index: 22, kind: input, shape index: {}]
  %s23 = inlined_call_operand.hbm [shape: f32[1,512], index: 23, kind: input, shape index: {}]
  %s24 = inlined_call_operand.hbm [shape: f32[256,256], index: 24, kind: input, shape index: {}]
  %s25 = inlined_call_operand.hbm [shape: f32[1,256], index: 25, kind: input, shape index: {}]
  %s26 = inlined_call_operand.hbm [shape: f32[1,256], index: 26, kind: input, shape index: {}]
  %s27 = inlined_call_operand.hbm [shape: f32[1,256], index: 27, kind: input, shape index: {}]
  %s28 = inlined_call_operand.vmem [shape: f32[2,16,48], index: 28, kind: output, shape index: {}]
  %s29 = sld [smem:[#allocation0]]
  $region245: #{nafnet_forward.1} parent=0
    _
  %s31 = ssub.s32 1, %s29
  %s32 = scalar_select 0, %s31, %s29
  $region1: #{nafnet_forward.1} parent=0
    #allocation2 [shape = 'u8[147456]{0}', space=vmem, size = 0x24000, scoped, tag = 'input window, operand 1, single buffered']
    #allocation3 [shape = 's32[2]{0}', space=sflag, size = 0x8, scoped, tag = 'scoped memory for nafnet_forward.1']
    #allocation4 [shape = 'u8[1024]{0}', space=vmem, size = 0x400, scoped, tag = 'input window, operand 2, single buffered']
    #allocation5 [shape = 's32[1]{0}', space=sflag, size = 0x4, scoped, tag = 'scoped memory for nafnet_forward.1']
    #allocation6 [shape = 'u8[512]{0}', space=vmem, size = 0x400, scoped, tag = 'input window, operand 4, single buffered']
    #allocation7 [shape = 'u8[262144]{0}', space=vmem, size = 0x40000, scoped, tag = 'input window, operand 5, single buffered']
    #allocation8 [shape = 's32[1]{0}', space=sflag, size = 0x4, scoped, tag = 'scoped memory for nafnet_forward.1']
    #allocation9 [shape = 'u8[524288]{0}', space=vmem, size = 0x80000, scoped, tag = 'input window, operand 6, single buffered']
    #allocation10 [shape = 'u8[524288]{0}', space=vmem, size = 0x80000, scoped, tag = 'input window, operand 7, single buffered']
    #allocation11 [shape = 's32[1]{0}', space=sflag, size = 0x4, scoped, tag = 'scoped memory for nafnet_forward.1']
    #allocation12 [shape = 'u8[16384]{0}', space=vmem, size = 0x4000, scoped, tag = 'input window, operand 9, single buffered']
    #allocation13 [shape = 'u8[524288]{0}', space=vmem, size = 0x80000, scoped, tag = 'input window, operand 10, single buffered']
    #allocation14 [shape = 's32[1]{0}', space=sflag, size = 0x4, scoped, tag = 'scoped memory for nafnet_forward.1']
    #allocation15 [shape = 'u8[2048]{0}', space=vmem, size = 0x800, scoped, tag = 'input window, operand 11, single buffered']
    #allocation16 [shape = 'u8[3145728]{0}', space=vmem, size = 0x300000, scoped, tag = 'input window, operand 12, single buffered']
    #allocation17 [shape = 's32[1]{0}', space=sflag, size = 0x4, scoped, tag = 'scoped memory for nafnet_forward.1']
    #allocation18 [shape = 'u8[2048]{0}', space=vmem, size = 0x800, scoped, tag = 'input window, operand 13, single buffered']
    #allocation19 [shape = 'u8[1024]{0}', space=vmem, size = 0x400, scoped, tag = 'input window, operand 14, single buffered']
    #allocation20 [shape = 's32[1]{0}', space=sflag, size = 0x4, scoped, tag = 'scoped memory for nafnet_forward.1']
    #allocation21 [shape = 'u8[1024]{0}', space=vmem, size = 0x400, scoped, tag = 'input window, operand 15, single buffered']
    #allocation22 [shape = 'u8[8192]{0}', space=vmem, size = 0x2000, scoped, tag = 'input window, operand 16, single buffered']
    #allocation23 [shape = 's32[1]{0}', space=sflag, size = 0x4, scoped, tag = 'scoped memory for nafnet_forward.1']
    #allocation24 [shape = 'u8[512]{0}', space=vmem, size = 0x400, scoped, tag = 'input window, operand 17, single buffered']
    #allocation25 [shape = 'u8[262144]{0}', space=vmem, size = 0x40000, scoped, tag = 'input window, operand 18, single buffered']
    #allocation26 [shape = 's32[1]{0}', space=sflag, size = 0x4, scoped, tag = 'scoped memory for nafnet_forward.1']
    #allocation27 [shape = 'u8[1024]{0}', space=vmem, size = 0x400, scoped, tag = 'input window, operand 19, single buffered']
    #allocation28 [shape = 'u8[1024]{0}', space=vmem, size = 0x400, scoped, tag = 'input window, operand 20, single buffered']
    #allocation29 [shape = 's32[1]{0}', space=sflag, size = 0x4, scoped, tag = 'scoped memory for nafnet_forward.1']
    #allocation30 [shape = 'u8[1024]{0}', space=vmem, size = 0x400, scoped, tag = 'input window, operand 21, single buffered']
    #allocation31 [shape = 'u8[524288]{0}', space=vmem, size = 0x80000, scoped, tag = 'input window, operand 22, single buffered']
    #allocation32 [shape = 's32[1]{0}', space=sflag, size = 0x4, scoped, tag = 'scoped memory for nafnet_forward.1']
    #allocation33 [shape = 'u8[2048]{0}', space=vmem, size = 0x800, scoped, tag = 'input window, operand 23, single buffered']
    #allocation34 [shape = 'u8[262144]{0}', space=vmem, size = 0x40000, scoped, tag = 'input window, operand 24, single buffered']
    #allocation35 [shape = 's32[1]{0}', space=sflag, size = 0x4, scoped, tag = 'scoped memory for nafnet_forward.1']
    #allocation36 [shape = 'u8[1024]{0}', space=vmem, size = 0x400, scoped, tag = 'input window, operand 25, single buffered']
    #allocation37 [shape = 'u8[1024]{0}', space=vmem, size = 0x400, scoped, tag = 'input window, operand 26, single buffered']
    #allocation38 [shape = 's32[1]{0}', space=sflag, size = 0x4, scoped, tag = 'scoped memory for nafnet_forward.1']
    #allocation39 [shape = 'u8[1024]{0}', space=vmem, size = 0x400, scoped, tag = 'input window, operand 27, single buffered']
    %33 = vsyncpa [#allocation3], 0
    %34 = vsyncpa [#allocation5], 0
    %35 = vsyncpa [#allocation8], 0
    %36 = vsyncpa [#allocation11], 0
    %37 = vsyncpa [#allocation14], 0
    %38 = vsyncpa [#allocation17], 0
    %39 = vsyncpa [#allocation20], 0
    %40 = vsyncpa [#allocation23], 0
    %41 = vsyncpa [#allocation26], 0
    %42 = vsyncpa [#allocation29], 0
    %43 = vsyncpa [#allocation32], 0
    %44 = vsyncpa [#allocation35], 0
    %45 = vsyncpa [#allocation38], 0
    loop: start=0, step=1, limit=4
    $region2: #{nafnet_forward.1} parent=1 // loop_pre_header
      _
    $region3: #{nafnet_forward.1} parent=1 // loop_header
      %s47 = sphi 0, %s51
      %p48 = scmp.ge.s32.totalorder %s47, 4
      %s57 = sphi 0, %s59
      %s60 = sphi 0, %s57
      %s61 = sphi 0, %s60
      %s77 = sphi 0, %s61
      %s81 = sphi 0, %s81
      %s83 = sphi 0, %s81
      %s84 = sphi 0, %s83
      %s98 = sphi 0, %s84
      %s102 = sphi 0, %s102
      %s104 = sphi 0, %s102
      %s105 = sphi 0, %s104
      %s119 = sphi 0, %s105
      %s123 = sphi 0, %s123
      %s125 = sphi 0, %s123
      %s126 = sphi 0, %s125
      %s140 = sphi 0, %s126
      %s144 = sphi 0, %s144
      %s146 = sphi 0, %s144
      %s147 = sphi 0, %s146
      %s161 = sphi 0, %s147
      %s165 = sphi 0, %s165
      %s167 = sphi 0, %s165
      %s168 = sphi 0, %s167
      %s182 = sphi 0, %s168
      %s186 = sphi 0, %s186
      %s188 = sphi 0, %s186
      %s189 = sphi 0, %s188
      %s203 = sphi 0, %s189
      %s207 = sphi 0, %s207
      %s209 = sphi 0, %s207
      %s210 = sphi 0, %s209
      %s224 = sphi 0, %s210
      %s228 = sphi 0, %s228
      %s230 = sphi 0, %s228
      %s231 = sphi 0, %s230
      %s245 = sphi 0, %s231
      %s249 = sphi 0, %s249
      %s251 = sphi 0, %s249
      %s252 = sphi 0, %s251
      %s266 = sphi 0, %s252
      %s270 = sphi 0, %s270
      %s272 = sphi 0, %s270
      %s273 = sphi 0, %s272
      %s287 = sphi 0, %s273
      %s291 = sphi 0, %s291
      %s293 = sphi 0, %s291
      %s294 = sphi 0, %s293
      %s308 = sphi 0, %s294
      %s312 = sphi 0, %s312
      %s314 = sphi 0, %s312
      %s315 = sphi 0, %s314
      %s329 = sphi 0, %s315
      %s333 = sphi 0, %s333
      %s335 = sphi 0, %s333
      %s336 = sphi 0, %s335
      %s350 = sphi 0, %s336
      %s354 = sphi 0, %s354
      %s356 = sphi 0, %s354
      %s357 = sphi 0, %s356
      %s371 = sphi 0, %s357
      %s375 = sphi 0, %s375
      %s377 = sphi 0, %s375
      %s378 = sphi 0, %s377
      %s392 = sphi 0, %s378
      %s396 = sphi 0, %s396
      %s398 = sphi 0, %s396
      %s399 = sphi 0, %s398
      %s413 = sphi 0, %s399
      %s417 = sphi 0, %s417
      %s419 = sphi 0, %s417
      %s420 = sphi 0, %s419
      %s434 = sphi 0, %s420
      %s438 = sphi 0, %s438
      %s440 = sphi 0, %s438
      %s441 = sphi 0, %s440
      %s455 = sphi 0, %s441
      %s459 = sphi 0, %s459
      %s461 = sphi 0, %s459
      %s462 = sphi 0, %s461
      %s476 = sphi 0, %s462
      %s480 = sphi 0, %s480
      %s482 = sphi 0, %s480
      %s483 = sphi 0, %s482
      %s497 = sphi 0, %s483
      %s501 = sphi 0, %s501
      %s503 = sphi 0, %s501
      %s504 = sphi 0, %s503
      %s518 = sphi 0, %s504
      %s522 = sphi 0, %s522
      %s524 = sphi 0, %s522
      %s525 = sphi 0, %s524
      %s539 = sphi 0, %s525
      %s543 = sphi 0, %s543
      %s545 = sphi 0, %s543
      %s546 = sphi 0, %s545
      %s560 = sphi 0, %s546
      %s564 = sphi 0, %s564
      %s566 = sphi 0, %s564
      %s567 = sphi 0, %s566
      %s581 = sphi 0, %s567
      %s585 = sphi 0, %s585
      %s587 = sphi 0, %s585
      %s588 = sphi 0, %s587
      %s602 = sphi 0, %s588
      %s606 = sphi 0, %s606
      %s608 = sphi 0, %s606
      %s609 = sphi 0, %s608
      %s623 = sphi 0, %s609
      %s627 = sphi 0, %s627
      %s629 = sphi 0, %s627
      %s630 = sphi 0, %s629
      %s644 = sphi 0, %s630
      %s650 = sphi 0, %s652
      %s653 = sphi 0, %s650
      %s654 = sphi 0, %s653
      %s670 = sphi 0, %s654
    $region4: #{nafnet_forward.1} parent=1 // loop_header_branch
      %50 = sbr.rel (%p48) target = $region8
    $region5: #{nafnet_forward.1} parent=1 // loop_body
      %s52 = ssub.s32 %s47, 1
      %s53 = ssub.s32 %s47, 2
      %s54 = sadd.s32 %s47, 1
      %s55 = ssub.s32 %s47, %s54
      %p56 = scmp.eq.s32.totalorder %s55, 0
      %s58 = sadd.s32 %s57, 1
      %s59 = scalar_select %p56, %s57, %s58
      %p62 = pneg %p56
      %p63 = scmp.eq.s32.totalorder %s47, 1
      %p64 = por %p62, %p63
      %p65 = scmp.ne.s32.totalorder %s57, %s60
      %p66 = scmp.eq.s32.totalorder %s47, 0
      %p67 = por %p65, %p66
      %p68 = scmp.ne.s32.totalorder %s57, %s60
      %p69 = scmp.eq.s32.totalorder %s52, 1
      %p70 = por %p68, %p69
      %p71 = scmp.ne.s32.totalorder %s60, %s61
      %p72 = scmp.eq.s32.totalorder %s52, 0
      %p73 = por %p71, %p72
      %p74 = scmp.ne.s32.totalorder %s60, %s61
      %p75 = scmp.eq.s32.totalorder %s53, 1
      %p76 = por %p74, %p75
      %p78 = scmp.ne.s32.totalorder %s61, %s77
      %p79 = scmp.eq.s32.totalorder %s53, 0
      %p80 = por %p78, %p79
      %s82 = sadd.s32 %s81, 1
      %p85 = scmp.eq.s32.totalorder %s47, 1
      %p86 = scmp.ne.s32.totalorder %s81, %s83
      %p87 = scmp.eq.s32.totalorder %s47, 0
      %p88 = por %p86, %p87
      %p89 = scmp.ne.s32.totalorder %s81, %s83
      %p90 = scmp.eq.s32.totalorder %s52, 1
      %p91 = por %p89, %p90
      %p92 = scmp.ne.s32.totalorder %s83, %s84
      %p93 = scmp.eq.s32.totalorder %s52, 0
      %p94 = por %p92, %p93
      %p95 = scmp.ne.s32.totalorder %s83, %s84
      %p96 = scmp.eq.s32.totalorder %s53, 1
      %p97 = por %p95, %p96
      %p99 = scmp.ne.s32.totalorder %s84, %s98
      %p100 = scmp.eq.s32.totalorder %s53, 0
      %p101 = por %p99, %p100
      %s103 = sadd.s32 %s102, 1
      %p106 = scmp.eq.s32.totalorder %s47, 1
      %p107 = scmp.ne.s32.totalorder %s102, %s104
      %p108 = scmp.eq.s32.totalorder %s47, 0
      %p109 = por %p107, %p108
      %p110 = scmp.ne.s32.totalorder %s102, %s104
      %p111 = scmp.eq.s32.totalorder %s52, 1
      %p112 = por %p110, %p111
      %p113 = scmp.ne.s32.totalorder %s104, %s105
      %p114 = scmp.eq.s32.totalorder %s52, 0
      %p115 = por %p113, %p114
      %p116 = scmp.ne.s32.totalorder %s104, %s105
      %p117 = scmp.eq.s32.totalorder %s53, 1
      %p118 = por %p116, %p117
      %p120 = scmp.ne.s32.totalorder %s105, %s119
      %p121 = scmp.eq.s32.totalorder %s53, 0
      %p122 = por %p120, %p121
      %s124 = sadd.s32 %s123, 1
      %p127 = scmp.eq.s32.totalorder %s47, 1
      %p128 = scmp.ne.s32.totalorder %s123, %s125
      %p129 = scmp.eq.s32.totalorder %s47, 0
      %p130 = por %p128, %p129
      %p131 = scmp.ne.s32.totalorder %s123, %s125
      %p132 = scmp.eq.s32.totalorder %s52, 1
      %p133 = por %p131, %p132
      %p134 = scmp.ne.s32.totalorder %s125, %s126
      %p135 = scmp.eq.s32.totalorder %s52, 0
      %p136 = por %p134, %p135
      %p137 = scmp.ne.s32.totalorder %s125, %s126
      %p138 = scmp.eq.s32.totalorder %s53, 1
      %p139 = por %p137, %p138
      %p141 = scmp.ne.s32.totalorder %s126, %s140
      %p142 = scmp.eq.s32.totalorder %s53, 0
      %p143 = por %p141, %p142
      %s145 = sadd.s32 %s144, 1
      %p148 = scmp.eq.s32.totalorder %s47, 1
      %p149 = scmp.ne.s32.totalorder %s144, %s146
      %p150 = scmp.eq.s32.totalorder %s47, 0
      %p151 = por %p149, %p150
      %p152 = scmp.ne.s32.totalorder %s144, %s146
      %p153 = scmp.eq.s32.totalorder %s52, 1
      %p154 = por %p152, %p153
      %p155 = scmp.ne.s32.totalorder %s146, %s147
      %p156 = scmp.eq.s32.totalorder %s52, 0
      %p157 = por %p155, %p156
      %p158 = scmp.ne.s32.totalorder %s146, %s147
      %p159 = scmp.eq.s32.totalorder %s53, 1
      %p160 = por %p158, %p159
      %p162 = scmp.ne.s32.totalorder %s147, %s161
      %p163 = scmp.eq.s32.totalorder %s53, 0
      %p164 = por %p162, %p163
      %s166 = sadd.s32 %s165, 1
      %p169 = scmp.eq.s32.totalorder %s47, 1
      %p170 = scmp.ne.s32.totalorder %s165, %s167
      %p171 = scmp.eq.s32.totalorder %s47, 0
      %p172 = por %p170, %p171
      %p173 = scmp.ne.s32.totalorder %s165, %s167
      %p174 = scmp.eq.s32.totalorder %s52, 1
      %p175 = por %p173, %p174
      %p176 = scmp.ne.s32.totalorder %s167, %s168
      %p177 = scmp.eq.s32.totalorder %s52, 0
      %p178 = por %p176, %p177
      %p179 = scmp.ne.s32.totalorder %s167, %s168
      %p180 = scmp.eq.s32.totalorder %s53, 1
      %p181 = por %p179, %p180
      %p183 = scmp.ne.s32.totalorder %s168, %s182
      %p184 = scmp.eq.s32.totalorder %s53, 0
      %p185 = por %p183, %p184
      %s187 = sadd.s32 %s186, 1
      %p190 = scmp.eq.s32.totalorder %s47, 1
      %p191 = scmp.ne.s32.totalorder %s186, %s188
      %p192 = scmp.eq.s32.totalorder %s47, 0
      %p193 = por %p191, %p192
      %p194 = scmp.ne.s32.totalorder %s186, %s188
      %p195 = scmp.eq.s32.totalorder %s52, 1
      %p196 = por %p194, %p195
      %p197 = scmp.ne.s32.totalorder %s188, %s189
      %p198 = scmp.eq.s32.totalorder %s52, 0
      %p199 = por %p197, %p198
      %p200 = scmp.ne.s32.totalorder %s188, %s189
      %p201 = scmp.eq.s32.totalorder %s53, 1
      %p202 = por %p200, %p201
      %p204 = scmp.ne.s32.totalorder %s189, %s203
      %p205 = scmp.eq.s32.totalorder %s53, 0
      %p206 = por %p204, %p205
      %s208 = sadd.s32 %s207, 1
      %p211 = scmp.eq.s32.totalorder %s47, 1
      %p212 = scmp.ne.s32.totalorder %s207, %s209
      %p213 = scmp.eq.s32.totalorder %s47, 0
      %p214 = por %p212, %p213
      %p215 = scmp.ne.s32.totalorder %s207, %s209
      %p216 = scmp.eq.s32.totalorder %s52, 1
      %p217 = por %p215, %p216
      %p218 = scmp.ne.s32.totalorder %s209, %s210
      %p219 = scmp.eq.s32.totalorder %s52, 0
      %p220 = por %p218, %p219
      %p221 = scmp.ne.s32.totalorder %s209, %s210
      %p222 = scmp.eq.s32.totalorder %s53, 1
      %p223 = por %p221, %p222
      %p225 = scmp.ne.s32.totalorder %s210, %s224
      %p226 = scmp.eq.s32.totalorder %s53, 0
      %p227 = por %p225, %p226
      %s229 = sadd.s32 %s228, 1
      %p232 = scmp.eq.s32.totalorder %s47, 1
      %p233 = scmp.ne.s32.totalorder %s228, %s230
      %p234 = scmp.eq.s32.totalorder %s47, 0
      %p235 = por %p233, %p234
      %p236 = scmp.ne.s32.totalorder %s228, %s230
      %p237 = scmp.eq.s32.totalorder %s52, 1
      %p238 = por %p236, %p237
      %p239 = scmp.ne.s32.totalorder %s230, %s231
      %p240 = scmp.eq.s32.totalorder %s52, 0
      %p241 = por %p239, %p240
      %p242 = scmp.ne.s32.totalorder %s230, %s231
      %p243 = scmp.eq.s32.totalorder %s53, 1
      %p244 = por %p242, %p243
      %p246 = scmp.ne.s32.totalorder %s231, %s245
      %p247 = scmp.eq.s32.totalorder %s53, 0
      %p248 = por %p246, %p247
      %s250 = sadd.s32 %s249, 1
      %p253 = scmp.eq.s32.totalorder %s47, 1
      %p254 = scmp.ne.s32.totalorder %s249, %s251
      %p255 = scmp.eq.s32.totalorder %s47, 0
      %p256 = por %p254, %p255
      %p257 = scmp.ne.s32.totalorder %s249, %s251
      %p258 = scmp.eq.s32.totalorder %s52, 1
      %p259 = por %p257, %p258
      %p260 = scmp.ne.s32.totalorder %s251, %s252
      %p261 = scmp.eq.s32.totalorder %s52, 0
      %p262 = por %p260, %p261
      %p263 = scmp.ne.s32.totalorder %s251, %s252
      %p264 = scmp.eq.s32.totalorder %s53, 1
      %p265 = por %p263, %p264
      %p267 = scmp.ne.s32.totalorder %s252, %s266
      %p268 = scmp.eq.s32.totalorder %s53, 0
      %p269 = por %p267, %p268
      %s271 = sadd.s32 %s270, 1
      %p274 = scmp.eq.s32.totalorder %s47, 1
      %p275 = scmp.ne.s32.totalorder %s270, %s272
      %p276 = scmp.eq.s32.totalorder %s47, 0
      %p277 = por %p275, %p276
      %p278 = scmp.ne.s32.totalorder %s270, %s272
      %p279 = scmp.eq.s32.totalorder %s52, 1
      %p280 = por %p278, %p279
      %p281 = scmp.ne.s32.totalorder %s272, %s273
      %p282 = scmp.eq.s32.totalorder %s52, 0
      %p283 = por %p281, %p282
      %p284 = scmp.ne.s32.totalorder %s272, %s273
      %p285 = scmp.eq.s32.totalorder %s53, 1
      %p286 = por %p284, %p285
      %p288 = scmp.ne.s32.totalorder %s273, %s287
      %p289 = scmp.eq.s32.totalorder %s53, 0
      %p290 = por %p288, %p289
      %s292 = sadd.s32 %s291, 1
      %p295 = scmp.eq.s32.totalorder %s47, 1
      %p296 = scmp.ne.s32.totalorder %s291, %s293
      %p297 = scmp.eq.s32.totalorder %s47, 0
      %p298 = por %p296, %p297
      %p299 = scmp.ne.s32.totalorder %s291, %s293
      %p300 = scmp.eq.s32.totalorder %s52, 1
      %p301 = por %p299, %p300
      %p302 = scmp.ne.s32.totalorder %s293, %s294
      %p303 = scmp.eq.s32.totalorder %s52, 0
      %p304 = por %p302, %p303
      %p305 = scmp.ne.s32.totalorder %s293, %s294
      %p306 = scmp.eq.s32.totalorder %s53, 1
      %p307 = por %p305, %p306
      %p309 = scmp.ne.s32.totalorder %s294, %s308
      %p310 = scmp.eq.s32.totalorder %s53, 0
      %p311 = por %p309, %p310
      %s313 = sadd.s32 %s312, 1
      %p316 = scmp.eq.s32.totalorder %s47, 1
      %p317 = scmp.ne.s32.totalorder %s312, %s314
      %p318 = scmp.eq.s32.totalorder %s47, 0
      %p319 = por %p317, %p318
      %p320 = scmp.ne.s32.totalorder %s312, %s314
      %p321 = scmp.eq.s32.totalorder %s52, 1
      %p322 = por %p320, %p321
      %p323 = scmp.ne.s32.totalorder %s314, %s315
      %p324 = scmp.eq.s32.totalorder %s52, 0
      %p325 = por %p323, %p324
      %p326 = scmp.ne.s32.totalorder %s314, %s315
      %p327 = scmp.eq.s32.totalorder %s53, 1
      %p328 = por %p326, %p327
      %p330 = scmp.ne.s32.totalorder %s315, %s329
      %p331 = scmp.eq.s32.totalorder %s53, 0
      %p332 = por %p330, %p331
      %s334 = sadd.s32 %s333, 1
      %p337 = scmp.eq.s32.totalorder %s47, 1
      %p338 = scmp.ne.s32.totalorder %s333, %s335
      %p339 = scmp.eq.s32.totalorder %s47, 0
      %p340 = por %p338, %p339
      %p341 = scmp.ne.s32.totalorder %s333, %s335
      %p342 = scmp.eq.s32.totalorder %s52, 1
      %p343 = por %p341, %p342
      %p344 = scmp.ne.s32.totalorder %s335, %s336
      %p345 = scmp.eq.s32.totalorder %s52, 0
      %p346 = por %p344, %p345
      %p347 = scmp.ne.s32.totalorder %s335, %s336
      %p348 = scmp.eq.s32.totalorder %s53, 1
      %p349 = por %p347, %p348
      %p351 = scmp.ne.s32.totalorder %s336, %s350
      %p352 = scmp.eq.s32.totalorder %s53, 0
      %p353 = por %p351, %p352
      %s355 = sadd.s32 %s354, 1
      %p358 = scmp.eq.s32.totalorder %s47, 1
      %p359 = scmp.ne.s32.totalorder %s354, %s356
      %p360 = scmp.eq.s32.totalorder %s47, 0
      %p361 = por %p359, %p360
      %p362 = scmp.ne.s32.totalorder %s354, %s356
      %p363 = scmp.eq.s32.totalorder %s52, 1
      %p364 = por %p362, %p363
      %p365 = scmp.ne.s32.totalorder %s356, %s357
      %p366 = scmp.eq.s32.totalorder %s52, 0
      %p367 = por %p365, %p366
      %p368 = scmp.ne.s32.totalorder %s356, %s357
      %p369 = scmp.eq.s32.totalorder %s53, 1
      %p370 = por %p368, %p369
      %p372 = scmp.ne.s32.totalorder %s357, %s371
      %p373 = scmp.eq.s32.totalorder %s53, 0
      %p374 = por %p372, %p373
      %s376 = sadd.s32 %s375, 1
      %p379 = scmp.eq.s32.totalorder %s47, 1
      %p380 = scmp.ne.s32.totalorder %s375, %s377
      %p381 = scmp.eq.s32.totalorder %s47, 0
      %p382 = por %p380, %p381
      %p383 = scmp.ne.s32.totalorder %s375, %s377
      %p384 = scmp.eq.s32.totalorder %s52, 1
      %p385 = por %p383, %p384
      %p386 = scmp.ne.s32.totalorder %s377, %s378
      %p387 = scmp.eq.s32.totalorder %s52, 0
      %p388 = por %p386, %p387
      %p389 = scmp.ne.s32.totalorder %s377, %s378
      %p390 = scmp.eq.s32.totalorder %s53, 1
      %p391 = por %p389, %p390
      %p393 = scmp.ne.s32.totalorder %s378, %s392
      %p394 = scmp.eq.s32.totalorder %s53, 0
      %p395 = por %p393, %p394
      %s397 = sadd.s32 %s396, 1
      %p400 = scmp.eq.s32.totalorder %s47, 1
      %p401 = scmp.ne.s32.totalorder %s396, %s398
      %p402 = scmp.eq.s32.totalorder %s47, 0
      %p403 = por %p401, %p402
      %p404 = scmp.ne.s32.totalorder %s396, %s398
      %p405 = scmp.eq.s32.totalorder %s52, 1
      %p406 = por %p404, %p405
      %p407 = scmp.ne.s32.totalorder %s398, %s399
      %p408 = scmp.eq.s32.totalorder %s52, 0
      %p409 = por %p407, %p408
      %p410 = scmp.ne.s32.totalorder %s398, %s399
      %p411 = scmp.eq.s32.totalorder %s53, 1
      %p412 = por %p410, %p411
      %p414 = scmp.ne.s32.totalorder %s399, %s413
      %p415 = scmp.eq.s32.totalorder %s53, 0
      %p416 = por %p414, %p415
      %s418 = sadd.s32 %s417, 1
      %p421 = scmp.eq.s32.totalorder %s47, 1
      %p422 = scmp.ne.s32.totalorder %s417, %s419
      %p423 = scmp.eq.s32.totalorder %s47, 0
      %p424 = por %p422, %p423
      %p425 = scmp.ne.s32.totalorder %s417, %s419
      %p426 = scmp.eq.s32.totalorder %s52, 1
      %p427 = por %p425, %p426
      %p428 = scmp.ne.s32.totalorder %s419, %s420
      %p429 = scmp.eq.s32.totalorder %s52, 0
      %p430 = por %p428, %p429
      %p431 = scmp.ne.s32.totalorder %s419, %s420
      %p432 = scmp.eq.s32.totalorder %s53, 1
      %p433 = por %p431, %p432
      %p435 = scmp.ne.s32.totalorder %s420, %s434
      %p436 = scmp.eq.s32.totalorder %s53, 0
      %p437 = por %p435, %p436
      %s439 = sadd.s32 %s438, 1
      %p442 = scmp.eq.s32.totalorder %s47, 1
      %p443 = scmp.ne.s32.totalorder %s438, %s440
      %p444 = scmp.eq.s32.totalorder %s47, 0
      %p445 = por %p443, %p444
      %p446 = scmp.ne.s32.totalorder %s438, %s440
      %p447 = scmp.eq.s32.totalorder %s52, 1
      %p448 = por %p446, %p447
      %p449 = scmp.ne.s32.totalorder %s440, %s441
      %p450 = scmp.eq.s32.totalorder %s52, 0
      %p451 = por %p449, %p450
      %p452 = scmp.ne.s32.totalorder %s440, %s441
      %p453 = scmp.eq.s32.totalorder %s53, 1
      %p454 = por %p452, %p453
      %p456 = scmp.ne.s32.totalorder %s441, %s455
      %p457 = scmp.eq.s32.totalorder %s53, 0
      %p458 = por %p456, %p457
      %s460 = sadd.s32 %s459, 1
      %p463 = scmp.eq.s32.totalorder %s47, 1
      %p464 = scmp.ne.s32.totalorder %s459, %s461
      %p465 = scmp.eq.s32.totalorder %s47, 0
      %p466 = por %p464, %p465
      %p467 = scmp.ne.s32.totalorder %s459, %s461
      %p468 = scmp.eq.s32.totalorder %s52, 1
      %p469 = por %p467, %p468
      %p470 = scmp.ne.s32.totalorder %s461, %s462
      %p471 = scmp.eq.s32.totalorder %s52, 0
      %p472 = por %p470, %p471
      %p473 = scmp.ne.s32.totalorder %s461, %s462
      %p474 = scmp.eq.s32.totalorder %s53, 1
      %p475 = por %p473, %p474
      %p477 = scmp.ne.s32.totalorder %s462, %s476
      %p478 = scmp.eq.s32.totalorder %s53, 0
      %p479 = por %p477, %p478
      %s481 = sadd.s32 %s480, 1
      %p484 = scmp.eq.s32.totalorder %s47, 1
      %p485 = scmp.ne.s32.totalorder %s480, %s482
      %p486 = scmp.eq.s32.totalorder %s47, 0
      %p487 = por %p485, %p486
      %p488 = scmp.ne.s32.totalorder %s480, %s482
      %p489 = scmp.eq.s32.totalorder %s52, 1
      %p490 = por %p488, %p489
      %p491 = scmp.ne.s32.totalorder %s482, %s483
      %p492 = scmp.eq.s32.totalorder %s52, 0
      %p493 = por %p491, %p492
      %p494 = scmp.ne.s32.totalorder %s482, %s483
      %p495 = scmp.eq.s32.totalorder %s53, 1
      %p496 = por %p494, %p495
      %p498 = scmp.ne.s32.totalorder %s483, %s497
      %p499 = scmp.eq.s32.totalorder %s53, 0
      %p500 = por %p498, %p499
      %s502 = sadd.s32 %s501, 1
      %p505 = scmp.eq.s32.totalorder %s47, 1
      %p506 = scmp.ne.s32.totalorder %s501, %s503
      %p507 = scmp.eq.s32.totalorder %s47, 0
      %p508 = por %p506, %p507
      %p509 = scmp.ne.s32.totalorder %s501, %s503
      %p510 = scmp.eq.s32.totalorder %s52, 1
      %p511 = por %p509, %p510
      %p512 = scmp.ne.s32.totalorder %s503, %s504
      %p513 = scmp.eq.s32.totalorder %s52, 0
      %p514 = por %p512, %p513
      %p515 = scmp.ne.s32.totalorder %s503, %s504
      %p516 = scmp.eq.s32.totalorder %s53, 1
      %p517 = por %p515, %p516
      %p519 = scmp.ne.s32.totalorder %s504, %s518
      %p520 = scmp.eq.s32.totalorder %s53, 0
      %p521 = por %p519, %p520
      %s523 = sadd.s32 %s522, 1
      %p526 = scmp.eq.s32.totalorder %s47, 1
      %p527 = scmp.ne.s32.totalorder %s522, %s524
      %p528 = scmp.eq.s32.totalorder %s47, 0
      %p529 = por %p527, %p528
      %p530 = scmp.ne.s32.totalorder %s522, %s524
      %p531 = scmp.eq.s32.totalorder %s52, 1
      %p532 = por %p530, %p531
      %p533 = scmp.ne.s32.totalorder %s524, %s525
      %p534 = scmp.eq.s32.totalorder %s52, 0
      %p535 = por %p533, %p534
      %p536 = scmp.ne.s32.totalorder %s524, %s525
      %p537 = scmp.eq.s32.totalorder %s53, 1
      %p538 = por %p536, %p537
      %p540 = scmp.ne.s32.totalorder %s525, %s539
      %p541 = scmp.eq.s32.totalorder %s53, 0
      %p542 = por %p540, %p541
      %s544 = sadd.s32 %s543, 1
      %p547 = scmp.eq.s32.totalorder %s47, 1
      %p548 = scmp.ne.s32.totalorder %s543, %s545
      %p549 = scmp.eq.s32.totalorder %s47, 0
      %p550 = por %p548, %p549
      %p551 = scmp.ne.s32.totalorder %s543, %s545
      %p552 = scmp.eq.s32.totalorder %s52, 1
      %p553 = por %p551, %p552
      %p554 = scmp.ne.s32.totalorder %s545, %s546
      %p555 = scmp.eq.s32.totalorder %s52, 0
      %p556 = por %p554, %p555
      %p557 = scmp.ne.s32.totalorder %s545, %s546
      %p558 = scmp.eq.s32.totalorder %s53, 1
      %p559 = por %p557, %p558
      %p561 = scmp.ne.s32.totalorder %s546, %s560
      %p562 = scmp.eq.s32.totalorder %s53, 0
      %p563 = por %p561, %p562
      %s565 = sadd.s32 %s564, 1
      %p568 = scmp.eq.s32.totalorder %s47, 1
      %p569 = scmp.ne.s32.totalorder %s564, %s566
      %p570 = scmp.eq.s32.totalorder %s47, 0
      %p571 = por %p569, %p570
      %p572 = scmp.ne.s32.totalorder %s564, %s566
      %p573 = scmp.eq.s32.totalorder %s52, 1
      %p574 = por %p572, %p573
      %p575 = scmp.ne.s32.totalorder %s566, %s567
      %p576 = scmp.eq.s32.totalorder %s52, 0
      %p577 = por %p575, %p576
      %p578 = scmp.ne.s32.totalorder %s566, %s567
      %p579 = scmp.eq.s32.totalorder %s53, 1
      %p580 = por %p578, %p579
      %p582 = scmp.ne.s32.totalorder %s567, %s581
      %p583 = scmp.eq.s32.totalorder %s53, 0
      %p584 = por %p582, %p583
      %s586 = sadd.s32 %s585, 1
      %p589 = scmp.eq.s32.totalorder %s47, 1
      %p590 = scmp.ne.s32.totalorder %s585, %s587
      %p591 = scmp.eq.s32.totalorder %s47, 0
      %p592 = por %p590, %p591
      %p593 = scmp.ne.s32.totalorder %s585, %s587
      %p594 = scmp.eq.s32.totalorder %s52, 1
      %p595 = por %p593, %p594
      %p596 = scmp.ne.s32.totalorder %s587, %s588
      %p597 = scmp.eq.s32.totalorder %s52, 0
      %p598 = por %p596, %p597
      %p599 = scmp.ne.s32.totalorder %s587, %s588
      %p600 = scmp.eq.s32.totalorder %s53, 1
      %p601 = por %p599, %p600
      %p603 = scmp.ne.s32.totalorder %s588, %s602
      %p604 = scmp.eq.s32.totalorder %s53, 0
      %p605 = por %p603, %p604
      %s607 = sadd.s32 %s606, 1
      %p610 = scmp.eq.s32.totalorder %s47, 1
      %p611 = scmp.ne.s32.totalorder %s606, %s608
      %p612 = scmp.eq.s32.totalorder %s47, 0
      %p613 = por %p611, %p612
      %p614 = scmp.ne.s32.totalorder %s606, %s608
      %p615 = scmp.eq.s32.totalorder %s52, 1
      %p616 = por %p614, %p615
      %p617 = scmp.ne.s32.totalorder %s608, %s609
      %p618 = scmp.eq.s32.totalorder %s52, 0
      %p619 = por %p617, %p618
      %p620 = scmp.ne.s32.totalorder %s608, %s609
      %p621 = scmp.eq.s32.totalorder %s53, 1
      %p622 = por %p620, %p621
      %p624 = scmp.ne.s32.totalorder %s609, %s623
      %p625 = scmp.eq.s32.totalorder %s53, 0
      %p626 = por %p624, %p625
      %s628 = sadd.s32 %s627, 1
      %p631 = scmp.eq.s32.totalorder %s47, 1
      %p632 = scmp.ne.s32.totalorder %s627, %s629
      %p633 = scmp.eq.s32.totalorder %s47, 0
      %p634 = por %p632, %p633
      %p635 = scmp.ne.s32.totalorder %s627, %s629
      %p636 = scmp.eq.s32.totalorder %s52, 1
      %p637 = por %p635, %p636
      %p638 = scmp.ne.s32.totalorder %s629, %s630
      %p639 = scmp.eq.s32.totalorder %s52, 0
      %p640 = por %p638, %p639
      %p641 = scmp.ne.s32.totalorder %s629, %s630
      %p642 = scmp.eq.s32.totalorder %s53, 1
      %p643 = por %p641, %p642
      %p645 = scmp.ne.s32.totalorder %s630, %s644
      %p646 = scmp.eq.s32.totalorder %s53, 0
      %p647 = por %p645, %p646
      %s648 = ssub.s32 %s47, %s54
      %p649 = scmp.eq.s32.totalorder %s648, 0
      %s651 = sadd.s32 %s650, 1
      %s652 = scalar_select %p649, %s650, %s651
      %p655 = pneg %p649
      %p656 = scmp.eq.s32.totalorder %s47, 1
      %p657 = por %p655, %p656
      %p658 = scmp.ne.s32.totalorder %s650, %s653
      %p659 = scmp.eq.s32.totalorder %s47, 0
      %p660 = por %p658, %p659
      %p661 = scmp.ne.s32.totalorder %s650, %s653
      %p662 = scmp.eq.s32.totalorder %s52, 1
      %p663 = por %p661, %p662
      %p664 = scmp.ne.s32.totalorder %s653, %s654
      %p665 = scmp.eq.s32.totalorder %s52, 0
      %p666 = por %p664, %p665
      %p667 = scmp.ne.s32.totalorder %s653, %s654
      %p668 = scmp.eq.s32.totalorder %s53, 1
      %p669 = por %p667, %p668
      %p671 = scmp.ne.s32.totalorder %s654, %s670
      %p672 = scmp.eq.s32.totalorder %s53, 0
      %p673 = por %p671, %p672
      %p674 = scmp.le.s32.totalorder 1, %s47
      %p675 = scmp.lt.s32.totalorder %s47, 3
      %p676 = pnand %p674, %p675
      %p677 = pneg %p676
      // Predicated region
      $region9: #{nafnet_forward.1} parent=5 // pred_check
        _
      $region10: #{nafnet_forward.1} parent=5 // pred_check_branch
        %679 = sbr.rel (%p676) target = $region12
      $region11: #{nafnet_forward.1} parent=5 // pred_region
        %s680 = ssub.s32 %s47, 1
        // Predicated region
        $region13: #{nafnet_forward.1} parent=11 // pred_check
          %p681 = pneg %p94
        $region14: #{nafnet_forward.1} parent=11 // pred_check_branch
          %683 = sbr.rel (%p681) target = $region16
        $region15: #{nafnet_forward.1} parent=11 // pred_region
          %s685 = ssub.s32 4608, 4608
          %686 = vsyncadd [#allocation3], %s685
          %s687 = sshll.u32 [#allocation2], 4
          %s688 = int_to_ptr.vmem [resolvable:$true] %s687
          %693 = dma.hbm_to_vmem [thread:$0]  %s1, 4608, %s688, [#allocation3], 256, 256, 16
        $region16: #{nafnet_forward.1} parent=11 // pred_fallthru
          _
        // Predicated region
        $region17: #{nafnet_forward.1} parent=11 // pred_check
          %p694 = pneg %p115
        $region18: #{nafnet_forward.1} parent=11 // pred_check_branch
          %696 = sbr.rel (%p694) target = $region20
        $region19: #{nafnet_forward.1} parent=11 // pred_region
          %s698 = ssub.s32 32, 32
          %699 = vsyncadd [#allocation5], %s698
          %s701 = sshll.u32 [#allocation4], 4
          %s702 = int_to_ptr.vmem [resolvable:$true] %s701
          %704 = dma.hbm_to_vmem [thread:$0]  %s2, 32, %s702, [#allocation5]
        $region20: #{nafnet_forward.1} parent=11 // pred_fallthru
          _
        // Predicated region
        $region21: #{nafnet_forward.1} parent=11 // pred_check
          %p705 = pneg %p136
        $region22: #{nafnet_forward.1} parent=11 // pred_check_branch
          %707 = sbr.rel (%p705) target = $region24
        $region23: #{nafnet_forward.1} parent=11 // pred_region
          _
        $region24: #{nafnet_forward.1} parent=11 // pred_fallthru
          _
        // Predicated region
        $region25: #{nafnet_forward.1} parent=11 // pred_check
          %p708 = pneg %p157
        $region26: #{nafnet_forward.1} parent=11 // pred_check_branch
          %710 = sbr.rel (%p708) target = $region28
        $region27: #{nafnet_forward.1} parent=11 // pred_region
          %s712 = ssub.s32 16, 16
          %713 = vsyncadd [#allocation5], %s712
          %s715 = sshll.u32 [#allocation6], 4
          %s716 = int_to_ptr.vmem [resolvable:$true] %s715
          %718 = dma.hbm_to_vmem [thread:$0]  %s4, 16, %s716, [#allocation5]
        $region28: #{nafnet_forward.1} parent=11 // pred_fallthru
          _
        // Predicated region
        $region29: #{nafnet_forward.1} parent=11 // pred_check
          %p719 = pneg %p178
        $region30: #{nafnet_forward.1} parent=11 // pred_check_branch
          %721 = sbr.rel (%p719) target = $region32
        $region31: #{nafnet_forward.1} parent=11 // pred_region
          %s723 = ssub.s32 8192, 8192
          %724 = vsyncadd [#allocation8], %s723
          %s725 = sshll.u32 [#allocation7], 4
          %s726 = int_to_ptr.vmem [resolvable:$true] %s725
          %731 = dma.hbm_to_vmem [thread:$0]  %s5, 8192, %s726, [#allocation8], 256, 256, 16
        $region32: #{nafnet_forward.1} parent=11 // pred_fallthru
          _
        // Predicated region
        $region33: #{nafnet_forward.1} parent=11 // pred_check
          %p732 = pneg %p199
        $region34: #{nafnet_forward.1} parent=11 // pred_check_branch
          %734 = sbr.rel (%p732) target = $region36
        $region35: #{nafnet_forward.1} parent=11 // pred_region
          %s736 = ssub.s32 16384, 16384
          %737 = vsyncadd [#allocation8], %s736
          %s738 = sshll.u32 [#allocation9], 4
          %s739 = int_to_ptr.vmem [resolvable:$true] %s738
          %744 = dma.hbm_to_vmem [thread:$0]  %s6, 16384, %s739, [#allocation8], 256, 256, 16
        $region36: #{nafnet_forward.1} parent=11 // pred_fallthru
          _
        // Predicated region
        $region37: #{nafnet_forward.1} parent=11 // pred_check
          %p745 = pneg %p220
        $region38: #{nafnet_forward.1} parent=11 // pred_check_branch
          %747 = sbr.rel (%p745) target = $region40
        $region39: #{nafnet_forward.1} parent=11 // pred_region
          %s749 = ssub.s32 16384, 16384
          %750 = vsyncadd [#allocation11], %s749
          %s751 = sshll.u32 [#allocation10], 4
          %s752 = int_to_ptr.vmem [resolvable:$true] %s751
          %757 = dma.hbm_to_vmem [thread:$0]  %s7, 16384, %s752, [#allocation11], 256, 256, 16
        $region40: #{nafnet_forward.1} parent=11 // pred_fallthru
          _
        // Predicated region
        $region41: #{nafnet_forward.1} parent=11 // pred_check
          %p758 = pneg %p241
        $region42: #{nafnet_forward.1} parent=11 // pred_check_branch
          %760 = sbr.rel (%p758) target = $region44
        $region43: #{nafnet_forward.1} parent=11 // pred_region
          _
        $region44: #{nafnet_forward.1} parent=11 // pred_fallthru
          _
        // Predicated region
        $region45: #{nafnet_forward.1} parent=11 // pred_check
          %p761 = pneg %p262
        $region46: #{nafnet_forward.1} parent=11 // pred_check_branch
          %763 = sbr.rel (%p761) target = $region48
        $region47: #{nafnet_forward.1} parent=11 // pred_region
          %s765 = ssub.s32 512, 512
          %766 = vsyncadd [#allocation11], %s765
          %s767 = sshll.u32 [#allocation12], 4
          %s768 = int_to_ptr.vmem [resolvable:$true] %s767
          %773 = dma.hbm_to_vmem [thread:$0]  %s9, 512, %s768, [#allocation11], 256, 256, 16
        $region48: #{nafnet_forward.1} parent=11 // pred_fallthru
          _
        // Predicated region
        $region49: #{nafnet_forward.1} parent=11 // pred_check
          %p774 = pneg %p283
        $region50: #{nafnet_forward.1} parent=11 // pred_check_branch
          %776 = sbr.rel (%p774) target = $region52
        $region51: #{nafnet_forward.1} parent=11 // pred_region
          %s778 = ssub.s32 16384, 16384
          %779 = vsyncadd [#allocation14], %s778
          %s780 = sshll.u32 [#allocation13], 4
          %s781 = int_to_ptr.vmem [resolvable:$true] %s780
          %786 = dma.hbm_to_vmem [thread:$0]  %s10, 16384, %s781, [#allocation14], 512, 512, 32
        $region52: #{nafnet_forward.1} parent=11 // pred_fallthru
          _
        // Predicated region
        $region53: #{nafnet_forward.1} parent=11 // pred_check
          %p787 = pneg %p304
        $region54: #{nafnet_forward.1} parent=11 // pred_check_branch
          %789 = sbr.rel (%p787) target = $region56
        $region55: #{nafnet_forward.1} parent=11 // pred_region
          %s791 = ssub.s32 64, 64
          %792 = vsyncadd [#allocation14], %s791
          %s794 = sshll.u32 [#allocation15], 4
          %s795 = int_to_ptr.vmem [resolvable:$true] %s794
          %797 = dma.hbm_to_vmem [thread:$0]  %s11, 64, %s795, [#allocation14]
        $region56: #{nafnet_forward.1} parent=11 // pred_fallthru
          _
        // Predicated region
        $region57: #{nafnet_forward.1} parent=11 // pred_check
          %p798 = pneg %p325
        $region58: #{nafnet_forward.1} parent=11 // pred_check_branch
          %800 = sbr.rel (%p798) target = $region60
        $region59: #{nafnet_forward.1} parent=11 // pred_region
          %s802 = ssub.s32 98304, 98304
          %803 = vsyncadd [#allocation17], %s802
          %s804 = sshll.u32 [#allocation16], 4
          %s805 = int_to_ptr.vmem [resolvable:$true] %s804
          %810 = dma.hbm_to_vmem [thread:$0]  %s12, 98304, %s805, [#allocation17], 512, 512, 32
        $region60: #{nafnet_forward.1} parent=11 // pred_fallthru
          _
        // Predicated region
        $region61: #{nafnet_forward.1} parent=11 // pred_check
          %p811 = pneg %p346
        $region62: #{nafnet_forward.1} parent=11 // pred_check_branch
          %813 = sbr.rel (%p811) target = $region64
        $region63: #{nafnet_forward.1} parent=11 // pred_region
          %s815 = ssub.s32 64, 64
          %816 = vsyncadd [#allocation17], %s815
          %s818 = sshll.u32 [#allocation18], 4
          %s819 = int_to_ptr.vmem [resolvable:$true] %s818
          %821 = dma.hbm_to_vmem [thread:$0]  %s13, 64, %s819, [#allocation17]
        $region64: #{nafnet_forward.1} parent=11 // pred_fallthru
          _
        // Predicated region
        $region65: #{nafnet_forward.1} parent=11 // pred_check
          %p822 = pneg %p367
        $region66: #{nafnet_forward.1} parent=11 // pred_check_branch
          %824 = sbr.rel (%p822) target = $region68
        $region67: #{nafnet_forward.1} parent=11 // pred_region
          %s826 = ssub.s32 32, 32
          %827 = vsyncadd [#allocation20], %s826
          %s829 = sshll.u32 [#allocation19], 4
          %s830 = int_to_ptr.vmem [resolvable:$true] %s829
          %832 = dma.hbm_to_vmem [thread:$0]  %s14, 32, %s830, [#allocation20]
        $region68: #{nafnet_forward.1} parent=11 // pred_fallthru
          _
        // Predicated region
        $region69: #{nafnet_forward.1} parent=11 // pred_check
          %p833 = pneg %p388
        $region70: #{nafnet_forward.1} parent=11 // pred_check_branch
          %835 = sbr.rel (%p833) target = $region72
        $region71: #{nafnet_forward.1} parent=11 // pred_region
          %s837 = ssub.s32 32, 32
          %838 = vsyncadd [#allocation20], %s837
          %s840 = sshll.u32 [#allocation21], 4
          %s841 = int_to_ptr.vmem [resolvable:$true] %s840
          %843 = dma.hbm_to_vmem [thread:$0]  %s15, 32, %s841, [#allocation20]
        $region72: #{nafnet_forward.1} parent=11 // pred_fallthru
          _
        // Predicated region
        $region73: #{nafnet_forward.1} parent=11 // pred_check
          %p844 = pneg %p409
        $region74: #{nafnet_forward.1} parent=11 // pred_check_branch
          %846 = sbr.rel (%p844) target = $region76
        $region75: #{nafnet_forward.1} parent=11 // pred_region
          %s848 = ssub.s32 256, 256
          %849 = vsyncadd [#allocation23], %s848
          %s850 = sshll.u32 [#allocation22], 4
          %s851 = int_to_ptr.vmem [resolvable:$true] %s850
          %856 = dma.hbm_to_vmem [thread:$0]  %s16, 256, %s851, [#allocation23], 128, 128, 8
        $region76: #{nafnet_forward.1} parent=11 // pred_fallthru
          _
        // Predicated region
        $region77: #{nafnet_forward.1} parent=11 // pred_check
          %p857 = pneg %p430
        $region78: #{nafnet_forward.1} parent=11 // pred_check_branch
          %859 = sbr.rel (%p857) target = $region80
        $region79: #{nafnet_forward.1} parent=11 // pred_region
          %s861 = ssub.s32 16, 16
          %862 = vsyncadd [#allocation23], %s861
          %s864 = sshll.u32 [#allocation24], 4
          %s865 = int_to_ptr.vmem [resolvable:$true] %s864
          %867 = dma.hbm_to_vmem [thread:$0]  %s17, 16, %s865, [#allocation23]
        $region80: #{nafnet_forward.1} parent=11 // pred_fallthru
          _
        // Predicated region
        $region81: #{nafnet_forward.1} parent=11 // pred_check
          %p868 = pneg %p451
        $region82: #{nafnet_forward.1} parent=11 // pred_check_branch
          %870 = sbr.rel (%p868) target = $region84
        $region83: #{nafnet_forward.1} parent=11 // pred_region
          %s872 = ssub.s32 8192, 8192
          %873 = vsyncadd [#allocation26], %s872
          %s874 = sshll.u32 [#allocation25], 4
          %s875 = int_to_ptr.vmem [resolvable:$true] %s874
          %880 = dma.hbm_to_vmem [thread:$0]  %s18, 8192, %s875, [#allocation26], 256, 256, 16
        $region84: #{nafnet_forward.1} parent=11 // pred_fallthru
          _
        // Predicated region
        $region85: #{nafnet_forward.1} parent=11 // pred_check
          %p881 = pneg %p472
        $region86: #{nafnet_forward.1} parent=11 // pred_check_branch
          %883 = sbr.rel (%p881) target = $region88
        $region87: #{nafnet_forward.1} parent=11 // pred_region
          %s885 = ssub.s32 32, 32
          %886 = vsyncadd [#allocation26], %s885
          %s888 = sshll.u32 [#allocation27], 4
          %s889 = int_to_ptr.vmem [resolvable:$true] %s888
          %891 = dma.hbm_to_vmem [thread:$0]  %s19, 32, %s889, [#allocation26]
        $region88: #{nafnet_forward.1} parent=11 // pred_fallthru
          _
        // Predicated region
        $region89: #{nafnet_forward.1} parent=11 // pred_check
          %p892 = pneg %p493
        $region90: #{nafnet_forward.1} parent=11 // pred_check_branch
          %894 = sbr.rel (%p892) target = $region92
        $region91: #{nafnet_forward.1} parent=11 // pred_region
          %s896 = ssub.s32 32, 32
          %897 = vsyncadd [#allocation29], %s896
          %s899 = sshll.u32 [#allocation28], 4
          %s900 = int_to_ptr.vmem [resolvable:$true] %s899
          %902 = dma.hbm_to_vmem [thread:$0]  %s20, 32, %s900, [#allocation29]
        $region92: #{nafnet_forward.1} parent=11 // pred_fallthru
          _
        // Predicated region
        $region93: #{nafnet_forward.1} parent=11 // pred_check
          %p903 = pneg %p514
        $region94: #{nafnet_forward.1} parent=11 // pred_check_branch
          %905 = sbr.rel (%p903) target = $region96
        $region95: #{nafnet_forward.1} parent=11 // pred_region
          %s907 = ssub.s32 32, 32
          %908 = vsyncadd [#allocation29], %s907
          %s910 = sshll.u32 [#allocation30], 4
          %s911 = int_to_ptr.vmem [resolvable:$true] %s910
          %913 = dma.hbm_to_vmem [thread:$0]  %s21, 32, %s911, [#allocation29]
        $region96: #{nafnet_forward.1} parent=11 // pred_fallthru
          _
        // Predicated region
        $region97: #{nafnet_forward.1} parent=11 // pred_check
          %p914 = pneg %p535
        $region98: #{nafnet_forward.1} parent=11 // pred_check_branch
          %916 = sbr.rel (%p914) target = $region100
        $region99: #{nafnet_forward.1} parent=11 // pred_region
          %s918 = ssub.s32 16384, 16384
          %919 = vsyncadd [#allocation32], %s918
          %s920 = sshll.u32 [#allocation31], 4
          %s921 = int_to_ptr.vmem [resolvable:$true] %s920
          %926 = dma.hbm_to_vmem [thread:$0]  %s22, 16384, %s921, [#allocation32], 512, 512, 32
        $region100: #{nafnet_forward.1} parent=11 // pred_fallthru
          _
        // Predicated region
        $region101: #{nafnet_forward.1} parent=11 // pred_check
          %p927 = pneg %p556
        $region102: #{nafnet_forward.1} parent=11 // pred_check_branch
          %929 = sbr.rel (%p927) target = $region104
        $region103: #{nafnet_forward.1} parent=11 // pred_region
          %s931 = ssub.s32 64, 64
          %932 = vsyncadd [#allocation32], %s931
          %s934 = sshll.u32 [#allocation33], 4
          %s935 = int_to_ptr.vmem [resolvable:$true] %s934
          %937 = dma.hbm_to_vmem [thread:$0]  %s23, 64, %s935, [#allocation32]
        $region104: #{nafnet_forward.1} parent=11 // pred_fallthru
          _
        // Predicated region
        $region105: #{nafnet_forward.1} parent=11 // pred_check
          %p938 = pneg %p577
        $region106: #{nafnet_forward.1} parent=11 // pred_check_branch
          %940 = sbr.rel (%p938) target = $region108
        $region107: #{nafnet_forward.1} parent=11 // pred_region
          %s942 = ssub.s32 8192, 8192
          %943 = vsyncadd [#allocation35], %s942
          %s944 = sshll.u32 [#allocation34], 4
          %s945 = int_to_ptr.vmem [resolvable:$true] %s944
          %950 = dma.hbm_to_vmem [thread:$0]  %s24, 8192, %s945, [#allocation35], 256, 256, 16
        $region108: #{nafnet_forward.1} parent=11 // pred_fallthru
          _
        // Predicated region
        $region109: #{nafnet_forward.1} parent=11 // pred_check
          %p951 = pneg %p598
        $region110: #{nafnet_forward.1} parent=11 // pred_check_branch
          %953 = sbr.rel (%p951) target = $region112
        $region111: #{nafnet_forward.1} parent=11 // pred_region
          %s955 = ssub.s32 32, 32
          %956 = vsyncadd [#allocation35], %s955
          %s958 = sshll.u32 [#allocation36], 4
          %s959 = int_to_ptr.vmem [resolvable:$true] %s958
          %961 = dma.hbm_to_vmem [thread:$0]  %s25, 32, %s959, [#allocation35]
        $region112: #{nafnet_forward.1} parent=11 // pred_fallthru
          _
        // Predicated region
        $region113: #{nafnet_forward.1} parent=11 // pred_check
          %p962 = pneg %p619
        $region114: #{nafnet_forward.1} parent=11 // pred_check_branch
          %964 = sbr.rel (%p962) target = $region116
        $region115: #{nafnet_forward.1} parent=11 // pred_region
          %s966 = ssub.s32 32, 32
          %967 = vsyncadd [#allocation38], %s966
          %s969 = sshll.u32 [#allocation37], 4
          %s970 = int_to_ptr.vmem [resolvable:$true] %s969
          %972 = dma.hbm_to_vmem [thread:$0]  %s26, 32, %s970, [#allocation38]
        $region116: #{nafnet_forward.1} parent=11 // pred_fallthru
          _
        // Predicated region
        $region117: #{nafnet_forward.1} parent=11 // pred_check
          %p973 = pneg %p640
        $region118: #{nafnet_forward.1} parent=11 // pred_check_branch
          %975 = sbr.rel (%p973) target = $region120
        $region119: #{nafnet_forward.1} parent=11 // pred_region
          %s977 = ssub.s32 32, 32
          %978 = vsyncadd [#allocation38], %s977
          %s980 = sshll.u32 [#allocation39], 4
          %s981 = int_to_ptr.vmem [resolvable:$true] %s980
          %983 = dma.hbm_to_vmem [thread:$0]  %s27, 32, %s981, [#allocation38]
        $region120: #{nafnet_forward.1} parent=11 // pred_fallthru
          _
      $region12: #{nafnet_forward.1} parent=5 // pred_fallthru
        _
      %p984 = scmp.lt.s32.totalorder %s47, 2
      // Predicated region
      $region121: #{nafnet_forward.1} parent=5 // pred_check
        %p985 = pneg %p984
      $region122: #{nafnet_forward.1} parent=5 // pred_check_branch
        %987 = sbr.rel (%p985) target = $region124
      $region123: #{nafnet_forward.1} parent=5 // pred_region
        // Predicated region
        $region125: #{nafnet_forward.1} parent=123 // pred_check
          %p988 = pneg %p67
        $region126: #{nafnet_forward.1} parent=123 // pred_check_branch
          %990 = sbr.rel (%p988) target = $region128
        $region127: #{nafnet_forward.1} parent=123 // pred_region
          %p991 = scmp.lt.s32.totalorder %s47, 1
          %s992 = scalar_select %p991, %s47, 1
          %s993 = smul.addr %s992, 2
          %s994 = smul.addr %s993, 8
          %s995 = scalar_lea.vmem %s0, %s994
        $region128: #{nafnet_forward.1} parent=123 // pred_fallthru
          _
      $region124: #{nafnet_forward.1} parent=5 // pred_fallthru
        _
      %p996 = scmp.le.s32.totalorder 1, %s47
      %p997 = scmp.lt.s32.totalorder %s47, 3
      %p998 = pnand %p996, %p997
      %p999 = pneg %p998
      // Predicated region
      $region129: #{nafnet_forward.1} parent=5 // pred_check
        _
      $region130: #{nafnet_forward.1} parent=5 // pred_check_branch
        %1001 = sbr.rel (%p998) target = $region132
      $region131: #{nafnet_forward.1} parent=5 // pred_region
        %s1002 = ssub.s32 %s47, 1
        // Predicated region
        $region133: #{nafnet_forward.1} parent=131 // pred_check
          %p1003 = pneg %p94
        $region134: #{nafnet_forward.1} parent=131 // pred_check_branch
          %1005 = sbr.rel (%p1003) target = $region136
        $region135: #{nafnet_forward.1} parent=131 // pred_region
          %1006 = dma.done [#allocation3], 4608
        $region136: #{nafnet_forward.1} parent=131 // pred_fallthru
          _
        // Predicated region
        $region137: #{nafnet_forward.1} parent=131 // pred_check
          %p1007 = pneg %p115
        $region138: #{nafnet_forward.1} parent=131 // pred_check_branch
          %1009 = sbr.rel (%p1007) target = $region140
        $region139: #{nafnet_forward.1} parent=131 // pred_region
          %1010 = dma.done [#allocation5], 32
        $region140: #{nafnet_forward.1} parent=131 // pred_fallthru
          _
        // Predicated region
        $region141: #{nafnet_forward.1} parent=131 // pred_check
          %p1011 = pneg %p157
        $region142: #{nafnet_forward.1} parent=131 // pred_check_branch
          %1013 = sbr.rel (%p1011) target = $region144
        $region143: #{nafnet_forward.1} parent=131 // pred_region
          %1014 = dma.done [#allocation5], 16
        $region144: #{nafnet_forward.1} parent=131 // pred_fallthru
          _
        // Predicated region
        $region145: #{nafnet_forward.1} parent=131 // pred_check
          %p1015 = pneg %p178
        $region146: #{nafnet_forward.1} parent=131 // pred_check_branch
          %1017 = sbr.rel (%p1015) target = $region148
        $region147: #{nafnet_forward.1} parent=131 // pred_region
          %1018 = dma.done [#allocation8], 8192
        $region148: #{nafnet_forward.1} parent=131 // pred_fallthru
          _
        // Predicated region
        $region149: #{nafnet_forward.1} parent=131 // pred_check
          %p1019 = pneg %p199
        $region150: #{nafnet_forward.1} parent=131 // pred_check_branch
          %1021 = sbr.rel (%p1019) target = $region152
        $region151: #{nafnet_forward.1} parent=131 // pred_region
          %1022 = dma.done [#allocation8], 16384
        $region152: #{nafnet_forward.1} parent=131 // pred_fallthru
          _
        // Predicated region
        $region153: #{nafnet_forward.1} parent=131 // pred_check
          %p1023 = pneg %p220
        $region154: #{nafnet_forward.1} parent=131 // pred_check_branch
          %1025 = sbr.rel (%p1023) target = $region156
        $region155: #{nafnet_forward.1} parent=131 // pred_region
          %1026 = dma.done [#allocation11], 16384
        $region156: #{nafnet_forward.1} parent=131 // pred_fallthru
          _
        // Predicated region
        $region157: #{nafnet_forward.1} parent=131 // pred_check
          %p1027 = pneg %p262
        $region158: #{nafnet_forward.1} parent=131 // pred_check_branch
          %1029 = sbr.rel (%p1027) target = $region160
        $region159: #{nafnet_forward.1} parent=131 // pred_region
          %1030 = dma.done [#allocation11], 512
        $region160: #{nafnet_forward.1} parent=131 // pred_fallthru
          _
        // Predicated region
        $region161: #{nafnet_forward.1} parent=131 // pred_check
          %p1031 = pneg %p283
        $region162: #{nafnet_forward.1} parent=131 // pred_check_branch
          %1033 = sbr.rel (%p1031) target = $region164
        $region163: #{nafnet_forward.1} parent=131 // pred_region
          %1034 = dma.done [#allocation14], 16384
        $region164: #{nafnet_forward.1} parent=131 // pred_fallthru
          _
        // Predicated region
        $region165: #{nafnet_forward.1} parent=131 // pred_check
          %p1035 = pneg %p304
        $region166: #{nafnet_forward.1} parent=131 // pred_check_branch
          %1037 = sbr.rel (%p1035) target = $region168
        $region167: #{nafnet_forward.1} parent=131 // pred_region
          %1038 = dma.done [#allocation14], 64
        $region168: #{nafnet_forward.1} parent=131 // pred_fallthru
          _
        // Predicated region
        $region169: #{nafnet_forward.1} parent=131 // pred_check
          %p1039 = pneg %p325
        $region170: #{nafnet_forward.1} parent=131 // pred_check_branch
          %1041 = sbr.rel (%p1039) target = $region172
        $region171: #{nafnet_forward.1} parent=131 // pred_region
          %1042 = dma.done [#allocation17], 98304
        $region172: #{nafnet_forward.1} parent=131 // pred_fallthru
          _
        // Predicated region
        $region173: #{nafnet_forward.1} parent=131 // pred_check
          %p1043 = pneg %p346
        $region174: #{nafnet_forward.1} parent=131 // pred_check_branch
          %1045 = sbr.rel (%p1043) target = $region176
        $region175: #{nafnet_forward.1} parent=131 // pred_region
          %1046 = dma.done [#allocation17], 64
        $region176: #{nafnet_forward.1} parent=131 // pred_fallthru
          _
        // Predicated region
        $region177: #{nafnet_forward.1} parent=131 // pred_check
          %p1047 = pneg %p367
        $region178: #{nafnet_forward.1} parent=131 // pred_check_branch
          %1049 = sbr.rel (%p1047) target = $region180
        $region179: #{nafnet_forward.1} parent=131 // pred_region
          %1050 = dma.done [#allocation20], 32
        $region180: #{nafnet_forward.1} parent=131 // pred_fallthru
          _
        // Predicated region
        $region181: #{nafnet_forward.1} parent=131 // pred_check
          %p1051 = pneg %p388
        $region182: #{nafnet_forward.1} parent=131 // pred_check_branch
          %1053 = sbr.rel (%p1051) target = $region184
        $region183: #{nafnet_forward.1} parent=131 // pred_region
          %1054 = dma.done [#allocation20], 32
        $region184: #{nafnet_forward.1} parent=131 // pred_fallthru
          _
        // Predicated region
        $region185: #{nafnet_forward.1} parent=131 // pred_check
          %p1055 = pneg %p409
        $region186: #{nafnet_forward.1} parent=131 // pred_check_branch
          %1057 = sbr.rel (%p1055) target = $region188
        $region187: #{nafnet_forward.1} parent=131 // pred_region
          %1058 = dma.done [#allocation23], 256
        $region188: #{nafnet_forward.1} parent=131 // pred_fallthru
          _
        // Predicated region
        $region189: #{nafnet_forward.1} parent=131 // pred_check
          %p1059 = pneg %p430
        $region190: #{nafnet_forward.1} parent=131 // pred_check_branch
          %1061 = sbr.rel (%p1059) target = $region192
        $region191: #{nafnet_forward.1} parent=131 // pred_region
          %1062 = dma.done [#allocation23], 16
        $region192: #{nafnet_forward.1} parent=131 // pred_fallthru
          _
        // Predicated region
        $region193: #{nafnet_forward.1} parent=131 // pred_check
          %p1063 = pneg %p451
        $region194: #{nafnet_forward.1} parent=131 // pred_check_branch
          %1065 = sbr.rel (%p1063) target = $region196
        $region195: #{nafnet_forward.1} parent=131 // pred_region
          %1066 = dma.done [#allocation26], 8192
        $region196: #{nafnet_forward.1} parent=131 // pred_fallthru
          _
        // Predicated region
        $region197: #{nafnet_forward.1} parent=131 // pred_check
          %p1067 = pneg %p472
        $region198: #{nafnet_forward.1} parent=131 // pred_check_branch
          %1069 = sbr.rel (%p1067) target = $region200
        $region199: #{nafnet_forward.1} parent=131 // pred_region
          %1070 = dma.done [#allocation26], 32
        $region200: #{nafnet_forward.1} parent=131 // pred_fallthru
          _
        // Predicated region
        $region201: #{nafnet_forward.1} parent=131 // pred_check
          %p1071 = pneg %p493
        $region202: #{nafnet_forward.1} parent=131 // pred_check_branch
          %1073 = sbr.rel (%p1071) target = $region204
        $region203: #{nafnet_forward.1} parent=131 // pred_region
          %1074 = dma.done [#allocation29], 32
        $region204: #{nafnet_forward.1} parent=131 // pred_fallthru
          _
        // Predicated region
        $region205: #{nafnet_forward.1} parent=131 // pred_check
          %p1075 = pneg %p514
        $region206: #{nafnet_forward.1} parent=131 // pred_check_branch
          %1077 = sbr.rel (%p1075) target = $region208
        $region207: #{nafnet_forward.1} parent=131 // pred_region
          %1078 = dma.done [#allocation29], 32
        $region208: #{nafnet_forward.1} parent=131 // pred_fallthru
          _
        // Predicated region
        $region209: #{nafnet_forward.1} parent=131 // pred_check
          %p1079 = pneg %p535
        $region210: #{nafnet_forward.1} parent=131 // pred_check_branch
          %1081 = sbr.rel (%p1079) target = $region212
        $region211: #{nafnet_forward.1} parent=131 // pred_region
          %1082 = dma.done [#allocation32], 16384
        $region212: #{nafnet_forward.1} parent=131 // pred_fallthru
          _
        // Predicated region
        $region213: #{nafnet_forward.1} parent=131 // pred_check
          %p1083 = pneg %p556
        $region214: #{nafnet_forward.1} parent=131 // pred_check_branch
          %1085 = sbr.rel (%p1083) target = $region216
        $region215: #{nafnet_forward.1} parent=131 // pred_region
          %1086 = dma.done [#allocation32], 64
        $region216: #{nafnet_forward.1} parent=131 // pred_fallthru
          _
        // Predicated region
        $region217: #{nafnet_forward.1} parent=131 // pred_check
          %p1087 = pneg %p577
        $region218: #{nafnet_forward.1} parent=131 // pred_check_branch
          %1089 = sbr.rel (%p1087) target = $region220
        $region219: #{nafnet_forward.1} parent=131 // pred_region
          %1090 = dma.done [#allocation35], 8192
        $region220: #{nafnet_forward.1} parent=131 // pred_fallthru
          _
        // Predicated region
        $region221: #{nafnet_forward.1} parent=131 // pred_check
          %p1091 = pneg %p598
        $region222: #{nafnet_forward.1} parent=131 // pred_check_branch
          %1093 = sbr.rel (%p1091) target = $region224
        $region223: #{nafnet_forward.1} parent=131 // pred_region
          %1094 = dma.done [#allocation35], 32
        $region224: #{nafnet_forward.1} parent=131 // pred_fallthru
          _
        // Predicated region
        $region225: #{nafnet_forward.1} parent=131 // pred_check
          %p1095 = pneg %p619
        $region226: #{nafnet_forward.1} parent=131 // pred_check_branch
          %1097 = sbr.rel (%p1095) target = $region228
        $region227: #{nafnet_forward.1} parent=131 // pred_region
          %1098 = dma.done [#allocation38], 32
        $region228: #{nafnet_forward.1} parent=131 // pred_fallthru
          _
        // Predicated region
        $region229: #{nafnet_forward.1} parent=131 // pred_check
          %p1099 = pneg %p640
        $region230: #{nafnet_forward.1} parent=131 // pred_check_branch
          %1101 = sbr.rel (%p1099) target = $region232
        $region231: #{nafnet_forward.1} parent=131 // pred_region
          %1102 = dma.done [#allocation38], 32
        $region232: #{nafnet_forward.1} parent=131 // pred_fallthru
          _
        %p1103 = scmp.lt.s32.totalorder %s52, 1
        %s1104 = scalar_select %p1103, %s52, 1
        %s1105 = smul.addr %s1104, 2
        %s1106 = smul.addr %s1105, 8
        %s1107 = scalar_lea.vmem %s0, %s1106
        %p1108 = pneg %p73
        %p1109 = pneg %p70
        %p1110 = pneg %p94
        %p1111 = pneg %p91
        %p1112 = pneg %p115
        %p1113 = pneg %p112
        %p1114 = pneg %p136
        %p1115 = pneg %p133
        %p1116 = pneg %p157
        %p1117 = pneg %p154
        %p1118 = pneg %p178
        %p1119 = pneg %p175
        %p1120 = pneg %p199
        %p1121 = pneg %p196
        %p1122 = pneg %p220
        %p1123 = pneg %p217
        %p1124 = pneg %p241
        %p1125 = pneg %p238
        %p1126 = pneg %p262
        %p1127 = pneg %p259
        %p1128 = pneg %p283
        %p1129 = pneg %p280
        %p1130 = pneg %p304
        %p1131 = pneg %p301
        %p1132 = pneg %p325
        %p1133 = pneg %p322
        %p1134 = pneg %p346
        %p1135 = pneg %p343
        %p1136 = pneg %p367
        %p1137 = pneg %p364
        %p1138 = pneg %p388
        %p1139 = pneg %p385
        %p1140 = pneg %p409
        %p1141 = pneg %p406
        %p1142 = pneg %p430
        %p1143 = pneg %p427
        %p1144 = pneg %p451
        %p1145 = pneg %p448
        %p1146 = pneg %p472
        %p1147 = pneg %p469
        %p1148 = pneg %p493
        %p1149 = pneg %p490
        %p1150 = pneg %p514
        %p1151 = pneg %p511
        %p1152 = pneg %p535
        %p1153 = pneg %p532
        %p1154 = pneg %p556
        %p1155 = pneg %p553
        %p1156 = pneg %p577
        %p1157 = pneg %p574
        %p1158 = pneg %p598
        %p1159 = pneg %p595
        %p1160 = pneg %p619
        %p1161 = pneg %p616
        %p1162 = pneg %p640
        %p1163 = pneg %p637
        %p1164 = pneg %p666
        %p1165 = pneg %p663
        %p1166 = scmp.lt.s32.totalorder %s52, 1
        %s1167 = scalar_select %p1166, %s52, 1
        %s1168 = smul.addr %s1167, 2
        %s1169 = smul.addr %s1168, 8
        %s1170 = scalar_lea.vmem %s28, %s1169
        %p1171 = scmp.lt.s32.totalorder %s52, 1
        %s1172 = scalar_select %p1171, %s52, 1
        %s1173 = smul.addr %s1172, 2
        %s1174 = smul.addr %s1173, 8
        %s1175 = scalar_lea.vmem %s0, %s1174
        %p1176 = scmp.lt.s32.totalorder %s52, 1
        %s1177 = scalar_select %p1176, %s52, 1
        %s1178 = smul.addr %s1177, 2
        %s1179 = smul.addr %s1178, 8
        %s1180 = scalar_lea.vmem %s28, %s1179
        %v1181 = vld [vmem:[%s1175] sm:$0xff]
        %v1182 = vld [vmem:[%s1175 + $0x8] sm:$0xff]
        %vm1185 = vcmask 1040384
        %v1186 = vrot.slane %v1181, 7
        %v1187 = vrot.slane %v1182, 7
        %v1188 = vsel %vm1185, %v1186, %v1187
        %v1191 = vsel %vm1185, 0.0, %v1186
        %v1192 = vsel %vm1185, %v1187, 0.0
        %v1193 = vld [vmem:[#allocation2] sm:$0xff]
        %v1194 = vld [vmem:[#allocation2 + $0x8] sm:$0xff]
        %v1195 = vld [vmem:[#allocation2 + $0x10] sm:$0xff]
        %v1196 = vld [vmem:[#allocation2 + $0x18] sm:$0xff]
        %v1197 = vld [vmem:[#allocation2 + $0x20] sm:$0xff]
        %v1198 = vld [vmem:[#allocation2 + $0x28] sm:$0xff]
        %v1199 = vld [vmem:[#allocation2 + $0x30] sm:$0xff]
        %v1200 = vld [vmem:[#allocation2 + $0x38] sm:$0xff]
        %v1201 = vld [vmem:[#allocation2 + $0x40] sm:$0xff]
        %v1202 = vld [vmem:[#allocation2 + $0x48] sm:$0xff]
        %v1203 = vld [vmem:[#allocation2 + $0x50] sm:$0xff]
        %v1204 = vld [vmem:[#allocation2 + $0x58] sm:$0xff]
        %s1205 = scalar_lea.vmem [#allocation2], 96
        %v1206 = vld [vmem:[%s1205] sm:$0xff]
        %v1207 = vld [vmem:[%s1205 + $0x8] sm:$0xff]
        %v1208 = vld [vmem:[%s1205 + $0x10] sm:$0xff]
        %v1209 = vld [vmem:[%s1205 + $0x18] sm:$0xff]
        %v1210 = vld [vmem:[%s1205 + $0x20] sm:$0xff]
        %v1211 = vld [vmem:[%s1205 + $0x28] sm:$0xff]
        %v1212 = vld [vmem:[%s1205 + $0x30] sm:$0xff]
        %v1213 = vld [vmem:[%s1205 + $0x38] sm:$0xff]
        %v1214 = vld [vmem:[%s1205 + $0x40] sm:$0xff]
        %v1215 = vld [vmem:[%s1205 + $0x48] sm:$0xff]
        %v1216 = vld [vmem:[%s1205 + $0x50] sm:$0xff]
        %v1217 = vld [vmem:[%s1205 + $0x58] sm:$0xff]
        %vm1220 = vcmask 1046528
        %v1221 = vrot.slane %v1191, 1
        %v1222 = vrot.slane %v1188, 1
        %v1223 = vsel %vm1220, %v1221, %v1222
        %v1224 = vrot.slane %v1192, 1
        %v1225 = vsel %vm1220, %v1222, %v1224
        %vm1226 = vcmask 392192
        %v1227 = vsel %vm1226, %v1223, 0
        %v1229 = vsel %vm1226, %v1225, 0
        %1231 = vmatprep.subr.mxu0 %v1207
        %1232 = vmatpush1.msra.mxu0 %v1206
        %1233 = vmatprep.subr.mxu0 %v1209
        %1234 = vmatpush1.msra.mxu0 %v1208
        %1235 = vmatprep.subr.mxu0 %v1211
        %1236 = vmatpush1.msra.mxu0 %v1210
        %1237 = vmatprep.subr.mxu0 %v1213
        %1238 = vmatpush1.msra.mxu0 %v1212
        %1239 = vmatprep.subr.mxu0 %v1215
        %1240 = vmatpush1.msra.mxu0 %v1214
        %1241 = vmatprep.subr.mxu0 %v1217
        %1242 = vmatpush1.msra.mxu0 %v1216
        %1243 = vmatprep.subr.mxu0 0.0
        %1244 = vmatpush1.msra.mxu0 0.0
        %1245 = vmatprep.subr.mxu0 0.0
        %1246 = vmatpush1.msra.mxu0 0.0
        %1247 = vmatprep.subr.mxu0 0.0
        %1248 = vmatpush1.msra.mxu0 0.0
        %1249 = vmatprep.subr.mxu0 0.0
        %1250 = vmatpush1.msra.mxu0 0.0
        %1251 = vmatprep.subr.mxu0 0.0
        %1252 = vmatpush1.msra.mxu0 0.0
        %1253 = vmatprep.subr.mxu0 0.0
        %1254 = vmatpush1.msra.mxu0 0.0
        %1255 = vmatprep.subr.mxu0 0.0
        %1256 = vmatpush1.msra.mxu0 0.0
        %1257 = vmatprep.subr.mxu0 0.0
        %1258 = vmatpush1.msra.mxu0 0.0
        %1259 = vmatprep.subr.mxu0 0.0
        %1260 = vmatpush1.msra.mxu0 0.0
        %1261 = vmatprep.subr.mxu0 0.0
        %1262 = vmatpush1.msra.mxu0 0.0
        %1263 = vmatprep.subr.mxu0 0.0
        %1264 = vmatpush1.msra.mxu0 0.0
        %1265 = vmatprep.subr.mxu0 0.0
        %1266 = vmatpush1.msra.mxu0 0.0
        %1267 = vmatprep.subr.mxu0 0.0
        %1268 = vmatpush1.msra.mxu0 0.0
        %1269 = vmatprep.subr.mxu0 0.0
        %1270 = vmatpush1.msra.mxu0 0.0
        %1271 = vmatprep.subr.mxu0 0.0
        %1272 = vmatpush1.msra.mxu0 0.0
        %1273 = vmatprep.subr.mxu0 0.0
        %1274 = vmatpush1.msra.mxu0 0.0
        %1275 = vmatprep.subr.mxu0 0.0
        %1276 = vmatpush1.msra.mxu0 0.0
        %1277 = vmatprep.subr.mxu0 0.0
        %1278 = vmatpush1.msra.mxu0 0.0
        %1279 = vmatprep.subr.mxu0 0.0
        %1280 = vmatpush1.msra.mxu0 0.0
        %1281 = vmatprep.subr.mxu0 0.0
        %1282 = vmatpush1.msra.mxu0 0.0
        %1283 = vmatprep.subr.mxu0 0.0
        %1284 = vmatpush1.msra.mxu0 0.0
        %1285 = vmatprep.subr.mxu0 0.0
        %1286 = vmatpush1.msra.mxu0 0.0
        %1287 = vmatprep.subr.mxu0 0.0
        %1288 = vmatpush1.msra.mxu0 0.0
        %1289 = vmatprep.subr.mxu0 0.0
        %1290 = vmatpush1.msra.mxu0 0.0
        %1291 = vmatprep.subr.mxu0 0.0
        %1292 = vmatpush1.msra.mxu0 0.0
        %1293 = vmatprep.subr.mxu0 0.0
        %1294 = vmatpush1.msra.mxu0 0.0
        %1295 = vmatprep.mubr.f32.mxu0 0.0
        %1296 = vmatmul.mubr.f32.gmra.mrb[0].mxu0 %v1227
        %v1297 = vpop.f32.mrb[0].mxu0
        %v1298 = vadd.f32 0.0, %v1297
        %v1299 = vpop.f32.mrb[0].mxu0
        %v1300 = vadd.f32 0.0, %v1299
        %1301 = vmatprep.mubr.f32.mxu0 0.0
        %1302 = vmatmul.mubr.f32.gmra.mrb[0].mxu0 %v1229
        %v1303 = vpop.f32.mrb[0].mxu0
        %v1304 = vadd.f32 0.0, %v1303
        %v1305 = vpop.f32.mrb[0].mxu0
        %v1306 = vadd.f32 0.0, %v1305
        %1307 = vdwg.mxu0
        %v1308 = vsel %vm1226, %v1191, 0
        %v1310 = vsel %vm1226, %v1188, 0
        %1312 = vmatprep.subr.mxu0 %v1194
        %1313 = vmatpush1.msra.mxu0 %v1193
        %1314 = vmatprep.subr.mxu0 %v1196
        %1315 = vmatpush1.msra.mxu0 %v1195
        %1316 = vmatprep.subr.mxu0 %v1198
        %1317 = vmatpush1.msra.mxu0 %v1197
        %1318 = vmatprep.subr.mxu0 %v1200
        %1319 = vmatpush1.msra.mxu0 %v1199
        %1320 = vmatprep.subr.mxu0 %v1202
        %1321 = vmatpush1.msra.mxu0 %v1201
        %1322 = vmatprep.subr.mxu0 %v1204
        %1323 = vmatpush1.msra.mxu0 %v1203
        %1324 = vmatprep.subr.mxu0 0.0
        %1325 = vmatpush1.msra.mxu0 0.0
        %1326 = vmatprep.subr.mxu0 0.0
        %1327 = vmatpush1.msra.mxu0 0.0
        %1328 = vmatprep.subr.mxu0 0.0
        %1329 = vmatpush1.msra.mxu0 0.0
        %1330 = vmatprep.subr.mxu0 0.0
        %1331 = vmatpush1.msra.mxu0 0.0
        %1332 = vmatprep.subr.mxu0 0.0
        %1333 = vmatpush1.msra.mxu0 0.0
        %1334 = vmatprep.subr.mxu0 0.0
        %1335 = vmatpush1.msra.mxu0 0.0
        %1336 = vmatprep.subr.mxu0 0.0
        %1337 = vmatpush1.msra.mxu0 0.0
        %1338 = vmatprep.subr.mxu0 0.0
        %1339 = vmatpush1.msra.mxu0 0.0
        %1340 = vmatprep.subr.mxu0 0.0
        %1341 = vmatpush1.msra.mxu0 0.0
        %1342 = vmatprep.subr.mxu0 0.0
        %1343 = vmatpush1.msra.mxu0 0.0
        %1344 = vmatprep.subr.mxu0 0.0
        %1345 = vmatpush1.msra.mxu0 0.0
        %1346 = vmatprep.subr.mxu0 0.0
        %1347 = vmatpush1.msra.mxu0 0.0
        %1348 = vmatprep.subr.mxu0 0.0
        %1349 = vmatpush1.msra.mxu0 0.0
        %1350 = vmatprep.subr.mxu0 0.0
        %1351 = vmatpush1.msra.mxu0 0.0
        %1352 = vmatprep.subr.mxu0 0.0
        %1353 = vmatpush1.msra.mxu0 0.0
        %1354 = vmatprep.subr.mxu0 0.0
        %1355 = vmatpush1.msra.mxu0 0.0
        %1356 = vmatprep.subr.mxu0 0.0
        %1357 = vmatpush1.msra.mxu0 0.0
        %1358 = vmatprep.subr.mxu0 0.0
        %1359 = vmatpush1.msra.mxu0 0.0
        %1360 = vmatprep.subr.mxu0 0.0
        %1361 = vmatpush1.msra.mxu0 0.0
        %1362 = vmatprep.subr.mxu0 0.0
        %1363 = vmatpush1.msra.mxu0 0.0
        %1364 = vmatprep.subr.mxu0 0.0
        %1365 = vmatpush1.msra.mxu0 0.0
        %1366 = vmatprep.subr.mxu0 0.0
        %1367 = vmatpush1.msra.mxu0 0.0
        %1368 = vmatprep.subr.mxu0 0.0
        %1369 = vmatpush1.msra.mxu0 0.0
        %1370 = vmatprep.subr.mxu0 0.0
        %1371 = vmatpush1.msra.mxu0 0.0
        %1372 = vmatprep.subr.mxu0 0.0
        %1373 = vmatpush1.msra.mxu0 0.0
        %1374 = vmatprep.subr.mxu0 0.0
        %1375 = vmatpush1.msra.mxu0 0.0
        %1376 = vmatprep.mubr.f32.mxu0 0.0
        %1377 = vmatmul.mubr.f32.gmra.mrb[0].mxu0 %v1308
        %v1378 = vpop.f32.mrb[0].mxu0
        %v1379 = vadd.f32 %v1298, %v1378
        %v1380 = vpop.f32.mrb[0].mxu0
        %v1381 = vadd.f32 %v1300, %v1380
        %1382 = vmatprep.mubr.f32.mxu0 0.0
        %1383 = vmatmul.mubr.f32.gmra.mrb[0].mxu0 %v1310
        %v1384 = vpop.f32.mrb[0].mxu0
        %v1385 = vadd.f32 %v1304, %v1384
        %v1386 = vpop.f32.mrb[0].mxu0
        %v1387 = vadd.f32 %v1306, %v1386
        %1388 = vdwg.mxu0
        %s1389 = scalar_lea.vmem [#allocation2], 192
        %v1390 = vld [vmem:[%s1389] sm:$0xff]
        %v1391 = vld [vmem:[%s1389 + $0x8] sm:$0xff]
        %v1392 = vld [vmem:[%s1389 + $0x10] sm:$0xff]
        %v1393 = vld [vmem:[%s1389 + $0x18] sm:$0xff]
        %v1394 = vld [vmem:[%s1389 + $0x20] sm:$0xff]
        %v1395 = vld [vmem:[%s1389 + $0x28] sm:$0xff]
        %v1396 = vld [vmem:[%s1389 + $0x30] sm:$0xff]
        %v1397 = vld [vmem:[%s1389 + $0x38] sm:$0xff]
        %v1398 = vld [vmem:[%s1389 + $0x40] sm:$0xff]
        %v1399 = vld [vmem:[%s1389 + $0x48] sm:$0xff]
        %v1400 = vld [vmem:[%s1389 + $0x50] sm:$0xff]
        %v1401 = vld [vmem:[%s1389 + $0x58] sm:$0xff]
        %vm1402 = vcmask 1045504
        %v1403 = vrot.slane %v1191, 2
        %v1404 = vrot.slane %v1188, 2
        %v1405 = vsel %vm1402, %v1403, %v1404
        %v1406 = vrot.slane %v1192, 2
        %v1407 = vsel %vm1402, %v1404, %v1406
        %v1408 = vsel %vm1226, %v1405, 0
        %v1410 = vsel %vm1226, %v1407, 0
        %1412 = vmatprep.subr.mxu0 %v1391
        %1413 = vmatpush1.msra.mxu0 %v1390
        %1414 = vmatprep.subr.mxu0 %v1393
        %1415 = vmatpush1.msra.mxu0 %v1392
        %1416 = vmatprep.subr.mxu0 %v1395
        %1417 = vmatpush1.msra.mxu0 %v1394
        %1418 = vmatprep.subr.mxu0 %v1397
        %1419 = vmatpush1.msra.mxu0 %v1396
        %1420 = vmatprep.subr.mxu0 %v1399
        %1421 = vmatpush1.msra.mxu0 %v1398
        %1422 = vmatprep.subr.mxu0 %v1401
        %1423 = vmatpush1.msra.mxu0 %v1400
        %1424 = vmatprep.subr.mxu0 0.0
        %1425 = vmatpush1.msra.mxu0 0.0
        %1426 = vmatprep.subr.mxu0 0.0
        %1427 = vmatpush1.msra.mxu0 0.0
        %1428 = vmatprep.subr.mxu0 0.0
        %1429 = vmatpush1.msra.mxu0 0.0
        %1430 = vmatprep.subr.mxu0 0.0
        %1431 = vmatpush1.msra.mxu0 0.0
        %1432 = vmatprep.subr.mxu0 0.0
        %1433 = vmatpush1.msra.mxu0 0.0
        %1434 = vmatprep.subr.mxu0 0.0
        %1435 = vmatpush1.msra.mxu0 0.0
        %1436 = vmatprep.subr.mxu0 0.0
        %1437 = vmatpush1.msra.mxu0 0.0
        %1438 = vmatprep.subr.mxu0 0.0
        %1439 = vmatpush1.msra.mxu0 0.0
        %1440 = vmatprep.subr.mxu0 0.0
        %1441 = vmatpush1.msra.mxu0 0.0
        %1442 = vmatprep.subr.mxu0 0.0
        %1443 = vmatpush1.msra.mxu0 0.0
        %1444 = vmatprep.subr.mxu0 0.0
        %1445 = vmatpush1.msra.mxu0 0.0
        %1446 = vmatprep.subr.mxu0 0.0
        %1447 = vmatpush1.msra.mxu0 0.0
        %1448 = vmatprep.subr.mxu0 0.0
        %1449 = vmatpush1.msra.mxu0 0.0
        %1450 = vmatprep.subr.mxu0 0.0
        %1451 = vmatpush1.msra.mxu0 0.0
        %1452 = vmatprep.subr.mxu0 0.0
        %1453 = vmatpush1.msra.mxu0 0.0
        %1454 = vmatprep.subr.mxu0 0.0
        %1455 = vmatpush1.msra.mxu0 0.0
        %1456 = vmatprep.subr.mxu0 0.0
        %1457 = vmatpush1.msra.mxu0 0.0
        %1458 = vmatprep.subr.mxu0 0.0
        %1459 = vmatpush1.msra.mxu0 0.0
        %1460 = vmatprep.subr.mxu0 0.0
        %1461 = vmatpush1.msra.mxu0 0.0
        %1462 = vmatprep.subr.mxu0 0.0
        %1463 = vmatpush1.msra.mxu0 0.0
        %1464 = vmatprep.subr.mxu0 0.0
        %1465 = vmatpush1.msra.mxu0 0.0
        %1466 = vmatprep.subr.mxu0 0.0
        %1467 = vmatpush1.msra.mxu0 0.0
        %1468 = vmatprep.subr.mxu0 0.0
        %1469 = vmatpush1.msra.mxu0 0.0
        %1470 = vmatprep.subr.mxu0 0.0
        %1471 = vmatpush1.msra.mxu0 0.0
        %1472 = vmatprep.subr.mxu0 0.0
        %1473 = vmatpush1.msra.mxu0 0.0
        %1474 = vmatprep.subr.mxu0 0.0
        %1475 = vmatpush1.msra.mxu0 0.0
        %1476 = vmatprep.mubr.f32.mxu0 0.0
        %1477 = vmatmul.mubr.f32.gmra.mrb[0].mxu0 %v1408
        %v1478 = vpop.f32.mrb[0].mxu0
        %v1479 = vadd.f32 0.0, %v1478
        %v1480 = vpop.f32.mrb[0].mxu0
        %v1481 = vadd.f32 0.0, %v1480
        %1482 = vmatprep.mubr.f32.mxu0 0.0
        %1483 = vmatmul.mubr.f32.gmra.mrb[0].mxu0 %v1410
        %v1484 = vpop.f32.mrb[0].mxu0
        %v1485 = vadd.f32 0.0, %v1484
        %v1486 = vpop.f32.mrb[0].mxu0
        %v1487 = vadd.f32 0.0, %v1486
        %1488 = vdwg.mxu0
        %v1489 = vadd.f32 %v1379, %v1479
        %v1490 = vadd.f32 %v1381, %v1481
        %v1491 = vadd.f32 %v1385, %v1485
        %v1492 = vadd.f32 %v1387, %v1487
        %v1493 = vld [vmem:[#allocation4] sm:$0x3]
        %v1495 = vlaneseq
        %v1496 = vshrl.u32 %v1495, 7
        %v1497 = vsub.s32 0, %v1496
        %v1498 = vrot.slane %v1493, %v1497
        %v1499 = vlaneseq
        %v1500 = vshrl.u32 %v1499, 7
        %v1501 = vsub.s32 1, %v1500
        %v1502 = vrot.slane %v1493, %v1501
        %v1505 = vadd.f32 %v1489, %v1498
        %v1506 = vadd.f32 %v1490, %v1502
        %v1507 = vadd.f32 %v1491, %v1498
        %v1508 = vadd.f32 %v1492, %v1502
        %v1509 = vld [vmem:[#allocation19] sm:$0x3]
        %v1510 = vld [vmem:[#allocation21] sm:$0x3]
        %v1511 = vld [vmem:[#allocation7] sm:$0xff]
        %v1512 = vld [vmem:[#allocation7 + $0x8] sm:$0xff]
        %v1513 = vld [vmem:[#allocation7 + $0x10] sm:$0xff]
        %v1514 = vld [vmem:[#allocation7 + $0x18] sm:$0xff]
        %v1515 = vld [vmem:[#allocation7 + $0x20] sm:$0xff]
        %v1516 = vld [vmem:[#allocation7 + $0x28] sm:$0xff]
        %v1517 = vld [vmem:[#allocation7 + $0x30] sm:$0xff]
        %v1518 = vld [vmem:[#allocation7 + $0x38] sm:$0xff]
        %v1519 = vld [vmem:[#allocation7 + $0x40] sm:$0xff]
        %v1520 = vld [vmem:[#allocation7 + $0x48] sm:$0xff]
        %v1521 = vld [vmem:[#allocation7 + $0x50] sm:$0xff]
        %v1522 = vld [vmem:[#allocation7 + $0x58] sm:$0xff]
        %v1523 = vld [vmem:[#allocation7 + $0x60] sm:$0xff]
        %v1524 = vld [vmem:[#allocation7 + $0x68] sm:$0xff]
        %v1525 = vld [vmem:[#allocation7 + $0x70] sm:$0xff]
        %v1526 = vld [vmem:[#allocation7 + $0x78] sm:$0xff]
        %v1527 = vld [vmem:[#allocation7 + $0x80] sm:$0xff]
        %v1528 = vld [vmem:[#allocation7 + $0x88] sm:$0xff]
        %v1529 = vld [vmem:[#allocation7 + $0x90] sm:$0xff]
        %v1530 = vld [vmem:[#allocation7 + $0x98] sm:$0xff]
        %v1531 = vld [vmem:[#allocation7 + $0xa0] sm:$0xff]
        %v1532 = vld [vmem:[#allocation7 + $0xa8] sm:$0xff]
        %v1533 = vld [vmem:[#allocation7 + $0xb0] sm:$0xff]
        %v1534 = vld [vmem:[#allocation7 + $0xb8] sm:$0xff]
        %v1535 = vld [vmem:[#allocation7 + $0xc0] sm:$0xff]
        %v1536 = vld [vmem:[#allocation7 + $0xc8] sm:$0xff]
        %v1537 = vld [vmem:[#allocation7 + $0xd0] sm:$0xff]
        %v1538 = vld [vmem:[#allocation7 + $0xd8] sm:$0xff]
        %v1539 = vld [vmem:[#allocation7 + $0xe0] sm:$0xff]
        %v1540 = vld [vmem:[#allocation7 + $0xe8] sm:$0xff]
        %v1541 = vld [vmem:[#allocation7 + $0xf0] sm:$0xff]
        %v1542 = vld [vmem:[#allocation7 + $0xf8] sm:$0xff]
        %v1543 = vld [vmem:[#allocation7 + $0x100] sm:$0xff]
        %v1544 = vld [vmem:[#allocation7 + $0x108] sm:$0xff]
        %v1545 = vld [vmem:[#allocation7 + $0x110] sm:$0xff]
        %v1546 = vld [vmem:[#allocation7 + $0x118] sm:$0xff]
        %v1547 = vld [vmem:[#allocation7 + $0x120] sm:$0xff]
        %v1548 = vld [vmem:[#allocation7 + $0x128] sm:$0xff]
        %v1549 = vld [vmem:[#allocation7 + $0x130] sm:$0xff]
        %v1550 = vld [vmem:[#allocation7 + $0x138] sm:$0xff]
        %v1551 = vld [vmem:[#allocation7 + $0x140] sm:$0xff]
        %v1552 = vld [vmem:[#allocation7 + $0x148] sm:$0xff]
        %v1553 = vld [vmem:[#allocation7 + $0x150] sm:$0xff]
        %v1554 = vld [vmem:[#allocation7 + $0x158] sm:$0xff]
        %v1555 = vld [vmem:[#allocation7 + $0x160] sm:$0xff]
        %v1556 = vld [vmem:[#allocation7 + $0x168] sm:$0xff]
        %v1557 = vld [vmem:[#allocation7 + $0x170] sm:$0xff]
        %v1558 = vld [vmem:[#allocation7 + $0x178] sm:$0xff]
        %v1559 = vld [vmem:[#allocation7 + $0x180] sm:$0xff]
        %v1560 = vld [vmem:[#allocation7 + $0x188] sm:$0xff]
        %v1561 = vld [vmem:[#allocation7 + $0x190] sm:$0xff]
        %v1562 = vld [vmem:[#allocation7 + $0x198] sm:$0xff]
        %v1563 = vld [vmem:[#allocation7 + $0x1a0] sm:$0xff]
        %v1564 = vld [vmem:[#allocation7 + $0x1a8] sm:$0xff]
        %v1565 = vld [vmem:[#allocation7 + $0x1b0] sm:$0xff]
        %v1566 = vld [vmem:[#allocation7 + $0x1b8] sm:$0xff]
        %v1567 = vld [vmem:[#allocation7 + $0x1c0] sm:$0xff]
        %v1568 = vld [vmem:[#allocation7 + $0x1c8] sm:$0xff]
        %v1569 = vld [vmem:[#allocation7 + $0x1d0] sm:$0xff]
        %v1570 = vld [vmem:[#allocation7 + $0x1d8] sm:$0xff]
        %v1571 = vld [vmem:[#allocation7 + $0x1e0] sm:$0xff]
        %v1572 = vld [vmem:[#allocation7 + $0x1e8] sm:$0xff]
        %v1573 = vld [vmem:[#allocation7 + $0x1f0] sm:$0xff]
        %v1574 = vld [vmem:[#allocation7 + $0x1f8] sm:$0xff]
        %1575 = vmatprep.subr.mxu0 %v1512
        %1576 = vmatpush1.msra.mxu0 %v1511
        %1577 = vmatprep.subr.mxu0 %v1514
        %1578 = vmatpush1.msra.mxu0 %v1513
        %1579 = vmatprep.subr.mxu0 %v1516
        %1580 = vmatpush1.msra.mxu0 %v1515
        %1581 = vmatprep.subr.mxu0 %v1518
        %1582 = vmatpush1.msra.mxu0 %v1517
        %1583 = vmatprep.subr.mxu0 %v1520
        %1584 = vmatpush1.msra.mxu0 %v1519
        %1585 = vmatprep.subr.mxu0 %v1522
        %1586 = vmatpush1.msra.mxu0 %v1521
        %1587 = vmatprep.subr.mxu0 %v1524
        %1588 = vmatpush1.msra.mxu0 %v1523
        %1589 = vmatprep.subr.mxu0 %v1526
        %1590 = vmatpush1.msra.mxu0 %v1525
        %1591 = vmatprep.subr.mxu0 %v1528
        %1592 = vmatpush1.msra.mxu0 %v1527
        %1593 = vmatprep.subr.mxu0 %v1530
        %1594 = vmatpush1.msra.mxu0 %v1529
        %1595 = vmatprep.subr.mxu0 %v1532
        %1596 = vmatpush1.msra.mxu0 %v1531
        %1597 = vmatprep.subr.mxu0 %v1534
        %1598 = vmatpush1.msra.mxu0 %v1533
        %1599 = vmatprep.subr.mxu0 %v1536
        %1600 = vmatpush1.msra.mxu0 %v1535
        %1601 = vmatprep.subr.mxu0 %v1538
        %1602 = vmatpush1.msra.mxu0 %v1537
        %1603 = vmatprep.subr.mxu0 %v1540
        %1604 = vmatpush1.msra.mxu0 %v1539
        %1605 = vmatprep.subr.mxu0 %v1542
        %1606 = vmatpush1.msra.mxu0 %v1541
        %1607 = vmatprep.subr.mxu0 %v1544
        %1608 = vmatpush1.msra.mxu0 %v1543
        %1609 = vmatprep.subr.mxu0 %v1546
        %1610 = vmatpush1.msra.mxu0 %v1545
        %1611 = vmatprep.subr.mxu0 %v1548
        %1612 = vmatpush1.msra.mxu0 %v1547
        %1613 = vmatprep.subr.mxu0 %v1550
        %1614 = vmatpush1.msra.mxu0 %v1549
        %1615 = vmatprep.subr.mxu0 %v1552
        %1616 = vmatpush1.msra.mxu0 %v1551
        %1617 = vmatprep.subr.mxu0 %v1554
        %1618 = vmatpush1.msra.mxu0 %v1553
        %1619 = vmatprep.subr.mxu0 %v1556
        %1620 = vmatpush1.msra.mxu0 %v1555
        %1621 = vmatprep.subr.mxu0 %v1558
        %1622 = vmatpush1.msra.mxu0 %v1557
        %1623 = vmatprep.subr.mxu0 %v1560
        %1624 = vmatpush1.msra.mxu0 %v1559
        %1625 = vmatprep.subr.mxu0 %v1562
        %1626 = vmatpush1.msra.mxu0 %v1561
        %1627 = vmatprep.subr.mxu0 %v1564
        %1628 = vmatpush1.msra.mxu0 %v1563
        %1629 = vmatprep.subr.mxu0 %v1566
        %1630 = vmatpush1.msra.mxu0 %v1565
        %1631 = vmatprep.subr.mxu0 %v1568
        %1632 = vmatpush1.msra.mxu0 %v1567
        %1633 = vmatprep.subr.mxu0 %v1570
        %1634 = vmatpush1.msra.mxu0 %v1569
        %1635 = vmatprep.subr.mxu0 %v1572
        %1636 = vmatpush1.msra.mxu0 %v1571
        %1637 = vmatprep.subr.mxu0 %v1574
        %1638 = vmatpush1.msra.mxu0 %v1573
        %1639 = vmatprep.mubr.f32.mxu0 %v1506
        %1640 = vmatmul.mubr.f32.gmra.mrb[0].mxu0 %v1505
        %v1641 = vpop.f32.mrb[0].mxu0
        %v1642 = vadd.f32 0.0, %v1641
        %v1643 = vpop.f32.mrb[0].mxu0
        %v1644 = vadd.f32 0.0, %v1643
        %1645 = vmatprep.mubr.f32.mxu0 %v1508
        %1646 = vmatmul.mubr.f32.gmra.mrb[0].mxu0 %v1507
        %v1647 = vpop.f32.mrb[0].mxu0
        %v1648 = vadd.f32 0.0, %v1647
        %v1649 = vpop.f32.mrb[0].mxu0
        %v1650 = vadd.f32 0.0, %v1649
        %1651 = vdwg.mxu0
        %v1652 = vsub.f32 %v1505, %v1642
        %v1653 = vsub.f32 %v1506, %v1644
        %v1654 = vsub.f32 %v1507, %v1648
        %v1655 = vsub.f32 %v1508, %v1650
        %v1656 = vmul.f32 %v1652, %v1652
        %v1657 = vmul.f32 %v1653, %v1653
        %v1658 = vmul.f32 %v1654, %v1654
        %v1659 = vmul.f32 %v1655, %v1655
        %1660 = vmatprep.subr.mxu0 %v1512
        %1661 = vmatpush1.msra.mxu0 %v1511
        %1662 = vmatprep.subr.mxu0 %v1514
        %1663 = vmatpush1.msra.mxu0 %v1513
        %1664 = vmatprep.subr.mxu0 %v1516
        %1665 = vmatpush1.msra.mxu0 %v1515
        %1666 = vmatprep.subr.mxu0 %v1518
        %1667 = vmatpush1.msra.mxu0 %v1517
        %1668 = vmatprep.subr.mxu0 %v1520
        %1669 = vmatpush1.msra.mxu0 %v1519
        %1670 = vmatprep.subr.mxu0 %v1522
        %1671 = vmatpush1.msra.mxu0 %v1521
        %1672 = vmatprep.subr.mxu0 %v1524
        %1673 = vmatpush1.msra.mxu0 %v1523
        %1674 = vmatprep.subr.mxu0 %v1526
        %1675 = vmatpush1.msra.mxu0 %v1525
        %1676 = vmatprep.subr.mxu0 %v1528
        %1677 = vmatpush1.msra.mxu0 %v1527
        %1678 = vmatprep.subr.mxu0 %v1530
        %1679 = vmatpush1.msra.mxu0 %v1529
        %1680 = vmatprep.subr.mxu0 %v1532
        %1681 = vmatpush1.msra.mxu0 %v1531
        %1682 = vmatprep.subr.mxu0 %v1534
        %1683 = vmatpush1.msra.mxu0 %v1533
        %1684 = vmatprep.subr.mxu0 %v1536
        %1685 = vmatpush1.msra.mxu0 %v1535
        %1686 = vmatprep.subr.mxu0 %v1538
        %1687 = vmatpush1.msra.mxu0 %v1537
        %1688 = vmatprep.subr.mxu0 %v1540
        %1689 = vmatpush1.msra.mxu0 %v1539
        %1690 = vmatprep.subr.mxu0 %v1542
        %1691 = vmatpush1.msra.mxu0 %v1541
        %1692 = vmatprep.subr.mxu0 %v1544
        %1693 = vmatpush1.msra.mxu0 %v1543
        %1694 = vmatprep.subr.mxu0 %v1546
        %1695 = vmatpush1.msra.mxu0 %v1545
        %1696 = vmatprep.subr.mxu0 %v1548
        %1697 = vmatpush1.msra.mxu0 %v1547
        %1698 = vmatprep.subr.mxu0 %v1550
        %1699 = vmatpush1.msra.mxu0 %v1549
        %1700 = vmatprep.subr.mxu0 %v1552
        %1701 = vmatpush1.msra.mxu0 %v1551
        %1702 = vmatprep.subr.mxu0 %v1554
        %1703 = vmatpush1.msra.mxu0 %v1553
        %1704 = vmatprep.subr.mxu0 %v1556
        %1705 = vmatpush1.msra.mxu0 %v1555
        %1706 = vmatprep.subr.mxu0 %v1558
        %1707 = vmatpush1.msra.mxu0 %v1557
        %1708 = vmatprep.subr.mxu0 %v1560
        %1709 = vmatpush1.msra.mxu0 %v1559
        %1710 = vmatprep.subr.mxu0 %v1562
        %1711 = vmatpush1.msra.mxu0 %v1561
        %1712 = vmatprep.subr.mxu0 %v1564
        %1713 = vmatpush1.msra.mxu0 %v1563
        %1714 = vmatprep.subr.mxu0 %v1566
        %1715 = vmatpush1.msra.mxu0 %v1565
        %1716 = vmatprep.subr.mxu0 %v1568
        %1717 = vmatpush1.msra.mxu0 %v1567
        %1718 = vmatprep.subr.mxu0 %v1570
        %1719 = vmatpush1.msra.mxu0 %v1569
        %1720 = vmatprep.subr.mxu0 %v1572
        %1721 = vmatpush1.msra.mxu0 %v1571
        %1722 = vmatprep.subr.mxu0 %v1574
        %1723 = vmatpush1.msra.mxu0 %v1573
        %1724 = vmatprep.mubr.f32.mxu0 %v1657
        %1725 = vmatmul.mubr.f32.gmra.mrb[0].mxu0 %v1656
        %v1726 = vpop.f32.mrb[0].mxu0
        %v1727 = vadd.f32 1e-06, %v1726
        %v1728 = vpop.f32.mrb[0].mxu0
        %v1729 = vadd.f32 1e-06, %v1728
        %1730 = vmatprep.mubr.f32.mxu0 %v1659
        %1731 = vmatmul.mubr.f32.gmra.mrb[0].mxu0 %v1658
        %v1732 = vpop.f32.mrb[0].mxu0
        %v1733 = vadd.f32 1e-06, %v1732
        %v1734 = vpop.f32.mrb[0].mxu0
        %v1735 = vadd.f32 1e-06, %v1734
        %1736 = vdwg.mxu0
        %v1737 = vrsqrt.pop %v1727
        %v1738 = vrsqrt.pop %v1729
        %v1739 = vrsqrt.pop %v1733
        %v1740 = vrsqrt.pop %v1735
        %v1741 = vmul.f32 %v1652, %v1737
        %v1742 = vmul.f32 %v1653, %v1738
        %v1743 = vmul.f32 %v1654, %v1739
        %v1744 = vmul.f32 %v1655, %v1740
        %v1746 = vlaneseq
        %v1747 = vshrl.u32 %v1746, 7
        %v1748 = vsub.s32 0, %v1747
        %v1749 = vrot.slane %v1509, %v1748
        %v1750 = vlaneseq
        %v1751 = vshrl.u32 %v1750, 7
        %v1752 = vsub.s32 1, %v1751
        %v1753 = vrot.slane %v1509, %v1752
        %v1756 = vmul.f32 %v1741, %v1749
        %v1757 = vmul.f32 %v1742, %v1753
        %v1758 = vmul.f32 %v1743, %v1749
        %v1759 = vmul.f32 %v1744, %v1753
        %v1761 = vlaneseq
        %v1762 = vshrl.u32 %v1761, 7
        %v1763 = vsub.s32 0, %v1762
        %v1764 = vrot.slane %v1510, %v1763
        %v1765 = vlaneseq
        %v1766 = vshrl.u32 %v1765, 7
        %v1767 = vsub.s32 1, %v1766
        %v1768 = vrot.slane %v1510, %v1767
        %v1771 = vadd.f32 %v1756, %v1764
        %v1772 = vadd.f32 %v1757, %v1768
        %v1773 = vadd.f32 %v1758, %v1764
        %v1774 = vadd.f32 %v1759, %v1768
        %v1775 = vld [vmem:[#allocation13] sm:$0xff]
        %v1776 = vld [vmem:[#allocation13 + $0x8] sm:$0xff]
        %v1777 = vld [vmem:[#allocation13 + $0x10] sm:$0xff]
        %v1778 = vld [vmem:[#allocation13 + $0x18] sm:$0xff]
        %v1779 = vld [vmem:[#allocation13 + $0x20] sm:$0xff]
        %v1780 = vld [vmem:[#allocation13 + $0x28] sm:$0xff]
        %v1781 = vld [vmem:[#allocation13 + $0x30] sm:$0xff]
        %v1782 = vld [vmem:[#allocation13 + $0x38] sm:$0xff]
        %v1783 = vld [vmem:[#allocation13 + $0x40] sm:$0xff]
        %v1784 = vld [vmem:[#allocation13 + $0x48] sm:$0xff]
        %v1785 = vld [vmem:[#allocation13 + $0x50] sm:$0xff]
        %v1786 = vld [vmem:[#allocation13 + $0x58] sm:$0xff]
        %v1787 = vld [vmem:[#allocation13 + $0x60] sm:$0xff]
        %v1788 = vld [vmem:[#allocation13 + $0x68] sm:$0xff]
        %v1789 = vld [vmem:[#allocation13 + $0x70] sm:$0xff]
        %v1790 = vld [vmem:[#allocation13 + $0x78] sm:$0xff]
        %v1791 = vld [vmem:[#allocation13 + $0x80] sm:$0xff]
        %v1792 = vld [vmem:[#allocation13 + $0x88] sm:$0xff]
        %v1793 = vld [vmem:[#allocation13 + $0x90] sm:$0xff]
        %v1794 = vld [vmem:[#allocation13 + $0x98] sm:$0xff]
        %v1795 = vld [vmem:[#allocation13 + $0xa0] sm:$0xff]
        %v1796 = vld [vmem:[#allocation13 + $0xa8] sm:$0xff]
        %v1797 = vld [vmem:[#allocation13 + $0xb0] sm:$0xff]
        %v1798 = vld [vmem:[#allocation13 + $0xb8] sm:$0xff]
        %v1799 = vld [vmem:[#allocation13 + $0xc0] sm:$0xff]
        %v1800 = vld [vmem:[#allocation13 + $0xc8] sm:$0xff]
        %v1801 = vld [vmem:[#allocation13 + $0xd0] sm:$0xff]
        %v1802 = vld [vmem:[#allocation13 + $0xd8] sm:$0xff]
        %v1803 = vld [vmem:[#allocation13 + $0xe0] sm:$0xff]
        %v1804 = vld [vmem:[#allocation13 + $0xe8] sm:$0xff]
        %v1805 = vld [vmem:[#allocation13 + $0xf0] sm:$0xff]
        %v1806 = vld [vmem:[#allocation13 + $0xf8] sm:$0xff]
        %v1807 = vld [vmem:[#allocation13 + $0x100] sm:$0xff]
        %v1808 = vld [vmem:[#allocation13 + $0x108] sm:$0xff]
        %v1809 = vld [vmem:[#allocation13 + $0x110] sm:$0xff]
        %v1810 = vld [vmem:[#allocation13 + $0x118] sm:$0xff]
        %v1811 = vld [vmem:[#allocation13 + $0x120] sm:$0xff]
        %v1812 = vld [vmem:[#allocation13 + $0x128] sm:$0xff]
        %v1813 = vld [vmem:[#allocation13 + $0x130] sm:$0xff]
        %v1814 = vld [vmem:[#allocation13 + $0x138] sm:$0xff]
        %v1815 = vld [vmem:[#allocation13 + $0x140] sm:$0xff]
        %v1816 = vld [vmem:[#allocation13 + $0x148] sm:$0xff]
        %v1817 = vld [vmem:[#allocation13 + $0x150] sm:$0xff]
        %v1818 = vld [vmem:[#allocation13 + $0x158] sm:$0xff]
        %v1819 = vld [vmem:[#allocation13 + $0x160] sm:$0xff]
        %v1820 = vld [vmem:[#allocation13 + $0x168] sm:$0xff]
        %v1821 = vld [vmem:[#allocation13 + $0x170] sm:$0xff]
        %v1822 = vld [vmem:[#allocation13 + $0x178] sm:$0xff]
        %v1823 = vld [vmem:[#allocation13 + $0x180] sm:$0xff]
        %v1824 = vld [vmem:[#allocation13 + $0x188] sm:$0xff]
        %v1825 = vld [vmem:[#allocation13 + $0x190] sm:$0xff]
        %v1826 = vld [vmem:[#allocation13 + $0x198] sm:$0xff]
        %v1827 = vld [vmem:[#allocation13 + $0x1a0] sm:$0xff]
        %v1828 = vld [vmem:[#allocation13 + $0x1a8] sm:$0xff]
        %v1829 = vld [vmem:[#allocation13 + $0x1b0] sm:$0xff]
        %v1830 = vld [vmem:[#allocation13 + $0x1b8] sm:$0xff]
        %v1831 = vld [vmem:[#allocation13 + $0x1c0] sm:$0xff]
        %v1832 = vld [vmem:[#allocation13 + $0x1c8] sm:$0xff]
        %v1833 = vld [vmem:[#allocation13 + $0x1d0] sm:$0xff]
        %v1834 = vld [vmem:[#allocation13 + $0x1d8] sm:$0xff]
        %v1835 = vld [vmem:[#allocation13 + $0x1e0] sm:$0xff]
        %v1836 = vld [vmem:[#allocation13 + $0x1e8] sm:$0xff]
        %v1837 = vld [vmem:[#allocation13 + $0x1f0] sm:$0xff]
        %v1838 = vld [vmem:[#allocation13 + $0x1f8] sm:$0xff]
        %v1839 = vld [vmem:[#allocation13 + $0x200] sm:$0xff]
        %v1840 = vld [vmem:[#allocation13 + $0x208] sm:$0xff]
        %v1841 = vld [vmem:[#allocation13 + $0x210] sm:$0xff]
        %v1842 = vld [vmem:[#allocation13 + $0x218] sm:$0xff]
        %v1843 = vld [vmem:[#allocation13 + $0x220] sm:$0xff]
        %v1844 = vld [vmem:[#allocation13 + $0x228] sm:$0xff]
        %v1845 = vld [vmem:[#allocation13 + $0x230] sm:$0xff]
        %v1846 = vld [vmem:[#allocation13 + $0x238] sm:$0xff]
        %v1847 = vld [vmem:[#allocation13 + $0x240] sm:$0xff]
        %v1848 = vld [vmem:[#allocation13 + $0x248] sm:$0xff]
        %v1849 = vld [vmem:[#allocation13 + $0x250] sm:$0xff]
        %v1850 = vld [vmem:[#allocation13 + $0x258] sm:$0xff]
        %v1851 = vld [vmem:[#allocation13 + $0x260] sm:$0xff]
        %v1852 = vld [vmem:[#allocation13 + $0x268] sm:$0xff]
        %v1853 = vld [vmem:[#allocation13 + $0x270] sm:$0xff]
        %v1854 = vld [vmem:[#allocation13 + $0x278] sm:$0xff]
        %v1855 = vld [vmem:[#allocation13 + $0x280] sm:$0xff]
        %v1856 = vld [vmem:[#allocation13 + $0x288] sm:$0xff]
        %v1857 = vld [vmem:[#allocation13 + $0x290] sm:$0xff]
        %v1858 = vld [vmem:[#allocation13 + $0x298] sm:$0xff]
        %v1859 = vld [vmem:[#allocation13 + $0x2a0] sm:$0xff]
        %v1860 = vld [vmem:[#allocation13 + $0x2a8] sm:$0xff]
        %v1861 = vld [vmem:[#allocation13 + $0x2b0] sm:$0xff]
        %v1862 = vld [vmem:[#allocation13 + $0x2b8] sm:$0xff]
        %v1863 = vld [vmem:[#allocation13 + $0x2c0] sm:$0xff]
        %v1864 = vld [vmem:[#allocation13 + $0x2c8] sm:$0xff]
        %v1865 = vld [vmem:[#allocation13 + $0x2d0] sm:$0xff]
        %v1866 = vld [vmem:[#allocation13 + $0x2d8] sm:$0xff]
        %v1867 = vld [vmem:[#allocation13 + $0x2e0] sm:$0xff]
        %v1868 = vld [vmem:[#allocation13 + $0x2e8] sm:$0xff]
        %v1869 = vld [vmem:[#allocation13 + $0x2f0] sm:$0xff]
        %v1870 = vld [vmem:[#allocation13 + $0x2f8] sm:$0xff]
        %v1871 = vld [vmem:[#allocation13 + $0x300] sm:$0xff]
        %v1872 = vld [vmem:[#allocation13 + $0x308] sm:$0xff]
        %v1873 = vld [vmem:[#allocation13 + $0x310] sm:$0xff]
        %v1874 = vld [vmem:[#allocation13 + $0x318] sm:$0xff]
        %v1875 = vld [vmem:[#allocation13 + $0x320] sm:$0xff]
        %v1876 = vld [vmem:[#allocation13 + $0x328] sm:$0xff]
        %v1877 = vld [vmem:[#allocation13 + $0x330] sm:$0xff]
        %v1878 = vld [vmem:[#allocation13 + $0x338] sm:$0xff]
        %v1879 = vld [vmem:[#allocation13 + $0x340] sm:$0xff]
        %v1880 = vld [vmem:[#allocation13 + $0x348] sm:$0xff]
        %v1881 = vld [vmem:[#allocation13 + $0x350] sm:$0xff]
        %v1882 = vld [vmem:[#allocation13 + $0x358] sm:$0xff]
        %v1883 = vld [vmem:[#allocation13 + $0x360] sm:$0xff]
        %v1884 = vld [vmem:[#allocation13 + $0x368] sm:$0xff]
        %v1885 = vld [vmem:[#allocation13 + $0x370] sm:$0xff]
        %v1886 = vld [vmem:[#allocation13 + $0x378] sm:$0xff]
        %v1887 = vld [vmem:[#allocation13 + $0x380] sm:$0xff]
        %v1888 = vld [vmem:[#allocation13 + $0x388] sm:$0xff]
        %v1889 = vld [vmem:[#allocation13 + $0x390] sm:$0xff]
        %v1890 = vld [vmem:[#allocation13 + $0x398] sm:$0xff]
        %v1891 = vld [vmem:[#allocation13 + $0x3a0] sm:$0xff]
        %v1892 = vld [vmem:[#allocation13 + $0x3a8] sm:$0xff]
        %v1893 = vld [vmem:[#allocation13 + $0x3b0] sm:$0xff]
        %v1894 = vld [vmem:[#allocation13 + $0x3b8] sm:$0xff]
        %v1895 = vld [vmem:[#allocation13 + $0x3c0] sm:$0xff]
        %v1896 = vld [vmem:[#allocation13 + $0x3c8] sm:$0xff]
        %v1897 = vld [vmem:[#allocation13 + $0x3d0] sm:$0xff]
        %v1898 = vld [vmem:[#allocation13 + $0x3d8] sm:$0xff]
        %v1899 = vld [vmem:[#allocation13 + $0x3e0] sm:$0xff]
        %v1900 = vld [vmem:[#allocation13 + $0x3e8] sm:$0xff]
        %v1901 = vld [vmem:[#allocation13 + $0x3f0] sm:$0xff]
        %v1902 = vld [vmem:[#allocation13 + $0x3f8] sm:$0xff]
        %v1903 = vld [vmem:[#allocation15] sm:$0xf]
        %v1905 = vlaneseq
        %v1906 = vshrl.u32 %v1905, 7
        %v1907 = vsub.s32 0, %v1906
        %v1908 = vrot.slane %v1903, %v1907
        %v1909 = vlaneseq
        %v1910 = vshrl.u32 %v1909, 7
        %v1911 = vsub.s32 1, %v1910
        %v1912 = vrot.slane %v1903, %v1911
        %v1913 = vlaneseq
        %v1914 = vshrl.u32 %v1913, 7
        %v1915 = vsub.s32 2, %v1914
        %v1916 = vrot.slane %v1903, %v1915
        %v1917 = vlaneseq
        %v1918 = vshrl.u32 %v1917, 7
        %v1919 = vsub.s32 3, %v1918
        %v1920 = vrot.slane %v1903, %v1919
        %1925 = vmatprep.subr.mxu0 %v1776
        %1926 = vmatpush1.msra.mxu0 %v1775
        %1927 = vmatprep.subr.mxu0 %v1780
        %1928 = vmatpush1.msra.mxu0 %v1779
        %1929 = vmatprep.subr.mxu0 %v1784
        %1930 = vmatpush1.msra.mxu0 %v1783
        %1931 = vmatprep.subr.mxu0 %v1788
        %1932 = vmatpush1.msra.mxu0 %v1787
        %1933 = vmatprep.subr.mxu0 %v1792
        %1934 = vmatpush1.msra.mxu0 %v1791
        %1935 = vmatprep.subr.mxu0 %v1796
        %1936 = vmatpush1.msra.mxu0 %v1795
        %1937 = vmatprep.subr.mxu0 %v1800
        %1938 = vmatpush1.msra.mxu0 %v1799
        %1939 = vmatprep.subr.mxu0 %v1804
        %1940 = vmatpush1.msra.mxu0 %v1803
        %1941 = vmatprep.subr.mxu0 %v1808
        %1942 = vmatpush1.msra.mxu0 %v1807
        %1943 = vmatprep.subr.mxu0 %v1812
        %1944 = vmatpush1.msra.mxu0 %v1811
        %1945 = vmatprep.subr.mxu0 %v1816
        %1946 = vmatpush1.msra.mxu0 %v1815
        %1947 = vmatprep.subr.mxu0 %v1820
        %1948 = vmatpush1.msra.mxu0 %v1819
        %1949 = vmatprep.subr.mxu0 %v1824
        %1950 = vmatpush1.msra.mxu0 %v1823
        %1951 = vmatprep.subr.mxu0 %v1828
        %1952 = vmatpush1.msra.mxu0 %v1827
        %1953 = vmatprep.subr.mxu0 %v1832
        %1954 = vmatpush1.msra.mxu0 %v1831
        %1955 = vmatprep.subr.mxu0 %v1836
        %1956 = vmatpush1.msra.mxu0 %v1835
        %1957 = vmatprep.subr.mxu0 %v1840
        %1958 = vmatpush1.msra.mxu0 %v1839
        %1959 = vmatprep.subr.mxu0 %v1844
        %1960 = vmatpush1.msra.mxu0 %v1843
        %1961 = vmatprep.subr.mxu0 %v1848
        %1962 = vmatpush1.msra.mxu0 %v1847
        %1963 = vmatprep.subr.mxu0 %v1852
        %1964 = vmatpush1.msra.mxu0 %v1851
        %1965 = vmatprep.subr.mxu0 %v1856
        %1966 = vmatpush1.msra.mxu0 %v1855
        %1967 = vmatprep.subr.mxu0 %v1860
        %1968 = vmatpush1.msra.mxu0 %v1859
        %1969 = vmatprep.subr.mxu0 %v1864
        %1970 = vmatpush1.msra.mxu0 %v1863
        %1971 = vmatprep.subr.mxu0 %v1868
        %1972 = vmatpush1.msra.mxu0 %v1867
        %1973 = vmatprep.subr.mxu0 %v1872
        %1974 = vmatpush1.msra.mxu0 %v1871
        %1975 = vmatprep.subr.mxu0 %v1876
        %1976 = vmatpush1.msra.mxu0 %v1875
        %1977 = vmatprep.subr.mxu0 %v1880
        %1978 = vmatpush1.msra.mxu0 %v1879
        %1979 = vmatprep.subr.mxu0 %v1884
        %1980 = vmatpush1.msra.mxu0 %v1883
        %1981 = vmatprep.subr.mxu0 %v1888
        %1982 = vmatpush1.msra.mxu0 %v1887
        %1983 = vmatprep.subr.mxu0 %v1892
        %1984 = vmatpush1.msra.mxu0 %v1891
        %1985 = vmatprep.subr.mxu0 %v1896
        %1986 = vmatpush1.msra.mxu0 %v1895
        %1987 = vmatprep.subr.mxu0 %v1900
        %1988 = vmatpush1.msra.mxu0 %v1899
        %1989 = vmatprep.mubr.f32.mxu0 %v1772
        %1990 = vmatmul.mubr.f32.gmra.mrb[0].mxu0 %v1771
        %v1991 = vpop.f32.mrb[0].mxu0
        %v1992 = vadd.f32 %v1908, %v1991
        %v1993 = vpop.f32.mrb[0].mxu0
        %v1994 = vadd.f32 %v1912, %v1993
        %1995 = vmatprep.mubr.f32.mxu0 %v1774
        %1996 = vmatmul.mubr.f32.gmra.mrb[0].mxu0 %v1773
        %v1997 = vpop.f32.mrb[0].mxu0
        %v1998 = vadd.f32 %v1908, %v1997
        %v1999 = vpop.f32.mrb[0].mxu0
        %v2000 = vadd.f32 %v1912, %v1999
        %2001 = vdwg.mxu0
        %2002 = vmatprep.subr.mxu0 %v1778
        %2003 = vmatpush1.msra.mxu0 %v1777
        %2004 = vmatprep.subr.mxu0 %v1782
        %2005 = vmatpush1.msra.mxu0 %v1781
        %2006 = vmatprep.subr.mxu0 %v1786
        %2007 = vmatpush1.msra.mxu0 %v1785
        %2008 = vmatprep.subr.mxu0 %v1790
        %2009 = vmatpush1.msra.mxu0 %v1789
        %2010 = vmatprep.subr.mxu0 %v1794
        %2011 = vmatpush1.msra.mxu0 %v1793
        %2012 = vmatprep.subr.mxu0 %v1798
        %2013 = vmatpush1.msra.mxu0 %v1797
        %2014 = vmatprep.subr.mxu0 %v1802
        %2015 = vmatpush1.msra.mxu0 %v1801
        %2016 = vmatprep.subr.mxu0 %v1806
        %2017 = vmatpush1.msra.mxu0 %v1805
        %2018 = vmatprep.subr.mxu0 %v1810
        %2019 = vmatpush1.msra.mxu0 %v1809
        %2020 = vmatprep.subr.mxu0 %v1814
        %2021 = vmatpush1.msra.mxu0 %v1813
        %2022 = vmatprep.subr.mxu0 %v1818
        %2023 = vmatpush1.msra.mxu0 %v1817
        %2024 = vmatprep.subr.mxu0 %v1822
        %2025 = vmatpush1.msra.mxu0 %v1821
        %2026 = vmatprep.subr.mxu0 %v1826
        %2027 = vmatpush1.msra.mxu0 %v1825
        %2028 = vmatprep.subr.mxu0 %v1830
        %2029 = vmatpush1.msra.mxu0 %v1829
        %2030 = vmatprep.subr.mxu0 %v1834
        %2031 = vmatpush1.msra.mxu0 %v1833
        %2032 = vmatprep.subr.mxu0 %v1838
        %2033 = vmatpush1.msra.mxu0 %v1837
        %2034 = vmatprep.subr.mxu0 %v1842
        %2035 = vmatpush1.msra.mxu0 %v1841
        %2036 = vmatprep.subr.mxu0 %v1846
        %2037 = vmatpush1.msra.mxu0 %v1845
        %2038 = vmatprep.subr.mxu0 %v1850
        %2039 = vmatpush1.msra.mxu0 %v1849
        %2040 = vmatprep.subr.mxu0 %v1854
        %2041 = vmatpush1.msra.mxu0 %v1853
        %2042 = vmatprep.subr.mxu0 %v1858
        %2043 = vmatpush1.msra.mxu0 %v1857
        %2044 = vmatprep.subr.mxu0 %v1862
        %2045 = vmatpush1.msra.mxu0 %v1861
        %2046 = vmatprep.subr.mxu0 %v1866
        %2047 = vmatpush1.msra.mxu0 %v1865
        %2048 = vmatprep.subr.mxu0 %v1870
        %2049 = vmatpush1.msra.mxu0 %v1869
        %2050 = vmatprep.subr.mxu0 %v1874
        %2051 = vmatpush1.msra.mxu0 %v1873
        %2052 = vmatprep.subr.mxu0 %v1878
        %2053 = vmatpush1.msra.mxu0 %v1877
        %2054 = vmatprep.subr.mxu0 %v1882
        %2055 = vmatpush1.msra.mxu0 %v1881
        %2056 = vmatprep.subr.mxu0 %v1886
        %2057 = vmatpush1.msra.mxu0 %v1885
        %2058 = vmatprep.subr.mxu0 %v1890
        %2059 = vmatpush1.msra.mxu0 %v1889
        %2060 = vmatprep.subr.mxu0 %v1894
        %2061 = vmatpush1.msra.mxu0 %v1893
        %2062 = vmatprep.subr.mxu0 %v1898
        %2063 = vmatpush1.msra.mxu0 %v1897
        %2064 = vmatprep.subr.mxu0 %v1902
        %2065 = vmatpush1.msra.mxu0 %v1901
        %2066 = vmatprep.mubr.f32.mxu0 %v1772
        %2067 = vmatmul.mubr.f32.gmra.mrb[0].mxu0 %v1771
        %v2068 = vpop.f32.mrb[0].mxu0
        %v2069 = vadd.f32 %v1916, %v2068
        %v2070 = vpop.f32.mrb[0].mxu0
        %v2071 = vadd.f32 %v1920, %v2070
        %2072 = vmatprep.mubr.f32.mxu0 %v1774
        %2073 = vmatmul.mubr.f32.gmra.mrb[0].mxu0 %v1773
        %v2074 = vpop.f32.mrb[0].mxu0
        %v2075 = vadd.f32 %v1916, %v2074
        %v2076 = vpop.f32.mrb[0].mxu0
        %v2077 = vadd.f32 %v1920, %v2076
        %2078 = vdwg.mxu0
        %v2087 = vrot.slane %v1992, 7
        %v2088 = vrot.slane %v1994, 7
        %v2089 = vrot.slane %v2069, 7
        %v2090 = vrot.slane %v2071, 7
        %v2091 = vrot.slane %v1998, 7
        %v2092 = vsel %vm1185, %v2087, %v2091
        %v2093 = vrot.slane %v2000, 7
        %v2094 = vsel %vm1185, %v2088, %v2093
        %v2095 = vrot.slane %v2075, 7
        %v2096 = vsel %vm1185, %v2089, %v2095
        %v2097 = vrot.slane %v2077, 7
        %v2098 = vsel %vm1185, %v2090, %v2097
        %v2111 = vsel %vm1185, 0.0, %v2087
        %v2112 = vsel %vm1185, 0.0, %v2088
        %v2113 = vsel %vm1185, 0.0, %v2089
        %v2114 = vsel %vm1185, 0.0, %v2090
        %v2115 = vsel %vm1185, %v2091, 0.0
        %v2116 = vsel %vm1185, %v2093, 0.0
        %v2117 = vsel %vm1185, %v2095, 0.0
        %v2118 = vsel %vm1185, %v2097, 0.0
        %v2119 = vld [vmem:[#allocation16] sm:$0xff]
        %v2120 = vld [vmem:[#allocation16 + $0x8] sm:$0xff]
        %v2121 = vld [vmem:[#allocation16 + $0x10] sm:$0xff]
        %v2122 = vld [vmem:[#allocation16 + $0x18] sm:$0xff]
        %v2123 = vld [vmem:[#allocation16 + $0x20] sm:$0xff]
        %v2124 = vld [vmem:[#allocation16 + $0x28] sm:$0xff]
        %v2125 = vld [vmem:[#allocation16 + $0x30] sm:$0xff]
        %v2126 = vld [vmem:[#allocation16 + $0x38] sm:$0xff]
        %v2127 = vld [vmem:[#allocation16 + $0x40] sm:$0xff]
        %v2128 = vld [vmem:[#allocation16 + $0x48] sm:$0xff]
        %v2129 = vld [vmem:[#allocation16 + $0x50] sm:$0xff]
        %v2130 = vld [vmem:[#allocation16 + $0x58] sm:$0xff]
        %v2131 = vld [vmem:[#allocation16 + $0x60] sm:$0xff]
        %v2132 = vld [vmem:[#allocation16 + $0x68] sm:$0xff]
        %v2133 = vld [vmem:[#allocation16 + $0x70] sm:$0xff]
        %v2134 = vld [vmem:[#allocation16 + $0x78] sm:$0xff]
        %v2135 = vld [vmem:[#allocation16 + $0x80] sm:$0xff]
        %v2136 = vld [vmem:[#allocation16 + $0x88] sm:$0xff]
        %v2137 = vld [vmem:[#allocation16 + $0x90] sm:$0xff]
        %v2138 = vld [vmem:[#allocation16 + $0x98] sm:$0xff]
        %v2139 = vld [vmem:[#allocation16 + $0xa0] sm:$0xff]
        %v2140 = vld [vmem:[#allocation16 + $0xa8] sm:$0xff]
        %v2141 = vld [vmem:[#allocation16 + $0xb0] sm:$0xff]
        %v2142 = vld [vmem:[#allocation16 + $0xb8] sm:$0xff]
        %v2143 = vld [vmem:[#allocation16 + $0xc0] sm:$0xff]
        %v2144 = vld [vmem:[#allocation16 + $0xc8] sm:$0xff]
        %v2145 = vld [vmem:[#allocation16 + $0xd0] sm:$0xff]
        %v2146 = vld [vmem:[#allocation16 + $0xd8] sm:$0xff]
        %v2147 = vld [vmem:[#allocation16 + $0xe0] sm:$0xff]
        %v2148 = vld [vmem:[#allocation16 + $0xe8] sm:$0xff]
        %v2149 = vld [vmem:[#allocation16 + $0xf0] sm:$0xff]
        %v2150 = vld [vmem:[#allocation16 + $0xf8] sm:$0xff]
        %v2151 = vld [vmem:[#allocation16 + $0x100] sm:$0xff]
        %v2152 = vld [vmem:[#allocation16 + $0x108] sm:$0xff]
        %v2153 = vld [vmem:[#allocation16 + $0x110] sm:$0xff]
        %v2154 = vld [vmem:[#allocation16 + $0x118] sm:$0xff]
        %v2155 = vld [vmem:[#allocation16 + $0x120] sm:$0xff]
        %v2156 = vld [vmem:[#allocation16 + $0x128] sm:$0xff]
        %v2157 = vld [vmem:[#allocation16 + $0x130] sm:$0xff]
        %v2158 = vld [vmem:[#allocation16 + $0x138] sm:$0xff]
        %v2159 = vld [vmem:[#allocation16 + $0x140] sm:$0xff]
        %v2160 = vld [vmem:[#allocation16 + $0x148] sm:$0xff]
        %v2161 = vld [vmem:[#allocation16 + $0x150] sm:$0xff]
        %v2162 = vld [vmem:[#allocation16 + $0x158] sm:$0xff]
        %v2163 = vld [vmem:[#allocation16 + $0x160] sm:$0xff]
        %v2164 = vld [vmem:[#allocation16 + $0x168] sm:$0xff]
        %v2165 = vld [vmem:[#allocation16 + $0x170] sm:$0xff]
        %v2166 = vld [vmem:[#allocation16 + $0x178] sm:$0xff]
        %v2167 = vld [vmem:[#allocation16 + $0x180] sm:$0xff]
        %v2168 = vld [vmem:[#allocation16 + $0x188] sm:$0xff]
        %v2169 = vld [vmem:[#allocation16 + $0x190] sm:$0xff]
        %v2170 = vld [vmem:[#allocation16 + $0x198] sm:$0xff]
        %v2171 = vld [vmem:[#allocation16 + $0x1a0] sm:$0xff]
        %v2172 = vld [vmem:[#allocation16 + $0x1a8] sm:$0xff]
        %v2173 = vld [vmem:[#allocation16 + $0x1b0] sm:$0xff]
        %v2174 = vld [vmem:[#allocation16 + $0x1b8] sm:$0xff]
        %v2175 = vld [vmem:[#allocation16 + $0x1c0] sm:$0xff]
        %v2176 = vld [vmem:[#allocation16 + $0x1c8] sm:$0xff]
        %v2177 = vld [vmem:[#allocation16 + $0x1d0] sm:$0xff]
        %v2178 = vld [vmem:[#allocation16 + $0x1d8] sm:$0xff]
        %v2179 = vld [vmem:[#allocation16 + $0x1e0] sm:$0xff]
        %v2180 = vld [vmem:[#allocation16 + $0x1e8] sm:$0xff]
        %v2181 = vld [vmem:[#allocation16 + $0x1f0] sm:$0xff]
        %v2182 = vld [vmem:[#allocation16 + $0x1f8] sm:$0xff]
        %v2183 = vld [vmem:[#allocation16 + $0x200] sm:$0xff]
        %v2184 = vld [vmem:[#allocation16 + $0x208] sm:$0xff]
        %v2185 = vld [vmem:[#allocation16 + $0x210] sm:$0xff]
        %v2186 = vld [vmem:[#allocation16 + $0x218] sm:$0xff]
        %v2187 = vld [vmem:[#allocation16 + $0x220] sm:$0xff]
        %v2188 = vld [vmem:[#allocation16 + $0x228] sm:$0xff]
        %v2189 = vld [vmem:[#allocation16 + $0x230] sm:$0xff]
        %v2190 = vld [vmem:[#allocation16 + $0x238] sm:$0xff]
        %v2191 = vld [vmem:[#allocation16 + $0x240] sm:$0xff]
        %v2192 = vld [vmem:[#allocation16 + $0x248] sm:$0xff]
        %v2193 = vld [vmem:[#allocation16 + $0x250] sm:$0xff]
        %v2194 = vld [vmem:[#allocation16 + $0x258] sm:$0xff]
        %v2195 = vld [vmem:[#allocation16 + $0x260] sm:$0xff]
        %v2196 = vld [vmem:[#allocation16 + $0x268] sm:$0xff]
        %v2197 = vld [vmem:[#allocation16 + $0x270] sm:$0xff]
        %v2198 = vld [vmem:[#allocation16 + $0x278] sm:$0xff]
        %v2199 = vld [vmem:[#allocation16 + $0x280] sm:$0xff]
        %v2200 = vld [vmem:[#allocation16 + $0x288] sm:$0xff]
        %v2201 = vld [vmem:[#allocation16 + $0x290] sm:$0xff]
        %v2202 = vld [vmem:[#allocation16 + $0x298] sm:$0xff]
        %v2203 = vld [vmem:[#allocation16 + $0x2a0] sm:$0xff]
        %v2204 = vld [vmem:[#allocation16 + $0x2a8] sm:$0xff]
        %v2205 = vld [vmem:[#allocation16 + $0x2b0] sm:$0xff]
        %v2206 = vld [vmem:[#allocation16 + $0x2b8] sm:$0xff]
        %v2207 = vld [vmem:[#allocation16 + $0x2c0] sm:$0xff]
        %v2208 = vld [vmem:[#allocation16 + $0x2c8] sm:$0xff]
        %v2209 = vld [vmem:[#allocation16 + $0x2d0] sm:$0xff]
        %v2210 = vld [vmem:[#allocation16 + $0x2d8] sm:$0xff]
        %v2211 = vld [vmem:[#allocation16 + $0x2e0] sm:$0xff]
        %v2212 = vld [vmem:[#allocation16 + $0x2e8] sm:$0xff]
        %v2213 = vld [vmem:[#allocation16 + $0x2f0] sm:$0xff]
        %v2214 = vld [vmem:[#allocation16 + $0x2f8] sm:$0xff]
        %v2215 = vld [vmem:[#allocation16 + $0x300] sm:$0xff]
        %v2216 = vld [vmem:[#allocation16 + $0x308] sm:$0xff]
        %v2217 = vld [vmem:[#allocation16 + $0x310] sm:$0xff]
        %v2218 = vld [vmem:[#allocation16 + $0x318] sm:$0xff]
        %v2219 = vld [vmem:[#allocation16 + $0x320] sm:$0xff]
        %v2220 = vld [vmem:[#allocation16 + $0x328] sm:$0xff]
        %v2221 = vld [vmem:[#allocation16 + $0x330] sm:$0xff]
        %v2222 = vld [vmem:[#allocation16 + $0x338] sm:$0xff]
        %v2223 = vld [vmem:[#allocation16 + $0x340] sm:$0xff]
        %v2224 = vld [vmem:[#allocation16 + $0x348] sm:$0xff]
        %v2225 = vld [vmem:[#allocation16 + $0x350] sm:$0xff]
        %v2226 = vld [vmem:[#allocation16 + $0x358] sm:$0xff]
        %v2227 = vld [vmem:[#allocation16 + $0x360] sm:$0xff]
        %v2228 = vld [vmem:[#allocation16 + $0x368] sm:$0xff]
        %v2229 = vld [vmem:[#allocation16 + $0x370] sm:$0xff]
        %v2230 = vld [vmem:[#allocation16 + $0x378] sm:$0xff]
        %v2231 = vld [vmem:[#allocation16 + $0x380] sm:$0xff]
        %v2232 = vld [vmem:[#allocation16 + $0x388] sm:$0xff]
        %v2233 = vld [vmem:[#allocation16 + $0x390] sm:$0xff]
        %v2234 = vld [vmem:[#allocation16 + $0x398] sm:$0xff]
        %v2235 = vld [vmem:[#allocation16 + $0x3a0] sm:$0xff]
        %v2236 = vld [vmem:[#allocation16 + $0x3a8] sm:$0xff]
        %v2237 = vld [vmem:[#allocation16 + $0x3b0] sm:$0xff]
        %v2238 = vld [vmem:[#allocation16 + $0x3b8] sm:$0xff]
        %v2239 = vld [vmem:[#allocation16 + $0x3c0] sm:$0xff]
        %v2240 = vld [vmem:[#allocation16 + $0x3c8] sm:$0xff]
        %v2241 = vld [vmem:[#allocation16 + $0x3d0] sm:$0xff]
        %v2242 = vld [vmem:[#allocation16 + $0x3d8] sm:$0xff]
        %v2243 = vld [vmem:[#allocation16 + $0x3e0] sm:$0xff]
        %v2244 = vld [vmem:[#allocation16 + $0x3e8] sm:$0xff]
        %v2245 = vld [vmem:[#allocation16 + $0x3f0] sm:$0xff]
        %v2246 = vld [vmem:[#allocation16 + $0x3f8] sm:$0xff]
        %v2247 = vld [vmem:[#allocation16 + $0x400] sm:$0xff]
        %v2248 = vld [vmem:[#allocation16 + $0x408] sm:$0xff]
        %v2249 = vld [vmem:[#allocation16 + $0x410] sm:$0xff]
        %v2250 = vld [vmem:[#allocation16 + $0x418] sm:$0xff]
        %v2251 = vld [vmem:[#allocation16 + $0x420] sm:$0xff]
        %v2252 = vld [vmem:[#allocation16 + $0x428] sm:$0xff]
        %v2253 = vld [vmem:[#allocation16 + $0x430] sm:$0xff]
        %v2254 = vld [vmem:[#allocation16 + $0x438] sm:$0xff]
        %v2255 = vld [vmem:[#allocation16 + $0x440] sm:$0xff]
        %v2256 = vld [vmem:[#allocation16 + $0x448] sm:$0xff]
        %v2257 = vld [vmem:[#allocation16 + $0x450] sm:$0xff]
        %v2258 = vld [vmem:[#allocation16 + $0x458] sm:$0xff]
        %v2259 = vld [vmem:[#allocation16 + $0x460] sm:$0xff]
        %v2260 = vld [vmem:[#allocation16 + $0x468] sm:$0xff]
        %v2261 = vld [vmem:[#allocation16 + $0x470] sm:$0xff]
        %v2262 = vld [vmem:[#allocation16 + $0x478] sm:$0xff]
        %v2263 = vld [vmem:[#allocation16 + $0x480] sm:$0xff]
        %v2264 = vld [vmem:[#allocation16 + $0x488] sm:$0xff]
        %v2265 = vld [vmem:[#allocation16 + $0x490] sm:$0xff]
        %v2266 = vld [vmem:[#allocation16 + $0x498] sm:$0xff]
        %v2267 = vld [vmem:[#allocation16 + $0x4a0] sm:$0xff]
        %v2268 = vld [vmem:[#allocation16 + $0x4a8] sm:$0xff]
        %v2269 = vld [vmem:[#allocation16 + $0x4b0] sm:$0xff]
        %v2270 = vld [vmem:[#allocation16 + $0x4b8] sm:$0xff]
        %v2271 = vld [vmem:[#allocation16 + $0x4c0] sm:$0xff]
        %v2272 = vld [vmem:[#allocation16 + $0x4c8] sm:$0xff]
        %v2273 = vld [vmem:[#allocation16 + $0x4d0] sm:$0xff]
        %v2274 = vld [vmem:[#allocation16 + $0x4d8] sm:$0xff]
        %v2275 = vld [vmem:[#allocation16 + $0x4e0] sm:$0xff]
        %v2276 = vld [vmem:[#allocation16 + $0x4e8] sm:$0xff]
        %v2277 = vld [vmem:[#allocation16 + $0x4f0] sm:$0xff]
        %v2278 = vld [vmem:[#allocation16 + $0x4f8] sm:$0xff]
        %v2279 = vld [vmem:[#allocation16 + $0x500] sm:$0xff]
        %v2280 = vld [vmem:[#allocation16 + $0x508] sm:$0xff]
        %v2281 = vld [vmem:[#allocation16 + $0x510] sm:$0xff]
        %v2282 = vld [vmem:[#allocation16 + $0x518] sm:$0xff]
        %v2283 = vld [vmem:[#allocation16 + $0x520] sm:$0xff]
        %v2284 = vld [vmem:[#allocation16 + $0x528] sm:$0xff]
        %v2285 = vld [vmem:[#allocation16 + $0x530] sm:$0xff]
        %v2286 = vld [vmem:[#allocation16 + $0x538] sm:$0xff]
        %v2287 = vld [vmem:[#allocation16 + $0x540] sm:$0xff]
        %v2288 = vld [vmem:[#allocation16 + $0x548] sm:$0xff]
        %v2289 = vld [vmem:[#allocation16 + $0x550] sm:$0xff]
        %v2290 = vld [vmem:[#allocation16 + $0x558] sm:$0xff]
        %v2291 = vld [vmem:[#allocation16 + $0x560] sm:$0xff]
        %v2292 = vld [vmem:[#allocation16 + $0x568] sm:$0xff]
        %v2293 = vld [vmem:[#allocation16 + $0x570] sm:$0xff]
        %v2294 = vld [vmem:[#allocation16 + $0x578] sm:$0xff]
        %v2295 = vld [vmem:[#allocation16 + $0x580] sm:$0xff]
        %v2296 = vld [vmem:[#allocation16 + $0x588] sm:$0xff]
        %v2297 = vld [vmem:[#allocation16 + $0x590] sm:$0xff]
        %v2298 = vld [vmem:[#allocation16 + $0x598] sm:$0xff]
        %v2299 = vld [vmem:[#allocation16 + $0x5a0] sm:$0xff]
        %v2300 = vld [vmem:[#allocation16 + $0x5a8] sm:$0xff]
        %v2301 = vld [vmem:[#allocation16 + $0x5b0] sm:$0xff]
        %v2302 = vld [vmem:[#allocation16 + $0x5b8] sm:$0xff]
        %v2303 = vld [vmem:[#allocation16 + $0x5c0] sm:$0xff]
        %v2304 = vld [vmem:[#allocation16 + $0x5c8] sm:$0xff]
        %v2305 = vld [vmem:[#allocation16 + $0x5d0] sm:$0xff]
        %v2306 = vld [vmem:[#allocation16 + $0x5d8] sm:$0xff]
        %v2307 = vld [vmem:[#allocation16 + $0x5e0] sm:$0xff]
        %v2308 = vld [vmem:[#allocation16 + $0x5e8] sm:$0xff]
        %v2309 = vld [vmem:[#allocation16 + $0x5f0] sm:$0xff]
        %v2310 = vld [vmem:[#allocation16 + $0x5f8] sm:$0xff]
        %v2311 = vld [vmem:[#allocation16 + $0x600] sm:$0xff]
        %v2312 = vld [vmem:[#allocation16 + $0x608] sm:$0xff]
        %v2313 = vld [vmem:[#allocation16 + $0x610] sm:$0xff]
        %v2314 = vld [vmem:[#allocation16 + $0x618] sm:$0xff]
        %v2315 = vld [vmem:[#allocation16 + $0x620] sm:$0xff]
        %v2316 = vld [vmem:[#allocation16 + $0x628] sm:$0xff]
        %v2317 = vld [vmem:[#allocation16 + $0x630] sm:$0xff]
        %v2318 = vld [vmem:[#allocation16 + $0x638] sm:$0xff]
        %v2319 = vld [vmem:[#allocation16 + $0x640] sm:$0xff]
        %v2320 = vld [vmem:[#allocation16 + $0x648] sm:$0xff]
        %v2321 = vld [vmem:[#allocation16 + $0x650] sm:$0xff]
        %v2322 = vld [vmem:[#allocation16 + $0x658] sm:$0xff]
        %v2323 = vld [vmem:[#allocation16 + $0x660] sm:$0xff]
        %v2324 = vld [vmem:[#allocation16 + $0x668] sm:$0xff]
        %v2325 = vld [vmem:[#allocation16 + $0x670] sm:$0xff]
        %v2326 = vld [vmem:[#allocation16 + $0x678] sm:$0xff]
        %v2327 = vld [vmem:[#allocation16 + $0x680] sm:$0xff]
        %v2328 = vld [vmem:[#allocation16 + $0x688] sm:$0xff]
        %v2329 = vld [vmem:[#allocation16 + $0x690] sm:$0xff]
        %v2330 = vld [vmem:[#allocation16 + $0x698] sm:$0xff]
        %v2331 = vld [vmem:[#allocation16 + $0x6a0] sm:$0xff]
        %v2332 = vld [vmem:[#allocation16 + $0x6a8] sm:$0xff]
        %v2333 = vld [vmem:[#allocation16 + $0x6b0] sm:$0xff]
        %v2334 = vld [vmem:[#allocation16 + $0x6b8] sm:$0xff]
        %v2335 = vld [vmem:[#allocation16 + $0x6c0] sm:$0xff]
        %v2336 = vld [vmem:[#allocation16 + $0x6c8] sm:$0xff]
        %v2337 = vld [vmem:[#allocation16 + $0x6d0] sm:$0xff]
        %v2338 = vld [vmem:[#allocation16 + $0x6d8] sm:$0xff]
        %v2339 = vld [vmem:[#allocation16 + $0x6e0] sm:$0xff]
        %v2340 = vld [vmem:[#allocation16 + $0x6e8] sm:$0xff]
        %v2341 = vld [vmem:[#allocation16 + $0x6f0] sm:$0xff]
        %v2342 = vld [vmem:[#allocation16 + $0x6f8] sm:$0xff]
        %v2343 = vld [vmem:[#allocation16 + $0x700] sm:$0xff]
        %v2344 = vld [vmem:[#allocation16 + $0x708] sm:$0xff]
        %v2345 = vld [vmem:[#allocation16 + $0x710] sm:$0xff]
        %v2346 = vld [vmem:[#allocation16 + $0x718] sm:$0xff]
        %v2347 = vld [vmem:[#allocation16 + $0x720] sm:$0xff]
        %v2348 = vld [vmem:[#allocation16 + $0x728] sm:$0xff]
        %v2349 = vld [vmem:[#allocation16 + $0x730] sm:$0xff]
        %v2350 = vld [vmem:[#allocation16 + $0x738] sm:$0xff]
        %v2351 = vld [vmem:[#allocation16 + $0x740] sm:$0xff]
        %v2352 = vld [vmem:[#allocation16 + $0x748] sm:$0xff]
        %v2353 = vld [vmem:[#allocation16 + $0x750] sm:$0xff]
        %v2354 = vld [vmem:[#allocation16 + $0x758] sm:$0xff]
        %v2355 = vld [vmem:[#allocation16 + $0x760] sm:$0xff]
        %v2356 = vld [vmem:[#allocation16 + $0x768] sm:$0xff]
        %v2357 = vld [vmem:[#allocation16 + $0x770] sm:$0xff]
        %v2358 = vld [vmem:[#allocation16 + $0x778] sm:$0xff]
        %v2359 = vld [vmem:[#allocation16 + $0x780] sm:$0xff]
        %v2360 = vld [vmem:[#allocation16 + $0x788] sm:$0xff]
        %v2361 = vld [vmem:[#allocation16 + $0x790] sm:$0xff]
        %v2362 = vld [vmem:[#allocation16 + $0x798] sm:$0xff]
        %v2363 = vld [vmem:[#allocation16 + $0x7a0] sm:$0xff]
        %v2364 = vld [vmem:[#allocation16 + $0x7a8] sm:$0xff]
        %v2365 = vld [vmem:[#allocation16 + $0x7b0] sm:$0xff]
        %v2366 = vld [vmem:[#allocation16 + $0x7b8] sm:$0xff]
        %v2367 = vld [vmem:[#allocation16 + $0x7c0] sm:$0xff]
        %v2368 = vld [vmem:[#allocation16 + $0x7c8] sm:$0xff]
        %v2369 = vld [vmem:[#allocation16 + $0x7d0] sm:$0xff]
        %v2370 = vld [vmem:[#allocation16 + $0x7d8] sm:$0xff]
        %v2371 = vld [vmem:[#allocation16 + $0x7e0] sm:$0xff]
        %v2372 = vld [vmem:[#allocation16 + $0x7e8] sm:$0xff]
        %v2373 = vld [vmem:[#allocation16 + $0x7f0] sm:$0xff]
        %v2374 = vld [vmem:[#allocation16 + $0x7f8] sm:$0xff]
        %s2375 = scalar_lea.vmem [#allocation16], 2048
        %v2376 = vld [vmem:[%s2375] sm:$0xff]
        %v2377 = vld [vmem:[%s2375 + $0x8] sm:$0xff]
        %v2378 = vld [vmem:[%s2375 + $0x10] sm:$0xff]
        %v2379 = vld [vmem:[%s2375 + $0x18] sm:$0xff]
        %v2380 = vld [vmem:[%s2375 + $0x20] sm:$0xff]
        %v2381 = vld [vmem:[%s2375 + $0x28] sm:$0xff]
        %v2382 = vld [vmem:[%s2375 + $0x30] sm:$0xff]
        %v2383 = vld [vmem:[%s2375 + $0x38] sm:$0xff]
        %v2384 = vld [vmem:[%s2375 + $0x40] sm:$0xff]
        %v2385 = vld [vmem:[%s2375 + $0x48] sm:$0xff]
        %v2386 = vld [vmem:[%s2375 + $0x50] sm:$0xff]
        %v2387 = vld [vmem:[%s2375 + $0x58] sm:$0xff]
        %v2388 = vld [vmem:[%s2375 + $0x60] sm:$0xff]
        %v2389 = vld [vmem:[%s2375 + $0x68] sm:$0xff]
        %v2390 = vld [vmem:[%s2375 + $0x70] sm:$0xff]
        %v2391 = vld [vmem:[%s2375 + $0x78] sm:$0xff]
        %v2392 = vld [vmem:[%s2375 + $0x80] sm:$0xff]
        %v2393 = vld [vmem:[%s2375 + $0x88] sm:$0xff]
        %v2394 = vld [vmem:[%s2375 + $0x90] sm:$0xff]
        %v2395 = vld [vmem:[%s2375 + $0x98] sm:$0xff]
        %v2396 = vld [vmem:[%s2375 + $0xa0] sm:$0xff]
        %v2397 = vld [vmem:[%s2375 + $0xa8] sm:$0xff]
        %v2398 = vld [vmem:[%s2375 + $0xb0] sm:$0xff]
        %v2399 = vld [vmem:[%s2375 + $0xb8] sm:$0xff]
        %v2400 = vld [vmem:[%s2375 + $0xc0] sm:$0xff]
        %v2401 = vld [vmem:[%s2375 + $0xc8] sm:$0xff]
        %v2402 = vld [vmem:[%s2375 + $0xd0] sm:$0xff]
        %v2403 = vld [vmem:[%s2375 + $0xd8] sm:$0xff]
        %v2404 = vld [vmem:[%s2375 + $0xe0] sm:$0xff]
        %v2405 = vld [vmem:[%s2375 + $0xe8] sm:$0xff]
        %v2406 = vld [vmem:[%s2375 + $0xf0] sm:$0xff]
        %v2407 = vld [vmem:[%s2375 + $0xf8] sm:$0xff]
        %v2408 = vld [vmem:[%s2375 + $0x100] sm:$0xff]
        %v2409 = vld [vmem:[%s2375 + $0x108] sm:$0xff]
        %v2410 = vld [vmem:[%s2375 + $0x110] sm:$0xff]
        %v2411 = vld [vmem:[%s2375 + $0x118] sm:$0xff]
        %v2412 = vld [vmem:[%s2375 + $0x120] sm:$0xff]
        %v2413 = vld [vmem:[%s2375 + $0x128] sm:$0xff]
        %v2414 = vld [vmem:[%s2375 + $0x130] sm:$0xff]
        %v2415 = vld [vmem:[%s2375 + $0x138] sm:$0xff]
        %v2416 = vld [vmem:[%s2375 + $0x140] sm:$0xff]
        %v2417 = vld [vmem:[%s2375 + $0x148] sm:$0xff]
        %v2418 = vld [vmem:[%s2375 + $0x150] sm:$0xff]
        %v2419 = vld [vmem:[%s2375 + $0x158] sm:$0xff]
        %v2420 = vld [vmem:[%s2375 + $0x160] sm:$0xff]
        %v2421 = vld [vmem:[%s2375 + $0x168] sm:$0xff]
        %v2422 = vld [vmem:[%s2375 + $0x170] sm:$0xff]
        %v2423 = vld [vmem:[%s2375 + $0x178] sm:$0xff]
        %v2424 = vld [vmem:[%s2375 + $0x180] sm:$0xff]
        %v2425 = vld [vmem:[%s2375 + $0x188] sm:$0xff]
        %v2426 = vld [vmem:[%s2375 + $0x190] sm:$0xff]
        %v2427 = vld [vmem:[%s2375 + $0x198] sm:$0xff]
        %v2428 = vld [vmem:[%s2375 + $0x1a0] sm:$0xff]
        %v2429 = vld [vmem:[%s2375 + $0x1a8] sm:$0xff]
        %v2430 = vld [vmem:[%s2375 + $0x1b0] sm:$0xff]
        %v2431 = vld [vmem:[%s2375 + $0x1b8] sm:$0xff]
        %v2432 = vld [vmem:[%s2375 + $0x1c0] sm:$0xff]
        %v2433 = vld [vmem:[%s2375 + $0x1c8] sm:$0xff]
        %v2434 = vld [vmem:[%s2375 + $0x1d0] sm:$0xff]
        %v2435 = vld [vmem:[%s2375 + $0x1d8] sm:$0xff]
        %v2436 = vld [vmem:[%s2375 + $0x1e0] sm:$0xff]
        %v2437 = vld [vmem:[%s2375 + $0x1e8] sm:$0xff]
        %v2438 = vld [vmem:[%s2375 + $0x1f0] sm:$0xff]
        %v2439 = vld [vmem:[%s2375 + $0x1f8] sm:$0xff]
        %v2440 = vld [vmem:[%s2375 + $0x200] sm:$0xff]
        %v2441 = vld [vmem:[%s2375 + $0x208] sm:$0xff]
        %v2442 = vld [vmem:[%s2375 + $0x210] sm:$0xff]
        %v2443 = vld [vmem:[%s2375 + $0x218] sm:$0xff]
        %v2444 = vld [vmem:[%s2375 + $0x220] sm:$0xff]
        %v2445 = vld [vmem:[%s2375 + $0x228] sm:$0xff]
        %v2446 = vld [vmem:[%s2375 + $0x230] sm:$0xff]
        %v2447 = vld [vmem:[%s2375 + $0x238] sm:$0xff]
        %v2448 = vld [vmem:[%s2375 + $0x240] sm:$0xff]
        %v2449 = vld [vmem:[%s2375 + $0x248] sm:$0xff]
        %v2450 = vld [vmem:[%s2375 + $0x250] sm:$0xff]
        %v2451 = vld [vmem:[%s2375 + $0x258] sm:$0xff]
        %v2452 = vld [vmem:[%s2375 + $0x260] sm:$0xff]
        %v2453 = vld [vmem:[%s2375 + $0x268] sm:$0xff]
        %v2454 = vld [vmem:[%s2375 + $0x270] sm:$0xff]
        %v2455 = vld [vmem:[%s2375 + $0x278] sm:$0xff]
        %v2456 = vld [vmem:[%s2375 + $0x280] sm:$0xff]
        %v2457 = vld [vmem:[%s2375 + $0x288] sm:$0xff]
        %v2458 = vld [vmem:[%s2375 + $0x290] sm:$0xff]
        %v2459 = vld [vmem:[%s2375 + $0x298] sm:$0xff]
        %v2460 = vld [vmem:[%s2375 + $0x2a0] sm:$0xff]
        %v2461 = vld [vmem:[%s2375 + $0x2a8] sm:$0xff]
        %v2462 = vld [vmem:[%s2375 + $0x2b0] sm:$0xff]
        %v2463 = vld [vmem:[%s2375 + $0x2b8] sm:$0xff]
        %v2464 = vld [vmem:[%s2375 + $0x2c0] sm:$0xff]
        %v2465 = vld [vmem:[%s2375 + $0x2c8] sm:$0xff]
        %v2466 = vld [vmem:[%s2375 + $0x2d0] sm:$0xff]
        %v2467 = vld [vmem:[%s2375 + $0x2d8] sm:$0xff]
        %v2468 = vld [vmem:[%s2375 + $0x2e0] sm:$0xff]
        %v2469 = vld [vmem:[%s2375 + $0x2e8] sm:$0xff]
        %v2470 = vld [vmem:[%s2375 + $0x2f0] sm:$0xff]
        %v2471 = vld [vmem:[%s2375 + $0x2f8] sm:$0xff]
        %v2472 = vld [vmem:[%s2375 + $0x300] sm:$0xff]
        %v2473 = vld [vmem:[%s2375 + $0x308] sm:$0xff]
        %v2474 = vld [vmem:[%s2375 + $0x310] sm:$0xff]
        %v2475 = vld [vmem:[%s2375 + $0x318] sm:$0xff]
        %v2476 = vld [vmem:[%s2375 + $0x320] sm:$0xff]
        %v2477 = vld [vmem:[%s2375 + $0x328] sm:$0xff]
        %v2478 = vld [vmem:[%s2375 + $0x330] sm:$0xff]
        %v2479 = vld [vmem:[%s2375 + $0x338] sm:$0xff]
        %v2480 = vld [vmem:[%s2375 + $0x340] sm:$0xff]
        %v2481 = vld [vmem:[%s2375 + $0x348] sm:$0xff]
        %v2482 = vld [vmem:[%s2375 + $0x350] sm:$0xff]
        %v2483 = vld [vmem:[%s2375 + $0x358] sm:$0xff]
        %v2484 = vld [vmem:[%s2375 + $0x360] sm:$0xff]
        %v2485 = vld [vmem:[%s2375 + $0x368] sm:$0xff]
        %v2486 = vld [vmem:[%s2375 + $0x370] sm:$0xff]
        %v2487 = vld [vmem:[%s2375 + $0x378] sm:$0xff]
        %v2488 = vld [vmem:[%s2375 + $0x380] sm:$0xff]
        %v2489 = vld [vmem:[%s2375 + $0x388] sm:$0xff]
        %v2490 = vld [vmem:[%s2375 + $0x390] sm:$0xff]
        %v2491 = vld [vmem:[%s2375 + $0x398] sm:$0xff]
        %v2492 = vld [vmem:[%s2375 + $0x3a0] sm:$0xff]
        %v2493 = vld [vmem:[%s2375 + $0x3a8] sm:$0xff]
        %v2494 = vld [vmem:[%s2375 + $0x3b0] sm:$0xff]
        %v2495 = vld [vmem:[%s2375 + $0x3b8] sm:$0xff]
        %v2496 = vld [vmem:[%s2375 + $0x3c0] sm:$0xff]
        %v2497 = vld [vmem:[%s2375 + $0x3c8] sm:$0xff]
        %v2498 = vld [vmem:[%s2375 + $0x3d0] sm:$0xff]
        %v2499 = vld [vmem:[%s2375 + $0x3d8] sm:$0xff]
        %v2500 = vld [vmem:[%s2375 + $0x3e0] sm:$0xff]
        %v2501 = vld [vmem:[%s2375 + $0x3e8] sm:$0xff]
        %v2502 = vld [vmem:[%s2375 + $0x3f0] sm:$0xff]
        %v2503 = vld [vmem:[%s2375 + $0x3f8] sm:$0xff]
        %v2504 = vld [vmem:[%s2375 + $0x400] sm:$0xff]
        %v2505 = vld [vmem:[%s2375 + $0x408] sm:$0xff]
        %v2506 = vld [vmem:[%s2375 + $0x410] sm:$0xff]
        %v2507 = vld [vmem:[%s2375 + $0x418] sm:$0xff]
        %v2508 = vld [vmem:[%s2375 + $0x420] sm:$0xff]
        %v2509 = vld [vmem:[%s2375 + $0x428] sm:$0xff]
        %v2510 = vld [vmem:[%s2375 + $0x430] sm:$0xff]
        %v2511 = vld [vmem:[%s2375 + $0x438] sm:$0xff]
        %v2512 = vld [vmem:[%s2375 + $0x440] sm:$0xff]
        %v2513 = vld [vmem:[%s2375 + $0x448] sm:$0xff]
        %v2514 = vld [vmem:[%s2375 + $0x450] sm:$0xff]
        %v2515 = vld [vmem:[%s2375 + $0x458] sm:$0xff]
        %v2516 = vld [vmem:[%s2375 + $0x460] sm:$0xff]
        %v2517 = vld [vmem:[%s2375 + $0x468] sm:$0xff]
        %v2518 = vld [vmem:[%s2375 + $0x470] sm:$0xff]
        %v2519 = vld [vmem:[%s2375 + $0x478] sm:$0xff]
        %v2520 = vld [vmem:[%s2375 + $0x480] sm:$0xff]
        %v2521 = vld [vmem:[%s2375 + $0x488] sm:$0xff]
        %v2522 = vld [vmem:[%s2375 + $0x490] sm:$0xff]
        %v2523 = vld [vmem:[%s2375 + $0x498] sm:$0xff]
        %v2524 = vld [vmem:[%s2375 + $0x4a0] sm:$0xff]
        %v2525 = vld [vmem:[%s2375 + $0x4a8] sm:$0xff]
        %v2526 = vld [vmem:[%s2375 + $0x4b0] sm:$0xff]
        %v2527 = vld [vmem:[%s2375 + $0x4b8] sm:$0xff]
        %v2528 = vld [vmem:[%s2375 + $0x4c0] sm:$0xff]
        %v2529 = vld [vmem:[%s2375 + $0x4c8] sm:$0xff]
        %v2530 = vld [vmem:[%s2375 + $0x4d0] sm:$0xff]
        %v2531 = vld [vmem:[%s2375 + $0x4d8] sm:$0xff]
        %v2532 = vld [vmem:[%s2375 + $0x4e0] sm:$0xff]
        %v2533 = vld [vmem:[%s2375 + $0x4e8] sm:$0xff]
        %v2534 = vld [vmem:[%s2375 + $0x4f0] sm:$0xff]
        %v2535 = vld [vmem:[%s2375 + $0x4f8] sm:$0xff]
        %v2536 = vld [vmem:[%s2375 + $0x500] sm:$0xff]
        %v2537 = vld [vmem:[%s2375 + $0x508] sm:$0xff]
        %v2538 = vld [vmem:[%s2375 + $0x510] sm:$0xff]
        %v2539 = vld [vmem:[%s2375 + $0x518] sm:$0xff]
        %v2540 = vld [vmem:[%s2375 + $0x520] sm:$0xff]
        %v2541 = vld [vmem:[%s2375 + $0x528] sm:$0xff]
        %v2542 = vld [vmem:[%s2375 + $0x530] sm:$0xff]
        %v2543 = vld [vmem:[%s2375 + $0x538] sm:$0xff]
        %v2544 = vld [vmem:[%s2375 + $0x540] sm:$0xff]
        %v2545 = vld [vmem:[%s2375 + $0x548] sm:$0xff]
        %v2546 = vld [vmem:[%s2375 + $0x550] sm:$0xff]
        %v2547 = vld [vmem:[%s2375 + $0x558] sm:$0xff]
        %v2548 = vld [vmem:[%s2375 + $0x560] sm:$0xff]
        %v2549 = vld [vmem:[%s2375 + $0x568] sm:$0xff]
        %v2550 = vld [vmem:[%s2375 + $0x570] sm:$0xff]
        %v2551 = vld [vmem:[%s2375 + $0x578] sm:$0xff]
        %v2552 = vld [vmem:[%s2375 + $0x580] sm:$0xff]
        %v2553 = vld [vmem:[%s2375 + $0x588] sm:$0xff]
        %v2554 = vld [vmem:[%s2375 + $0x590] sm:$0xff]
        %v2555 = vld [vmem:[%s2375 + $0x598] sm:$0xff]
        %v2556 = vld [vmem:[%s2375 + $0x5a0] sm:$0xff]
        %v2557 = vld [vmem:[%s2375 + $0x5a8] sm:$0xff]
        %v2558 = vld [vmem:[%s2375 + $0x5b0] sm:$0xff]
        %v2559 = vld [vmem:[%s2375 + $0x5b8] sm:$0xff]
        %v2560 = vld [vmem:[%s2375 + $0x5c0] sm:$0xff]
        %v2561 = vld [vmem:[%s2375 + $0x5c8] sm:$0xff]
        %v2562 = vld [vmem:[%s2375 + $0x5d0] sm:$0xff]
        %v2563 = vld [vmem:[%s2375 + $0x5d8] sm:$0xff]
        %v2564 = vld [vmem:[%s2375 + $0x5e0] sm:$0xff]
        %v2565 = vld [vmem:[%s2375 + $0x5e8] sm:$0xff]
        %v2566 = vld [vmem:[%s2375 + $0x5f0] sm:$0xff]
        %v2567 = vld [vmem:[%s2375 + $0x5f8] sm:$0xff]
        %v2568 = vld [vmem:[%s2375 + $0x600] sm:$0xff]
        %v2569 = vld [vmem:[%s2375 + $0x608] sm:$0xff]
        %v2570 = vld [vmem:[%s2375 + $0x610] sm:$0xff]
        %v2571 = vld [vmem:[%s2375 + $0x618] sm:$0xff]
        %v2572 = vld [vmem:[%s2375 + $0x620] sm:$0xff]
        %v2573 = vld [vmem:[%s2375 + $0x628] sm:$0xff]
        %v2574 = vld [vmem:[%s2375 + $0x630] sm:$0xff]
        %v2575 = vld [vmem:[%s2375 + $0x638] sm:$0xff]
        %v2576 = vld [vmem:[%s2375 + $0x640] sm:$0xff]
        %v2577 = vld [vmem:[%s2375 + $0x648] sm:$0xff]
        %v2578 = vld [vmem:[%s2375 + $0x650] sm:$0xff]
        %v2579 = vld [vmem:[%s2375 + $0x658] sm:$0xff]
        %v2580 = vld [vmem:[%s2375 + $0x660] sm:$0xff]
        %v2581 = vld [vmem:[%s2375 + $0x668] sm:$0xff]
        %v2582 = vld [vmem:[%s2375 + $0x670] sm:$0xff]
        %v2583 = vld [vmem:[%s2375 + $0x678] sm:$0xff]
        %v2584 = vld [vmem:[%s2375 + $0x680] sm:$0xff]
        %v2585 = vld [vmem:[%s2375 + $0x688] sm:$0xff]
        %v2586 = vld [vmem:[%s2375 + $0x690] sm:$0xff]
        %v2587 = vld [vmem:[%s2375 + $0x698] sm:$0xff]
        %v2588 = vld [vmem:[%s2375 + $0x6a0] sm:$0xff]
        %v2589 = vld [vmem:[%s2375 + $0x6a8] sm:$0xff]
        %v2590 = vld [vmem:[%s2375 + $0x6b0] sm:$0xff]
        %v2591 = vld [vmem:[%s2375 + $0x6b8] sm:$0xff]
        %v2592 = vld [vmem:[%s2375 + $0x6c0] sm:$0xff]
        %v2593 = vld [vmem:[%s2375 + $0x6c8] sm:$0xff]
        %v2594 = vld [vmem:[%s2375 + $0x6d0] sm:$0xff]
        %v2595 = vld [vmem:[%s2375 + $0x6d8] sm:$0xff]
        %v2596 = vld [vmem:[%s2375 + $0x6e0] sm:$0xff]
        %v2597 = vld [vmem:[%s2375 + $0x6e8] sm:$0xff]
        %v2598 = vld [vmem:[%s2375 + $0x6f0] sm:$0xff]
        %v2599 = vld [vmem:[%s2375 + $0x6f8] sm:$0xff]
        %v2600 = vld [vmem:[%s2375 + $0x700] sm:$0xff]
        %v2601 = vld [vmem:[%s2375 + $0x708] sm:$0xff]
        %v2602 = vld [vmem:[%s2375 + $0x710] sm:$0xff]
        %v2603 = vld [vmem:[%s2375 + $0x718] sm:$0xff]
        %v2604 = vld [vmem:[%s2375 + $0x720] sm:$0xff]
        %v2605 = vld [vmem:[%s2375 + $0x728] sm:$0xff]
        %v2606 = vld [vmem:[%s2375 + $0x730] sm:$0xff]
        %v2607 = vld [vmem:[%s2375 + $0x738] sm:$0xff]
        %v2608 = vld [vmem:[%s2375 + $0x740] sm:$0xff]
        %v2609 = vld [vmem:[%s2375 + $0x748] sm:$0xff]
        %v2610 = vld [vmem:[%s2375 + $0x750] sm:$0xff]
        %v2611 = vld [vmem:[%s2375 + $0x758] sm:$0xff]
        %v2612 = vld [vmem:[%s2375 + $0x760] sm:$0xff]
        %v2613 = vld [vmem:[%s2375 + $0x768] sm:$0xff]
        %v2614 = vld [vmem:[%s2375 + $0x770] sm:$0xff]
        %v2615 = vld [vmem:[%s2375 + $0x778] sm:$0xff]
        %v2616 = vld [vmem:[%s2375 + $0x780] sm:$0xff]
        %v2617 = vld [vmem:[%s2375 + $0x788] sm:$0xff]
        %v2618 = vld [vmem:[%s2375 + $0x790] sm:$0xff]
        %v2619 = vld [vmem:[%s2375 + $0x798] sm:$0xff]
        %v2620 = vld [vmem:[%s2375 + $0x7a0] sm:$0xff]
        %v2621 = vld [vmem:[%s2375 + $0x7a8] sm:$0xff]
        %v2622 = vld [vmem:[%s2375 + $0x7b0] sm:$0xff]
        %v2623 = vld [vmem:[%s2375 + $0x7b8] sm:$0xff]
        %v2624 = vld [vmem:[%s2375 + $0x7c0] sm:$0xff]
        %v2625 = vld [vmem:[%s2375 + $0x7c8] sm:$0xff]
        %v2626 = vld [vmem:[%s2375 + $0x7d0] sm:$0xff]
        %v2627 = vld [vmem:[%s2375 + $0x7d8] sm:$0xff]
        %v2628 = vld [vmem:[%s2375 + $0x7e0] sm:$0xff]
        %v2629 = vld [vmem:[%s2375 + $0x7e8] sm:$0xff]
        %v2630 = vld [vmem:[%s2375 + $0x7f0] sm:$0xff]
        %v2631 = vld [vmem:[%s2375 + $0x7f8] sm:$0xff]
        %v2640 = vrot.slane %v2111, 1
        %v2641 = vrot.slane %v2092, 1
        %v2642 = vsel %vm1220, %v2640, %v2641
        %v2643 = vrot.slane %v2112, 1
        %v2644 = vrot.slane %v2094, 1
        %v2645 = vsel %vm1220, %v2643, %v2644
        %v2646 = vrot.slane %v2113, 1
        %v2647 = vrot.slane %v2096, 1
        %v2648 = vsel %vm1220, %v2646, %v2647
        %v2649 = vrot.slane %v2114, 1
        %v2650 = vrot.slane %v2098, 1
        %v2651 = vsel %vm1220, %v2649, %v2650
        %v2652 = vrot.slane %v2115, 1
        %v2653 = vsel %vm1220, %v2641, %v2652
        %v2654 = vrot.slane %v2116, 1
        %v2655 = vsel %vm1220, %v2644, %v2654
        %v2656 = vrot.slane %v2117, 1
        %v2657 = vsel %vm1220, %v2647, %v2656
        %v2658 = vrot.slane %v2118, 1
        %v2659 = vsel %vm1220, %v2650, %v2658
        %2668 = vmatprep.subr.mxu0 %v2377
        %2669 = vmatpush1.msra.mxu0 %v2376
        %2670 = vmatprep.subr.mxu0 %v2381
        %2671 = vmatpush1.msra.mxu0 %v2380
        %2672 = vmatprep.subr.mxu0 %v2385
        %2673 = vmatpush1.msra.mxu0 %v2384
        %2674 = vmatprep.subr.mxu0 %v2389
        %2675 = vmatpush1.msra.mxu0 %v2388
        %2676 = vmatprep.subr.mxu0 %v2393
        %2677 = vmatpush1.msra.mxu0 %v2392
        %2678 = vmatprep.subr.mxu0 %v2397
        %2679 = vmatpush1.msra.mxu0 %v2396
        %2680 = vmatprep.subr.mxu0 %v2401
        %2681 = vmatpush1.msra.mxu0 %v2400
        %2682 = vmatprep.subr.mxu0 %v2405
        %2683 = vmatpush1.msra.mxu0 %v2404
        %2684 = vmatprep.subr.mxu0 %v2409
        %2685 = vmatpush1.msra.mxu0 %v2408
        %2686 = vmatprep.subr.mxu0 %v2413
        %2687 = vmatpush1.msra.mxu0 %v2412
        %2688 = vmatprep.subr.mxu0 %v2417
        %2689 = vmatpush1.msra.mxu0 %v2416
        %2690 = vmatprep.subr.mxu0 %v2421
        %2691 = vmatpush1.msra.mxu0 %v2420
        %2692 = vmatprep.subr.mxu0 %v2425
        %2693 = vmatpush1.msra.mxu0 %v2424
        %2694 = vmatprep.subr.mxu0 %v2429
        %2695 = vmatpush1.msra.mxu0 %v2428
        %2696 = vmatprep.subr.mxu0 %v2433
        %2697 = vmatpush1.msra.mxu0 %v2432
        %2698 = vmatprep.subr.mxu0 %v2437
        %2699 = vmatpush1.msra.mxu0 %v2436
        %2700 = vmatprep.subr.mxu0 %v2441
        %2701 = vmatpush1.msra.mxu0 %v2440
        %2702 = vmatprep.subr.mxu0 %v2445
        %2703 = vmatpush1.msra.mxu0 %v2444
        %2704 = vmatprep.subr.mxu0 %v2449
        %2705 = vmatpush1.msra.mxu0 %v2448
        %2706 = vmatprep.subr.mxu0 %v2453
        %2707 = vmatpush1.msra.mxu0 %v2452
        %2708 = vmatprep.subr.mxu0 %v2457
        %2709 = vmatpush1.msra.mxu0 %v2456
        %2710 = vmatprep.subr.mxu0 %v2461
        %2711 = vmatpush1.msra.mxu0 %v2460
        %2712 = vmatprep.subr.mxu0 %v2465
        %2713 = vmatpush1.msra.mxu0 %v2464
        %2714 = vmatprep.subr.mxu0 %v2469
        %2715 = vmatpush1.msra.mxu0 %v2468
        %2716 = vmatprep.subr.mxu0 %v2473
        %2717 = vmatpush1.msra.mxu0 %v2472
        %2718 = vmatprep.subr.mxu0 %v2477
        %2719 = vmatpush1.msra.mxu0 %v2476
        %2720 = vmatprep.subr.mxu0 %v2481
        %2721 = vmatpush1.msra.mxu0 %v2480
        %2722 = vmatprep.subr.mxu0 %v2485
        %2723 = vmatpush1.msra.mxu0 %v2484
        %2724 = vmatprep.subr.mxu0 %v2489
        %2725 = vmatpush1.msra.mxu0 %v2488
        %2726 = vmatprep.subr.mxu0 %v2493
        %2727 = vmatpush1.msra.mxu0 %v2492
        %2728 = vmatprep.subr.mxu0 %v2497
        %2729 = vmatpush1.msra.mxu0 %v2496
        %2730 = vmatprep.subr.mxu0 %v2501
        %2731 = vmatpush1.msra.mxu0 %v2500
        %2732 = vmatprep.mubr.f32.mxu0 %v2645
        %2733 = vmatmul.mubr.f32.gmra.mrb[0].mxu0 %v2642
        %v2734 = vpop.f32.mrb[0].mxu0
        %v2735 = vadd.f32 0.0, %v2734
        %v2736 = vpop.f32.mrb[0].mxu0
        %v2737 = vadd.f32 0.0, %v2736
        %2738 = vmatprep.mubr.f32.mxu0 %v2655
        %2739 = vmatmul.mubr.f32.gmra.mrb[0].mxu0 %v2653
        %v2740 = vpop.f32.mrb[0].mxu0
        %v2741 = vadd.f32 0.0, %v2740
        %v2742 = vpop.f32.mrb[0].mxu0
        %v2743 = vadd.f32 0.0, %v2742
        %2744 = vdwg.mxu0
        %2745 = vmatprep.subr.mxu0 %v2505
        %2746 = vmatpush1.msra.mxu0 %v2504
        %2747 = vmatprep.subr.mxu0 %v2509
        %2748 = vmatpush1.msra.mxu0 %v2508
        %2749 = vmatprep.subr.mxu0 %v2513
        %2750 = vmatpush1.msra.mxu0 %v2512
        %2751 = vmatprep.subr.mxu0 %v2517
        %2752 = vmatpush1.msra.mxu0 %v2516
        %2753 = vmatprep.subr.mxu0 %v2521
        %2754 = vmatpush1.msra.mxu0 %v2520
        %2755 = vmatprep.subr.mxu0 %v2525
        %2756 = vmatpush1.msra.mxu0 %v2524
        %2757 = vmatprep.subr.mxu0 %v2529
        %2758 = vmatpush1.msra.mxu0 %v2528
        %2759 = vmatprep.subr.mxu0 %v2533
        %2760 = vmatpush1.msra.mxu0 %v2532
        %2761 = vmatprep.subr.mxu0 %v2537
        %2762 = vmatpush1.msra.mxu0 %v2536
        %2763 = vmatprep.subr.mxu0 %v2541
        %2764 = vmatpush1.msra.mxu0 %v2540
        %2765 = vmatprep.subr.mxu0 %v2545
        %2766 = vmatpush1.msra.mxu0 %v2544
        %2767 = vmatprep.subr.mxu0 %v2549
        %2768 = vmatpush1.msra.mxu0 %v2548
        %2769 = vmatprep.subr.mxu0 %v2553
        %2770 = vmatpush1.msra.mxu0 %v2552
        %2771 = vmatprep.subr.mxu0 %v2557
        %2772 = vmatpush1.msra.mxu0 %v2556
        %2773 = vmatprep.subr.mxu0 %v2561
        %2774 = vmatpush1.msra.mxu0 %v2560
        %2775 = vmatprep.subr.mxu0 %v2565
        %2776 = vmatpush1.msra.mxu0 %v2564
        %2777 = vmatprep.subr.mxu0 %v2569
        %2778 = vmatpush1.msra.mxu0 %v2568
        %2779 = vmatprep.subr.mxu0 %v2573
        %2780 = vmatpush1.msra.mxu0 %v2572
        %2781 = vmatprep.subr.mxu0 %v2577
        %2782 = vmatpush1.msra.mxu0 %v2576
        %2783 = vmatprep.subr.mxu0 %v2581
        %2784 = vmatpush1.msra.mxu0 %v2580
        %2785 = vmatprep.subr.mxu0 %v2585
        %2786 = vmatpush1.msra.mxu0 %v2584
        %2787 = vmatprep.subr.mxu0 %v2589
        %2788 = vmatpush1.msra.mxu0 %v2588
        %2789 = vmatprep.subr.mxu0 %v2593
        %2790 = vmatpush1.msra.mxu0 %v2592
        %2791 = vmatprep.subr.mxu0 %v2597
        %2792 = vmatpush1.msra.mxu0 %v2596
        %2793 = vmatprep.subr.mxu0 %v2601
        %2794 = vmatpush1.msra.mxu0 %v2600
        %2795 = vmatprep.subr.mxu0 %v2605
        %2796 = vmatpush1.msra.mxu0 %v2604
        %2797 = vmatprep.subr.mxu0 %v2609
        %2798 = vmatpush1.msra.mxu0 %v2608
        %2799 = vmatprep.subr.mxu0 %v2613
        %2800 = vmatpush1.msra.mxu0 %v2612
        %2801 = vmatprep.subr.mxu0 %v2617
        %2802 = vmatpush1.msra.mxu0 %v2616
        %2803 = vmatprep.subr.mxu0 %v2621
        %2804 = vmatpush1.msra.mxu0 %v2620
        %2805 = vmatprep.subr.mxu0 %v2625
        %2806 = vmatpush1.msra.mxu0 %v2624
        %2807 = vmatprep.subr.mxu0 %v2629
        %2808 = vmatpush1.msra.mxu0 %v2628
        %2809 = vmatprep.mubr.f32.mxu0 %v2651
        %2810 = vmatmul.mubr.f32.gmra.mrb[0].mxu0 %v2648
        %v2811 = vpop.f32.mrb[0].mxu0
        %v2812 = vadd.f32 %v2735, %v2811
        %v2813 = vpop.f32.mrb[0].mxu0
        %v2814 = vadd.f32 %v2737, %v2813
        %2815 = vmatprep.mubr.f32.mxu0 %v2659
        %2816 = vmatmul.mubr.f32.gmra.mrb[0].mxu0 %v2657
        %v2817 = vpop.f32.mrb[0].mxu0
        %v2818 = vadd.f32 %v2741, %v2817
        %v2819 = vpop.f32.mrb[0].mxu0
        %v2820 = vadd.f32 %v2743, %v2819
        %2821 = vdwg.mxu0
        %2822 = vmatprep.subr.mxu0 %v2379
        %2823 = vmatpush1.msra.mxu0 %v2378
        %2824 = vmatprep.subr.mxu0 %v2383
        %2825 = vmatpush1.msra.mxu0 %v2382
        %2826 = vmatprep.subr.mxu0 %v2387
        %2827 = vmatpush1.msra.mxu0 %v2386
        %2828 = vmatprep.subr.mxu0 %v2391
        %2829 = vmatpush1.msra.mxu0 %v2390
        %2830 = vmatprep.subr.mxu0 %v2395
        %2831 = vmatpush1.msra.mxu0 %v2394
        %2832 = vmatprep.subr.mxu0 %v2399
        %2833 = vmatpush1.msra.mxu0 %v2398
        %2834 = vmatprep.subr.mxu0 %v2403
        %2835 = vmatpush1.msra.mxu0 %v2402
        %2836 = vmatprep.subr.mxu0 %v2407
        %2837 = vmatpush1.msra.mxu0 %v2406
        %2838 = vmatprep.subr.mxu0 %v2411
        %2839 = vmatpush1.msra.mxu0 %v2410
        %2840 = vmatprep.subr.mxu0 %v2415
        %2841 = vmatpush1.msra.mxu0 %v2414
        %2842 = vmatprep.subr.mxu0 %v2419
        %2843 = vmatpush1.msra.mxu0 %v2418
        %2844 = vmatprep.subr.mxu0 %v2423
        %2845 = vmatpush1.msra.mxu0 %v2422
        %2846 = vmatprep.subr.mxu0 %v2427
        %2847 = vmatpush1.msra.mxu0 %v2426
        %2848 = vmatprep.subr.mxu0 %v2431
        %2849 = vmatpush1.msra.mxu0 %v2430
        %2850 = vmatprep.subr.mxu0 %v2435
        %2851 = vmatpush1.msra.mxu0 %v2434
        %2852 = vmatprep.subr.mxu0 %v2439
        %2853 = vmatpush1.msra.mxu0 %v2438
        %2854 = vmatprep.subr.mxu0 %v2443
        %2855 = vmatpush1.msra.mxu0 %v2442
        %2856 = vmatprep.subr.mxu0 %v2447
        %2857 = vmatpush1.msra.mxu0 %v2446
        %2858 = vmatprep.subr.mxu0 %v2451
        %2859 = vmatpush1.msra.mxu0 %v2450
        %2860 = vmatprep.subr.mxu0 %v2455
        %2861 = vmatpush1.msra.mxu0 %v2454
        %2862 = vmatprep.subr.mxu0 %v2459
        %2863 = vmatpush1.msra.mxu0 %v2458
        %2864 = vmatprep.subr.mxu0 %v2463
        %2865 = vmatpush1.msra.mxu0 %v2462
        %2866 = vmatprep.subr.mxu0 %v2467
        %2867 = vmatpush1.msra.mxu0 %v2466
        %2868 = vmatprep.subr.mxu0 %v2471
        %2869 = vmatpush1.msra.mxu0 %v2470
        %2870 = vmatprep.subr.mxu0 %v2475
        %2871 = vmatpush1.msra.mxu0 %v2474
        %2872 = vmatprep.subr.mxu0 %v2479
        %2873 = vmatpush1.msra.mxu0 %v2478
        %2874 = vmatprep.subr.mxu0 %v2483
        %2875 = vmatpush1.msra.mxu0 %v2482
        %2876 = vmatprep.subr.mxu0 %v2487
        %2877 = vmatpush1.msra.mxu0 %v2486
        %2878 = vmatprep.subr.mxu0 %v2491
        %2879 = vmatpush1.msra.mxu0 %v2490
        %2880 = vmatprep.subr.mxu0 %v2495
        %2881 = vmatpush1.msra.mxu0 %v2494
        %2882 = vmatprep.subr.mxu0 %v2499
        %2883 = vmatpush1.msra.mxu0 %v2498
        %2884 = vmatprep.subr.mxu0 %v2503
        %2885 = vmatpush1.msra.mxu0 %v2502
        %2886 = vmatprep.mubr.f32.mxu0 %v2645
        %2887 = vmatmul.mubr.f32.gmra.mrb[0].mxu0 %v2642
        %v2888 = vpop.f32.mrb[0].mxu0
        %v2889 = vadd.f32 0.0, %v2888
        %v2890 = vpop.f32.mrb[0].mxu0
        %v2891 = vadd.f32 0.0, %v2890
        %2892 = vmatprep.mubr.f32.mxu0 %v2655
        %2893 = vmatmul.mubr.f32.gmra.mrb[0].mxu0 %v2653
        %v2894 = vpop.f32.mrb[0].mxu0
        %v2895 = vadd.f32 0.0, %v2894
        %v2896 = vpop.f32.mrb[0].mxu0
        %v2897 = vadd.f32 0.0, %v2896
        %2898 = vdwg.mxu0
        %2899 = vmatprep.subr.mxu0 %v2507
        %2900 = vmatpush1.msra.mxu0 %v2506
        %2901 = vmatprep.subr.mxu0 %v2511
        %2902 = vmatpush1.msra.mxu0 %v2510
        %2903 = vmatprep.subr.mxu0 %v2515
        %2904 = vmatpush1.msra.mxu0 %v2514
        %2905 = vmatprep.subr.mxu0 %v2519
        %2906 = vmatpush1.msra.mxu0 %v2518
        %2907 = vmatprep.subr.mxu0 %v2523
        %2908 = vmatpush1.msra.mxu0 %v2522
        %2909 = vmatprep.subr.mxu0 %v2527
        %2910 = vmatpush1.msra.mxu0 %v2526
        %2911 = vmatprep.subr.mxu0 %v2531
        %2912 = vmatpush1.msra.mxu0 %v2530
        %2913 = vmatprep.subr.mxu0 %v2535
        %2914 = vmatpush1.msra.mxu0 %v2534
        %2915 = vmatprep.subr.mxu0 %v2539
        %2916 = vmatpush1.msra.mxu0 %v2538
        %2917 = vmatprep.subr.mxu0 %v2543
        %2918 = vmatpush1.msra.mxu0 %v2542
        %2919 = vmatprep.subr.mxu0 %v2547
        %2920 = vmatpush1.msra.mxu0 %v2546
        %2921 = vmatprep.subr.mxu0 %v2551
        %2922 = vmatpush1.msra.mxu0 %v2550
        %2923 = vmatprep.subr.mxu0 %v2555
        %2924 = vmatpush1.msra.mxu0 %v2554
        %2925 = vmatprep.subr.mxu0 %v2559
        %2926 = vmatpush1.msra.mxu0 %v2558
        %2927 = vmatprep.subr.mxu0 %v2563
        %2928 = vmatpush1.msra.mxu0 %v2562
        %2929 = vmatprep.subr.mxu0 %v2567
        %2930 = vmatpush1.msra.mxu0 %v2566
        %2931 = vmatprep.subr.mxu0 %v2571
        %2932 = vmatpush1.msra.mxu0 %v2570
        %2933 = vmatprep.subr.mxu0 %v2575
        %2934 = vmatpush1.msra.mxu0 %v2574
        %2935 = vmatprep.subr.mxu0 %v2579
        %2936 = vmatpush1.msra.mxu0 %v2578
        %2937 = vmatprep.subr.mxu0 %v2583
        %2938 = vmatpush1.msra.mxu0 %v2582
        %2939 = vmatprep.subr.mxu0 %v2587
        %2940 = vmatpush1.msra.mxu0 %v2586
        %2941 = vmatprep.subr.mxu0 %v2591
        %2942 = vmatpush1.msra.mxu0 %v2590
        %2943 = vmatprep.subr.mxu0 %v2595
        %2944 = vmatpush1.msra.mxu0 %v2594
        %2945 = vmatprep.subr.mxu0 %v2599
        %2946 = vmatpush1.msra.mxu0 %v2598
        %2947 = vmatprep.subr.mxu0 %v2603
        %2948 = vmatpush1.msra.mxu0 %v2602
        %2949 = vmatprep.subr.mxu0 %v2607
        %2950 = vmatpush1.msra.mxu0 %v2606
        %2951 = vmatprep.subr.mxu0 %v2611
        %2952 = vmatpush1.msra.mxu0 %v2610
        %2953 = vmatprep.subr.mxu0 %v2615
        %2954 = vmatpush1.msra.mxu0 %v2614
        %2955 = vmatprep.subr.mxu0 %v2619
        %2956 = vmatpush1.msra.mxu0 %v2618
        %2957 = vmatprep.subr.mxu0 %v2623
        %2958 = vmatpush1.msra.mxu0 %v2622
        %2959 = vmatprep.subr.mxu0 %v2627
        %2960 = vmatpush1.msra.mxu0 %v2626
        %2961 = vmatprep.subr.mxu0 %v2631
        %2962 = vmatpush1.msra.mxu0 %v2630
        %2963 = vmatprep.mubr.f32.mxu0 %v2651
        %2964 = vmatmul.mubr.f32.gmra.mrb[0].mxu0 %v2648
        %v2965 = vpop.f32.mrb[0].mxu0
        %v2966 = vadd.f32 %v2889, %v2965
        %v2967 = vpop.f32.mrb[0].mxu0
        %v2968 = vadd.f32 %v2891, %v2967
        %2969 = vmatprep.mubr.f32.mxu0 %v2659
        %2970 = vmatmul.mubr.f32.gmra.mrb[0].mxu0 %v2657
        %v2971 = vpop.f32.mrb[0].mxu0
        %v2972 = vadd.f32 %v2895, %v2971
        %v2973 = vpop.f32.mrb[0].mxu0
        %v2974 = vadd.f32 %v2897, %v2973
        %2975 = vdwg.mxu0
        %2976 = vmatprep.subr.mxu0 %v2120
        %2977 = vmatpush1.msra.mxu0 %v2119
        %2978 = vmatprep.subr.mxu0 %v2124
        %2979 = vmatpush1.msra.mxu0 %v2123
        %2980 = vmatprep.subr.mxu0 %v2128
        %2981 = vmatpush1.msra.mxu0 %v2127
        %2982 = vmatprep.subr.mxu0 %v2132
        %2983 = vmatpush1.msra.mxu0 %v2131
        %2984 = vmatprep.subr.mxu0 %v2136
        %2985 = vmatpush1.msra.mxu0 %v2135
        %2986 = vmatprep.subr.mxu0 %v2140
        %2987 = vmatpush1.msra.mxu0 %v2139
        %2988 = vmatprep.subr.mxu0 %v2144
        %2989 = vmatpush1.msra.mxu0 %v2143
        %2990 = vmatprep.subr.mxu0 %v2148
        %2991 = vmatpush1.msra.mxu0 %v2147
        %2992 = vmatprep.subr.mxu0 %v2152
        %2993 = vmatpush1.msra.mxu0 %v2151
        %2994 = vmatprep.subr.mxu0 %v2156
        %2995 = vmatpush1.msra.mxu0 %v2155
        %2996 = vmatprep.subr.mxu0 %v2160
        %2997 = vmatpush1.msra.mxu0 %v2159
        %2998 = vmatprep.subr.mxu0 %v2164
        %2999 = vmatpush1.msra.mxu0 %v2163
        %3000 = vmatprep.subr.mxu0 %v2168
        %3001 = vmatpush1.msra.mxu0 %v2167
        %3002 = vmatprep.subr.mxu0 %v2172
        %3003 = vmatpush1.msra.mxu0 %v2171
        %3004 = vmatprep.subr.mxu0 %v2176
        %3005 = vmatpush1.msra.mxu0 %v2175
        %3006 = vmatprep.subr.mxu0 %v2180
        %3007 = vmatpush1.msra.mxu0 %v2179
        %3008 = vmatprep.subr.mxu0 %v2184
        %3009 = vmatpush1.msra.mxu0 %v2183
        %3010 = vmatprep.subr.mxu0 %v2188
        %3011 = vmatpush1.msra.mxu0 %v2187
        %3012 = vmatprep.subr.mxu0 %v2192
        %3013 = vmatpush1.msra.mxu0 %v2191
        %3014 = vmatprep.subr.mxu0 %v2196
        %3015 = vmatpush1.msra.mxu0 %v2195
        %3016 = vmatprep.subr.mxu0 %v2200
        %3017 = vmatpush1.msra.mxu0 %v2199
        %3018 = vmatprep.subr.mxu0 %v2204
        %3019 = vmatpush1.msra.mxu0 %v2203
        %3020 = vmatprep.subr.mxu0 %v2208
        %3021 = vmatpush1.msra.mxu0 %v2207
        %3022 = vmatprep.subr.mxu0 %v2212
        %3023 = vmatpush1.msra.mxu0 %v2211
        %3024 = vmatprep.subr.mxu0 %v2216
        %3025 = vmatpush1.msra.mxu0 %v2215
        %3026 = vmatprep.subr.mxu0 %v2220
        %3027 = vmatpush1.msra.mxu0 %v2219
        %3028 = vmatprep.subr.mxu0 %v2224
        %3029 = vmatpush1.msra.mxu0 %v2223
        %3030 = vmatprep.subr.mxu0 %v2228
        %3031 = vmatpush1.msra.mxu0 %v2227
        %3032 = vmatprep.subr.mxu0 %v2232
        %3033 = vmatpush1.msra.mxu0 %v2231
        %3034 = vmatprep.subr.mxu0 %v2236
        %3035 = vmatpush1.msra.mxu0 %v2235
        %3036 = vmatprep.subr.mxu0 %v2240
        %3037 = vmatpush1.msra.mxu0 %v2239
        %3038 = vmatprep.subr.mxu0 %v2244
        %3039 = vmatpush1.msra.mxu0 %v2243
        %3040 = vmatprep.mubr.f32.mxu0 %v2112
        %3041 = vmatmul.mubr.f32.gmra.mrb[0].mxu0 %v2111
        %v3042 = vpop.f32.mrb[0].mxu0
        %v3043 = vadd.f32 %v2812, %v3042
        %v3044 = vpop.f32.mrb[0].mxu0
        %v3045 = vadd.f32 %v2814, %v3044
        %3046 = vmatprep.mubr.f32.mxu0 %v2094
        %3047 = vmatmul.mubr.f32.gmra.mrb[0].mxu0 %v2092
        %v3048 = vpop.f32.mrb[0].mxu0
        %v3049 = vadd.f32 %v2818, %v3048
        %v3050 = vpop.f32.mrb[0].mxu0
        %v3051 = vadd.f32 %v2820, %v3050
        %3052 = vdwg.mxu0
        %3053 = vmatprep.subr.mxu0 %v2248
        %3054 = vmatpush1.msra.mxu0 %v2247
        %3055 = vmatprep.subr.mxu0 %v2252
        %3056 = vmatpush1.msra.mxu0 %v2251
        %3057 = vmatprep.subr.mxu0 %v2256
        %3058 = vmatpush1.msra.mxu0 %v2255
        %3059 = vmatprep.subr.mxu0 %v2260
        %3060 = vmatpush1.msra.mxu0 %v2259
        %3061 = vmatprep.subr.mxu0 %v2264
        %3062 = vmatpush1.msra.mxu0 %v2263
        %3063 = vmatprep.subr.mxu0 %v2268
        %3064 = vmatpush1.msra.mxu0 %v2267
        %3065 = vmatprep.subr.mxu0 %v2272
        %3066 = vmatpush1.msra.mxu0 %v2271
        %3067 = vmatprep.subr.mxu0 %v2276
        %3068 = vmatpush1.msra.mxu0 %v2275
        %3069 = vmatprep.subr.mxu0 %v2280
        %3070 = vmatpush1.msra.mxu0 %v2279
        %3071 = vmatprep.subr.mxu0 %v2284
        %3072 = vmatpush1.msra.mxu0 %v2283
        %3073 = vmatprep.subr.mxu0 %v2288
        %3074 = vmatpush1.msra.mxu0 %v2287
        %3075 = vmatprep.subr.mxu0 %v2292
        %3076 = vmatpush1.msra.mxu0 %v2291
        %3077 = vmatprep.subr.mxu0 %v2296
        %3078 = vmatpush1.msra.mxu0 %v2295
        %3079 = vmatprep.subr.mxu0 %v2300
        %3080 = vmatpush1.msra.mxu0 %v2299
        %3081 = vmatprep.subr.mxu0 %v2304
        %3082 = vmatpush1.msra.mxu0 %v2303
        %3083 = vmatprep.subr.mxu0 %v2308
        %3084 = vmatpush1.msra.mxu0 %v2307
        %3085 = vmatprep.subr.mxu0 %v2312
        %3086 = vmatpush1.msra.mxu0 %v2311
        %3087 = vmatprep.subr.mxu0 %v2316
        %3088 = vmatpush1.msra.mxu0 %v2315
        %3089 = vmatprep.subr.mxu0 %v2320
        %3090 = vmatpush1.msra.mxu0 %v2319
        %3091 = vmatprep.subr.mxu0 %v2324
        %3092 = vmatpush1.msra.mxu0 %v2323
        %3093 = vmatprep.subr.mxu0 %v2328
        %3094 = vmatpush1.msra.mxu0 %v2327
        %3095 = vmatprep.subr.mxu0 %v2332
        %3096 = vmatpush1.msra.mxu0 %v2331
        %3097 = vmatprep.subr.mxu0 %v2336
        %3098 = vmatpush1.msra.mxu0 %v2335
        %3099 = vmatprep.subr.mxu0 %v2340
        %3100 = vmatpush1.msra.mxu0 %v2339
        %3101 = vmatprep.subr.mxu0 %v2344
        %3102 = vmatpush1.msra.mxu0 %v2343
        %3103 = vmatprep.subr.mxu0 %v2348
        %3104 = vmatpush1.msra.mxu0 %v2347
        %3105 = vmatprep.subr.mxu0 %v2352
        %3106 = vmatpush1.msra.mxu0 %v2351
        %3107 = vmatprep.subr.mxu0 %v2356
        %3108 = vmatpush1.msra.mxu0 %v2355
        %3109 = vmatprep.subr.mxu0 %v2360
        %3110 = vmatpush1.msra.mxu0 %v2359
        %3111 = vmatprep.subr.mxu0 %v2364
        %3112 = vmatpush1.msra.mxu0 %v2363
        %3113 = vmatprep.subr.mxu0 %v2368
        %3114 = vmatpush1.msra.mxu0 %v2367
        %3115 = vmatprep.subr.mxu0 %v2372
        %3116 = vmatpush1.msra.mxu0 %v2371
        %3117 = vmatprep.mubr.f32.mxu0 %v2114
        %3118 = vmatmul.mubr.f32.gmra.mrb[0].mxu0 %v2113
        %v3119 = vpop.f32.mrb[0].mxu0
        %v3120 = vadd.f32 %v3043, %v3119
        %v3121 = vpop.f32.mrb[0].mxu0
        %v3122 = vadd.f32 %v3045, %v3121
        %3123 = vmatprep.mubr.f32.mxu0 %v2098
        %3124 = vmatmul.mubr.f32.gmra.mrb[0].mxu0 %v2096
        %v3125 = vpop.f32.mrb[0].mxu0
        %v3126 = vadd.f32 %v3049, %v3125
        %v3127 = vpop.f32.mrb[0].mxu0
        %v3128 = vadd.f32 %v3051, %v3127
        %3129 = vdwg.mxu0
        %3130 = vmatprep.subr.mxu0 %v2122
        %3131 = vmatpush1.msra.mxu0 %v2121
        %3132 = vmatprep.subr.mxu0 %v2126
        %3133 = vmatpush1.msra.mxu0 %v2125
        %3134 = vmatprep.subr.mxu0 %v2130
        %3135 = vmatpush1.msra.mxu0 %v2129
        %3136 = vmatprep.subr.mxu0 %v2134
        %3137 = vmatpush1.msra.mxu0 %v2133
        %3138 = vmatprep.subr.mxu0 %v2138
        %3139 = vmatpush1.msra.mxu0 %v2137
        %3140 = vmatprep.subr.mxu0 %v2142
        %3141 = vmatpush1.msra.mxu0 %v2141
        %3142 = vmatprep.subr.mxu0 %v2146
        %3143 = vmatpush1.msra.mxu0 %v2145
        %3144 = vmatprep.subr.mxu0 %v2150
        %3145 = vmatpush1.msra.mxu0 %v2149
        %3146 = vmatprep.subr.mxu0 %v2154
        %3147 = vmatpush1.msra.mxu0 %v2153
        %3148 = vmatprep.subr.mxu0 %v2158
        %3149 = vmatpush1.msra.mxu0 %v2157
        %3150 = vmatprep.subr.mxu0 %v2162
        %3151 = vmatpush1.msra.mxu0 %v2161
        %3152 = vmatprep.subr.mxu0 %v2166
        %3153 = vmatpush1.msra.mxu0 %v2165
        %3154 = vmatprep.subr.mxu0 %v2170
        %3155 = vmatpush1.msra.mxu0 %v2169
        %3156 = vmatprep.subr.mxu0 %v2174
        %3157 = vmatpush1.msra.mxu0 %v2173
        %3158 = vmatprep.subr.mxu0 %v2178
        %3159 = vmatpush1.msra.mxu0 %v2177
        %3160 = vmatprep.subr.mxu0 %v2182
        %3161 = vmatpush1.msra.mxu0 %v2181
        %3162 = vmatprep.subr.mxu0 %v2186
        %3163 = vmatpush1.msra.mxu0 %v2185
        %3164 = vmatprep.subr.mxu0 %v2190
        %3165 = vmatpush1.msra.mxu0 %v2189
        %3166 = vmatprep.subr.mxu0 %v2194
        %3167 = vmatpush1.msra.mxu0 %v2193
        %3168 = vmatprep.subr.mxu0 %v2198
        %3169 = vmatpush1.msra.mxu0 %v2197
        %3170 = vmatprep.subr.mxu0 %v2202
        %3171 = vmatpush1.msra.mxu0 %v2201
        %3172 = vmatprep.subr.mxu0 %v2206
        %3173 = vmatpush1.msra.mxu0 %v2205
        %3174 = vmatprep.subr.mxu0 %v2210
        %3175 = vmatpush1.msra.mxu0 %v2209
        %3176 = vmatprep.subr.mxu0 %v2214
        %3177 = vmatpush1.msra.mxu0 %v2213
        %3178 = vmatprep.subr.mxu0 %v2218
        %3179 = vmatpush1.msra.mxu0 %v2217
        %3180 = vmatprep.subr.mxu0 %v2222
        %3181 = vmatpush1.msra.mxu0 %v2221
        %3182 = vmatprep.subr.mxu0 %v2226
        %3183 = vmatpush1.msra.mxu0 %v2225
        %3184 = vmatprep.subr.mxu0 %v2230
        %3185 = vmatpush1.msra.mxu0 %v2229
        %3186 = vmatprep.subr.mxu0 %v2234
        %3187 = vmatpush1.msra.mxu0 %v2233
        %3188 = vmatprep.subr.mxu0 %v2238
        %3189 = vmatpush1.msra.mxu0 %v2237
        %3190 = vmatprep.subr.mxu0 %v2242
        %3191 = vmatpush1.msra.mxu0 %v2241
        %3192 = vmatprep.subr.mxu0 %v2246
        %3193 = vmatpush1.msra.mxu0 %v2245
        %3194 = vmatprep.mubr.f32.mxu0 %v2112
        %3195 = vmatmul.mubr.f32.gmra.mrb[0].mxu0 %v2111
        %v3196 = vpop.f32.mrb[0].mxu0
        %v3197 = vadd.f32 %v2966, %v3196
        %v3198 = vpop.f32.mrb[0].mxu0
        %v3199 = vadd.f32 %v2968, %v3198
        %3200 = vmatprep.mubr.f32.mxu0 %v2094
        %3201 = vmatmul.mubr.f32.gmra.mrb[0].mxu0 %v2092
        %v3202 = vpop.f32.mrb[0].mxu0
        %v3203 = vadd.f32 %v2972, %v3202
        %v3204 = vpop.f32.mrb[0].mxu0
        %v3205 = vadd.f32 %v2974, %v3204
        %3206 = vdwg.mxu0
        %3207 = vmatprep.subr.mxu0 %v2250
        %3208 = vmatpush1.msra.mxu0 %v2249
        %3209 = vmatprep.subr.mxu0 %v2254
        %3210 = vmatpush1.msra.mxu0 %v2253
        %3211 = vmatprep.subr.mxu0 %v2258
        %3212 = vmatpush1.msra.mxu0 %v2257
        %3213 = vmatprep.subr.mxu0 %v2262
        %3214 = vmatpush1.msra.mxu0 %v2261
        %3215 = vmatprep.subr.mxu0 %v2266
        %3216 = vmatpush1.msra.mxu0 %v2265
        %3217 = vmatprep.subr.mxu0 %v2270
        %3218 = vmatpush1.msra.mxu0 %v2269
        %3219 = vmatprep.subr.mxu0 %v2274
        %3220 = vmatpush1.msra.mxu0 %v2273
        %3221 = vmatprep.subr.mxu0 %v2278
        %3222 = vmatpush1.msra.mxu0 %v2277
        %3223 = vmatprep.subr.mxu0 %v2282
        %3224 = vmatpush1.msra.mxu0 %v2281
        %3225 = vmatprep.subr.mxu0 %v2286
        %3226 = vmatpush1.msra.mxu0 %v2285
        %3227 = vmatprep.subr.mxu0 %v2290
        %3228 = vmatpush1.msra.mxu0 %v2289
        %3229 = vmatprep.subr.mxu0 %v2294
        %3230 = vmatpush1.msra.mxu0 %v2293
        %3231 = vmatprep.subr.mxu0 %v2298
        %3232 = vmatpush1.msra.mxu0 %v2297
        %3233 = vmatprep.subr.mxu0 %v2302
        %3234 = vmatpush1.msra.mxu0 %v2301
        %3235 = vmatprep.subr.mxu0 %v2306
        %3236 = vmatpush1.msra.mxu0 %v2305
        %3237 = vmatprep.subr.mxu0 %v2310
        %3238 = vmatpush1.msra.mxu0 %v2309
        %3239 = vmatprep.subr.mxu0 %v2314
        %3240 = vmatpush1.msra.mxu0 %v2313
        %3241 = vmatprep.subr.mxu0 %v2318
        %3242 = vmatpush1.msra.mxu0 %v2317
        %3243 = vmatprep.subr.mxu0 %v2322
        %3244 = vmatpush1.msra.mxu0 %v2321
        %3245 = vmatprep.subr.mxu0 %v2326
        %3246 = vmatpush1.msra.mxu0 %v2325
        %3247 = vmatprep.subr.mxu0 %v2330
        %3248 = vmatpush1.msra.mxu0 %v2329
        %3249 = vmatprep.subr.mxu0 %v2334
        %3250 = vmatpush1.msra.mxu0 %v2333
        %3251 = vmatprep.subr.mxu0 %v2338
        %3252 = vmatpush1.msra.mxu0 %v2337
        %3253 = vmatprep.subr.mxu0 %v2342
        %3254 = vmatpush1.msra.mxu0 %v2341
        %3255 = vmatprep.subr.mxu0 %v2346
        %3256 = vmatpush1.msra.mxu0 %v2345
        %3257 = vmatprep.subr.mxu0 %v2350
        %3258 = vmatpush1.msra.mxu0 %v2349
        %3259 = vmatprep.subr.mxu0 %v2354
        %3260 = vmatpush1.msra.mxu0 %v2353
        %3261 = vmatprep.subr.mxu0 %v2358
        %3262 = vmatpush1.msra.mxu0 %v2357
        %3263 = vmatprep.subr.mxu0 %v2362
        %3264 = vmatpush1.msra.mxu0 %v2361
        %3265 = vmatprep.subr.mxu0 %v2366
        %3266 = vmatpush1.msra.mxu0 %v2365
        %3267 = vmatprep.subr.mxu0 %v2370
        %3268 = vmatpush1.msra.mxu0 %v2369
        %3269 = vmatprep.subr.mxu0 %v2374
        %3270 = vmatpush1.msra.mxu0 %v2373
        %3271 = vmatprep.mubr.f32.mxu0 %v2114
        %3272 = vmatmul.mubr.f32.gmra.mrb[0].mxu0 %v2113
        %v3273 = vpop.f32.mrb[0].mxu0
        %v3274 = vadd.f32 %v3197, %v3273
        %v3275 = vpop.f32.mrb[0].mxu0
        %v3276 = vadd.f32 %v3199, %v3275
        %3277 = vmatprep.mubr.f32.mxu0 %v2098
        %3278 = vmatmul.mubr.f32.gmra.mrb[0].mxu0 %v2096
        %v3279 = vpop.f32.mrb[0].mxu0
        %v3280 = vadd.f32 %v3203, %v3279
        %v3281 = vpop.f32.mrb[0].mxu0
        %v3282 = vadd.f32 %v3205, %v3281
        %3283 = vdwg.mxu0
        %s3284 = scalar_lea.vmem [#allocation16], 4096
        %v3285 = vld [vmem:[%s3284] sm:$0xff]
        %v3286 = vld [vmem:[%s3284 + $0x8] sm:$0xff]
        %v3287 = vld [vmem:[%s3284 + $0x10] sm:$0xff]
        %v3288 = vld [vmem:[%s3284 + $0x18] sm:$0xff]
        %v3289 = vld [vmem:[%s3284 + $0x20] sm:$0xff]
        %v3290 = vld [vmem:[%s3284 + $0x28] sm:$0xff]
        %v3291 = vld [vmem:[%s3284 + $0x30] sm:$0xff]
        %v3292 = vld [vmem:[%s3284 + $0x38] sm:$0xff]
        %v3293 = vld [vmem:[%s3284 + $0x40] sm:$0xff]
        %v3294 = vld [vmem:[%s3284 + $0x48] sm:$0xff]
        %v3295 = vld [vmem:[%s3284 + $0x50] sm:$0xff]
        %v3296 = vld [vmem:[%s3284 + $0x58] sm:$0xff]
        %v3297 = vld [vmem:[%s3284 + $0x60] sm:$0xff]
        %v3298 = vld [vmem:[%s3284 + $0x68] sm:$0xff]
        %v3299 = vld [vmem:[%s3284 + $0x70] sm:$0xff]
        %v3300 = vld [vmem:[%s3284 + $0x78] sm:$0xff]
        %v3301 = vld [vmem:[%s3284 + $0x80] sm:$0xff]
        %v3302 = vld [vmem:[%s3284 + $0x88] sm:$0xff]
        %v3303 = vld [vmem:[%s3284 + $0x90] sm:$0xff]
        %v3304 = vld [vmem:[%s3284 + $0x98] sm:$0xff]
        %v3305 = vld [vmem:[%s3284 + $0xa0] sm:$0xff]
        %v3306 = vld [vmem:[%s3284 + $0xa8] sm:$0xff]
        %v3307 = vld [vmem:[%s3284 + $0xb0] sm:$0xff]
        %v3308 = vld [vmem:[%s3284 + $0xb8] sm:$0xff]
        %v3309 = vld [vmem:[%s3284 + $0xc0] sm:$0xff]
        %v3310 = vld [vmem:[%s3284 + $0xc8] sm:$0xff]
        %v3311 = vld [vmem:[%s3284 + $0xd0] sm:$0xff]
        %v3312 = vld [vmem:[%s3284 + $0xd8] sm:$0xff]
        %v3313 = vld [vmem:[%s3284 + $0xe0] sm:$0xff]
        %v3314 = vld [vmem:[%s3284 + $0xe8] sm:$0xff]
        %v3315 = vld [vmem:[%s3284 + $0xf0] sm:$0xff]
        %v3316 = vld [vmem:[%s3284 + $0xf8] sm:$0xff]
        %v3317 = vld [vmem:[%s3284 + $0x100] sm:$0xff]
        %v3318 = vld [vmem:[%s3284 + $0x108] sm:$0xff]
        %v3319 = vld [vmem:[%s3284 + $0x110] sm:$0xff]
        %v3320 = vld [vmem:[%s3284 + $0x118] sm:$0xff]
        %v3321 = vld [vmem:[%s3284 + $0x120] sm:$0xff]
        %v3322 = vld [vmem:[%s3284 + $0x128] sm:$0xff]
        %v3323 = vld [vmem:[%s3284 + $0x130] sm:$0xff]
        %v3324 = vld [vmem:[%s3284 + $0x138] sm:$0xff]
        %v3325 = vld [vmem:[%s3284 + $0x140] sm:$0xff]
        %v3326 = vld [vmem:[%s3284 + $0x148] sm:$0xff]
        %v3327 = vld [vmem:[%s3284 + $0x150] sm:$0xff]
        %v3328 = vld [vmem:[%s3284 + $0x158] sm:$0xff]
        %v3329 = vld [vmem:[%s3284 + $0x160] sm:$0xff]
        %v3330 = vld [vmem:[%s3284 + $0x168] sm:$0xff]
        %v3331 = vld [vmem:[%s3284 + $0x170] sm:$0xff]
        %v3332 = vld [vmem:[%s3284 + $0x178] sm:$0xff]
        %v3333 = vld [vmem:[%s3284 + $0x180] sm:$0xff]
        %v3334 = vld [vmem:[%s3284 + $0x188] sm:$0xff]
        %v3335 = vld [vmem:[%s3284 + $0x190] sm:$0xff]
        %v3336 = vld [vmem:[%s3284 + $0x198] sm:$0xff]
        %v3337 = vld [vmem:[%s3284 + $0x1a0] sm:$0xff]
        %v3338 = vld [vmem:[%s3284 + $0x1a8] sm:$0xff]
        %v3339 = vld [vmem:[%s3284 + $0x1b0] sm:$0xff]
        %v3340 = vld [vmem:[%s3284 + $0x1b8] sm:$0xff]
        %v3341 = vld [vmem:[%s3284 + $0x1c0] sm:$0xff]
        %v3342 = vld [vmem:[%s3284 + $0x1c8] sm:$0xff]
        %v3343 = vld [vmem:[%s3284 + $0x1d0] sm:$0xff]
        %v3344 = vld [vmem:[%s3284 + $0x1d8] sm:$0xff]
        %v3345 = vld [vmem:[%s3284 + $0x1e0] sm:$0xff]
        %v3346 = vld [vmem:[%s3284 + $0x1e8] sm:$0xff]
        %v3347 = vld [vmem:[%s3284 + $0x1f0] sm:$0xff]
        %v3348 = vld [vmem:[%s3284 + $0x1f8] sm:$0xff]
        %v3349 = vld [vmem:[%s3284 + $0x200] sm:$0xff]
        %v3350 = vld [vmem:[%s3284 + $0x208] sm:$0xff]
        %v3351 = vld [vmem:[%s3284 + $0x210] sm:$0xff]
        %v3352 = vld [vmem:[%s3284 + $0x218] sm:$0xff]
        %v3353 = vld [vmem:[%s3284 + $0x220] sm:$0xff]
        %v3354 = vld [vmem:[%s3284 + $0x228] sm:$0xff]
        %v3355 = vld [vmem:[%s3284 + $0x230] sm:$0xff]
        %v3356 = vld [vmem:[%s3284 + $0x238] sm:$0xff]
        %v3357 = vld [vmem:[%s3284 + $0x240] sm:$0xff]
        %v3358 = vld [vmem:[%s3284 + $0x248] sm:$0xff]
        %v3359 = vld [vmem:[%s3284 + $0x250] sm:$0xff]
        %v3360 = vld [vmem:[%s3284 + $0x258] sm:$0xff]
        %v3361 = vld [vmem:[%s3284 + $0x260] sm:$0xff]
        %v3362 = vld [vmem:[%s3284 + $0x268] sm:$0xff]
        %v3363 = vld [vmem:[%s3284 + $0x270] sm:$0xff]
        %v3364 = vld [vmem:[%s3284 + $0x278] sm:$0xff]
        %v3365 = vld [vmem:[%s3284 + $0x280] sm:$0xff]
        %v3366 = vld [vmem:[%s3284 + $0x288] sm:$0xff]
        %v3367 = vld [vmem:[%s3284 + $0x290] sm:$0xff]
        %v3368 = vld [vmem:[%s3284 + $0x298] sm:$0xff]
        %v3369 = vld [vmem:[%s3284 + $0x2a0] sm:$0xff]
        %v3370 = vld [vmem:[%s3284 + $0x2a8] sm:$0xff]
        %v3371 = vld [vmem:[%s3284 + $0x2b0] sm:$0xff]
        %v3372 = vld [vmem:[%s3284 + $0x2b8] sm:$0xff]
        %v3373 = vld [vmem:[%s3284 + $0x2c0] sm:$0xff]
        %v3374 = vld [vmem:[%s3284 + $0x2c8] sm:$0xff]
        %v3375 = vld [vmem:[%s3284 + $0x2d0] sm:$0xff]
        %v3376 = vld [vmem:[%s3284 + $0x2d8] sm:$0xff]
        %v3377 = vld [vmem:[%s3284 + $0x2e0] sm:$0xff]
        %v3378 = vld [vmem:[%s3284 + $0x2e8] sm:$0xff]
        %v3379 = vld [vmem:[%s3284 + $0x2f0] sm:$0xff]
        %v3380 = vld [vmem:[%s3284 + $0x2f8] sm:$0xff]
        %v3381 = vld [vmem:[%s3284 + $0x300] sm:$0xff]
        %v3382 = vld [vmem:[%s3284 + $0x308] sm:$0xff]
        %v3383 = vld [vmem:[%s3284 + $0x310] sm:$0xff]
        %v3384 = vld [vmem:[%s3284 + $0x318] sm:$0xff]
        %v3385 = vld [vmem:[%s3284 + $0x320] sm:$0xff]
        %v3386 = vld [vmem:[%s3284 + $0x328] sm:$0xff]
        %v3387 = vld [vmem:[%s3284 + $0x330] sm:$0xff]
        %v3388 = vld [vmem:[%s3284 + $0x338] sm:$0xff]
        %v3389 = vld [vmem:[%s3284 + $0x340] sm:$0xff]
        %v3390 = vld [vmem:[%s3284 + $0x348] sm:$0xff]
        %v3391 = vld [vmem:[%s3284 + $0x350] sm:$0xff]
        %v3392 = vld [vmem:[%s3284 + $0x358] sm:$0xff]
        %v3393 = vld [vmem:[%s3284 + $0x360] sm:$0xff]
        %v3394 = vld [vmem:[%s3284 + $0x368] sm:$0xff]
        %v3395 = vld [vmem:[%s3284 + $0x370] sm:$0xff]
        %v3396 = vld [vmem:[%s3284 + $0x378] sm:$0xff]
        %v3397 = vld [vmem:[%s3284 + $0x380] sm:$0xff]
        %v3398 = vld [vmem:[%s3284 + $0x388] sm:$0xff]
        %v3399 = vld [vmem:[%s3284 + $0x390] sm:$0xff]
        %v3400 = vld [vmem:[%s3284 + $0x398] sm:$0xff]
        %v3401 = vld [vmem:[%s3284 + $0x3a0] sm:$0xff]
        %v3402 = vld [vmem:[%s3284 + $0x3a8] sm:$0xff]
        %v3403 = vld [vmem:[%s3284 + $0x3b0] sm:$0xff]
        %v3404 = vld [vmem:[%s3284 + $0x3b8] sm:$0xff]
        %v3405 = vld [vmem:[%s3284 + $0x3c0] sm:$0xff]
        %v3406 = vld [vmem:[%s3284 + $0x3c8] sm:$0xff]
        %v3407 = vld [vmem:[%s3284 + $0x3d0] sm:$0xff]
        %v3408 = vld [vmem:[%s3284 + $0x3d8] sm:$0xff]
        %v3409 = vld [vmem:[%s3284 + $0x3e0] sm:$0xff]
        %v3410 = vld [vmem:[%s3284 + $0x3e8] sm:$0xff]
        %v3411 = vld [vmem:[%s3284 + $0x3f0] sm:$0xff]
        %v3412 = vld [vmem:[%s3284 + $0x3f8] sm:$0xff]
        %v3413 = vld [vmem:[%s3284 + $0x400] sm:$0xff]
        %v3414 = vld [vmem:[%s3284 + $0x408] sm:$0xff]
        %v3415 = vld [vmem:[%s3284 + $0x410] sm:$0xff]
        %v3416 = vld [vmem:[%s3284 + $0x418] sm:$0xff]
        %v3417 = vld [vmem:[%s3284 + $0x420] sm:$0xff]
        %v3418 = vld [vmem:[%s3284 + $0x428] sm:$0xff]
        %v3419 = vld [vmem:[%s3284 + $0x430] sm:$0xff]
        %v3420 = vld [vmem:[%s3284 + $0x438] sm:$0xff]
        %v3421 = vld [vmem:[%s3284 + $0x440] sm:$0xff]
        %v3422 = vld [vmem:[%s3284 + $0x448] sm:$0xff]
        %v3423 = vld [vmem:[%s3284 + $0x450] sm:$0xff]
        %v3424 = vld [vmem:[%s3284 + $0x458] sm:$0xff]
        %v3425 = vld [vmem:[%s3284 + $0x460] sm:$0xff]
        %v3426 = vld [vmem:[%s3284 + $0x468] sm:$0xff]
        %v3427 = vld [vmem:[%s3284 + $0x470] sm:$0xff]
        %v3428 = vld [vmem:[%s3284 + $0x478] sm:$0xff]
        %v3429 = vld [vmem:[%s3284 + $0x480] sm:$0xff]
        %v3430 = vld [vmem:[%s3284 + $0x488] sm:$0xff]
        %v3431 = vld [vmem:[%s3284 + $0x490] sm:$0xff]
        %v3432 = vld [vmem:[%s3284 + $0x498] sm:$0xff]
        %v3433 = vld [vmem:[%s3284 + $0x4a0] sm:$0xff]
        %v3434 = vld [vmem:[%s3284 + $0x4a8] sm:$0xff]
        %v3435 = vld [vmem:[%s3284 + $0x4b0] sm:$0xff]
        %v3436 = vld [vmem:[%s3284 + $0x4b8] sm:$0xff]
        %v3437 = vld [vmem:[%s3284 + $0x4c0] sm:$0xff]
        %v3438 = vld [vmem:[%s3284 + $0x4c8] sm:$0xff]
        %v3439 = vld [vmem:[%s3284 + $0x4d0] sm:$0xff]
        %v3440 = vld [vmem:[%s3284 + $0x4d8] sm:$0xff]
        %v3441 = vld [vmem:[%s3284 + $0x4e0] sm:$0xff]
        %v3442 = vld [vmem:[%s3284 + $0x4e8] sm:$0xff]
        %v3443 = vld [vmem:[%s3284 + $0x4f0] sm:$0xff]
        %v3444 = vld [vmem:[%s3284 + $0x4f8] sm:$0xff]
        %v3445 = vld [vmem:[%s3284 + $0x500] sm:$0xff]
        %v3446 = vld [vmem:[%s3284 + $0x508] sm:$0xff]
        %v3447 = vld [vmem:[%s3284 + $0x510] sm:$0xff]
        %v3448 = vld [vmem:[%s3284 + $0x518] sm:$0xff]
        %v3449 = vld [vmem:[%s3284 + $0x520] sm:$0xff]
        %v3450 = vld [vmem:[%s3284 + $0x528] sm:$0xff]
        %v3451 = vld [vmem:[%s3284 + $0x530] sm:$0xff]
        %v3452 = vld [vmem:[%s3284 + $0x538] sm:$0xff]
        %v3453 = vld [vmem:[%s3284 + $0x540] sm:$0xff]
        %v3454 = vld [vmem:[%s3284 + $0x548] sm:$0xff]
        %v3455 = vld [vmem:[%s3284 + $0x550] sm:$0xff]
        %v3456 = vld [vmem:[%s3284 + $0x558] sm:$0xff]
        %v3457 = vld [vmem:[%s3284 + $0x560] sm:$0xff]
        %v3458 = vld [vmem:[%s3284 + $0x568] sm:$0xff]
        %v3459 = vld [vmem:[%s3284 + $0x570] sm:$0xff]
        %v3460 = vld [vmem:[%s3284 + $0x578] sm:$0xff]
        %v3461 = vld [vmem:[%s3284 + $0x580] sm:$0xff]
        %v3462 = vld [vmem:[%s3284 + $0x588] sm:$0xff]
        %v3463 = vld [vmem:[%s3284 + $0x590] sm:$0xff]
        %v3464 = vld [vmem:[%s3284 + $0x598] sm:$0xff]
        %v3465 = vld [vmem:[%s3284 + $0x5a0] sm:$0xff]
        %v3466 = vld [vmem:[%s3284 + $0x5a8] sm:$0xff]
        %v3467 = vld [vmem:[%s3284 + $0x5b0] sm:$0xff]
        %v3468 = vld [vmem:[%s3284 + $0x5b8] sm:$0xff]
        %v3469 = vld [vmem:[%s3284 + $0x5c0] sm:$0xff]
        %v3470 = vld [vmem:[%s3284 + $0x5c8] sm:$0xff]
        %v3471 = vld [vmem:[%s3284 + $0x5d0] sm:$0xff]
        %v3472 = vld [vmem:[%s3284 + $0x5d8] sm:$0xff]
        %v3473 = vld [vmem:[%s3284 + $0x5e0] sm:$0xff]
        %v3474 = vld [vmem:[%s3284 + $0x5e8] sm:$0xff]
        %v3475 = vld [vmem:[%s3284 + $0x5f0] sm:$0xff]
        %v3476 = vld [vmem:[%s3284 + $0x5f8] sm:$0xff]
        %v3477 = vld [vmem:[%s3284 + $0x600] sm:$0xff]
        %v3478 = vld [vmem:[%s3284 + $0x608] sm:$0xff]
        %v3479 = vld [vmem:[%s3284 + $0x610] sm:$0xff]
        %v3480 = vld [vmem:[%s3284 + $0x618] sm:$0xff]
        %v3481 = vld [vmem:[%s3284 + $0x620] sm:$0xff]
        %v3482 = vld [vmem:[%s3284 + $0x628] sm:$0xff]
        %v3483 = vld [vmem:[%s3284 + $0x630] sm:$0xff]
        %v3484 = vld [vmem:[%s3284 + $0x638] sm:$0xff]
        %v3485 = vld [vmem:[%s3284 + $0x640] sm:$0xff]
        %v3486 = vld [vmem:[%s3284 + $0x648] sm:$0xff]
        %v3487 = vld [vmem:[%s3284 + $0x650] sm:$0xff]
        %v3488 = vld [vmem:[%s3284 + $0x658] sm:$0xff]
        %v3489 = vld [vmem:[%s3284 + $0x660] sm:$0xff]
        %v3490 = vld [vmem:[%s3284 + $0x668] sm:$0xff]
        %v3491 = vld [vmem:[%s3284 + $0x670] sm:$0xff]
        %v3492 = vld [vmem:[%s3284 + $0x678] sm:$0xff]
        %v3493 = vld [vmem:[%s3284 + $0x680] sm:$0xff]
        %v3494 = vld [vmem:[%s3284 + $0x688] sm:$0xff]
        %v3495 = vld [vmem:[%s3284 + $0x690] sm:$0xff]
        %v3496 = vld [vmem:[%s3284 + $0x698] sm:$0xff]
        %v3497 = vld [vmem:[%s3284 + $0x6a0] sm:$0xff]
        %v3498 = vld [vmem:[%s3284 + $0x6a8] sm:$0xff]
        %v3499 = vld [vmem:[%s3284 + $0x6b0] sm:$0xff]
        %v3500 = vld [vmem:[%s3284 + $0x6b8] sm:$0xff]
        %v3501 = vld [vmem:[%s3284 + $0x6c0] sm:$0xff]
        %v3502 = vld [vmem:[%s3284 + $0x6c8] sm:$0xff]
        %v3503 = vld [vmem:[%s3284 + $0x6d0] sm:$0xff]
        %v3504 = vld [vmem:[%s3284 + $0x6d8] sm:$0xff]
        %v3505 = vld [vmem:[%s3284 + $0x6e0] sm:$0xff]
        %v3506 = vld [vmem:[%s3284 + $0x6e8] sm:$0xff]
        %v3507 = vld [vmem:[%s3284 + $0x6f0] sm:$0xff]
        %v3508 = vld [vmem:[%s3284 + $0x6f8] sm:$0xff]
        %v3509 = vld [vmem:[%s3284 + $0x700] sm:$0xff]
        %v3510 = vld [vmem:[%s3284 + $0x708] sm:$0xff]
        %v3511 = vld [vmem:[%s3284 + $0x710] sm:$0xff]
        %v3512 = vld [vmem:[%s3284 + $0x718] sm:$0xff]
        %v3513 = vld [vmem:[%s3284 + $0x720] sm:$0xff]
        %v3514 = vld [vmem:[%s3284 + $0x728] sm:$0xff]
        %v3515 = vld [vmem:[%s3284 + $0x730] sm:$0xff]
        %v3516 = vld [vmem:[%s3284 + $0x738] sm:$0xff]
        %v3517 = vld [vmem:[%s3284 + $0x740] sm:$0xff]
        %v3518 = vld [vmem:[%s3284 + $0x748] sm:$0xff]
        %v3519 = vld [vmem:[%s3284 + $0x750] sm:$0xff]
        %v3520 = vld [vmem:[%s3284 + $0x758] sm:$0xff]
        %v3521 = vld [vmem:[%s3284 + $0x760] sm:$0xff]
        %v3522 = vld [vmem:[%s3284 + $0x768] sm:$0xff]
        %v3523 = vld [vmem:[%s3284 + $0x770] sm:$0xff]
        %v3524 = vld [vmem:[%s3284 + $0x778] sm:$0xff]
        %v3525 = vld [vmem:[%s3284 + $0x780] sm:$0xff]
        %v3526 = vld [vmem:[%s3284 + $0x788] sm:$0xff]
        %v3527 = vld [vmem:[%s3284 + $0x790] sm:$0xff]
        %v3528 = vld [vmem:[%s3284 + $0x798] sm:$0xff]
        %v3529 = vld [vmem:[%s3284 + $0x7a0] sm:$0xff]
        %v3530 = vld [vmem:[%s3284 + $0x7a8] sm:$0xff]
        %v3531 = vld [vmem:[%s3284 + $0x7b0] sm:$0xff]
        %v3532 = vld [vmem:[%s3284 + $0x7b8] sm:$0xff]
        %v3533 = vld [vmem:[%s3284 + $0x7c0] sm:$0xff]
        %v3534 = vld [vmem:[%s3284 + $0x7c8] sm:$0xff]
        %v3535 = vld [vmem:[%s3284 + $0x7d0] sm:$0xff]
        %v3536 = vld [vmem:[%s3284 + $0x7d8] sm:$0xff]
        %v3537 = vld [vmem:[%s3284 + $0x7e0] sm:$0xff]
        %v3538 = vld [vmem:[%s3284 + $0x7e8] sm:$0xff]
        %v3539 = vld [vmem:[%s3284 + $0x7f0] sm:$0xff]
        %v3540 = vld [vmem:[%s3284 + $0x7f8] sm:$0xff]
        %v3541 = vrot.slane %v2111, 2
        %v3542 = vrot.slane %v2092, 2
        %v3543 = vsel %vm1402, %v3541, %v3542
        %v3544 = vrot.slane %v2112, 2
        %v3545 = vrot.slane %v2094, 2
        %v3546 = vsel %vm1402, %v3544, %v3545
        %v3547 = vrot.slane %v2113, 2
        %v3548 = vrot.slane %v2096, 2
        %v3549 = vsel %vm1402, %v3547, %v3548
        %v3550 = vrot.slane %v2114, 2
        %v3551 = vrot.slane %v2098, 2
        %v3552 = vsel %vm1402, %v3550, %v3551
        %v3553 = vrot.slane %v2115, 2
        %v3554 = vsel %vm1402, %v3542, %v3553
        %v3555 = vrot.slane %v2116, 2
        %v3556 = vsel %vm1402, %v3545, %v3555
        %v3557 = vrot.slane %v2117, 2
        %v3558 = vsel %vm1402, %v3548, %v3557
        %v3559 = vrot.slane %v2118, 2
        %v3560 = vsel %vm1402, %v3551, %v3559
        %3569 = vmatprep.subr.mxu0 %v3286
        %3570 = vmatpush1.msra.mxu0 %v3285
        %3571 = vmatprep.subr.mxu0 %v3290
        %3572 = vmatpush1.msra.mxu0 %v3289
        %3573 = vmatprep.subr.mxu0 %v3294
        %3574 = vmatpush1.msra.mxu0 %v3293
        %3575 = vmatprep.subr.mxu0 %v3298
        %3576 = vmatpush1.msra.mxu0 %v3297
        %3577 = vmatprep.subr.mxu0 %v3302
        %3578 = vmatpush1.msra.mxu0 %v3301
        %3579 = vmatprep.subr.mxu0 %v3306
        %3580 = vmatpush1.msra.mxu0 %v3305
        %3581 = vmatprep.subr.mxu0 %v3310
        %3582 = vmatpush1.msra.mxu0 %v3309
        %3583 = vmatprep.subr.mxu0 %v3314
        %3584 = vmatpush1.msra.mxu0 %v3313
        %3585 = vmatprep.subr.mxu0 %v3318
        %3586 = vmatpush1.msra.mxu0 %v3317
        %3587 = vmatprep.subr.mxu0 %v3322
        %3588 = vmatpush1.msra.mxu0 %v3321
        %3589 = vmatprep.subr.mxu0 %v3326
        %3590 = vmatpush1.msra.mxu0 %v3325
        %3591 = vmatprep.subr.mxu0 %v3330
        %3592 = vmatpush1.msra.mxu0 %v3329
        %3593 = vmatprep.subr.mxu0 %v3334
        %3594 = vmatpush1.msra.mxu0 %v3333
        %3595 = vmatprep.subr.mxu0 %v3338
        %3596 = vmatpush1.msra.mxu0 %v3337
        %3597 = vmatprep.subr.mxu0 %v3342
        %3598 = vmatpush1.msra.mxu0 %v3341
        %3599 = vmatprep.subr.mxu0 %v3346
        %3600 = vmatpush1.msra.mxu0 %v3345
        %3601 = vmatprep.subr.mxu0 %v3350
        %3602 = vmatpush1.msra.mxu0 %v3349
        %3603 = vmatprep.subr.mxu0 %v3354
        %3604 = vmatpush1.msra.mxu0 %v3353
        %3605 = vmatprep.subr.mxu0 %v3358
        %3606 = vmatpush1.msra.mxu0 %v3357
        %3607 = vmatprep.subr.mxu0 %v3362
        %3608 = vmatpush1.msra.mxu0 %v3361
        %3609 = vmatprep.subr.mxu0 %v3366
        %3610 = vmatpush1.msra.mxu0 %v3365
        %3611 = vmatprep.subr.mxu0 %v3370
        %3612 = vmatpush1.msra.mxu0 %v3369
        %3613 = vmatprep.subr.mxu0 %v3374
        %3614 = vmatpush1.msra.mxu0 %v3373
        %3615 = vmatprep.subr.mxu0 %v3378
        %3616 = vmatpush1.msra.mxu0 %v3377
        %3617 = vmatprep.subr.mxu0 %v3382
        %3618 = vmatpush1.msra.mxu0 %v3381
        %3619 = vmatprep.subr.mxu0 %v3386
        %3620 = vmatpush1.msra.mxu0 %v3385
        %3621 = vmatprep.subr.mxu0 %v3390
        %3622 = vmatpush1.msra.mxu0 %v3389
        %3623 = vmatprep.subr.mxu0 %v3394
        %3624 = vmatpush1.msra.mxu0 %v3393
        %3625 = vmatprep.subr.mxu0 %v3398
        %3626 = vmatpush1.msra.mxu0 %v3397
        %3627 = vmatprep.subr.mxu0 %v3402
        %3628 = vmatpush1.msra.mxu0 %v3401
        %3629 = vmatprep.subr.mxu0 %v3406
        %3630 = vmatpush1.msra.mxu0 %v3405
        %3631 = vmatprep.subr.mxu0 %v3410
        %3632 = vmatpush1.msra.mxu0 %v3409
        %3633 = vmatprep.mubr.f32.mxu0 %v3546
        %3634 = vmatmul.mubr.f32.gmra.mrb[0].mxu0 %v3543
        %v3635 = vpop.f32.mrb[0].mxu0
        %v3636 = vadd.f32 0.0, %v3635
        %v3637 = vpop.f32.mrb[0].mxu0
        %v3638 = vadd.f32 0.0, %v3637
        %3639 = vmatprep.mubr.f32.mxu0 %v3556
        %3640 = vmatmul.mubr.f32.gmra.mrb[0].mxu0 %v3554
        %v3641 = vpop.f32.mrb[0].mxu0
        %v3642 = vadd.f32 0.0, %v3641
        %v3643 = vpop.f32.mrb[0].mxu0
        %v3644 = vadd.f32 0.0, %v3643
        %3645 = vdwg.mxu0
        %3646 = vmatprep.subr.mxu0 %v3414
        %3647 = vmatpush1.msra.mxu0 %v3413
        %3648 = vmatprep.subr.mxu0 %v3418
        %3649 = vmatpush1.msra.mxu0 %v3417
        %3650 = vmatprep.subr.mxu0 %v3422
        %3651 = vmatpush1.msra.mxu0 %v3421
        %3652 = vmatprep.subr.mxu0 %v3426
        %3653 = vmatpush1.msra.mxu0 %v3425
        %3654 = vmatprep.subr.mxu0 %v3430
        %3655 = vmatpush1.msra.mxu0 %v3429
        %3656 = vmatprep.subr.mxu0 %v3434
        %3657 = vmatpush1.msra.mxu0 %v3433
        %3658 = vmatprep.subr.mxu0 %v3438
        %3659 = vmatpush1.msra.mxu0 %v3437
        %3660 = vmatprep.subr.mxu0 %v3442
        %3661 = vmatpush1.msra.mxu0 %v3441
        %3662 = vmatprep.subr.mxu0 %v3446
        %3663 = vmatpush1.msra.mxu0 %v3445
        %3664 = vmatprep.subr.mxu0 %v3450
        %3665 = vmatpush1.msra.mxu0 %v3449
        %3666 = vmatprep.subr.mxu0 %v3454
        %3667 = vmatpush1.msra.mxu0 %v3453
        %3668 = vmatprep.subr.mxu0 %v3458
        %3669 = vmatpush1.msra.mxu0 %v3457
        %3670 = vmatprep.subr.mxu0 %v3462
        %3671 = vmatpush1.msra.mxu0 %v3461
        %3672 = vmatprep.subr.mxu0 %v3466
        %3673 = vmatpush1.msra.mxu0 %v3465
        %3674 = vmatprep.subr.mxu0 %v3470
        %3675 = vmatpush1.msra.mxu0 %v3469
        %3676 = vmatprep.subr.mxu0 %v3474
        %3677 = vmatpush1.msra.mxu0 %v3473
        %3678 = vmatprep.subr.mxu0 %v3478
        %3679 = vmatpush1.msra.mxu0 %v3477
        %3680 = vmatprep.subr.mxu0 %v3482
        %3681 = vmatpush1.msra.mxu0 %v3481
        %3682 = vmatprep.subr.mxu0 %v3486
        %3683 = vmatpush1.msra.mxu0 %v3485
        %3684 = vmatprep.subr.mxu0 %v3490
        %3685 = vmatpush1.msra.mxu0 %v3489
        %3686 = vmatprep.subr.mxu0 %v3494
        %3687 = vmatpush1.msra.mxu0 %v3493
        %3688 = vmatprep.subr.mxu0 %v3498
        %3689 = vmatpush1.msra.mxu0 %v3497
        %3690 = vmatprep.subr.mxu0 %v3502
        %3691 = vmatpush1.msra.mxu0 %v3501
        %3692 = vmatprep.subr.mxu0 %v3506
        %3693 = vmatpush1.msra.mxu0 %v3505
        %3694 = vmatprep.subr.mxu0 %v3510
        %3695 = vmatpush1.msra.mxu0 %v3509
        %3696 = vmatprep.subr.mxu0 %v3514
        %3697 = vmatpush1.msra.mxu0 %v3513
        %3698 = vmatprep.subr.mxu0 %v3518
        %3699 = vmatpush1.msra.mxu0 %v3517
        %3700 = vmatprep.subr.mxu0 %v3522
        %3701 = vmatpush1.msra.mxu0 %v3521
        %3702 = vmatprep.subr.mxu0 %v3526
        %3703 = vmatpush1.msra.mxu0 %v3525
        %3704 = vmatprep.subr.mxu0 %v3530
        %3705 = vmatpush1.msra.mxu0 %v3529
        %3706 = vmatprep.subr.mxu0 %v3534
        %3707 = vmatpush1.msra.mxu0 %v3533
        %3708 = vmatprep.subr.mxu0 %v3538
        %3709 = vmatpush1.msra.mxu0 %v3537
        %3710 = vmatprep.mubr.f32.mxu0 %v3552
        %3711 = vmatmul.mubr.f32.gmra.mrb[0].mxu0 %v3549
        %v3712 = vpop.f32.mrb[0].mxu0
        %v3713 = vadd.f32 %v3636, %v3712
        %v3714 = vpop.f32.mrb[0].mxu0
        %v3715 = vadd.f32 %v3638, %v3714
        %3716 = vmatprep.mubr.f32.mxu0 %v3560
        %3717 = vmatmul.mubr.f32.gmra.mrb[0].mxu0 %v3558
        %v3718 = vpop.f32.mrb[0].mxu0
        %v3719 = vadd.f32 %v3642, %v3718
        %v3720 = vpop.f32.mrb[0].mxu0
        %v3721 = vadd.f32 %v3644, %v3720
        %3722 = vdwg.mxu0
        %3723 = vmatprep.subr.mxu0 %v3288
        %3724 = vmatpush1.msra.mxu0 %v3287
        %3725 = vmatprep.subr.mxu0 %v3292
        %3726 = vmatpush1.msra.mxu0 %v3291
        %3727 = vmatprep.subr.mxu0 %v3296
        %3728 = vmatpush1.msra.mxu0 %v3295
        %3729 = vmatprep.subr.mxu0 %v3300
        %3730 = vmatpush1.msra.mxu0 %v3299
        %3731 = vmatprep.subr.mxu0 %v3304
        %3732 = vmatpush1.msra.mxu0 %v3303
        %3733 = vmatprep.subr.mxu0 %v3308
        %3734 = vmatpush1.msra.mxu0 %v3307
        %3735 = vmatprep.subr.mxu0 %v3312
        %3736 = vmatpush1.msra.mxu0 %v3311
        %3737 = vmatprep.subr.mxu0 %v3316
        %3738 = vmatpush1.msra.mxu0 %v3315
        %3739 = vmatprep.subr.mxu0 %v3320
        %3740 = vmatpush1.msra.mxu0 %v3319
        %3741 = vmatprep.subr.mxu0 %v3324
        %3742 = vmatpush1.msra.mxu0 %v3323
        %3743 = vmatprep.subr.mxu0 %v3328
        %3744 = vmatpush1.msra.mxu0 %v3327
        %3745 = vmatprep.subr.mxu0 %v3332
        %3746 = vmatpush1.msra.mxu0 %v3331
        %3747 = vmatprep.subr.mxu0 %v3336
        %3748 = vmatpush1.msra.mxu0 %v3335
        %3749 = vmatprep.subr.mxu0 %v3340
        %3750 = vmatpush1.msra.mxu0 %v3339
        %3751 = vmatprep.subr.mxu0 %v3344
        %3752 = vmatpush1.msra.mxu0 %v3343
        %3753 = vmatprep.subr.mxu0 %v3348
        %3754 = vmatpush1.msra.mxu0 %v3347
        %3755 = vmatprep.subr.mxu0 %v3352
        %3756 = vmatpush1.msra.mxu0 %v3351
        %3757 = vmatprep.subr.mxu0 %v3356
        %3758 = vmatpush1.msra.mxu0 %v3355
        %3759 = vmatprep.subr.mxu0 %v3360
        %3760 = vmatpush1.msra.mxu0 %v3359
        %3761 = vmatprep.subr.mxu0 %v3364
        %3762 = vmatpush1.msra.mxu0 %v3363
        %3763 = vmatprep.subr.mxu0 %v3368
        %3764 = vmatpush1.msra.mxu0 %v3367
        %3765 = vmatprep.subr.mxu0 %v3372
        %3766 = vmatpush1.msra.mxu0 %v3371
        %3767 = vmatprep.subr.mxu0 %v3376
        %3768 = vmatpush1.msra.mxu0 %v3375
        %3769 = vmatprep.subr.mxu0 %v3380
        %3770 = vmatpush1.msra.mxu0 %v3379
        %3771 = vmatprep.subr.mxu0 %v3384
        %3772 = vmatpush1.msra.mxu0 %v3383
        %3773 = vmatprep.subr.mxu0 %v3388
        %3774 = vmatpush1.msra.mxu0 %v3387
        %3775 = vmatprep.subr.mxu0 %v3392
        %3776 = vmatpush1.msra.mxu0 %v3391
        %3777 = vmatprep.subr.mxu0 %v3396
        %3778 = vmatpush1.msra.mxu0 %v3395
        %3779 = vmatprep.subr.mxu0 %v3400
        %3780 = vmatpush1.msra.mxu0 %v3399
        %3781 = vmatprep.subr.mxu0 %v3404
        %3782 = vmatpush1.msra.mxu0 %v3403
        %3783 = vmatprep.subr.mxu0 %v3408
        %3784 = vmatpush1.msra.mxu0 %v3407
        %3785 = vmatprep.subr.mxu0 %v3412
        %3786 = vmatpush1.msra.mxu0 %v3411
        %3787 = vmatprep.mubr.f32.mxu0 %v3546
        %3788 = vmatmul.mubr.f32.gmra.mrb[0].mxu0 %v3543
        %v3789 = vpop.f32.mrb[0].mxu0
        %v3790 = vadd.f32 0.0, %v3789
        %v3791 = vpop.f32.mrb[0].mxu0
        %v3792 = vadd.f32 0.0, %v3791
        %3793 = vmatprep.mubr.f32.mxu0 %v3556
        %3794 = vmatmul.mubr.f32.gmra.mrb[0].mxu0 %v3554
        %v3795 = vpop.f32.mrb[0].mxu0
        %v3796 = vadd.f32 0.0, %v3795
        %v3797 = vpop.f32.mrb[0].mxu0
        %v3798 = vadd.f32 0.0, %v3797
        %3799 = vdwg.mxu0
        %3800 = vmatprep.subr.mxu0 %v3416
        %3801 = vmatpush1.msra.mxu0 %v3415
        %3802 = vmatprep.subr.mxu0 %v3420
        %3803 = vmatpush1.msra.mxu0 %v3419
        %3804 = vmatprep.subr.mxu0 %v3424
        %3805 = vmatpush1.msra.mxu0 %v3423
        %3806 = vmatprep.subr.mxu0 %v3428
        %3807 = vmatpush1.msra.mxu0 %v3427
        %3808 = vmatprep.subr.mxu0 %v3432
        %3809 = vmatpush1.msra.mxu0 %v3431
        %3810 = vmatprep.subr.mxu0 %v3436
        %3811 = vmatpush1.msra.mxu0 %v3435
        %3812 = vmatprep.subr.mxu0 %v3440
        %3813 = vmatpush1.msra.mxu0 %v3439
        %3814 = vmatprep.subr.mxu0 %v3444
        %3815 = vmatpush1.msra.mxu0 %v3443
        %3816 = vmatprep.subr.mxu0 %v3448
        %3817 = vmatpush1.msra.mxu0 %v3447
        %3818 = vmatprep.subr.mxu0 %v3452
        %3819 = vmatpush1.msra.mxu0 %v3451
        %3820 = vmatprep.subr.mxu0 %v3456
        %3821 = vmatpush1.msra.mxu0 %v3455
        %3822 = vmatprep.subr.mxu0 %v3460
        %3823 = vmatpush1.msra.mxu0 %v3459
        %3824 = vmatprep.subr.mxu0 %v3464
        %3825 = vmatpush1.msra.mxu0 %v3463
        %3826 = vmatprep.subr.mxu0 %v3468
        %3827 = vmatpush1.msra.mxu0 %v3467
        %3828 = vmatprep.subr.mxu0 %v3472
        %3829 = vmatpush1.msra.mxu0 %v3471
        %3830 = vmatprep.subr.mxu0 %v3476
        %3831 = vmatpush1.msra.mxu0 %v3475
        %3832 = vmatprep.subr.mxu0 %v3480
        %3833 = vmatpush1.msra.mxu0 %v3479
        %3834 = vmatprep.subr.mxu0 %v3484
        %3835 = vmatpush1.msra.mxu0 %v3483
        %3836 = vmatprep.subr.mxu0 %v3488
        %3837 = vmatpush1.msra.mxu0 %v3487
        %3838 = vmatprep.subr.mxu0 %v3492
        %3839 = vmatpush1.msra.mxu0 %v3491
        %3840 = vmatprep.subr.mxu0 %v3496
        %3841 = vmatpush1.msra.mxu0 %v3495
        %3842 = vmatprep.subr.mxu0 %v3500
        %3843 = vmatpush1.msra.mxu0 %v3499
        %3844 = vmatprep.subr.mxu0 %v3504
        %3845 = vmatpush1.msra.mxu0 %v3503
        %3846 = vmatprep.subr.mxu0 %v3508
        %3847 = vmatpush1.msra.mxu0 %v3507
        %3848 = vmatprep.subr.mxu0 %v3512
        %3849 = vmatpush1.msra.mxu0 %v3511
        %3850 = vmatprep.subr.mxu0 %v3516
        %3851 = vmatpush1.msra.mxu0 %v3515
        %3852 = vmatprep.subr.mxu0 %v3520
        %3853 = vmatpush1.msra.mxu0 %v3519
        %3854 = vmatprep.subr.mxu0 %v3524
        %3855 = vmatpush1.msra.mxu0 %v3523
        %3856 = vmatprep.subr.mxu0 %v3528
        %3857 = vmatpush1.msra.mxu0 %v3527
        %3858 = vmatprep.subr.mxu0 %v3532
        %3859 = vmatpush1.msra.mxu0 %v3531
        %3860 = vmatprep.subr.mxu0 %v3536
        %3861 = vmatpush1.msra.mxu0 %v3535
        %3862 = vmatprep.subr.mxu0 %v3540
        %3863 = vmatpush1.msra.mxu0 %v3539
        %3864 = vmatprep.mubr.f32.mxu0 %v3552
        %3865 = vmatmul.mubr.f32.gmra.mrb[0].mxu0 %v3549
        %v3866 = vpop.f32.mrb[0].mxu0
        %v3867 = vadd.f32 %v3790, %v3866
        %v3868 = vpop.f32.mrb[0].mxu0
        %v3869 = vadd.f32 %v3792, %v3868
        %3870 = vmatprep.mubr.f32.mxu0 %v3560
        %3871 = vmatmul.mubr.f32.gmra.mrb[0].mxu0 %v3558
        %v3872 = vpop.f32.mrb[0].mxu0
        %v3873 = vadd.f32 %v3796, %v3872
        %v3874 = vpop.f32.mrb[0].mxu0
        %v3875 = vadd.f32 %v3798, %v3874
        %3876 = vdwg.mxu0
        %v3877 = vadd.f32 %v3120, %v3713
        %v3878 = vadd.f32 %v3122, %v3715
        %v3879 = vadd.f32 %v3274, %v3867
        %v3880 = vadd.f32 %v3276, %v3869
        %v3881 = vadd.f32 %v3126, %v3719
        %v3882 = vadd.f32 %v3128, %v3721
        %v3883 = vadd.f32 %v3280, %v3873
        %v3884 = vadd.f32 %v3282, %v3875
        %v3885 = vld [vmem:[#allocation18] sm:$0xf]
        %v3887 = vlaneseq
        %v3888 = vshrl.u32 %v3887, 7
        %v3889 = vsub.s32 0, %v3888
        %v3890 = vrot.slane %v3885, %v3889
        %v3891 = vlaneseq
        %v3892 = vshrl.u32 %v3891, 7
        %v3893 = vsub.s32 1, %v3892
        %v3894 = vrot.slane %v3885, %v3893
        %v3895 = vlaneseq
        %v3896 = vshrl.u32 %v3895, 7
        %v3897 = vsub.s32 2, %v3896
        %v3898 = vrot.slane %v3885, %v3897
        %v3899 = vlaneseq
        %v3900 = vshrl.u32 %v3899, 7
        %v3901 = vsub.s32 3, %v3900
        %v3902 = vrot.slane %v3885, %v3901
        %v3907 = vadd.f32 %v3877, %v3890
        %v3908 = vadd.f32 %v3878, %v3894
        %v3909 = vadd.f32 %v3879, %v3898
        %v3910 = vadd.f32 %v3880, %v3902
        %v3911 = vadd.f32 %v3881, %v3890
        %v3912 = vadd.f32 %v3882, %v3894
        %v3913 = vadd.f32 %v3883, %v3898
        %v3914 = vadd.f32 %v3884, %v3902
        %v3915 = vld [vmem:[#allocation9] sm:$0xff]
        %v3916 = vld [vmem:[#allocation9 + $0x8] sm:$0xff]
        %v3917 = vld [vmem:[#allocation9 + $0x10] sm:$0xff]
        %v3918 = vld [vmem:[#allocation9 + $0x18] sm:$0xff]
        %v3919 = vld [vmem:[#allocation9 + $0x20] sm:$0xff]
        %v3920 = vld [vmem:[#allocation9 + $0x28] sm:$0xff]
        %v3921 = vld [vmem:[#allocation9 + $0x30] sm:$0xff]
        %v3922 = vld [vmem:[#allocation9 + $0x38] sm:$0xff]
        %v3923 = vld [vmem:[#allocation9 + $0x40] sm:$0xff]
        %v3924 = vld [vmem:[#allocation9 + $0x48] sm:$0xff]
        %v3925 = vld [vmem:[#allocation9 + $0x50] sm:$0xff]
        %v3926 = vld [vmem:[#allocation9 + $0x58] sm:$0xff]
        %v3927 = vld [vmem:[#allocation9 + $0x60] sm:$0xff]
        %v3928 = vld [vmem:[#allocation9 + $0x68] sm:$0xff]
        %v3929 = vld [vmem:[#allocation9 + $0x70] sm:$0xff]
        %v3930 = vld [vmem:[#allocation9 + $0x78] sm:$0xff]
        %v3931 = vld [vmem:[#allocation9 + $0x80] sm:$0xff]
        %v3932 = vld [vmem:[#allocation9 + $0x88] sm:$0xff]
        %v3933 = vld [vmem:[#allocation9 + $0x90] sm:$0xff]
        %v3934 = vld [vmem:[#allocation9 + $0x98] sm:$0xff]
        %v3935 = vld [vmem:[#allocation9 + $0xa0] sm:$0xff]
        %v3936 = vld [vmem:[#allocation9 + $0xa8] sm:$0xff]
        %v3937 = vld [vmem:[#allocation9 + $0xb0] sm:$0xff]
        %v3938 = vld [vmem:[#allocation9 + $0xb8] sm:$0xff]
        %v3939 = vld [vmem:[#allocation9 + $0xc0] sm:$0xff]
        %v3940 = vld [vmem:[#allocation9 + $0xc8] sm:$0xff]
        %v3941 = vld [vmem:[#allocation9 + $0xd0] sm:$0xff]
        %v3942 = vld [vmem:[#allocation9 + $0xd8] sm:$0xff]
        %v3943 = vld [vmem:[#allocation9 + $0xe0] sm:$0xff]
        %v3944 = vld [vmem:[#allocation9 + $0xe8] sm:$0xff]
        %v3945 = vld [vmem:[#allocation9 + $0xf0] sm:$0xff]
        %v3946 = vld [vmem:[#allocation9 + $0xf8] sm:$0xff]
        %v3947 = vld [vmem:[#allocation9 + $0x100] sm:$0xff]
        %v3948 = vld [vmem:[#allocation9 + $0x108] sm:$0xff]
        %v3949 = vld [vmem:[#allocation9 + $0x110] sm:$0xff]
        %v3950 = vld [vmem:[#allocation9 + $0x118] sm:$0xff]
        %v3951 = vld [vmem:[#allocation9 + $0x120] sm:$0xff]
        %v3952 = vld [vmem:[#allocation9 + $0x128] sm:$0xff]
        %v3953 = vld [vmem:[#allocation9 + $0x130] sm:$0xff]
        %v3954 = vld [vmem:[#allocation9 + $0x138] sm:$0xff]
        %v3955 = vld [vmem:[#allocation9 + $0x140] sm:$0xff]
        %v3956 = vld [vmem:[#allocation9 + $0x148] sm:$0xff]
        %v3957 = vld [vmem:[#allocation9 + $0x150] sm:$0xff]
        %v3958 = vld [vmem:[#allocation9 + $0x158] sm:$0xff]
        %v3959 = vld [vmem:[#allocation9 + $0x160] sm:$0xff]
        %v3960 = vld [vmem:[#allocation9 + $0x168] sm:$0xff]
        %v3961 = vld [vmem:[#allocation9 + $0x170] sm:$0xff]
        %v3962 = vld [vmem:[#allocation9 + $0x178] sm:$0xff]
        %v3963 = vld [vmem:[#allocation9 + $0x180] sm:$0xff]
        %v3964 = vld [vmem:[#allocation9 + $0x188] sm:$0xff]
        %v3965 = vld [vmem:[#allocation9 + $0x190] sm:$0xff]
        %v3966 = vld [vmem:[#allocation9 + $0x198] sm:$0xff]
        %v3967 = vld [vmem:[#allocation9 + $0x1a0] sm:$0xff]
        %v3968 = vld [vmem:[#allocation9 + $0x1a8] sm:$0xff]
        %v3969 = vld [vmem:[#allocation9 + $0x1b0] sm:$0xff]
        %v3970 = vld [vmem:[#allocation9 + $0x1b8] sm:$0xff]
        %v3971 = vld [vmem:[#allocation9 + $0x1c0] sm:$0xff]
        %v3972 = vld [vmem:[#allocation9 + $0x1c8] sm:$0xff]
        %v3973 = vld [vmem:[#allocation9 + $0x1d0] sm:$0xff]
        %v3974 = vld [vmem:[#allocation9 + $0x1d8] sm:$0xff]
        %v3975 = vld [vmem:[#allocation9 + $0x1e0] sm:$0xff]
        %v3976 = vld [vmem:[#allocation9 + $0x1e8] sm:$0xff]
        %v3977 = vld [vmem:[#allocation9 + $0x1f0] sm:$0xff]
        %v3978 = vld [vmem:[#allocation9 + $0x1f8] sm:$0xff]
        %v3979 = vld [vmem:[#allocation9 + $0x200] sm:$0xff]
        %v3980 = vld [vmem:[#allocation9 + $0x208] sm:$0xff]
        %v3981 = vld [vmem:[#allocation9 + $0x210] sm:$0xff]
        %v3982 = vld [vmem:[#allocation9 + $0x218] sm:$0xff]
        %v3983 = vld [vmem:[#allocation9 + $0x220] sm:$0xff]
        %v3984 = vld [vmem:[#allocation9 + $0x228] sm:$0xff]
        %v3985 = vld [vmem:[#allocation9 + $0x230] sm:$0xff]
        %v3986 = vld [vmem:[#allocation9 + $0x238] sm:$0xff]
        %v3987 = vld [vmem:[#allocation9 + $0x240] sm:$0xff]
        %v3988 = vld [vmem:[#allocation9 + $0x248] sm:$0xff]
        %v3989 = vld [vmem:[#allocation9 + $0x250] sm:$0xff]
        %v3990 = vld [vmem:[#allocation9 + $0x258] sm:$0xff]
        %v3991 = vld [vmem:[#allocation9 + $0x260] sm:$0xff]
        %v3992 = vld [vmem:[#allocation9 + $0x268] sm:$0xff]
        %v3993 = vld [vmem:[#allocation9 + $0x270] sm:$0xff]
        %v3994 = vld [vmem:[#allocation9 + $0x278] sm:$0xff]
        %v3995 = vld [vmem:[#allocation9 + $0x280] sm:$0xff]
        %v3996 = vld [vmem:[#allocation9 + $0x288] sm:$0xff]
        %v3997 = vld [vmem:[#allocation9 + $0x290] sm:$0xff]
        %v3998 = vld [vmem:[#allocation9 + $0x298] sm:$0xff]
        %v3999 = vld [vmem:[#allocation9 + $0x2a0] sm:$0xff]
        %v4000 = vld [vmem:[#allocation9 + $0x2a8] sm:$0xff]
        %v4001 = vld [vmem:[#allocation9 + $0x2b0] sm:$0xff]
        %v4002 = vld [vmem:[#allocation9 + $0x2b8] sm:$0xff]
        %v4003 = vld [vmem:[#allocation9 + $0x2c0] sm:$0xff]
        %v4004 = vld [vmem:[#allocation9 + $0x2c8] sm:$0xff]
        %v4005 = vld [vmem:[#allocation9 + $0x2d0] sm:$0xff]
        %v4006 = vld [vmem:[#allocation9 + $0x2d8] sm:$0xff]
        %v4007 = vld [vmem:[#allocation9 + $0x2e0] sm:$0xff]
        %v4008 = vld [vmem:[#allocation9 + $0x2e8] sm:$0xff]
        %v4009 = vld [vmem:[#allocation9 + $0x2f0] sm:$0xff]
        %v4010 = vld [vmem:[#allocation9 + $0x2f8] sm:$0xff]
        %v4011 = vld [vmem:[#allocation9 + $0x300] sm:$0xff]
        %v4012 = vld [vmem:[#allocation9 + $0x308] sm:$0xff]
        %v4013 = vld [vmem:[#allocation9 + $0x310] sm:$0xff]
        %v4014 = vld [vmem:[#allocation9 + $0x318] sm:$0xff]
        %v4015 = vld [vmem:[#allocation9 + $0x320] sm:$0xff]
        %v4016 = vld [vmem:[#allocation9 + $0x328] sm:$0xff]
        %v4017 = vld [vmem:[#allocation9 + $0x330] sm:$0xff]
        %v4018 = vld [vmem:[#allocation9 + $0x338] sm:$0xff]
        %v4019 = vld [vmem:[#allocation9 + $0x340] sm:$0xff]
        %v4020 = vld [vmem:[#allocation9 + $0x348] sm:$0xff]
        %v4021 = vld [vmem:[#allocation9 + $0x350] sm:$0xff]
        %v4022 = vld [vmem:[#allocation9 + $0x358] sm:$0xff]
        %v4023 = vld [vmem:[#allocation9 + $0x360] sm:$0xff]
        %v4024 = vld [vmem:[#allocation9 + $0x368] sm:$0xff]
        %v4025 = vld [vmem:[#allocation9 + $0x370] sm:$0xff]
        %v4026 = vld [vmem:[#allocation9 + $0x378] sm:$0xff]
        %v4027 = vld [vmem:[#allocation9 + $0x380] sm:$0xff]
        %v4028 = vld [vmem:[#allocation9 + $0x388] sm:$0xff]
        %v4029 = vld [vmem:[#allocation9 + $0x390] sm:$0xff]
        %v4030 = vld [vmem:[#allocation9 + $0x398] sm:$0xff]
        %v4031 = vld [vmem:[#allocation9 + $0x3a0] sm:$0xff]
        %v4032 = vld [vmem:[#allocation9 + $0x3a8] sm:$0xff]
        %v4033 = vld [vmem:[#allocation9 + $0x3b0] sm:$0xff]
        %v4034 = vld [vmem:[#allocation9 + $0x3b8] sm:$0xff]
        %v4035 = vld [vmem:[#allocation9 + $0x3c0] sm:$0xff]
        %v4036 = vld [vmem:[#allocation9 + $0x3c8] sm:$0xff]
        %v4037 = vld [vmem:[#allocation9 + $0x3d0] sm:$0xff]
        %v4038 = vld [vmem:[#allocation9 + $0x3d8] sm:$0xff]
        %v4039 = vld [vmem:[#allocation9 + $0x3e0] sm:$0xff]
        %v4040 = vld [vmem:[#allocation9 + $0x3e8] sm:$0xff]
        %v4041 = vld [vmem:[#allocation9 + $0x3f0] sm:$0xff]
        %v4042 = vld [vmem:[#allocation9 + $0x3f8] sm:$0xff]
        %4043 = vmatprep.subr.mxu0 %v3916
        %4044 = vmatpush1.msra.mxu0 %v3915
        %4045 = vmatprep.subr.mxu0 %v3918
        %4046 = vmatpush1.msra.mxu0 %v3917
        %4047 = vmatprep.subr.mxu0 %v3920
        %4048 = vmatpush1.msra.mxu0 %v3919
        %4049 = vmatprep.subr.mxu0 %v3922
        %4050 = vmatpush1.msra.mxu0 %v3921
        %4051 = vmatprep.subr.mxu0 %v3924
        %4052 = vmatpush1.msra.mxu0 %v3923
        %4053 = vmatprep.subr.mxu0 %v3926
        %4054 = vmatpush1.msra.mxu0 %v3925
        %4055 = vmatprep.subr.mxu0 %v3928
        %4056 = vmatpush1.msra.mxu0 %v3927
        %4057 = vmatprep.subr.mxu0 %v3930
        %4058 = vmatpush1.msra.mxu0 %v3929
        %4059 = vmatprep.subr.mxu0 %v3932
        %4060 = vmatpush1.msra.mxu0 %v3931
        %4061 = vmatprep.subr.mxu0 %v3934
        %4062 = vmatpush1.msra.mxu0 %v3933
        %4063 = vmatprep.subr.mxu0 %v3936
        %4064 = vmatpush1.msra.mxu0 %v3935
        %4065 = vmatprep.subr.mxu0 %v3938
        %4066 = vmatpush1.msra.mxu0 %v3937
        %4067 = vmatprep.subr.mxu0 %v3940
        %4068 = vmatpush1.msra.mxu0 %v3939
        %4069 = vmatprep.subr.mxu0 %v3942
        %4070 = vmatpush1.msra.mxu0 %v3941
        %4071 = vmatprep.subr.mxu0 %v3944
        %4072 = vmatpush1.msra.mxu0 %v3943
        %4073 = vmatprep.subr.mxu0 %v3946
        %4074 = vmatpush1.msra.mxu0 %v3945
        %4075 = vmatprep.subr.mxu0 %v3948
        %4076 = vmatpush1.msra.mxu0 %v3947
        %4077 = vmatprep.subr.mxu0 %v3950
        %4078 = vmatpush1.msra.mxu0 %v3949
        %4079 = vmatprep.subr.mxu0 %v3952
        %4080 = vmatpush1.msra.mxu0 %v3951
        %4081 = vmatprep.subr.mxu0 %v3954
        %4082 = vmatpush1.msra.mxu0 %v3953
        %4083 = vmatprep.subr.mxu0 %v3956
        %4084 = vmatpush1.msra.mxu0 %v3955
        %4085 = vmatprep.subr.mxu0 %v3958
        %4086 = vmatpush1.msra.mxu0 %v3957
        %4087 = vmatprep.subr.mxu0 %v3960
        %4088 = vmatpush1.msra.mxu0 %v3959
        %4089 = vmatprep.subr.mxu0 %v3962
        %4090 = vmatpush1.msra.mxu0 %v3961
        %4091 = vmatprep.subr.mxu0 %v3964
        %4092 = vmatpush1.msra.mxu0 %v3963
        %4093 = vmatprep.subr.mxu0 %v3966
        %4094 = vmatpush1.msra.mxu0 %v3965
        %4095 = vmatprep.subr.mxu0 %v3968
        %4096 = vmatpush1.msra.mxu0 %v3967
        %4097 = vmatprep.subr.mxu0 %v3970
        %4098 = vmatpush1.msra.mxu0 %v3969
        %4099 = vmatprep.subr.mxu0 %v3972
        %4100 = vmatpush1.msra.mxu0 %v3971
        %4101 = vmatprep.subr.mxu0 %v3974
        %4102 = vmatpush1.msra.mxu0 %v3973
        %4103 = vmatprep.subr.mxu0 %v3976
        %4104 = vmatpush1.msra.mxu0 %v3975
        %4105 = vmatprep.subr.mxu0 %v3978
        %4106 = vmatpush1.msra.mxu0 %v3977
        %4107 = vmatprep.mubr.f32.mxu0 %v3908
        %4108 = vmatmul.mubr.f32.gmra.mrb[0].mxu0 %v3907
        %v4109 = vpop.f32.mrb[0].mxu0
        %v4110 = vadd.f32 0.0, %v4109
        %v4111 = vpop.f32.mrb[0].mxu0
        %v4112 = vadd.f32 0.0, %v4111
        %4113 = vmatprep.mubr.f32.mxu0 %v3912
        %4114 = vmatmul.mubr.f32.gmra.mrb[0].mxu0 %v3911
        %v4115 = vpop.f32.mrb[0].mxu0
        %v4116 = vadd.f32 0.0, %v4115
        %v4117 = vpop.f32.mrb[0].mxu0
        %v4118 = vadd.f32 0.0, %v4117
        %4119 = vdwg.mxu0
        %4120 = vmatprep.subr.mxu0 %v3980
        %4121 = vmatpush1.msra.mxu0 %v3979
        %4122 = vmatprep.subr.mxu0 %v3982
        %4123 = vmatpush1.msra.mxu0 %v3981
        %4124 = vmatprep.subr.mxu0 %v3984
        %4125 = vmatpush1.msra.mxu0 %v3983
        %4126 = vmatprep.subr.mxu0 %v3986
        %4127 = vmatpush1.msra.mxu0 %v3985
        %4128 = vmatprep.subr.mxu0 %v3988
        %4129 = vmatpush1.msra.mxu0 %v3987
        %4130 = vmatprep.subr.mxu0 %v3990
        %4131 = vmatpush1.msra.mxu0 %v3989
        %4132 = vmatprep.subr.mxu0 %v3992
        %4133 = vmatpush1.msra.mxu0 %v3991
        %4134 = vmatprep.subr.mxu0 %v3994
        %4135 = vmatpush1.msra.mxu0 %v3993
        %4136 = vmatprep.subr.mxu0 %v3996
        %4137 = vmatpush1.msra.mxu0 %v3995
        %4138 = vmatprep.subr.mxu0 %v3998
        %4139 = vmatpush1.msra.mxu0 %v3997
        %4140 = vmatprep.subr.mxu0 %v4000
        %4141 = vmatpush1.msra.mxu0 %v3999
        %4142 = vmatprep.subr.mxu0 %v4002
        %4143 = vmatpush1.msra.mxu0 %v4001
        %4144 = vmatprep.subr.mxu0 %v4004
        %4145 = vmatpush1.msra.mxu0 %v4003
        %4146 = vmatprep.subr.mxu0 %v4006
        %4147 = vmatpush1.msra.mxu0 %v4005
        %4148 = vmatprep.subr.mxu0 %v4008
        %4149 = vmatpush1.msra.mxu0 %v4007
        %4150 = vmatprep.subr.mxu0 %v4010
        %4151 = vmatpush1.msra.mxu0 %v4009
        %4152 = vmatprep.subr.mxu0 %v4012
        %4153 = vmatpush1.msra.mxu0 %v4011
        %4154 = vmatprep.subr.mxu0 %v4014
        %4155 = vmatpush1.msra.mxu0 %v4013
        %4156 = vmatprep.subr.mxu0 %v4016
        %4157 = vmatpush1.msra.mxu0 %v4015
        %4158 = vmatprep.subr.mxu0 %v4018
        %4159 = vmatpush1.msra.mxu0 %v4017
        %4160 = vmatprep.subr.mxu0 %v4020
        %4161 = vmatpush1.msra.mxu0 %v4019
        %4162 = vmatprep.subr.mxu0 %v4022
        %4163 = vmatpush1.msra.mxu0 %v4021
        %4164 = vmatprep.subr.mxu0 %v4024
        %4165 = vmatpush1.msra.mxu0 %v4023
        %4166 = vmatprep.subr.mxu0 %v4026
        %4167 = vmatpush1.msra.mxu0 %v4025
        %4168 = vmatprep.subr.mxu0 %v4028
        %4169 = vmatpush1.msra.mxu0 %v4027
        %4170 = vmatprep.subr.mxu0 %v4030
        %4171 = vmatpush1.msra.mxu0 %v4029
        %4172 = vmatprep.subr.mxu0 %v4032
        %4173 = vmatpush1.msra.mxu0 %v4031
        %4174 = vmatprep.subr.mxu0 %v4034
        %4175 = vmatpush1.msra.mxu0 %v4033
        %4176 = vmatprep.subr.mxu0 %v4036
        %4177 = vmatpush1.msra.mxu0 %v4035
        %4178 = vmatprep.subr.mxu0 %v4038
        %4179 = vmatpush1.msra.mxu0 %v4037
        %4180 = vmatprep.subr.mxu0 %v4040
        %4181 = vmatpush1.msra.mxu0 %v4039
        %4182 = vmatprep.subr.mxu0 %v4042
        %4183 = vmatpush1.msra.mxu0 %v4041
        %4184 = vmatprep.mubr.f32.mxu0 %v3910
        %4185 = vmatmul.mubr.f32.gmra.mrb[0].mxu0 %v3909
        %v4186 = vpop.f32.mrb[0].mxu0
        %v4187 = vadd.f32 %v4110, %v4186
        %v4188 = vpop.f32.mrb[0].mxu0
        %v4189 = vadd.f32 %v4112, %v4188
        %4190 = vmatprep.mubr.f32.mxu0 %v3914
        %4191 = vmatmul.mubr.f32.gmra.mrb[0].mxu0 %v3913
        %v4192 = vpop.f32.mrb[0].mxu0
        %v4193 = vadd.f32 %v4116, %v4192
        %v4194 = vpop.f32.mrb[0].mxu0
        %v4195 = vadd.f32 %v4118, %v4194
        %4196 = vdwg.mxu0
        %v4197 = vld [vmem:[#allocation10] sm:$0xff]
        %v4198 = vld [vmem:[#allocation10 + $0x8] sm:$0xff]
        %v4199 = vld [vmem:[#allocation10 + $0x10] sm:$0xff]
        %v4200 = vld [vmem:[#allocation10 + $0x18] sm:$0xff]
        %v4201 = vld [vmem:[#allocation10 + $0x20] sm:$0xff]
        %v4202 = vld [vmem:[#allocation10 + $0x28] sm:$0xff]
        %v4203 = vld [vmem:[#allocation10 + $0x30] sm:$0xff]
        %v4204 = vld [vmem:[#allocation10 + $0x38] sm:$0xff]
        %v4205 = vld [vmem:[#allocation10 + $0x40] sm:$0xff]
        %v4206 = vld [vmem:[#allocation10 + $0x48] sm:$0xff]
        %v4207 = vld [vmem:[#allocation10 + $0x50] sm:$0xff]
        %v4208 = vld [vmem:[#allocation10 + $0x58] sm:$0xff]
        %v4209 = vld [vmem:[#allocation10 + $0x60] sm:$0xff]
        %v4210 = vld [vmem:[#allocation10 + $0x68] sm:$0xff]
        %v4211 = vld [vmem:[#allocation10 + $0x70] sm:$0xff]
        %v4212 = vld [vmem:[#allocation10 + $0x78] sm:$0xff]
        %v4213 = vld [vmem:[#allocation10 + $0x80] sm:$0xff]
        %v4214 = vld [vmem:[#allocation10 + $0x88] sm:$0xff]
        %v4215 = vld [vmem:[#allocation10 + $0x90] sm:$0xff]
        %v4216 = vld [vmem:[#allocation10 + $0x98] sm:$0xff]
        %v4217 = vld [vmem:[#allocation10 + $0xa0] sm:$0xff]
        %v4218 = vld [vmem:[#allocation10 + $0xa8] sm:$0xff]
        %v4219 = vld [vmem:[#allocation10 + $0xb0] sm:$0xff]
        %v4220 = vld [vmem:[#allocation10 + $0xb8] sm:$0xff]
        %v4221 = vld [vmem:[#allocation10 + $0xc0] sm:$0xff]
        %v4222 = vld [vmem:[#allocation10 + $0xc8] sm:$0xff]
        %v4223 = vld [vmem:[#allocation10 + $0xd0] sm:$0xff]
        %v4224 = vld [vmem:[#allocation10 + $0xd8] sm:$0xff]
        %v4225 = vld [vmem:[#allocation10 + $0xe0] sm:$0xff]
        %v4226 = vld [vmem:[#allocation10 + $0xe8] sm:$0xff]
        %v4227 = vld [vmem:[#allocation10 + $0xf0] sm:$0xff]
        %v4228 = vld [vmem:[#allocation10 + $0xf8] sm:$0xff]
        %v4229 = vld [vmem:[#allocation10 + $0x100] sm:$0xff]
        %v4230 = vld [vmem:[#allocation10 + $0x108] sm:$0xff]
        %v4231 = vld [vmem:[#allocation10 + $0x110] sm:$0xff]
        %v4232 = vld [vmem:[#allocation10 + $0x118] sm:$0xff]
        %v4233 = vld [vmem:[#allocation10 + $0x120] sm:$0xff]
        %v4234 = vld [vmem:[#allocation10 + $0x128] sm:$0xff]
        %v4235 = vld [vmem:[#allocation10 + $0x130] sm:$0xff]
        %v4236 = vld [vmem:[#allocation10 + $0x138] sm:$0xff]
        %v4237 = vld [vmem:[#allocation10 + $0x140] sm:$0xff]
        %v4238 = vld [vmem:[#allocation10 + $0x148] sm:$0xff]
        %v4239 = vld [vmem:[#allocation10 + $0x150] sm:$0xff]
        %v4240 = vld [vmem:[#allocation10 + $0x158] sm:$0xff]
        %v4241 = vld [vmem:[#allocation10 + $0x160] sm:$0xff]
        %v4242 = vld [vmem:[#allocation10 + $0x168] sm:$0xff]
        %v4243 = vld [vmem:[#allocation10 + $0x170] sm:$0xff]
        %v4244 = vld [vmem:[#allocation10 + $0x178] sm:$0xff]
        %v4245 = vld [vmem:[#allocation10 + $0x180] sm:$0xff]
        %v4246 = vld [vmem:[#allocation10 + $0x188] sm:$0xff]
        %v4247 = vld [vmem:[#allocation10 + $0x190] sm:$0xff]
        %v4248 = vld [vmem:[#allocation10 + $0x198] sm:$0xff]
        %v4249 = vld [vmem:[#allocation10 + $0x1a0] sm:$0xff]
        %v4250 = vld [vmem:[#allocation10 + $0x1a8] sm:$0xff]
        %v4251 = vld [vmem:[#allocation10 + $0x1b0] sm:$0xff]
        %v4252 = vld [vmem:[#allocation10 + $0x1b8] sm:$0xff]
        %v4253 = vld [vmem:[#allocation10 + $0x1c0] sm:$0xff]
        %v4254 = vld [vmem:[#allocation10 + $0x1c8] sm:$0xff]
        %v4255 = vld [vmem:[#allocation10 + $0x1d0] sm:$0xff]
        %v4256 = vld [vmem:[#allocation10 + $0x1d8] sm:$0xff]
        %v4257 = vld [vmem:[#allocation10 + $0x1e0] sm:$0xff]
        %v4258 = vld [vmem:[#allocation10 + $0x1e8] sm:$0xff]
        %v4259 = vld [vmem:[#allocation10 + $0x1f0] sm:$0xff]
        %v4260 = vld [vmem:[#allocation10 + $0x1f8] sm:$0xff]
        %v4261 = vld [vmem:[#allocation10 + $0x200] sm:$0xff]
        %v4262 = vld [vmem:[#allocation10 + $0x208] sm:$0xff]
        %v4263 = vld [vmem:[#allocation10 + $0x210] sm:$0xff]
        %v4264 = vld [vmem:[#allocation10 + $0x218] sm:$0xff]
        %v4265 = vld [vmem:[#allocation10 + $0x220] sm:$0xff]
        %v4266 = vld [vmem:[#allocation10 + $0x228] sm:$0xff]
        %v4267 = vld [vmem:[#allocation10 + $0x230] sm:$0xff]
        %v4268 = vld [vmem:[#allocation10 + $0x238] sm:$0xff]
        %v4269 = vld [vmem:[#allocation10 + $0x240] sm:$0xff]
        %v4270 = vld [vmem:[#allocation10 + $0x248] sm:$0xff]
        %v4271 = vld [vmem:[#allocation10 + $0x250] sm:$0xff]
        %v4272 = vld [vmem:[#allocation10 + $0x258] sm:$0xff]
        %v4273 = vld [vmem:[#allocation10 + $0x260] sm:$0xff]
        %v4274 = vld [vmem:[#allocation10 + $0x268] sm:$0xff]
        %v4275 = vld [vmem:[#allocation10 + $0x270] sm:$0xff]
        %v4276 = vld [vmem:[#allocation10 + $0x278] sm:$0xff]
        %v4277 = vld [vmem:[#allocation10 + $0x280] sm:$0xff]
        %v4278 = vld [vmem:[#allocation10 + $0x288] sm:$0xff]
        %v4279 = vld [vmem:[#allocation10 + $0x290] sm:$0xff]
        %v4280 = vld [vmem:[#allocation10 + $0x298] sm:$0xff]
        %v4281 = vld [vmem:[#allocation10 + $0x2a0] sm:$0xff]
        %v4282 = vld [vmem:[#allocation10 + $0x2a8] sm:$0xff]
        %v4283 = vld [vmem:[#allocation10 + $0x2b0] sm:$0xff]
        %v4284 = vld [vmem:[#allocation10 + $0x2b8] sm:$0xff]
        %v4285 = vld [vmem:[#allocation10 + $0x2c0] sm:$0xff]
        %v4286 = vld [vmem:[#allocation10 + $0x2c8] sm:$0xff]
        %v4287 = vld [vmem:[#allocation10 + $0x2d0] sm:$0xff]
        %v4288 = vld [vmem:[#allocation10 + $0x2d8] sm:$0xff]
        %v4289 = vld [vmem:[#allocation10 + $0x2e0] sm:$0xff]
        %v4290 = vld [vmem:[#allocation10 + $0x2e8] sm:$0xff]
        %v4291 = vld [vmem:[#allocation10 + $0x2f0] sm:$0xff]
        %v4292 = vld [vmem:[#allocation10 + $0x2f8] sm:$0xff]
        %v4293 = vld [vmem:[#allocation10 + $0x300] sm:$0xff]
        %v4294 = vld [vmem:[#allocation10 + $0x308] sm:$0xff]
        %v4295 = vld [vmem:[#allocation10 + $0x310] sm:$0xff]
        %v4296 = vld [vmem:[#allocation10 + $0x318] sm:$0xff]
        %v4297 = vld [vmem:[#allocation10 + $0x320] sm:$0xff]
        %v4298 = vld [vmem:[#allocation10 + $0x328] sm:$0xff]
        %v4299 = vld [vmem:[#allocation10 + $0x330] sm:$0xff]
        %v4300 = vld [vmem:[#allocation10 + $0x338] sm:$0xff]
        %v4301 = vld [vmem:[#allocation10 + $0x340] sm:$0xff]
        %v4302 = vld [vmem:[#allocation10 + $0x348] sm:$0xff]
        %v4303 = vld [vmem:[#allocation10 + $0x350] sm:$0xff]
        %v4304 = vld [vmem:[#allocation10 + $0x358] sm:$0xff]
        %v4305 = vld [vmem:[#allocation10 + $0x360] sm:$0xff]
        %v4306 = vld [vmem:[#allocation10 + $0x368] sm:$0xff]
        %v4307 = vld [vmem:[#allocation10 + $0x370] sm:$0xff]
        %v4308 = vld [vmem:[#allocation10 + $0x378] sm:$0xff]
        %v4309 = vld [vmem:[#allocation10 + $0x380] sm:$0xff]
        %v4310 = vld [vmem:[#allocation10 + $0x388] sm:$0xff]
        %v4311 = vld [vmem:[#allocation10 + $0x390] sm:$0xff]
        %v4312 = vld [vmem:[#allocation10 + $0x398] sm:$0xff]
        %v4313 = vld [vmem:[#allocation10 + $0x3a0] sm:$0xff]
        %v4314 = vld [vmem:[#allocation10 + $0x3a8] sm:$0xff]
        %v4315 = vld [vmem:[#allocation10 + $0x3b0] sm:$0xff]
        %v4316 = vld [vmem:[#allocation10 + $0x3b8] sm:$0xff]
        %v4317 = vld [vmem:[#allocation10 + $0x3c0] sm:$0xff]
        %v4318 = vld [vmem:[#allocation10 + $0x3c8] sm:$0xff]
        %v4319 = vld [vmem:[#allocation10 + $0x3d0] sm:$0xff]
        %v4320 = vld [vmem:[#allocation10 + $0x3d8] sm:$0xff]
        %v4321 = vld [vmem:[#allocation10 + $0x3e0] sm:$0xff]
        %v4322 = vld [vmem:[#allocation10 + $0x3e8] sm:$0xff]
        %v4323 = vld [vmem:[#allocation10 + $0x3f0] sm:$0xff]
        %v4324 = vld [vmem:[#allocation10 + $0x3f8] sm:$0xff]
        %4325 = vmatprep.subr.mxu0 %v4198
        %4326 = vmatpush1.msra.mxu0 %v4197
        %4327 = vmatprep.subr.mxu0 %v4200
        %4328 = vmatpush1.msra.mxu0 %v4199
        %4329 = vmatprep.subr.mxu0 %v4202
        %4330 = vmatpush1.msra.mxu0 %v4201
        %4331 = vmatprep.subr.mxu0 %v4204
        %4332 = vmatpush1.msra.mxu0 %v4203
        %4333 = vmatprep.subr.mxu0 %v4206
        %4334 = vmatpush1.msra.mxu0 %v4205
        %4335 = vmatprep.subr.mxu0 %v4208
        %4336 = vmatpush1.msra.mxu0 %v4207
        %4337 = vmatprep.subr.mxu0 %v4210
        %4338 = vmatpush1.msra.mxu0 %v4209
        %4339 = vmatprep.subr.mxu0 %v4212
        %4340 = vmatpush1.msra.mxu0 %v4211
        %4341 = vmatprep.subr.mxu0 %v4214
        %4342 = vmatpush1.msra.mxu0 %v4213
        %4343 = vmatprep.subr.mxu0 %v4216
        %4344 = vmatpush1.msra.mxu0 %v4215
        %4345 = vmatprep.subr.mxu0 %v4218
        %4346 = vmatpush1.msra.mxu0 %v4217
        %4347 = vmatprep.subr.mxu0 %v4220
        %4348 = vmatpush1.msra.mxu0 %v4219
        %4349 = vmatprep.subr.mxu0 %v4222
        %4350 = vmatpush1.msra.mxu0 %v4221
        %4351 = vmatprep.subr.mxu0 %v4224
        %4352 = vmatpush1.msra.mxu0 %v4223
        %4353 = vmatprep.subr.mxu0 %v4226
        %4354 = vmatpush1.msra.mxu0 %v4225
        %4355 = vmatprep.subr.mxu0 %v4228
        %4356 = vmatpush1.msra.mxu0 %v4227
        %4357 = vmatprep.subr.mxu0 %v4230
        %4358 = vmatpush1.msra.mxu0 %v4229
        %4359 = vmatprep.subr.mxu0 %v4232
        %4360 = vmatpush1.msra.mxu0 %v4231
        %4361 = vmatprep.subr.mxu0 %v4234
        %4362 = vmatpush1.msra.mxu0 %v4233
        %4363 = vmatprep.subr.mxu0 %v4236
        %4364 = vmatpush1.msra.mxu0 %v4235
        %4365 = vmatprep.subr.mxu0 %v4238
        %4366 = vmatpush1.msra.mxu0 %v4237
        %4367 = vmatprep.subr.mxu0 %v4240
        %4368 = vmatpush1.msra.mxu0 %v4239
        %4369 = vmatprep.subr.mxu0 %v4242
        %4370 = vmatpush1.msra.mxu0 %v4241
        %4371 = vmatprep.subr.mxu0 %v4244
        %4372 = vmatpush1.msra.mxu0 %v4243
        %4373 = vmatprep.subr.mxu0 %v4246
        %4374 = vmatpush1.msra.mxu0 %v4245
        %4375 = vmatprep.subr.mxu0 %v4248
        %4376 = vmatpush1.msra.mxu0 %v4247
        %4377 = vmatprep.subr.mxu0 %v4250
        %4378 = vmatpush1.msra.mxu0 %v4249
        %4379 = vmatprep.subr.mxu0 %v4252
        %4380 = vmatpush1.msra.mxu0 %v4251
        %4381 = vmatprep.subr.mxu0 %v4254
        %4382 = vmatpush1.msra.mxu0 %v4253
        %4383 = vmatprep.subr.mxu0 %v4256
        %4384 = vmatpush1.msra.mxu0 %v4255
        %4385 = vmatprep.subr.mxu0 %v4258
        %4386 = vmatpush1.msra.mxu0 %v4257
        %4387 = vmatprep.subr.mxu0 %v4260
        %4388 = vmatpush1.msra.mxu0 %v4259
        %4389 = vmatprep.mubr.f32.mxu0 %v3908
        %4390 = vmatmul.mubr.f32.gmra.mrb[0].mxu0 %v3907
        %v4391 = vpop.f32.mrb[0].mxu0
        %v4392 = vadd.f32 0.0, %v4391
        %v4393 = vpop.f32.mrb[0].mxu0
        %v4394 = vadd.f32 0.0, %v4393
        %4395 = vmatprep.mubr.f32.mxu0 %v3912
        %4396 = vmatmul.mubr.f32.gmra.mrb[0].mxu0 %v3911
        %v4397 = vpop.f32.mrb[0].mxu0
        %v4398 = vadd.f32 0.0, %v4397
        %v4399 = vpop.f32.mrb[0].mxu0
        %v4400 = vadd.f32 0.0, %v4399
        %4401 = vdwg.mxu0
        %4402 = vmatprep.subr.mxu0 %v4262
        %4403 = vmatpush1.msra.mxu0 %v4261
        %4404 = vmatprep.subr.mxu0 %v4264
        %4405 = vmatpush1.msra.mxu0 %v4263
        %4406 = vmatprep.subr.mxu0 %v4266
        %4407 = vmatpush1.msra.mxu0 %v4265
        %4408 = vmatprep.subr.mxu0 %v4268
        %4409 = vmatpush1.msra.mxu0 %v4267
        %4410 = vmatprep.subr.mxu0 %v4270
        %4411 = vmatpush1.msra.mxu0 %v4269
        %4412 = vmatprep.subr.mxu0 %v4272
        %4413 = vmatpush1.msra.mxu0 %v4271
        %4414 = vmatprep.subr.mxu0 %v4274
        %4415 = vmatpush1.msra.mxu0 %v4273
        %4416 = vmatprep.subr.mxu0 %v4276
        %4417 = vmatpush1.msra.mxu0 %v4275
        %4418 = vmatprep.subr.mxu0 %v4278
        %4419 = vmatpush1.msra.mxu0 %v4277
        %4420 = vmatprep.subr.mxu0 %v4280
        %4421 = vmatpush1.msra.mxu0 %v4279
        %4422 = vmatprep.subr.mxu0 %v4282
        %4423 = vmatpush1.msra.mxu0 %v4281
        %4424 = vmatprep.subr.mxu0 %v4284
        %4425 = vmatpush1.msra.mxu0 %v4283
        %4426 = vmatprep.subr.mxu0 %v4286
        %4427 = vmatpush1.msra.mxu0 %v4285
        %4428 = vmatprep.subr.mxu0 %v4288
        %4429 = vmatpush1.msra.mxu0 %v4287
        %4430 = vmatprep.subr.mxu0 %v4290
        %4431 = vmatpush1.msra.mxu0 %v4289
        %4432 = vmatprep.subr.mxu0 %v4292
        %4433 = vmatpush1.msra.mxu0 %v4291
        %4434 = vmatprep.subr.mxu0 %v4294
        %4435 = vmatpush1.msra.mxu0 %v4293
        %4436 = vmatprep.subr.mxu0 %v4296
        %4437 = vmatpush1.msra.mxu0 %v4295
        %4438 = vmatprep.subr.mxu0 %v4298
        %4439 = vmatpush1.msra.mxu0 %v4297
        %4440 = vmatprep.subr.mxu0 %v4300
        %4441 = vmatpush1.msra.mxu0 %v4299
        %4442 = vmatprep.subr.mxu0 %v4302
        %4443 = vmatpush1.msra.mxu0 %v4301
        %4444 = vmatprep.subr.mxu0 %v4304
        %4445 = vmatpush1.msra.mxu0 %v4303
        %4446 = vmatprep.subr.mxu0 %v4306
        %4447 = vmatpush1.msra.mxu0 %v4305
        %4448 = vmatprep.subr.mxu0 %v4308
        %4449 = vmatpush1.msra.mxu0 %v4307
        %4450 = vmatprep.subr.mxu0 %v4310
        %4451 = vmatpush1.msra.mxu0 %v4309
        %4452 = vmatprep.subr.mxu0 %v4312
        %4453 = vmatpush1.msra.mxu0 %v4311
        %4454 = vmatprep.subr.mxu0 %v4314
        %4455 = vmatpush1.msra.mxu0 %v4313
        %4456 = vmatprep.subr.mxu0 %v4316
        %4457 = vmatpush1.msra.mxu0 %v4315
        %4458 = vmatprep.subr.mxu0 %v4318
        %4459 = vmatpush1.msra.mxu0 %v4317
        %4460 = vmatprep.subr.mxu0 %v4320
        %4461 = vmatpush1.msra.mxu0 %v4319
        %4462 = vmatprep.subr.mxu0 %v4322
        %4463 = vmatpush1.msra.mxu0 %v4321
        %4464 = vmatprep.subr.mxu0 %v4324
        %4465 = vmatpush1.msra.mxu0 %v4323
        %4466 = vmatprep.mubr.f32.mxu0 %v3910
        %4467 = vmatmul.mubr.f32.gmra.mrb[0].mxu0 %v3909
        %v4468 = vpop.f32.mrb[0].mxu0
        %v4469 = vadd.f32 %v4392, %v4468
        %v4470 = vpop.f32.mrb[0].mxu0
        %v4471 = vadd.f32 %v4394, %v4470
        %4472 = vmatprep.mubr.f32.mxu0 %v3914
        %4473 = vmatmul.mubr.f32.gmra.mrb[0].mxu0 %v3913
        %v4474 = vpop.f32.mrb[0].mxu0
        %v4475 = vadd.f32 %v4398, %v4474
        %v4476 = vpop.f32.mrb[0].mxu0
        %v4477 = vadd.f32 %v4400, %v4476
        %4478 = vdwg.mxu0
        %v4479 = vmul.f32 %v4187, %v4469
        %v4480 = vmul.f32 %v4189, %v4471
        %v4481 = vmul.f32 %v4193, %v4475
        %v4482 = vmul.f32 %v4195, %v4477
        %v4483 = vadd.f32 %v4479, %v4481
        %v4484 = vrot.slane %v4483, 4
        %v4485 = vadd.f32 %v4483, %v4484
        %v4486 = vrot.slane %v4485, 2
        %v4487 = vadd.f32 %v4485, %v4486
        %v4488 = vrot.slane %v4487, 1
        %v4489 = vadd.f32 %v4487, %v4488
        %v4490 = vadd.f32 %v4480, %v4482
        %v4491 = vrot.slane %v4490, 4
        %v4492 = vadd.f32 %v4490, %v4491
        %v4493 = vrot.slane %v4492, 2
        %v4494 = vadd.f32 %v4492, %v4493
        %v4495 = vrot.slane %v4494, 1
        %v4496 = vadd.f32 %v4494, %v4495
        %v4497 = vrcp.pop 16.0
        %v4498 = vmul.f32 %v4489, %v4497
        %v4499 = vmul.f32 %v4496, %v4497
        %v4500 = vld [vmem:[%s8] sm:$0xff]
        %v4501 = vld [vmem:[%s8 + $0x8] sm:$0xff]
        %v4502 = vld [vmem:[%s8 + $0x10] sm:$0xff]
        %v4503 = vld [vmem:[%s8 + $0x18] sm:$0xff]
        %v4504 = vld [vmem:[%s8 + $0x20] sm:$0xff]
        %v4505 = vld [vmem:[%s8 + $0x28] sm:$0xff]
        %v4506 = vld [vmem:[%s8 + $0x30] sm:$0xff]
        %v4507 = vld [vmem:[%s8 + $0x38] sm:$0xff]
        %v4508 = vld [vmem:[%s8 + $0x40] sm:$0xff]
        %v4509 = vld [vmem:[%s8 + $0x48] sm:$0xff]
        %v4510 = vld [vmem:[%s8 + $0x50] sm:$0xff]
        %v4511 = vld [vmem:[%s8 + $0x58] sm:$0xff]
        %v4512 = vld [vmem:[%s8 + $0x60] sm:$0xff]
        %v4513 = vld [vmem:[%s8 + $0x68] sm:$0xff]
        %v4514 = vld [vmem:[%s8 + $0x70] sm:$0xff]
        %v4515 = vld [vmem:[%s8 + $0x78] sm:$0xff]
        %v4516 = vld [vmem:[%s8 + $0x80] sm:$0xff]
        %v4517 = vld [vmem:[%s8 + $0x88] sm:$0xff]
        %v4518 = vld [vmem:[%s8 + $0x90] sm:$0xff]
        %v4519 = vld [vmem:[%s8 + $0x98] sm:$0xff]
        %v4520 = vld [vmem:[%s8 + $0xa0] sm:$0xff]
        %v4521 = vld [vmem:[%s8 + $0xa8] sm:$0xff]
        %v4522 = vld [vmem:[%s8 + $0xb0] sm:$0xff]
        %v4523 = vld [vmem:[%s8 + $0xb8] sm:$0xff]
        %v4524 = vld [vmem:[%s8 + $0xc0] sm:$0xff]
        %v4525 = vld [vmem:[%s8 + $0xc8] sm:$0xff]
        %v4526 = vld [vmem:[%s8 + $0xd0] sm:$0xff]
        %v4527 = vld [vmem:[%s8 + $0xd8] sm:$0xff]
        %v4528 = vld [vmem:[%s8 + $0xe0] sm:$0xff]
        %v4529 = vld [vmem:[%s8 + $0xe8] sm:$0xff]
        %v4530 = vld [vmem:[%s8 + $0xf0] sm:$0xff]
        %v4531 = vld [vmem:[%s8 + $0xf8] sm:$0xff]
        %4532 = vmatprep.subr.mxu0 0.0
        %4533 = vmatpush1.msra.mxu0 %v4500
        %4534 = vmatprep.subr.mxu0 0.0
        %4535 = vmatpush1.msra.mxu0 %v4501
        %4536 = vmatprep.subr.mxu0 0.0
        %4537 = vmatpush1.msra.mxu0 %v4502
        %4538 = vmatprep.subr.mxu0 0.0
        %4539 = vmatpush1.msra.mxu0 %v4503
        %4540 = vmatprep.subr.mxu0 0.0
        %4541 = vmatpush1.msra.mxu0 %v4504
        %4542 = vmatprep.subr.mxu0 0.0
        %4543 = vmatpush1.msra.mxu0 %v4505
        %4544 = vmatprep.subr.mxu0 0.0
        %4545 = vmatpush1.msra.mxu0 %v4506
        %4546 = vmatprep.subr.mxu0 0.0
        %4547 = vmatpush1.msra.mxu0 %v4507
        %4548 = vmatprep.subr.mxu0 0.0
        %4549 = vmatpush1.msra.mxu0 %v4508
        %4550 = vmatprep.subr.mxu0 0.0
        %4551 = vmatpush1.msra.mxu0 %v4509
        %4552 = vmatprep.subr.mxu0 0.0
        %4553 = vmatpush1.msra.mxu0 %v4510
        %4554 = vmatprep.subr.mxu0 0.0
        %4555 = vmatpush1.msra.mxu0 %v4511
        %4556 = vmatprep.subr.mxu0 0.0
        %4557 = vmatpush1.msra.mxu0 %v4512
        %4558 = vmatprep.subr.mxu0 0.0
        %4559 = vmatpush1.msra.mxu0 %v4513
        %4560 = vmatprep.subr.mxu0 0.0
        %4561 = vmatpush1.msra.mxu0 %v4514
        %4562 = vmatprep.subr.mxu0 0.0
        %4563 = vmatpush1.msra.mxu0 %v4515
        %4564 = vmatprep.subr.mxu0 0.0
        %4565 = vmatpush1.msra.mxu0 %v4516
        %4566 = vmatprep.subr.mxu0 0.0
        %4567 = vmatpush1.msra.mxu0 %v4517
        %4568 = vmatprep.subr.mxu0 0.0
        %4569 = vmatpush1.msra.mxu0 %v4518
        %4570 = vmatprep.subr.mxu0 0.0
        %4571 = vmatpush1.msra.mxu0 %v4519
        %4572 = vmatprep.subr.mxu0 0.0
        %4573 = vmatpush1.msra.mxu0 %v4520
        %4574 = vmatprep.subr.mxu0 0.0
        %4575 = vmatpush1.msra.mxu0 %v4521
        %4576 = vmatprep.subr.mxu0 0.0
        %4577 = vmatpush1.msra.mxu0 %v4522
        %4578 = vmatprep.subr.mxu0 0.0
        %4579 = vmatpush1.msra.mxu0 %v4523
        %4580 = vmatprep.subr.mxu0 0.0
        %4581 = vmatpush1.msra.mxu0 %v4524
        %4582 = vmatprep.subr.mxu0 0.0
        %4583 = vmatpush1.msra.mxu0 %v4525
        %4584 = vmatprep.subr.mxu0 0.0
        %4585 = vmatpush1.msra.mxu0 %v4526
        %4586 = vmatprep.subr.mxu0 0.0
        %4587 = vmatpush1.msra.mxu0 %v4527
        %4588 = vmatprep.subr.mxu0 0.0
        %4589 = vmatpush1.msra.mxu0 %v4528
        %4590 = vmatprep.subr.mxu0 0.0
        %4591 = vmatpush1.msra.mxu0 %v4529
        %4592 = vmatprep.subr.mxu0 0.0
        %4593 = vmatpush1.msra.mxu0 %v4530
        %4594 = vmatprep.subr.mxu0 0.0
        %4595 = vmatpush1.msra.mxu0 %v4531
        %4596 = vmatprep.mubr.f32.mxu0 %v4499
        %4597 = vmatmul.mubr.f32.gmra.mrb[0].mxu0 %v4498
        %v4598 = vpop.f32.mrb[0].mxu0
        %v4599 = vadd.f32 0.0, %v4598
        %v4600 = vpop.f32.mrb[0].mxu0
        %4601 = vdwg.mxu0
        %v4602 = vld [vmem:[#allocation22] sm:$0xff]
        %v4603 = vld [vmem:[#allocation22 + $0x8] sm:$0xff]
        %v4604 = vld [vmem:[#allocation24] sm:$0x1]
        %vm4605 = vcmask 130048
        %v4607 = vsel %vm4605, %v4599, 0
        %4609 = vmatprep.subr.mxu0 0.0
        %4610 = vmatpush1.msra.mxu0 %v4602
        %4611 = vmatprep.subr.mxu0 0.0
        %4612 = vmatpush1.msra.mxu0 %v4603
        %4613 = vmatprep.subr.mxu0 0.0
        %4614 = vmatpush1.msra.mxu0 0.0
        %4615 = vmatprep.subr.mxu0 0.0
        %4616 = vmatpush1.msra.mxu0 0.0
        %4617 = vmatprep.subr.mxu0 0.0
        %4618 = vmatpush1.msra.mxu0 0.0
        %4619 = vmatprep.subr.mxu0 0.0
        %4620 = vmatpush1.msra.mxu0 0.0
        %4621 = vmatprep.subr.mxu0 0.0
        %4622 = vmatpush1.msra.mxu0 0.0
        %4623 = vmatprep.subr.mxu0 0.0
        %4624 = vmatpush1.msra.mxu0 0.0
        %4625 = vmatprep.subr.mxu0 0.0
        %4626 = vmatpush1.msra.mxu0 0.0
        %4627 = vmatprep.subr.mxu0 0.0
        %4628 = vmatpush1.msra.mxu0 0.0
        %4629 = vmatprep.subr.mxu0 0.0
        %4630 = vmatpush1.msra.mxu0 0.0
        %4631 = vmatprep.subr.mxu0 0.0
        %4632 = vmatpush1.msra.mxu0 0.0
        %4633 = vmatprep.subr.mxu0 0.0
        %4634 = vmatpush1.msra.mxu0 0.0
        %4635 = vmatprep.subr.mxu0 0.0
        %4636 = vmatpush1.msra.mxu0 0.0
        %4637 = vmatprep.subr.mxu0 0.0
        %4638 = vmatpush1.msra.mxu0 0.0
        %4639 = vmatprep.subr.mxu0 0.0
        %4640 = vmatpush1.msra.mxu0 0.0
        %4641 = vmatprep.subr.mxu0 0.0
        %4642 = vmatpush1.msra.mxu0 0.0
        %4643 = vmatprep.subr.mxu0 0.0
        %4644 = vmatpush1.msra.mxu0 0.0
        %4645 = vmatprep.subr.mxu0 0.0
        %4646 = vmatpush1.msra.mxu0 0.0
        %4647 = vmatprep.subr.mxu0 0.0
        %4648 = vmatpush1.msra.mxu0 0.0
        %4649 = vmatprep.subr.mxu0 0.0
        %4650 = vmatpush1.msra.mxu0 0.0
        %4651 = vmatprep.subr.mxu0 0.0
        %4652 = vmatpush1.msra.mxu0 0.0
        %4653 = vmatprep.subr.mxu0 0.0
        %4654 = vmatpush1.msra.mxu0 0.0
        %4655 = vmatprep.subr.mxu0 0.0
        %4656 = vmatpush1.msra.mxu0 0.0
        %4657 = vmatprep.subr.mxu0 0.0
        %4658 = vmatpush1.msra.mxu0 0.0
        %4659 = vmatprep.subr.mxu0 0.0
        %4660 = vmatpush1.msra.mxu0 0.0
        %4661 = vmatprep.subr.mxu0 0.0
        %4662 = vmatpush1.msra.mxu0 0.0
        %4663 = vmatprep.subr.mxu0 0.0
        %4664 = vmatpush1.msra.mxu0 0.0
        %4665 = vmatprep.subr.mxu0 0.0
        %4666 = vmatpush1.msra.mxu0 0.0
        %4667 = vmatprep.subr.mxu0 0.0
        %4668 = vmatpush1.msra.mxu0 0.0
        %4669 = vmatprep.subr.mxu0 0.0
        %4670 = vmatpush1.msra.mxu0 0.0
        %4671 = vmatprep.subr.mxu0 0.0
        %4672 = vmatpush1.msra.mxu0 0.0
        %4673 = vmatprep.mubr.f32.mxu0 0.0
        %4674 = vmatmul.mubr.f32.gmra.mrb[0].mxu0 %v4607
        %v4675 = vpop.f32.mrb[0].mxu0
        %v4676 = vadd.f32 %v4604, %v4675
        %v4677 = vpop.f32.mrb[0].mxu0
        %4678 = vdwg.mxu0
        %v4679 = vld [vmem:[#allocation12] sm:$0xff]
        %v4680 = vld [vmem:[#allocation12 + $0x8] sm:$0xff]
        %v4681 = vld [vmem:[#allocation12 + $0x10] sm:$0xff]
        %v4682 = vld [vmem:[#allocation12 + $0x18] sm:$0xff]
        %v4684 = vsel %vm4605, %v4676, 0
        %4686 = vmatprep.subr.mxu0 %v4680
        %4687 = vmatpush1.msra.mxu0 %v4679
        %4688 = vmatprep.subr.mxu0 %v4682
        %4689 = vmatpush1.msra.mxu0 %v4681
        %4690 = vmatprep.subr.mxu0 0.0
        %4691 = vmatpush1.msra.mxu0 0.0
        %4692 = vmatprep.subr.mxu0 0.0
        %4693 = vmatpush1.msra.mxu0 0.0
        %4694 = vmatprep.subr.mxu0 0.0
        %4695 = vmatpush1.msra.mxu0 0.0
        %4696 = vmatprep.subr.mxu0 0.0
        %4697 = vmatpush1.msra.mxu0 0.0
        %4698 = vmatprep.subr.mxu0 0.0
        %4699 = vmatpush1.msra.mxu0 0.0
        %4700 = vmatprep.subr.mxu0 0.0
        %4701 = vmatpush1.msra.mxu0 0.0
        %4702 = vmatprep.subr.mxu0 0.0
        %4703 = vmatpush1.msra.mxu0 0.0
        %4704 = vmatprep.subr.mxu0 0.0
        %4705 = vmatpush1.msra.mxu0 0.0
        %4706 = vmatprep.subr.mxu0 0.0
        %4707 = vmatpush1.msra.mxu0 0.0
        %4708 = vmatprep.subr.mxu0 0.0
        %4709 = vmatpush1.msra.mxu0 0.0
        %4710 = vmatprep.subr.mxu0 0.0
        %4711 = vmatpush1.msra.mxu0 0.0
        %4712 = vmatprep.subr.mxu0 0.0
        %4713 = vmatpush1.msra.mxu0 0.0
        %4714 = vmatprep.subr.mxu0 0.0
        %4715 = vmatpush1.msra.mxu0 0.0
        %4716 = vmatprep.subr.mxu0 0.0
        %4717 = vmatpush1.msra.mxu0 0.0
        %4718 = vmatprep.subr.mxu0 0.0
        %4719 = vmatpush1.msra.mxu0 0.0
        %4720 = vmatprep.subr.mxu0 0.0
        %4721 = vmatpush1.msra.mxu0 0.0
        %4722 = vmatprep.subr.mxu0 0.0
        %4723 = vmatpush1.msra.mxu0 0.0
        %4724 = vmatprep.subr.mxu0 0.0
        %4725 = vmatpush1.msra.mxu0 0.0
        %4726 = vmatprep.subr.mxu0 0.0
        %4727 = vmatpush1.msra.mxu0 0.0
        %4728 = vmatprep.subr.mxu0 0.0
        %4729 = vmatpush1.msra.mxu0 0.0
        %4730 = vmatprep.subr.mxu0 0.0
        %4731 = vmatpush1.msra.mxu0 0.0
        %4732 = vmatprep.subr.mxu0 0.0
        %4733 = vmatpush1.msra.mxu0 0.0
        %4734 = vmatprep.subr.mxu0 0.0
        %4735 = vmatpush1.msra.mxu0 0.0
        %4736 = vmatprep.subr.mxu0 0.0
        %4737 = vmatpush1.msra.mxu0 0.0
        %4738 = vmatprep.subr.mxu0 0.0
        %4739 = vmatpush1.msra.mxu0 0.0
        %4740 = vmatprep.subr.mxu0 0.0
        %4741 = vmatpush1.msra.mxu0 0.0
        %4742 = vmatprep.subr.mxu0 0.0
        %4743 = vmatpush1.msra.mxu0 0.0
        %4744 = vmatprep.subr.mxu0 0.0
        %4745 = vmatpush1.msra.mxu0 0.0
        %4746 = vmatprep.subr.mxu0 0.0
        %4747 = vmatpush1.msra.mxu0 0.0
        %4748 = vmatprep.subr.mxu0 0.0
        %4749 = vmatpush1.msra.mxu0 0.0
        %4750 = vmatprep.mubr.f32.mxu0 0.0
        %4751 = vmatmul.mubr.f32.gmra.mrb[0].mxu0 %v4684
        %v4752 = vpop.f32.mrb[0].mxu0
        %v4753 = vadd.f32 0.0, %v4752
        %v4754 = vpop.f32.mrb[0].mxu0
        %v4755 = vadd.f32 0.0, %v4754
        %4756 = vdwg.mxu0
        %v4757 = vlaneseq
        %v4758 = vshrl.u32 %v4757, 7
        %v4759 = vsub.s32 0, %v4758
        %v4760 = vrot.slane %v4753, %v4759
        %v4761 = vlaneseq
        %v4762 = vshrl.u32 %v4761, 7
        %v4763 = vsub.s32 0, %v4762
        %v4764 = vrot.slane %v4755, %v4763
        %v4765 = vmul.f32 %v4479, %v4760
        %v4766 = vmul.f32 %v4480, %v4764
        %v4767 = vmul.f32 %v4481, %v4760
        %v4768 = vmul.f32 %v4482, %v4764
        %v4769 = vld [vmem:[#allocation25] sm:$0xff]
        %v4770 = vld [vmem:[#allocation25 + $0x8] sm:$0xff]
        %v4771 = vld [vmem:[#allocation25 + $0x10] sm:$0xff]
        %v4772 = vld [vmem:[#allocation25 + $0x18] sm:$0xff]
        %v4773 = vld [vmem:[#allocation25 + $0x20] sm:$0xff]
        %v4774 = vld [vmem:[#allocation25 + $0x28] sm:$0xff]
        %v4775 = vld [vmem:[#allocation25 + $0x30] sm:$0xff]
        %v4776 = vld [vmem:[#allocation25 + $0x38] sm:$0xff]
        %v4777 = vld [vmem:[#allocation25 + $0x40] sm:$0xff]
        %v4778 = vld [vmem:[#allocation25 + $0x48] sm:$0xff]
        %v4779 = vld [vmem:[#allocation25 + $0x50] sm:$0xff]
        %v4780 = vld [vmem:[#allocation25 + $0x58] sm:$0xff]
        %v4781 = vld [vmem:[#allocation25 + $0x60] sm:$0xff]
        %v4782 = vld [vmem:[#allocation25 + $0x68] sm:$0xff]
        %v4783 = vld [vmem:[#allocation25 + $0x70] sm:$0xff]
        %v4784 = vld [vmem:[#allocation25 + $0x78] sm:$0xff]
        %v4785 = vld [vmem:[#allocation25 + $0x80] sm:$0xff]
        %v4786 = vld [vmem:[#allocation25 + $0x88] sm:$0xff]
        %v4787 = vld [vmem:[#allocation25 + $0x90] sm:$0xff]
        %v4788 = vld [vmem:[#allocation25 + $0x98] sm:$0xff]
        %v4789 = vld [vmem:[#allocation25 + $0xa0] sm:$0xff]
        %v4790 = vld [vmem:[#allocation25 + $0xa8] sm:$0xff]
        %v4791 = vld [vmem:[#allocation25 + $0xb0] sm:$0xff]
        %v4792 = vld [vmem:[#allocation25 + $0xb8] sm:$0xff]
        %v4793 = vld [vmem:[#allocation25 + $0xc0] sm:$0xff]
        %v4794 = vld [vmem:[#allocation25 + $0xc8] sm:$0xff]
        %v4795 = vld [vmem:[#allocation25 + $0xd0] sm:$0xff]
        %v4796 = vld [vmem:[#allocation25 + $0xd8] sm:$0xff]
        %v4797 = vld [vmem:[#allocation25 + $0xe0] sm:$0xff]
        %v4798 = vld [vmem:[#allocation25 + $0xe8] sm:$0xff]
        %v4799 = vld [vmem:[#allocation25 + $0xf0] sm:$0xff]
        %v4800 = vld [vmem:[#allocation25 + $0xf8] sm:$0xff]
        %v4801 = vld [vmem:[#allocation25 + $0x100] sm:$0xff]
        %v4802 = vld [vmem:[#allocation25 + $0x108] sm:$0xff]
        %v4803 = vld [vmem:[#allocation25 + $0x110] sm:$0xff]
        %v4804 = vld [vmem:[#allocation25 + $0x118] sm:$0xff]
        %v4805 = vld [vmem:[#allocation25 + $0x120] sm:$0xff]
        %v4806 = vld [vmem:[#allocation25 + $0x128] sm:$0xff]
        %v4807 = vld [vmem:[#allocation25 + $0x130] sm:$0xff]
        %v4808 = vld [vmem:[#allocation25 + $0x138] sm:$0xff]
        %v4809 = vld [vmem:[#allocation25 + $0x140] sm:$0xff]
        %v4810 = vld [vmem:[#allocation25 + $0x148] sm:$0xff]
        %v4811 = vld [vmem:[#allocation25 + $0x150] sm:$0xff]
        %v4812 = vld [vmem:[#allocation25 + $0x158] sm:$0xff]
        %v4813 = vld [vmem:[#allocation25 + $0x160] sm:$0xff]
        %v4814 = vld [vmem:[#allocation25 + $0x168] sm:$0xff]
        %v4815 = vld [vmem:[#allocation25 + $0x170] sm:$0xff]
        %v4816 = vld [vmem:[#allocation25 + $0x178] sm:$0xff]
        %v4817 = vld [vmem:[#allocation25 + $0x180] sm:$0xff]
        %v4818 = vld [vmem:[#allocation25 + $0x188] sm:$0xff]
        %v4819 = vld [vmem:[#allocation25 + $0x190] sm:$0xff]
        %v4820 = vld [vmem:[#allocation25 + $0x198] sm:$0xff]
        %v4821 = vld [vmem:[#allocation25 + $0x1a0] sm:$0xff]
        %v4822 = vld [vmem:[#allocation25 + $0x1a8] sm:$0xff]
        %v4823 = vld [vmem:[#allocation25 + $0x1b0] sm:$0xff]
        %v4824 = vld [vmem:[#allocation25 + $0x1b8] sm:$0xff]
        %v4825 = vld [vmem:[#allocation25 + $0x1c0] sm:$0xff]
        %v4826 = vld [vmem:[#allocation25 + $0x1c8] sm:$0xff]
        %v4827 = vld [vmem:[#allocation25 + $0x1d0] sm:$0xff]
        %v4828 = vld [vmem:[#allocation25 + $0x1d8] sm:$0xff]
        %v4829 = vld [vmem:[#allocation25 + $0x1e0] sm:$0xff]
        %v4830 = vld [vmem:[#allocation25 + $0x1e8] sm:$0xff]
        %v4831 = vld [vmem:[#allocation25 + $0x1f0] sm:$0xff]
        %v4832 = vld [vmem:[#allocation25 + $0x1f8] sm:$0xff]
        %v4833 = vld [vmem:[#allocation27] sm:$0x3]
        %v4835 = vlaneseq
        %v4836 = vshrl.u32 %v4835, 7
        %v4837 = vsub.s32 0, %v4836
        %v4838 = vrot.slane %v4833, %v4837
        %v4839 = vlaneseq
        %v4840 = vshrl.u32 %v4839, 7
        %v4841 = vsub.s32 1, %v4840
        %v4842 = vrot.slane %v4833, %v4841
        %4845 = vmatprep.subr.mxu0 %v4770
        %4846 = vmatpush1.msra.mxu0 %v4769
        %4847 = vmatprep.subr.mxu0 %v4772
        %4848 = vmatpush1.msra.mxu0 %v4771
        %4849 = vmatprep.subr.mxu0 %v4774
        %4850 = vmatpush1.msra.mxu0 %v4773
        %4851 = vmatprep.subr.mxu0 %v4776
        %4852 = vmatpush1.msra.mxu0 %v4775
        %4853 = vmatprep.subr.mxu0 %v4778
        %4854 = vmatpush1.msra.mxu0 %v4777
        %4855 = vmatprep.subr.mxu0 %v4780
        %4856 = vmatpush1.msra.mxu0 %v4779
        %4857 = vmatprep.subr.mxu0 %v4782
        %4858 = vmatpush1.msra.mxu0 %v4781
        %4859 = vmatprep.subr.mxu0 %v4784
        %4860 = vmatpush1.msra.mxu0 %v4783
        %4861 = vmatprep.subr.mxu0 %v4786
        %4862 = vmatpush1.msra.mxu0 %v4785
        %4863 = vmatprep.subr.mxu0 %v4788
        %4864 = vmatpush1.msra.mxu0 %v4787
        %4865 = vmatprep.subr.mxu0 %v4790
        %4866 = vmatpush1.msra.mxu0 %v4789
        %4867 = vmatprep.subr.mxu0 %v4792
        %4868 = vmatpush1.msra.mxu0 %v4791
        %4869 = vmatprep.subr.mxu0 %v4794
        %4870 = vmatpush1.msra.mxu0 %v4793
        %4871 = vmatprep.subr.mxu0 %v4796
        %4872 = vmatpush1.msra.mxu0 %v4795
        %4873 = vmatprep.subr.mxu0 %v4798
        %4874 = vmatpush1.msra.mxu0 %v4797
        %4875 = vmatprep.subr.mxu0 %v4800
        %4876 = vmatpush1.msra.mxu0 %v4799
        %4877 = vmatprep.subr.mxu0 %v4802
        %4878 = vmatpush1.msra.mxu0 %v4801
        %4879 = vmatprep.subr.mxu0 %v4804
        %4880 = vmatpush1.msra.mxu0 %v4803
        %4881 = vmatprep.subr.mxu0 %v4806
        %4882 = vmatpush1.msra.mxu0 %v4805
        %4883 = vmatprep.subr.mxu0 %v4808
        %4884 = vmatpush1.msra.mxu0 %v4807
        %4885 = vmatprep.subr.mxu0 %v4810
        %4886 = vmatpush1.msra.mxu0 %v4809
        %4887 = vmatprep.subr.mxu0 %v4812
        %4888 = vmatpush1.msra.mxu0 %v4811
        %4889 = vmatprep.subr.mxu0 %v4814
        %4890 = vmatpush1.msra.mxu0 %v4813
        %4891 = vmatprep.subr.mxu0 %v4816
        %4892 = vmatpush1.msra.mxu0 %v4815
        %4893 = vmatprep.subr.mxu0 %v4818
        %4894 = vmatpush1.msra.mxu0 %v4817
        %4895 = vmatprep.subr.mxu0 %v4820
        %4896 = vmatpush1.msra.mxu0 %v4819
        %4897 = vmatprep.subr.mxu0 %v4822
        %4898 = vmatpush1.msra.mxu0 %v4821
        %4899 = vmatprep.subr.mxu0 %v4824
        %4900 = vmatpush1.msra.mxu0 %v4823
        %4901 = vmatprep.subr.mxu0 %v4826
        %4902 = vmatpush1.msra.mxu0 %v4825
        %4903 = vmatprep.subr.mxu0 %v4828
        %4904 = vmatpush1.msra.mxu0 %v4827
        %4905 = vmatprep.subr.mxu0 %v4830
        %4906 = vmatpush1.msra.mxu0 %v4829
        %4907 = vmatprep.subr.mxu0 %v4832
        %4908 = vmatpush1.msra.mxu0 %v4831
        %4909 = vmatprep.mubr.f32.mxu0 %v4766
        %4910 = vmatmul.mubr.f32.gmra.mrb[0].mxu0 %v4765
        %v4911 = vpop.f32.mrb[0].mxu0
        %v4912 = vadd.f32 %v4838, %v4911
        %v4913 = vpop.f32.mrb[0].mxu0
        %v4914 = vadd.f32 %v4842, %v4913
        %4915 = vmatprep.mubr.f32.mxu0 %v4768
        %4916 = vmatmul.mubr.f32.gmra.mrb[0].mxu0 %v4767
        %v4917 = vpop.f32.mrb[0].mxu0
        %v4918 = vadd.f32 %v4838, %v4917
        %v4919 = vpop.f32.mrb[0].mxu0
        %v4920 = vadd.f32 %v4842, %v4919
        %4921 = vdwg.mxu0
        %v4922 = vld [vmem:[#allocation37] sm:$0x3]
        %v4924 = vlaneseq
        %v4925 = vshrl.u32 %v4924, 7
        %v4926 = vsub.s32 0, %v4925
        %v4927 = vrot.slane %v4922, %v4926
        %v4928 = vlaneseq
        %v4929 = vshrl.u32 %v4928, 7
        %v4930 = vsub.s32 1, %v4929
        %v4931 = vrot.slane %v4922, %v4930
        %v4934 = vmul.f32 %v4912, %v4927
        %v4935 = vmul.f32 %v4914, %v4931
        %v4936 = vmul.f32 %v4918, %v4927
        %v4937 = vmul.f32 %v4920, %v4931
        %v4938 = vadd.f32 %v1505, %v4934
        %v4939 = vadd.f32 %v1506, %v4935
        %v4940 = vadd.f32 %v1507, %v4936
        %v4941 = vadd.f32 %v1508, %v4937
        %v4942 = vld [vmem:[#allocation28] sm:$0x3]
        %v4943 = vld [vmem:[#allocation30] sm:$0x3]
        %4944 = vmatprep.subr.mxu0 %v1512
        %4945 = vmatpush1.msra.mxu0 %v1511
        %4946 = vmatprep.subr.mxu0 %v1514
        %4947 = vmatpush1.msra.mxu0 %v1513
        %4948 = vmatprep.subr.mxu0 %v1516
        %4949 = vmatpush1.msra.mxu0 %v1515
        %4950 = vmatprep.subr.mxu0 %v1518
        %4951 = vmatpush1.msra.mxu0 %v1517
        %4952 = vmatprep.subr.mxu0 %v1520
        %4953 = vmatpush1.msra.mxu0 %v1519
        %4954 = vmatprep.subr.mxu0 %v1522
        %4955 = vmatpush1.msra.mxu0 %v1521
        %4956 = vmatprep.subr.mxu0 %v1524
        %4957 = vmatpush1.msra.mxu0 %v1523
        %4958 = vmatprep.subr.mxu0 %v1526
        %4959 = vmatpush1.msra.mxu0 %v1525
        %4960 = vmatprep.subr.mxu0 %v1528
        %4961 = vmatpush1.msra.mxu0 %v1527
        %4962 = vmatprep.subr.mxu0 %v1530
        %4963 = vmatpush1.msra.mxu0 %v1529
        %4964 = vmatprep.subr.mxu0 %v1532
        %4965 = vmatpush1.msra.mxu0 %v1531
        %4966 = vmatprep.subr.mxu0 %v1534
        %4967 = vmatpush1.msra.mxu0 %v1533
        %4968 = vmatprep.subr.mxu0 %v1536
        %4969 = vmatpush1.msra.mxu0 %v1535
        %4970 = vmatprep.subr.mxu0 %v1538
        %4971 = vmatpush1.msra.mxu0 %v1537
        %4972 = vmatprep.subr.mxu0 %v1540
        %4973 = vmatpush1.msra.mxu0 %v1539
        %4974 = vmatprep.subr.mxu0 %v1542
        %4975 = vmatpush1.msra.mxu0 %v1541
        %4976 = vmatprep.subr.mxu0 %v1544
        %4977 = vmatpush1.msra.mxu0 %v1543
        %4978 = vmatprep.subr.mxu0 %v1546
        %4979 = vmatpush1.msra.mxu0 %v1545
        %4980 = vmatprep.subr.mxu0 %v1548
        %4981 = vmatpush1.msra.mxu0 %v1547
        %4982 = vmatprep.subr.mxu0 %v1550
        %4983 = vmatpush1.msra.mxu0 %v1549
        %4984 = vmatprep.subr.mxu0 %v1552
        %4985 = vmatpush1.msra.mxu0 %v1551
        %4986 = vmatprep.subr.mxu0 %v1554
        %4987 = vmatpush1.msra.mxu0 %v1553
        %4988 = vmatprep.subr.mxu0 %v1556
        %4989 = vmatpush1.msra.mxu0 %v1555
        %4990 = vmatprep.subr.mxu0 %v1558
        %4991 = vmatpush1.msra.mxu0 %v1557
        %4992 = vmatprep.subr.mxu0 %v1560
        %4993 = vmatpush1.msra.mxu0 %v1559
        %4994 = vmatprep.subr.mxu0 %v1562
        %4995 = vmatpush1.msra.mxu0 %v1561
        %4996 = vmatprep.subr.mxu0 %v1564
        %4997 = vmatpush1.msra.mxu0 %v1563
        %4998 = vmatprep.subr.mxu0 %v1566
        %4999 = vmatpush1.msra.mxu0 %v1565
        %5000 = vmatprep.subr.mxu0 %v1568
        %5001 = vmatpush1.msra.mxu0 %v1567
        %5002 = vmatprep.subr.mxu0 %v1570
        %5003 = vmatpush1.msra.mxu0 %v1569
        %5004 = vmatprep.subr.mxu0 %v1572
        %5005 = vmatpush1.msra.mxu0 %v1571
        %5006 = vmatprep.subr.mxu0 %v1574
        %5007 = vmatpush1.msra.mxu0 %v1573
        %5008 = vmatprep.mubr.f32.mxu0 %v4939
        %5009 = vmatmul.mubr.f32.gmra.mrb[0].mxu0 %v4938
        %v5010 = vpop.f32.mrb[0].mxu0
        %v5011 = vadd.f32 0.0, %v5010
        %v5012 = vpop.f32.mrb[0].mxu0
        %v5013 = vadd.f32 0.0, %v5012
        %5014 = vmatprep.mubr.f32.mxu0 %v4941
        %5015 = vmatmul.mubr.f32.gmra.mrb[0].mxu0 %v4940
        %v5016 = vpop.f32.mrb[0].mxu0
        %v5017 = vadd.f32 0.0, %v5016
        %v5018 = vpop.f32.mrb[0].mxu0
        %v5019 = vadd.f32 0.0, %v5018
        %5020 = vdwg.mxu0
        %v5021 = vsub.f32 %v4938, %v5011
        %v5022 = vsub.f32 %v4939, %v5013
        %v5023 = vsub.f32 %v4940, %v5017
        %v5024 = vsub.f32 %v4941, %v5019
        %v5025 = vmul.f32 %v5021, %v5021
        %v5026 = vmul.f32 %v5022, %v5022
        %v5027 = vmul.f32 %v5023, %v5023
        %v5028 = vmul.f32 %v5024, %v5024
        %5029 = vmatprep.subr.mxu0 %v1512
        %5030 = vmatpush1.msra.mxu0 %v1511
        %5031 = vmatprep.subr.mxu0 %v1514
        %5032 = vmatpush1.msra.mxu0 %v1513
        %5033 = vmatprep.subr.mxu0 %v1516
        %5034 = vmatpush1.msra.mxu0 %v1515
        %5035 = vmatprep.subr.mxu0 %v1518
        %5036 = vmatpush1.msra.mxu0 %v1517
        %5037 = vmatprep.subr.mxu0 %v1520
        %5038 = vmatpush1.msra.mxu0 %v1519
        %5039 = vmatprep.subr.mxu0 %v1522
        %5040 = vmatpush1.msra.mxu0 %v1521
        %5041 = vmatprep.subr.mxu0 %v1524
        %5042 = vmatpush1.msra.mxu0 %v1523
        %5043 = vmatprep.subr.mxu0 %v1526
        %5044 = vmatpush1.msra.mxu0 %v1525
        %5045 = vmatprep.subr.mxu0 %v1528
        %5046 = vmatpush1.msra.mxu0 %v1527
        %5047 = vmatprep.subr.mxu0 %v1530
        %5048 = vmatpush1.msra.mxu0 %v1529
        %5049 = vmatprep.subr.mxu0 %v1532
        %5050 = vmatpush1.msra.mxu0 %v1531
        %5051 = vmatprep.subr.mxu0 %v1534
        %5052 = vmatpush1.msra.mxu0 %v1533
        %5053 = vmatprep.subr.mxu0 %v1536
        %5054 = vmatpush1.msra.mxu0 %v1535
        %5055 = vmatprep.subr.mxu0 %v1538
        %5056 = vmatpush1.msra.mxu0 %v1537
        %5057 = vmatprep.subr.mxu0 %v1540
        %5058 = vmatpush1.msra.mxu0 %v1539
        %5059 = vmatprep.subr.mxu0 %v1542
        %5060 = vmatpush1.msra.mxu0 %v1541
        %5061 = vmatprep.subr.mxu0 %v1544
        %5062 = vmatpush1.msra.mxu0 %v1543
        %5063 = vmatprep.subr.mxu0 %v1546
        %5064 = vmatpush1.msra.mxu0 %v1545
        %5065 = vmatprep.subr.mxu0 %v1548
        %5066 = vmatpush1.msra.mxu0 %v1547
        %5067 = vmatprep.subr.mxu0 %v1550
        %5068 = vmatpush1.msra.mxu0 %v1549
        %5069 = vmatprep.subr.mxu0 %v1552
        %5070 = vmatpush1.msra.mxu0 %v1551
        %5071 = vmatprep.subr.mxu0 %v1554
        %5072 = vmatpush1.msra.mxu0 %v1553
        %5073 = vmatprep.subr.mxu0 %v1556
        %5074 = vmatpush1.msra.mxu0 %v1555
        %5075 = vmatprep.subr.mxu0 %v1558
        %5076 = vmatpush1.msra.mxu0 %v1557
        %5077 = vmatprep.subr.mxu0 %v1560
        %5078 = vmatpush1.msra.mxu0 %v1559
        %5079 = vmatprep.subr.mxu0 %v1562
        %5080 = vmatpush1.msra.mxu0 %v1561
        %5081 = vmatprep.subr.mxu0 %v1564
        %5082 = vmatpush1.msra.mxu0 %v1563
        %5083 = vmatprep.subr.mxu0 %v1566
        %5084 = vmatpush1.msra.mxu0 %v1565
        %5085 = vmatprep.subr.mxu0 %v1568
        %5086 = vmatpush1.msra.mxu0 %v1567
        %5087 = vmatprep.subr.mxu0 %v1570
        %5088 = vmatpush1.msra.mxu0 %v1569
        %5089 = vmatprep.subr.mxu0 %v1572
        %5090 = vmatpush1.msra.mxu0 %v1571
        %5091 = vmatprep.subr.mxu0 %v1574
        %5092 = vmatpush1.msra.mxu0 %v1573
        %5093 = vmatprep.mubr.f32.mxu0 %v5026
        %5094 = vmatmul.mubr.f32.gmra.mrb[0].mxu0 %v5025
        %v5095 = vpop.f32.mrb[0].mxu0
        %v5096 = vadd.f32 1e-06, %v5095
        %v5097 = vpop.f32.mrb[0].mxu0
        %v5098 = vadd.f32 1e-06, %v5097
        %5099 = vmatprep.mubr.f32.mxu0 %v5028
        %5100 = vmatmul.mubr.f32.gmra.mrb[0].mxu0 %v5027
        %v5101 = vpop.f32.mrb[0].mxu0
        %v5102 = vadd.f32 1e-06, %v5101
        %v5103 = vpop.f32.mrb[0].mxu0
        %v5104 = vadd.f32 1e-06, %v5103
        %5105 = vdwg.mxu0
        %v5106 = vrsqrt.pop %v5096
        %v5107 = vrsqrt.pop %v5098
        %v5108 = vrsqrt.pop %v5102
        %v5109 = vrsqrt.pop %v5104
        %v5110 = vmul.f32 %v5021, %v5106
        %v5111 = vmul.f32 %v5022, %v5107
        %v5112 = vmul.f32 %v5023, %v5108
        %v5113 = vmul.f32 %v5024, %v5109
        %v5115 = vlaneseq
        %v5116 = vshrl.u32 %v5115, 7
        %v5117 = vsub.s32 0, %v5116
        %v5118 = vrot.slane %v4942, %v5117
        %v5119 = vlaneseq
        %v5120 = vshrl.u32 %v5119, 7
        %v5121 = vsub.s32 1, %v5120
        %v5122 = vrot.slane %v4942, %v5121
        %v5125 = vmul.f32 %v5110, %v5118
        %v5126 = vmul.f32 %v5111, %v5122
        %v5127 = vmul.f32 %v5112, %v5118
        %v5128 = vmul.f32 %v5113, %v5122
        %v5130 = vlaneseq
        %v5131 = vshrl.u32 %v5130, 7
        %v5132 = vsub.s32 0, %v5131
        %v5133 = vrot.slane %v4943, %v5132
        %v5134 = vlaneseq
        %v5135 = vshrl.u32 %v5134, 7
        %v5136 = vsub.s32 1, %v5135
        %v5137 = vrot.slane %v4943, %v5136
        %v5140 = vadd.f32 %v5125, %v5133
        %v5141 = vadd.f32 %v5126, %v5137
        %v5142 = vadd.f32 %v5127, %v5133
        %v5143 = vadd.f32 %v5128, %v5137
        %v5144 = vld [vmem:[#allocation31] sm:$0xff]
        %v5145 = vld [vmem:[#allocation31 + $0x8] sm:$0xff]
        %v5146 = vld [vmem:[#allocation31 + $0x10] sm:$0xff]
        %v5147 = vld [vmem:[#allocation31 + $0x18] sm:$0xff]
        %v5148 = vld [vmem:[#allocation31 + $0x20] sm:$0xff]
        %v5149 = vld [vmem:[#allocation31 + $0x28] sm:$0xff]
        %v5150 = vld [vmem:[#allocation31 + $0x30] sm:$0xff]
        %v5151 = vld [vmem:[#allocation31 + $0x38] sm:$0xff]
        %v5152 = vld [vmem:[#allocation31 + $0x40] sm:$0xff]
        %v5153 = vld [vmem:[#allocation31 + $0x48] sm:$0xff]
        %v5154 = vld [vmem:[#allocation31 + $0x50] sm:$0xff]
        %v5155 = vld [vmem:[#allocation31 + $0x58] sm:$0xff]
        %v5156 = vld [vmem:[#allocation31 + $0x60] sm:$0xff]
        %v5157 = vld [vmem:[#allocation31 + $0x68] sm:$0xff]
        %v5158 = vld [vmem:[#allocation31 + $0x70] sm:$0xff]
        %v5159 = vld [vmem:[#allocation31 + $0x78] sm:$0xff]
        %v5160 = vld [vmem:[#allocation31 + $0x80] sm:$0xff]
        %v5161 = vld [vmem:[#allocation31 + $0x88] sm:$0xff]
        %v5162 = vld [vmem:[#allocation31 + $0x90] sm:$0xff]
        %v5163 = vld [vmem:[#allocation31 + $0x98] sm:$0xff]
        %v5164 = vld [vmem:[#allocation31 + $0xa0] sm:$0xff]
        %v5165 = vld [vmem:[#allocation31 + $0xa8] sm:$0xff]
        %v5166 = vld [vmem:[#allocation31 + $0xb0] sm:$0xff]
        %v5167 = vld [vmem:[#allocation31 + $0xb8] sm:$0xff]
        %v5168 = vld [vmem:[#allocation31 + $0xc0] sm:$0xff]
        %v5169 = vld [vmem:[#allocation31 + $0xc8] sm:$0xff]
        %v5170 = vld [vmem:[#allocation31 + $0xd0] sm:$0xff]
        %v5171 = vld [vmem:[#allocation31 + $0xd8] sm:$0xff]
        %v5172 = vld [vmem:[#allocation31 + $0xe0] sm:$0xff]
        %v5173 = vld [vmem:[#allocation31 + $0xe8] sm:$0xff]
        %v5174 = vld [vmem:[#allocation31 + $0xf0] sm:$0xff]
        %v5175 = vld [vmem:[#allocation31 + $0xf8] sm:$0xff]
        %v5176 = vld [vmem:[#allocation31 + $0x100] sm:$0xff]
        %v5177 = vld [vmem:[#allocation31 + $0x108] sm:$0xff]
        %v5178 = vld [vmem:[#allocation31 + $0x110] sm:$0xff]
        %v5179 = vld [vmem:[#allocation31 + $0x118] sm:$0xff]
        %v5180 = vld [vmem:[#allocation31 + $0x120] sm:$0xff]
        %v5181 = vld [vmem:[#allocation31 + $0x128] sm:$0xff]
        %v5182 = vld [vmem:[#allocation31 + $0x130] sm:$0xff]
        %v5183 = vld [vmem:[#allocation31 + $0x138] sm:$0xff]
        %v5184 = vld [vmem:[#allocation31 + $0x140] sm:$0xff]
        %v5185 = vld [vmem:[#allocation31 + $0x148] sm:$0xff]
        %v5186 = vld [vmem:[#allocation31 + $0x150] sm:$0xff]
        %v5187 = vld [vmem:[#allocation31 + $0x158] sm:$0xff]
        %v5188 = vld [vmem:[#allocation31 + $0x160] sm:$0xff]
        %v5189 = vld [vmem:[#allocation31 + $0x168] sm:$0xff]
        %v5190 = vld [vmem:[#allocation31 + $0x170] sm:$0xff]
        %v5191 = vld [vmem:[#allocation31 + $0x178] sm:$0xff]
        %v5192 = vld [vmem:[#allocation31 + $0x180] sm:$0xff]
        %v5193 = vld [vmem:[#allocation31 + $0x188] sm:$0xff]
        %v5194 = vld [vmem:[#allocation31 + $0x190] sm:$0xff]
        %v5195 = vld [vmem:[#allocation31 + $0x198] sm:$0xff]
        %v5196 = vld [vmem:[#allocation31 + $0x1a0] sm:$0xff]
        %v5197 = vld [vmem:[#allocation31 + $0x1a8] sm:$0xff]
        %v5198 = vld [vmem:[#allocation31 + $0x1b0] sm:$0xff]
        %v5199 = vld [vmem:[#allocation31 + $0x1b8] sm:$0xff]
        %v5200 = vld [vmem:[#allocation31 + $0x1c0] sm:$0xff]
        %v5201 = vld [vmem:[#allocation31 + $0x1c8] sm:$0xff]
        %v5202 = vld [vmem:[#allocation31 + $0x1d0] sm:$0xff]
        %v5203 = vld [vmem:[#allocation31 + $0x1d8] sm:$0xff]
        %v5204 = vld [vmem:[#allocation31 + $0x1e0] sm:$0xff]
        %v5205 = vld [vmem:[#allocation31 + $0x1e8] sm:$0xff]
        %v5206 = vld [vmem:[#allocation31 + $0x1f0] sm:$0xff]
        %v5207 = vld [vmem:[#allocation31 + $0x1f8] sm:$0xff]
        %v5208 = vld [vmem:[#allocation31 + $0x200] sm:$0xff]
        %v5209 = vld [vmem:[#allocation31 + $0x208] sm:$0xff]
        %v5210 = vld [vmem:[#allocation31 + $0x210] sm:$0xff]
        %v5211 = vld [vmem:[#allocation31 + $0x218] sm:$0xff]
        %v5212 = vld [vmem:[#allocation31 + $0x220] sm:$0xff]
        %v5213 = vld [vmem:[#allocation31 + $0x228] sm:$0xff]
        %v5214 = vld [vmem:[#allocation31 + $0x230] sm:$0xff]
        %v5215 = vld [vmem:[#allocation31 + $0x238] sm:$0xff]
        %v5216 = vld [vmem:[#allocation31 + $0x240] sm:$0xff]
        %v5217 = vld [vmem:[#allocation31 + $0x248] sm:$0xff]
        %v5218 = vld [vmem:[#allocation31 + $0x250] sm:$0xff]
        %v5219 = vld [vmem:[#allocation31 + $0x258] sm:$0xff]
        %v5220 = vld [vmem:[#allocation31 + $0x260] sm:$0xff]
        %v5221 = vld [vmem:[#allocation31 + $0x268] sm:$0xff]
        %v5222 = vld [vmem:[#allocation31 + $0x270] sm:$0xff]
        %v5223 = vld [vmem:[#allocation31 + $0x278] sm:$0xff]
        %v5224 = vld [vmem:[#allocation31 + $0x280] sm:$0xff]
        %v5225 = vld [vmem:[#allocation31 + $0x288] sm:$0xff]
        %v5226 = vld [vmem:[#allocation31 + $0x290] sm:$0xff]
        %v5227 = vld [vmem:[#allocation31 + $0x298] sm:$0xff]
        %v5228 = vld [vmem:[#allocation31 + $0x2a0] sm:$0xff]
        %v5229 = vld [vmem:[#allocation31 + $0x2a8] sm:$0xff]
        %v5230 = vld [vmem:[#allocation31 + $0x2b0] sm:$0xff]
        %v5231 = vld [vmem:[#allocation31 + $0x2b8] sm:$0xff]
        %v5232 = vld [vmem:[#allocation31 + $0x2c0] sm:$0xff]
        %v5233 = vld [vmem:[#allocation31 + $0x2c8] sm:$0xff]
        %v5234 = vld [vmem:[#allocation31 + $0x2d0] sm:$0xff]
        %v5235 = vld [vmem:[#allocation31 + $0x2d8] sm:$0xff]
        %v5236 = vld [vmem:[#allocation31 + $0x2e0] sm:$0xff]
        %v5237 = vld [vmem:[#allocation31 + $0x2e8] sm:$0xff]
        %v5238 = vld [vmem:[#allocation31 + $0x2f0] sm:$0xff]
        %v5239 = vld [vmem:[#allocation31 + $0x2f8] sm:$0xff]
        %v5240 = vld [vmem:[#allocation31 + $0x300] sm:$0xff]
        %v5241 = vld [vmem:[#allocation31 + $0x308] sm:$0xff]
        %v5242 = vld [vmem:[#allocation31 + $0x310] sm:$0xff]
        %v5243 = vld [vmem:[#allocation31 + $0x318] sm:$0xff]
        %v5244 = vld [vmem:[#allocation31 + $0x320] sm:$0xff]
        %v5245 = vld [vmem:[#allocation31 + $0x328] sm:$0xff]
        %v5246 = vld [vmem:[#allocation31 + $0x330] sm:$0xff]
        %v5247 = vld [vmem:[#allocation31 + $0x338] sm:$0xff]
        %v5248 = vld [vmem:[#allocation31 + $0x340] sm:$0xff]
        %v5249 = vld [vmem:[#allocation31 + $0x348] sm:$0xff]
        %v5250 = vld [vmem:[#allocation31 + $0x350] sm:$0xff]
        %v5251 = vld [vmem:[#allocation31 + $0x358] sm:$0xff]
        %v5252 = vld [vmem:[#allocation31 + $0x360] sm:$0xff]
        %v5253 = vld [vmem:[#allocation31 + $0x368] sm:$0xff]
        %v5254 = vld [vmem:[#allocation31 + $0x370] sm:$0xff]
        %v5255 = vld [vmem:[#allocation31 + $0x378] sm:$0xff]
        %v5256 = vld [vmem:[#allocation31 + $0x380] sm:$0xff]
        %v5257 = vld [vmem:[#allocation31 + $0x388] sm:$0xff]
        %v5258 = vld [vmem:[#allocation31 + $0x390] sm:$0xff]
        %v5259 = vld [vmem:[#allocation31 + $0x398] sm:$0xff]
        %v5260 = vld [vmem:[#allocation31 + $0x3a0] sm:$0xff]
        %v5261 = vld [vmem:[#allocation31 + $0x3a8] sm:$0xff]
        %v5262 = vld [vmem:[#allocation31 + $0x3b0] sm:$0xff]
        %v5263 = vld [vmem:[#allocation31 + $0x3b8] sm:$0xff]
        %v5264 = vld [vmem:[#allocation31 + $0x3c0] sm:$0xff]
        %v5265 = vld [vmem:[#allocation31 + $0x3c8] sm:$0xff]
        %v5266 = vld [vmem:[#allocation31 + $0x3d0] sm:$0xff]
        %v5267 = vld [vmem:[#allocation31 + $0x3d8] sm:$0xff]
        %v5268 = vld [vmem:[#allocation31 + $0x3e0] sm:$0xff]
        %v5269 = vld [vmem:[#allocation31 + $0x3e8] sm:$0xff]
        %v5270 = vld [vmem:[#allocation31 + $0x3f0] sm:$0xff]
        %v5271 = vld [vmem:[#allocation31 + $0x3f8] sm:$0xff]
        %v5272 = vld [vmem:[#allocation33] sm:$0xf]
        %v5274 = vlaneseq
        %v5275 = vshrl.u32 %v5274, 7
        %v5276 = vsub.s32 0, %v5275
        %v5277 = vrot.slane %v5272, %v5276
        %v5278 = vlaneseq
        %v5279 = vshrl.u32 %v5278, 7
        %v5280 = vsub.s32 1, %v5279
        %v5281 = vrot.slane %v5272, %v5280
        %v5282 = vlaneseq
        %v5283 = vshrl.u32 %v5282, 7
        %v5284 = vsub.s32 2, %v5283
        %v5285 = vrot.slane %v5272, %v5284
        %v5286 = vlaneseq
        %v5287 = vshrl.u32 %v5286, 7
        %v5288 = vsub.s32 3, %v5287
        %v5289 = vrot.slane %v5272, %v5288
        %5294 = vmatprep.subr.mxu0 %v5145
        %5295 = vmatpush1.msra.mxu0 %v5144
        %5296 = vmatprep.subr.mxu0 %v5149
        %5297 = vmatpush1.msra.mxu0 %v5148
        %5298 = vmatprep.subr.mxu0 %v5153
        %5299 = vmatpush1.msra.mxu0 %v5152
        %5300 = vmatprep.subr.mxu0 %v5157
        %5301 = vmatpush1.msra.mxu0 %v5156
        %5302 = vmatprep.subr.mxu0 %v5161
        %5303 = vmatpush1.msra.mxu0 %v5160
        %5304 = vmatprep.subr.mxu0 %v5165
        %5305 = vmatpush1.msra.mxu0 %v5164
        %5306 = vmatprep.subr.mxu0 %v5169
        %5307 = vmatpush1.msra.mxu0 %v5168
        %5308 = vmatprep.subr.mxu0 %v5173
        %5309 = vmatpush1.msra.mxu0 %v5172
        %5310 = vmatprep.subr.mxu0 %v5177
        %5311 = vmatpush1.msra.mxu0 %v5176
        %5312 = vmatprep.subr.mxu0 %v5181
        %5313 = vmatpush1.msra.mxu0 %v5180
        %5314 = vmatprep.subr.mxu0 %v5185
        %5315 = vmatpush1.msra.mxu0 %v5184
        %5316 = vmatprep.subr.mxu0 %v5189
        %5317 = vmatpush1.msra.mxu0 %v5188
        %5318 = vmatprep.subr.mxu0 %v5193
        %5319 = vmatpush1.msra.mxu0 %v5192
        %5320 = vmatprep.subr.mxu0 %v5197
        %5321 = vmatpush1.msra.mxu0 %v5196
        %5322 = vmatprep.subr.mxu0 %v5201
        %5323 = vmatpush1.msra.mxu0 %v5200
        %5324 = vmatprep.subr.mxu0 %v5205
        %5325 = vmatpush1.msra.mxu0 %v5204
        %5326 = vmatprep.subr.mxu0 %v5209
        %5327 = vmatpush1.msra.mxu0 %v5208
        %5328 = vmatprep.subr.mxu0 %v5213
        %5329 = vmatpush1.msra.mxu0 %v5212
        %5330 = vmatprep.subr.mxu0 %v5217
        %5331 = vmatpush1.msra.mxu0 %v5216
        %5332 = vmatprep.subr.mxu0 %v5221
        %5333 = vmatpush1.msra.mxu0 %v5220
        %5334 = vmatprep.subr.mxu0 %v5225
        %5335 = vmatpush1.msra.mxu0 %v5224
        %5336 = vmatprep.subr.mxu0 %v5229
        %5337 = vmatpush1.msra.mxu0 %v5228
        %5338 = vmatprep.subr.mxu0 %v5233
        %5339 = vmatpush1.msra.mxu0 %v5232
        %5340 = vmatprep.subr.mxu0 %v5237
        %5341 = vmatpush1.msra.mxu0 %v5236
        %5342 = vmatprep.subr.mxu0 %v5241
        %5343 = vmatpush1.msra.mxu0 %v5240
        %5344 = vmatprep.subr.mxu0 %v5245
        %5345 = vmatpush1.msra.mxu0 %v5244
        %5346 = vmatprep.subr.mxu0 %v5249
        %5347 = vmatpush1.msra.mxu0 %v5248
        %5348 = vmatprep.subr.mxu0 %v5253
        %5349 = vmatpush1.msra.mxu0 %v5252
        %5350 = vmatprep.subr.mxu0 %v5257
        %5351 = vmatpush1.msra.mxu0 %v5256
        %5352 = vmatprep.subr.mxu0 %v5261
        %5353 = vmatpush1.msra.mxu0 %v5260
        %5354 = vmatprep.subr.mxu0 %v5265
        %5355 = vmatpush1.msra.mxu0 %v5264
        %5356 = vmatprep.subr.mxu0 %v5269
        %5357 = vmatpush1.msra.mxu0 %v5268
        %5358 = vmatprep.mubr.f32.mxu0 %v5141
        %5359 = vmatmul.mubr.f32.gmra.mrb[0].mxu0 %v5140
        %v5360 = vpop.f32.mrb[0].mxu0
        %v5361 = vadd.f32 %v5277, %v5360
        %v5362 = vpop.f32.mrb[0].mxu0
        %v5363 = vadd.f32 %v5281, %v5362
        %5364 = vmatprep.mubr.f32.mxu0 %v5143
        %5365 = vmatmul.mubr.f32.gmra.mrb[0].mxu0 %v5142
        %v5366 = vpop.f32.mrb[0].mxu0
        %v5367 = vadd.f32 %v5277, %v5366
        %v5368 = vpop.f32.mrb[0].mxu0
        %v5369 = vadd.f32 %v5281, %v5368
        %5370 = vdwg.mxu0
        %5371 = vmatprep.subr.mxu0 %v5147
        %5372 = vmatpush1.msra.mxu0 %v5146
        %5373 = vmatprep.subr.mxu0 %v5151
        %5374 = vmatpush1.msra.mxu0 %v5150
        %5375 = vmatprep.subr.mxu0 %v5155
        %5376 = vmatpush1.msra.mxu0 %v5154
        %5377 = vmatprep.subr.mxu0 %v5159
        %5378 = vmatpush1.msra.mxu0 %v5158
        %5379 = vmatprep.subr.mxu0 %v5163
        %5380 = vmatpush1.msra.mxu0 %v5162
        %5381 = vmatprep.subr.mxu0 %v5167
        %5382 = vmatpush1.msra.mxu0 %v5166
        %5383 = vmatprep.subr.mxu0 %v5171
        %5384 = vmatpush1.msra.mxu0 %v5170
        %5385 = vmatprep.subr.mxu0 %v5175
        %5386 = vmatpush1.msra.mxu0 %v5174
        %5387 = vmatprep.subr.mxu0 %v5179
        %5388 = vmatpush1.msra.mxu0 %v5178
        %5389 = vmatprep.subr.mxu0 %v5183
        %5390 = vmatpush1.msra.mxu0 %v5182
        %5391 = vmatprep.subr.mxu0 %v5187
        %5392 = vmatpush1.msra.mxu0 %v5186
        %5393 = vmatprep.subr.mxu0 %v5191
        %5394 = vmatpush1.msra.mxu0 %v5190
        %5395 = vmatprep.subr.mxu0 %v5195
        %5396 = vmatpush1.msra.mxu0 %v5194
        %5397 = vmatprep.subr.mxu0 %v5199
        %5398 = vmatpush1.msra.mxu0 %v5198
        %5399 = vmatprep.subr.mxu0 %v5203
        %5400 = vmatpush1.msra.mxu0 %v5202
        %5401 = vmatprep.subr.mxu0 %v5207
        %5402 = vmatpush1.msra.mxu0 %v5206
        %5403 = vmatprep.subr.mxu0 %v5211
        %5404 = vmatpush1.msra.mxu0 %v5210
        %5405 = vmatprep.subr.mxu0 %v5215
        %5406 = vmatpush1.msra.mxu0 %v5214
        %5407 = vmatprep.subr.mxu0 %v5219
        %5408 = vmatpush1.msra.mxu0 %v5218
        %5409 = vmatprep.subr.mxu0 %v5223
        %5410 = vmatpush1.msra.mxu0 %v5222
        %5411 = vmatprep.subr.mxu0 %v5227
        %5412 = vmatpush1.msra.mxu0 %v5226
        %5413 = vmatprep.subr.mxu0 %v5231
        %5414 = vmatpush1.msra.mxu0 %v5230
        %5415 = vmatprep.subr.mxu0 %v5235
        %5416 = vmatpush1.msra.mxu0 %v5234
        %5417 = vmatprep.subr.mxu0 %v5239
        %5418 = vmatpush1.msra.mxu0 %v5238
        %5419 = vmatprep.subr.mxu0 %v5243
        %5420 = vmatpush1.msra.mxu0 %v5242
        %5421 = vmatprep.subr.mxu0 %v5247
        %5422 = vmatpush1.msra.mxu0 %v5246
        %5423 = vmatprep.subr.mxu0 %v5251
        %5424 = vmatpush1.msra.mxu0 %v5250
        %5425 = vmatprep.subr.mxu0 %v5255
        %5426 = vmatpush1.msra.mxu0 %v5254
        %5427 = vmatprep.subr.mxu0 %v5259
        %5428 = vmatpush1.msra.mxu0 %v5258
        %5429 = vmatprep.subr.mxu0 %v5263
        %5430 = vmatpush1.msra.mxu0 %v5262
        %5431 = vmatprep.subr.mxu0 %v5267
        %5432 = vmatpush1.msra.mxu0 %v5266
        %5433 = vmatprep.subr.mxu0 %v5271
        %5434 = vmatpush1.msra.mxu0 %v5270
        %5435 = vmatprep.mubr.f32.mxu0 %v5141
        %5436 = vmatmul.mubr.f32.gmra.mrb[0].mxu0 %v5140
        %v5437 = vpop.f32.mrb[0].mxu0
        %v5438 = vadd.f32 %v5285, %v5437
        %v5439 = vpop.f32.mrb[0].mxu0
        %v5440 = vadd.f32 %v5289, %v5439
        %5441 = vmatprep.mubr.f32.mxu0 %v5143
        %5442 = vmatmul.mubr.f32.gmra.mrb[0].mxu0 %v5142
        %v5443 = vpop.f32.mrb[0].mxu0
        %v5444 = vadd.f32 %v5285, %v5443
        %v5445 = vpop.f32.mrb[0].mxu0
        %v5446 = vadd.f32 %v5289, %v5445
        %5447 = vdwg.mxu0
        %5448 = vmatprep.subr.mxu0 %v3916
        %5449 = vmatpush1.msra.mxu0 %v3915
        %5450 = vmatprep.subr.mxu0 %v3918
        %5451 = vmatpush1.msra.mxu0 %v3917
        %5452 = vmatprep.subr.mxu0 %v3920
        %5453 = vmatpush1.msra.mxu0 %v3919
        %5454 = vmatprep.subr.mxu0 %v3922
        %5455 = vmatpush1.msra.mxu0 %v3921
        %5456 = vmatprep.subr.mxu0 %v3924
        %5457 = vmatpush1.msra.mxu0 %v3923
        %5458 = vmatprep.subr.mxu0 %v3926
        %5459 = vmatpush1.msra.mxu0 %v3925
        %5460 = vmatprep.subr.mxu0 %v3928
        %5461 = vmatpush1.msra.mxu0 %v3927
        %5462 = vmatprep.subr.mxu0 %v3930
        %5463 = vmatpush1.msra.mxu0 %v3929
        %5464 = vmatprep.subr.mxu0 %v3932
        %5465 = vmatpush1.msra.mxu0 %v3931
        %5466 = vmatprep.subr.mxu0 %v3934
        %5467 = vmatpush1.msra.mxu0 %v3933
        %5468 = vmatprep.subr.mxu0 %v3936
        %5469 = vmatpush1.msra.mxu0 %v3935
        %5470 = vmatprep.subr.mxu0 %v3938
        %5471 = vmatpush1.msra.mxu0 %v3937
        %5472 = vmatprep.subr.mxu0 %v3940
        %5473 = vmatpush1.msra.mxu0 %v3939
        %5474 = vmatprep.subr.mxu0 %v3942
        %5475 = vmatpush1.msra.mxu0 %v3941
        %5476 = vmatprep.subr.mxu0 %v3944
        %5477 = vmatpush1.msra.mxu0 %v3943
        %5478 = vmatprep.subr.mxu0 %v3946
        %5479 = vmatpush1.msra.mxu0 %v3945
        %5480 = vmatprep.subr.mxu0 %v3948
        %5481 = vmatpush1.msra.mxu0 %v3947
        %5482 = vmatprep.subr.mxu0 %v3950
        %5483 = vmatpush1.msra.mxu0 %v3949
        %5484 = vmatprep.subr.mxu0 %v3952
        %5485 = vmatpush1.msra.mxu0 %v3951
        %5486 = vmatprep.subr.mxu0 %v3954
        %5487 = vmatpush1.msra.mxu0 %v3953
        %5488 = vmatprep.subr.mxu0 %v3956
        %5489 = vmatpush1.msra.mxu0 %v3955
        %5490 = vmatprep.subr.mxu0 %v3958
        %5491 = vmatpush1.msra.mxu0 %v3957
        %5492 = vmatprep.subr.mxu0 %v3960
        %5493 = vmatpush1.msra.mxu0 %v3959
        %5494 = vmatprep.subr.mxu0 %v3962
        %5495 = vmatpush1.msra.mxu0 %v3961
        %5496 = vmatprep.subr.mxu0 %v3964
        %5497 = vmatpush1.msra.mxu0 %v3963
        %5498 = vmatprep.subr.mxu0 %v3966
        %5499 = vmatpush1.msra.mxu0 %v3965
        %5500 = vmatprep.subr.mxu0 %v3968
        %5501 = vmatpush1.msra.mxu0 %v3967
        %5502 = vmatprep.subr.mxu0 %v3970
        %5503 = vmatpush1.msra.mxu0 %v3969
        %5504 = vmatprep.subr.mxu0 %v3972
        %5505 = vmatpush1.msra.mxu0 %v3971
        %5506 = vmatprep.subr.mxu0 %v3974
        %5507 = vmatpush1.msra.mxu0 %v3973
        %5508 = vmatprep.subr.mxu0 %v3976
        %5509 = vmatpush1.msra.mxu0 %v3975
        %5510 = vmatprep.subr.mxu0 %v3978
        %5511 = vmatpush1.msra.mxu0 %v3977
        %5512 = vmatprep.mubr.f32.mxu0 %v5363
        %5513 = vmatmul.mubr.f32.gmra.mrb[0].mxu0 %v5361
        %v5514 = vpop.f32.mrb[0].mxu0
        %v5515 = vadd.f32 0.0, %v5514
        %v5516 = vpop.f32.mrb[0].mxu0
        %v5517 = vadd.f32 0.0, %v5516
        %5518 = vmatprep.mubr.f32.mxu0 %v5369
        %5519 = vmatmul.mubr.f32.gmra.mrb[0].mxu0 %v5367
        %v5520 = vpop.f32.mrb[0].mxu0
        %v5521 = vadd.f32 0.0, %v5520
        %v5522 = vpop.f32.mrb[0].mxu0
        %v5523 = vadd.f32 0.0, %v5522
        %5524 = vdwg.mxu0
        %5525 = vmatprep.subr.mxu0 %v3980
        %5526 = vmatpush1.msra.mxu0 %v3979
        %5527 = vmatprep.subr.mxu0 %v3982
        %5528 = vmatpush1.msra.mxu0 %v3981
        %5529 = vmatprep.subr.mxu0 %v3984
        %5530 = vmatpush1.msra.mxu0 %v3983
        %5531 = vmatprep.subr.mxu0 %v3986
        %5532 = vmatpush1.msra.mxu0 %v3985
        %5533 = vmatprep.subr.mxu0 %v3988
        %5534 = vmatpush1.msra.mxu0 %v3987
        %5535 = vmatprep.subr.mxu0 %v3990
        %5536 = vmatpush1.msra.mxu0 %v3989
        %5537 = vmatprep.subr.mxu0 %v3992
        %5538 = vmatpush1.msra.mxu0 %v3991
        %5539 = vmatprep.subr.mxu0 %v3994
        %5540 = vmatpush1.msra.mxu0 %v3993
        %5541 = vmatprep.subr.mxu0 %v3996
        %5542 = vmatpush1.msra.mxu0 %v3995
        %5543 = vmatprep.subr.mxu0 %v3998
        %5544 = vmatpush1.msra.mxu0 %v3997
        %5545 = vmatprep.subr.mxu0 %v4000
        %5546 = vmatpush1.msra.mxu0 %v3999
        %5547 = vmatprep.subr.mxu0 %v4002
        %5548 = vmatpush1.msra.mxu0 %v4001
        %5549 = vmatprep.subr.mxu0 %v4004
        %5550 = vmatpush1.msra.mxu0 %v4003
        %5551 = vmatprep.subr.mxu0 %v4006
        %5552 = vmatpush1.msra.mxu0 %v4005
        %5553 = vmatprep.subr.mxu0 %v4008
        %5554 = vmatpush1.msra.mxu0 %v4007
        %5555 = vmatprep.subr.mxu0 %v4010
        %5556 = vmatpush1.msra.mxu0 %v4009
        %5557 = vmatprep.subr.mxu0 %v4012
        %5558 = vmatpush1.msra.mxu0 %v4011
        %5559 = vmatprep.subr.mxu0 %v4014
        %5560 = vmatpush1.msra.mxu0 %v4013
        %5561 = vmatprep.subr.mxu0 %v4016
        %5562 = vmatpush1.msra.mxu0 %v4015
        %5563 = vmatprep.subr.mxu0 %v4018
        %5564 = vmatpush1.msra.mxu0 %v4017
        %5565 = vmatprep.subr.mxu0 %v4020
        %5566 = vmatpush1.msra.mxu0 %v4019
        %5567 = vmatprep.subr.mxu0 %v4022
        %5568 = vmatpush1.msra.mxu0 %v4021
        %5569 = vmatprep.subr.mxu0 %v4024
        %5570 = vmatpush1.msra.mxu0 %v4023
        %5571 = vmatprep.subr.mxu0 %v4026
        %5572 = vmatpush1.msra.mxu0 %v4025
        %5573 = vmatprep.subr.mxu0 %v4028
        %5574 = vmatpush1.msra.mxu0 %v4027
        %5575 = vmatprep.subr.mxu0 %v4030
        %5576 = vmatpush1.msra.mxu0 %v4029
        %5577 = vmatprep.subr.mxu0 %v4032
        %5578 = vmatpush1.msra.mxu0 %v4031
        %5579 = vmatprep.subr.mxu0 %v4034
        %5580 = vmatpush1.msra.mxu0 %v4033
        %5581 = vmatprep.subr.mxu0 %v4036
        %5582 = vmatpush1.msra.mxu0 %v4035
        %5583 = vmatprep.subr.mxu0 %v4038
        %5584 = vmatpush1.msra.mxu0 %v4037
        %5585 = vmatprep.subr.mxu0 %v4040
        %5586 = vmatpush1.msra.mxu0 %v4039
        %5587 = vmatprep.subr.mxu0 %v4042
        %5588 = vmatpush1.msra.mxu0 %v4041
        %5589 = vmatprep.mubr.f32.mxu0 %v5440
        %5590 = vmatmul.mubr.f32.gmra.mrb[0].mxu0 %v5438
        %v5591 = vpop.f32.mrb[0].mxu0
        %v5592 = vadd.f32 %v5515, %v5591
        %v5593 = vpop.f32.mrb[0].mxu0
        %v5594 = vadd.f32 %v5517, %v5593
        %5595 = vmatprep.mubr.f32.mxu0 %v5446
        %5596 = vmatmul.mubr.f32.gmra.mrb[0].mxu0 %v5444
        %v5597 = vpop.f32.mrb[0].mxu0
        %v5598 = vadd.f32 %v5521, %v5597
        %v5599 = vpop.f32.mrb[0].mxu0
        %v5600 = vadd.f32 %v5523, %v5599
        %5601 = vdwg.mxu0
        %5602 = vmatprep.subr.mxu0 %v4198
        %5603 = vmatpush1.msra.mxu0 %v4197
        %5604 = vmatprep.subr.mxu0 %v4200
        %5605 = vmatpush1.msra.mxu0 %v4199
        %5606 = vmatprep.subr.mxu0 %v4202
        %5607 = vmatpush1.msra.mxu0 %v4201
        %5608 = vmatprep.subr.mxu0 %v4204
        %5609 = vmatpush1.msra.mxu0 %v4203
        %5610 = vmatprep.subr.mxu0 %v4206
        %5611 = vmatpush1.msra.mxu0 %v4205
        %5612 = vmatprep.subr.mxu0 %v4208
        %5613 = vmatpush1.msra.mxu0 %v4207
        %5614 = vmatprep.subr.mxu0 %v4210
        %5615 = vmatpush1.msra.mxu0 %v4209
        %5616 = vmatprep.subr.mxu0 %v4212
        %5617 = vmatpush1.msra.mxu0 %v4211
        %5618 = vmatprep.subr.mxu0 %v4214
        %5619 = vmatpush1.msra.mxu0 %v4213
        %5620 = vmatprep.subr.mxu0 %v4216
        %5621 = vmatpush1.msra.mxu0 %v4215
        %5622 = vmatprep.subr.mxu0 %v4218
        %5623 = vmatpush1.msra.mxu0 %v4217
        %5624 = vmatprep.subr.mxu0 %v4220
        %5625 = vmatpush1.msra.mxu0 %v4219
        %5626 = vmatprep.subr.mxu0 %v4222
        %5627 = vmatpush1.msra.mxu0 %v4221
        %5628 = vmatprep.subr.mxu0 %v4224
        %5629 = vmatpush1.msra.mxu0 %v4223
        %5630 = vmatprep.subr.mxu0 %v4226
        %5631 = vmatpush1.msra.mxu0 %v4225
        %5632 = vmatprep.subr.mxu0 %v4228
        %5633 = vmatpush1.msra.mxu0 %v4227
        %5634 = vmatprep.subr.mxu0 %v4230
        %5635 = vmatpush1.msra.mxu0 %v4229
        %5636 = vmatprep.subr.mxu0 %v4232
        %5637 = vmatpush1.msra.mxu0 %v4231
        %5638 = vmatprep.subr.mxu0 %v4234
        %5639 = vmatpush1.msra.mxu0 %v4233
        %5640 = vmatprep.subr.mxu0 %v4236
        %5641 = vmatpush1.msra.mxu0 %v4235
        %5642 = vmatprep.subr.mxu0 %v4238
        %5643 = vmatpush1.msra.mxu0 %v4237
        %5644 = vmatprep.subr.mxu0 %v4240
        %5645 = vmatpush1.msra.mxu0 %v4239
        %5646 = vmatprep.subr.mxu0 %v4242
        %5647 = vmatpush1.msra.mxu0 %v4241
        %5648 = vmatprep.subr.mxu0 %v4244
        %5649 = vmatpush1.msra.mxu0 %v4243
        %5650 = vmatprep.subr.mxu0 %v4246
        %5651 = vmatpush1.msra.mxu0 %v4245
        %5652 = vmatprep.subr.mxu0 %v4248
        %5653 = vmatpush1.msra.mxu0 %v4247
        %5654 = vmatprep.subr.mxu0 %v4250
        %5655 = vmatpush1.msra.mxu0 %v4249
        %5656 = vmatprep.subr.mxu0 %v4252
        %5657 = vmatpush1.msra.mxu0 %v4251
        %5658 = vmatprep.subr.mxu0 %v4254
        %5659 = vmatpush1.msra.mxu0 %v4253
        %5660 = vmatprep.subr.mxu0 %v4256
        %5661 = vmatpush1.msra.mxu0 %v4255
        %5662 = vmatprep.subr.mxu0 %v4258
        %5663 = vmatpush1.msra.mxu0 %v4257
        %5664 = vmatprep.subr.mxu0 %v4260
        %5665 = vmatpush1.msra.mxu0 %v4259
        %5666 = vmatprep.mubr.f32.mxu0 %v5363
        %5667 = vmatmul.mubr.f32.gmra.mrb[0].mxu0 %v5361
        %v5668 = vpop.f32.mrb[0].mxu0
        %v5669 = vadd.f32 0.0, %v5668
        %v5670 = vpop.f32.mrb[0].mxu0
        %v5671 = vadd.f32 0.0, %v5670
        %5672 = vmatprep.mubr.f32.mxu0 %v5369
        %5673 = vmatmul.mubr.f32.gmra.mrb[0].mxu0 %v5367
        %v5674 = vpop.f32.mrb[0].mxu0
        %v5675 = vadd.f32 0.0, %v5674
        %v5676 = vpop.f32.mrb[0].mxu0
        %v5677 = vadd.f32 0.0, %v5676
        %5678 = vdwg.mxu0
        %5679 = vmatprep.subr.mxu0 %v4262
        %5680 = vmatpush1.msra.mxu0 %v4261
        %5681 = vmatprep.subr.mxu0 %v4264
        %5682 = vmatpush1.msra.mxu0 %v4263
        %5683 = vmatprep.subr.mxu0 %v4266
        %5684 = vmatpush1.msra.mxu0 %v4265
        %5685 = vmatprep.subr.mxu0 %v4268
        %5686 = vmatpush1.msra.mxu0 %v4267
        %5687 = vmatprep.subr.mxu0 %v4270
        %5688 = vmatpush1.msra.mxu0 %v4269
        %5689 = vmatprep.subr.mxu0 %v4272
        %5690 = vmatpush1.msra.mxu0 %v4271
        %5691 = vmatprep.subr.mxu0 %v4274
        %5692 = vmatpush1.msra.mxu0 %v4273
        %5693 = vmatprep.subr.mxu0 %v4276
        %5694 = vmatpush1.msra.mxu0 %v4275
        %5695 = vmatprep.subr.mxu0 %v4278
        %5696 = vmatpush1.msra.mxu0 %v4277
        %5697 = vmatprep.subr.mxu0 %v4280
        %5698 = vmatpush1.msra.mxu0 %v4279
        %5699 = vmatprep.subr.mxu0 %v4282
        %5700 = vmatpush1.msra.mxu0 %v4281
        %5701 = vmatprep.subr.mxu0 %v4284
        %5702 = vmatpush1.msra.mxu0 %v4283
        %5703 = vmatprep.subr.mxu0 %v4286
        %5704 = vmatpush1.msra.mxu0 %v4285
        %5705 = vmatprep.subr.mxu0 %v4288
        %5706 = vmatpush1.msra.mxu0 %v4287
        %5707 = vmatprep.subr.mxu0 %v4290
        %5708 = vmatpush1.msra.mxu0 %v4289
        %5709 = vmatprep.subr.mxu0 %v4292
        %5710 = vmatpush1.msra.mxu0 %v4291
        %5711 = vmatprep.subr.mxu0 %v4294
        %5712 = vmatpush1.msra.mxu0 %v4293
        %5713 = vmatprep.subr.mxu0 %v4296
        %5714 = vmatpush1.msra.mxu0 %v4295
        %5715 = vmatprep.subr.mxu0 %v4298
        %5716 = vmatpush1.msra.mxu0 %v4297
        %5717 = vmatprep.subr.mxu0 %v4300
        %5718 = vmatpush1.msra.mxu0 %v4299
        %5719 = vmatprep.subr.mxu0 %v4302
        %5720 = vmatpush1.msra.mxu0 %v4301
        %5721 = vmatprep.subr.mxu0 %v4304
        %5722 = vmatpush1.msra.mxu0 %v4303
        %5723 = vmatprep.subr.mxu0 %v4306
        %5724 = vmatpush1.msra.mxu0 %v4305
        %5725 = vmatprep.subr.mxu0 %v4308
        %5726 = vmatpush1.msra.mxu0 %v4307
        %5727 = vmatprep.subr.mxu0 %v4310
        %5728 = vmatpush1.msra.mxu0 %v4309
        %5729 = vmatprep.subr.mxu0 %v4312
        %5730 = vmatpush1.msra.mxu0 %v4311
        %5731 = vmatprep.subr.mxu0 %v4314
        %5732 = vmatpush1.msra.mxu0 %v4313
        %5733 = vmatprep.subr.mxu0 %v4316
        %5734 = vmatpush1.msra.mxu0 %v4315
        %5735 = vmatprep.subr.mxu0 %v4318
        %5736 = vmatpush1.msra.mxu0 %v4317
        %5737 = vmatprep.subr.mxu0 %v4320
        %5738 = vmatpush1.msra.mxu0 %v4319
        %5739 = vmatprep.subr.mxu0 %v4322
        %5740 = vmatpush1.msra.mxu0 %v4321
        %5741 = vmatprep.subr.mxu0 %v4324
        %5742 = vmatpush1.msra.mxu0 %v4323
        %5743 = vmatprep.mubr.f32.mxu0 %v5440
        %5744 = vmatmul.mubr.f32.gmra.mrb[0].mxu0 %v5438
        %v5745 = vpop.f32.mrb[0].mxu0
        %v5746 = vadd.f32 %v5669, %v5745
        %v5747 = vpop.f32.mrb[0].mxu0
        %v5748 = vadd.f32 %v5671, %v5747
        %5749 = vmatprep.mubr.f32.mxu0 %v5446
        %5750 = vmatmul.mubr.f32.gmra.mrb[0].mxu0 %v5444
        %v5751 = vpop.f32.mrb[0].mxu0
        %v5752 = vadd.f32 %v5675, %v5751
        %v5753 = vpop.f32.mrb[0].mxu0
        %v5754 = vadd.f32 %v5677, %v5753
        %5755 = vdwg.mxu0
        %v5756 = vmul.f32 %v5592, %v5746
        %v5757 = vmul.f32 %v5594, %v5748
        %v5758 = vmul.f32 %v5598, %v5752
        %v5759 = vmul.f32 %v5600, %v5754
        %v5760 = vld [vmem:[#allocation34] sm:$0xff]
        %v5761 = vld [vmem:[#allocation34 + $0x8] sm:$0xff]
        %v5762 = vld [vmem:[#allocation34 + $0x10] sm:$0xff]
        %v5763 = vld [vmem:[#allocation34 + $0x18] sm:$0xff]
        %v5764 = vld [vmem:[#allocation34 + $0x20] sm:$0xff]
        %v5765 = vld [vmem:[#allocation34 + $0x28] sm:$0xff]
        %v5766 = vld [vmem:[#allocation34 + $0x30] sm:$0xff]
        %v5767 = vld [vmem:[#allocation34 + $0x38] sm:$0xff]
        %v5768 = vld [vmem:[#allocation34 + $0x40] sm:$0xff]
        %v5769 = vld [vmem:[#allocation34 + $0x48] sm:$0xff]
        %v5770 = vld [vmem:[#allocation34 + $0x50] sm:$0xff]
        %v5771 = vld [vmem:[#allocation34 + $0x58] sm:$0xff]
        %v5772 = vld [vmem:[#allocation34 + $0x60] sm:$0xff]
        %v5773 = vld [vmem:[#allocation34 + $0x68] sm:$0xff]
        %v5774 = vld [vmem:[#allocation34 + $0x70] sm:$0xff]
        %v5775 = vld [vmem:[#allocation34 + $0x78] sm:$0xff]
        %v5776 = vld [vmem:[#allocation34 + $0x80] sm:$0xff]
        %v5777 = vld [vmem:[#allocation34 + $0x88] sm:$0xff]
        %v5778 = vld [vmem:[#allocation34 + $0x90] sm:$0xff]
        %v5779 = vld [vmem:[#allocation34 + $0x98] sm:$0xff]
        %v5780 = vld [vmem:[#allocation34 + $0xa0] sm:$0xff]
        %v5781 = vld [vmem:[#allocation34 + $0xa8] sm:$0xff]
        %v5782 = vld [vmem:[#allocation34 + $0xb0] sm:$0xff]
        %v5783 = vld [vmem:[#allocation34 + $0xb8] sm:$0xff]
        %v5784 = vld [vmem:[#allocation34 + $0xc0] sm:$0xff]
        %v5785 = vld [vmem:[#allocation34 + $0xc8] sm:$0xff]
        %v5786 = vld [vmem:[#allocation34 + $0xd0] sm:$0xff]
        %v5787 = vld [vmem:[#allocation34 + $0xd8] sm:$0xff]
        %v5788 = vld [vmem:[#allocation34 + $0xe0] sm:$0xff]
        %v5789 = vld [vmem:[#allocation34 + $0xe8] sm:$0xff]
        %v5790 = vld [vmem:[#allocation34 + $0xf0] sm:$0xff]
        %v5791 = vld [vmem:[#allocation34 + $0xf8] sm:$0xff]
        %v5792 = vld [vmem:[#allocation34 + $0x100] sm:$0xff]
        %v5793 = vld [vmem:[#allocation34 + $0x108] sm:$0xff]
        %v5794 = vld [vmem:[#allocation34 + $0x110] sm:$0xff]
        %v5795 = vld [vmem:[#allocation34 + $0x118] sm:$0xff]
        %v5796 = vld [vmem:[#allocation34 + $0x120] sm:$0xff]
        %v5797 = vld [vmem:[#allocation34 + $0x128] sm:$0xff]
        %v5798 = vld [vmem:[#allocation34 + $0x130] sm:$0xff]
        %v5799 = vld [vmem:[#allocation34 + $0x138] sm:$0xff]
        %v5800 = vld [vmem:[#allocation34 + $0x140] sm:$0xff]
        %v5801 = vld [vmem:[#allocation34 + $0x148] sm:$0xff]
        %v5802 = vld [vmem:[#allocation34 + $0x150] sm:$0xff]
        %v5803 = vld [vmem:[#allocation34 + $0x158] sm:$0xff]
        %v5804 = vld [vmem:[#allocation34 + $0x160] sm:$0xff]
        %v5805 = vld [vmem:[#allocation34 + $0x168] sm:$0xff]
        %v5806 = vld [vmem:[#allocation34 + $0x170] sm:$0xff]
        %v5807 = vld [vmem:[#allocation34 + $0x178] sm:$0xff]
        %v5808 = vld [vmem:[#allocation34 + $0x180] sm:$0xff]
        %v5809 = vld [vmem:[#allocation34 + $0x188] sm:$0xff]
        %v5810 = vld [vmem:[#allocation34 + $0x190] sm:$0xff]
        %v5811 = vld [vmem:[#allocation34 + $0x198] sm:$0xff]
        %v5812 = vld [vmem:[#allocation34 + $0x1a0] sm:$0xff]
        %v5813 = vld [vmem:[#allocation34 + $0x1a8] sm:$0xff]
        %v5814 = vld [vmem:[#allocation34 + $0x1b0] sm:$0xff]
        %v5815 = vld [vmem:[#allocation34 + $0x1b8] sm:$0xff]
        %v5816 = vld [vmem:[#allocation34 + $0x1c0] sm:$0xff]
        %v5817 = vld [vmem:[#allocation34 + $0x1c8] sm:$0xff]
        %v5818 = vld [vmem:[#allocation34 + $0x1d0] sm:$0xff]
        %v5819 = vld [vmem:[#allocation34 + $0x1d8] sm:$0xff]
        %v5820 = vld [vmem:[#allocation34 + $0x1e0] sm:$0xff]
        %v5821 = vld [vmem:[#allocation34 + $0x1e8] sm:$0xff]
        %v5822 = vld [vmem:[#allocation34 + $0x1f0] sm:$0xff]
        %v5823 = vld [vmem:[#allocation34 + $0x1f8] sm:$0xff]
        %v5824 = vld [vmem:[#allocation36] sm:$0x3]
        %v5826 = vlaneseq
        %v5827 = vshrl.u32 %v5826, 7
        %v5828 = vsub.s32 0, %v5827
        %v5829 = vrot.slane %v5824, %v5828
        %v5830 = vlaneseq
        %v5831 = vshrl.u32 %v5830, 7
        %v5832 = vsub.s32 1, %v5831
        %v5833 = vrot.slane %v5824, %v5832
        %5836 = vmatprep.subr.mxu0 %v5761
        %5837 = vmatpush1.msra.mxu0 %v5760
        %5838 = vmatprep.subr.mxu0 %v5763
        %5839 = vmatpush1.msra.mxu0 %v5762
        %5840 = vmatprep.subr.mxu0 %v5765
        %5841 = vmatpush1.msra.mxu0 %v5764
        %5842 = vmatprep.subr.mxu0 %v5767
        %5843 = vmatpush1.msra.mxu0 %v5766
        %5844 = vmatprep.subr.mxu0 %v5769
        %5845 = vmatpush1.msra.mxu0 %v5768
        %5846 = vmatprep.subr.mxu0 %v5771
        %5847 = vmatpush1.msra.mxu0 %v5770
        %5848 = vmatprep.subr.mxu0 %v5773
        %5849 = vmatpush1.msra.mxu0 %v5772
        %5850 = vmatprep.subr.mxu0 %v5775
        %5851 = vmatpush1.msra.mxu0 %v5774
        %5852 = vmatprep.subr.mxu0 %v5777
        %5853 = vmatpush1.msra.mxu0 %v5776
        %5854 = vmatprep.subr.mxu0 %v5779
        %5855 = vmatpush1.msra.mxu0 %v5778
        %5856 = vmatprep.subr.mxu0 %v5781
        %5857 = vmatpush1.msra.mxu0 %v5780
        %5858 = vmatprep.subr.mxu0 %v5783
        %5859 = vmatpush1.msra.mxu0 %v5782
        %5860 = vmatprep.subr.mxu0 %v5785
        %5861 = vmatpush1.msra.mxu0 %v5784
        %5862 = vmatprep.subr.mxu0 %v5787
        %5863 = vmatpush1.msra.mxu0 %v5786
        %5864 = vmatprep.subr.mxu0 %v5789
        %5865 = vmatpush1.msra.mxu0 %v5788
        %5866 = vmatprep.subr.mxu0 %v5791
        %5867 = vmatpush1.msra.mxu0 %v5790
        %5868 = vmatprep.subr.mxu0 %v5793
        %5869 = vmatpush1.msra.mxu0 %v5792
        %5870 = vmatprep.subr.mxu0 %v5795
        %5871 = vmatpush1.msra.mxu0 %v5794
        %5872 = vmatprep.subr.mxu0 %v5797
        %5873 = vmatpush1.msra.mxu0 %v5796
        %5874 = vmatprep.subr.mxu0 %v5799
        %5875 = vmatpush1.msra.mxu0 %v5798
        %5876 = vmatprep.subr.mxu0 %v5801
        %5877 = vmatpush1.msra.mxu0 %v5800
        %5878 = vmatprep.subr.mxu0 %v5803
        %5879 = vmatpush1.msra.mxu0 %v5802
        %5880 = vmatprep.subr.mxu0 %v5805
        %5881 = vmatpush1.msra.mxu0 %v5804
        %5882 = vmatprep.subr.mxu0 %v5807
        %5883 = vmatpush1.msra.mxu0 %v5806
        %5884 = vmatprep.subr.mxu0 %v5809
        %5885 = vmatpush1.msra.mxu0 %v5808
        %5886 = vmatprep.subr.mxu0 %v5811
        %5887 = vmatpush1.msra.mxu0 %v5810
        %5888 = vmatprep.subr.mxu0 %v5813
        %5889 = vmatpush1.msra.mxu0 %v5812
        %5890 = vmatprep.subr.mxu0 %v5815
        %5891 = vmatpush1.msra.mxu0 %v5814
        %5892 = vmatprep.subr.mxu0 %v5817
        %5893 = vmatpush1.msra.mxu0 %v5816
        %5894 = vmatprep.subr.mxu0 %v5819
        %5895 = vmatpush1.msra.mxu0 %v5818
        %5896 = vmatprep.subr.mxu0 %v5821
        %5897 = vmatpush1.msra.mxu0 %v5820
        %5898 = vmatprep.subr.mxu0 %v5823
        %5899 = vmatpush1.msra.mxu0 %v5822
        %5900 = vmatprep.mubr.f32.mxu0 %v5757
        %5901 = vmatmul.mubr.f32.gmra.mrb[0].mxu0 %v5756
        %v5902 = vpop.f32.mrb[0].mxu0
        %v5903 = vadd.f32 %v5829, %v5902
        %v5904 = vpop.f32.mrb[0].mxu0
        %v5905 = vadd.f32 %v5833, %v5904
        %5906 = vmatprep.mubr.f32.mxu0 %v5759
        %5907 = vmatmul.mubr.f32.gmra.mrb[0].mxu0 %v5758
        %v5908 = vpop.f32.mrb[0].mxu0
        %v5909 = vadd.f32 %v5829, %v5908
        %v5910 = vpop.f32.mrb[0].mxu0
        %v5911 = vadd.f32 %v5833, %v5910
        %5912 = vdwg.mxu0
        %v5913 = vld [vmem:[#allocation39] sm:$0x3]
        %v5915 = vlaneseq
        %v5916 = vshrl.u32 %v5915, 7
        %v5917 = vsub.s32 0, %v5916
        %v5918 = vrot.slane %v5913, %v5917
        %v5919 = vlaneseq
        %v5920 = vshrl.u32 %v5919, 7
        %v5921 = vsub.s32 1, %v5920
        %v5922 = vrot.slane %v5913, %v5921
        %v5925 = vmul.f32 %v5903, %v5918
        %v5926 = vmul.f32 %v5905, %v5922
        %v5927 = vmul.f32 %v5909, %v5918
        %v5928 = vmul.f32 %v5911, %v5922
        %v5929 = vadd.f32 %v4938, %v5925
        %v5930 = vadd.f32 %v4939, %v5926
        %v5931 = vadd.f32 %v4940, %v5927
        %v5932 = vadd.f32 %v4941, %v5928
        %v5937 = vrot.slane %v5929, 7
        %v5938 = vrot.slane %v5930, 7
        %v5939 = vrot.slane %v5931, 7
        %v5940 = vsel %vm1185, %v5937, %v5939
        %v5941 = vrot.slane %v5932, 7
        %v5942 = vsel %vm1185, %v5938, %v5941
        %v5949 = vsel %vm1185, 0.0, %v5937
        %v5950 = vsel %vm1185, 0.0, %v5938
        %v5951 = vsel %vm1185, %v5939, 0.0
        %v5952 = vsel %vm1185, %v5941, 0.0
        %v5953 = vld [vmem:[%s3] sm:$0xff]
        %v5954 = vld [vmem:[%s3 + $0x8] sm:$0xff]
        %v5955 = vld [vmem:[%s3 + $0x10] sm:$0xff]
        %v5956 = vld [vmem:[%s3 + $0x18] sm:$0xff]
        %v5957 = vld [vmem:[%s3 + $0x20] sm:$0xff]
        %v5958 = vld [vmem:[%s3 + $0x28] sm:$0xff]
        %v5959 = vld [vmem:[%s3 + $0x30] sm:$0xff]
        %v5960 = vld [vmem:[%s3 + $0x38] sm:$0xff]
        %v5961 = vld [vmem:[%s3 + $0x40] sm:$0xff]
        %v5962 = vld [vmem:[%s3 + $0x48] sm:$0xff]
        %v5963 = vld [vmem:[%s3 + $0x50] sm:$0xff]
        %v5964 = vld [vmem:[%s3 + $0x58] sm:$0xff]
        %v5965 = vld [vmem:[%s3 + $0x60] sm:$0xff]
        %v5966 = vld [vmem:[%s3 + $0x68] sm:$0xff]
        %v5967 = vld [vmem:[%s3 + $0x70] sm:$0xff]
        %v5968 = vld [vmem:[%s3 + $0x78] sm:$0xff]
        %v5969 = vld [vmem:[%s3 + $0x80] sm:$0xff]
        %v5970 = vld [vmem:[%s3 + $0x88] sm:$0xff]
        %v5971 = vld [vmem:[%s3 + $0x90] sm:$0xff]
        %v5972 = vld [vmem:[%s3 + $0x98] sm:$0xff]
        %v5973 = vld [vmem:[%s3 + $0xa0] sm:$0xff]
        %v5974 = vld [vmem:[%s3 + $0xa8] sm:$0xff]
        %v5975 = vld [vmem:[%s3 + $0xb0] sm:$0xff]
        %v5976 = vld [vmem:[%s3 + $0xb8] sm:$0xff]
        %v5977 = vld [vmem:[%s3 + $0xc0] sm:$0xff]
        %v5978 = vld [vmem:[%s3 + $0xc8] sm:$0xff]
        %v5979 = vld [vmem:[%s3 + $0xd0] sm:$0xff]
        %v5980 = vld [vmem:[%s3 + $0xd8] sm:$0xff]
        %v5981 = vld [vmem:[%s3 + $0xe0] sm:$0xff]
        %v5982 = vld [vmem:[%s3 + $0xe8] sm:$0xff]
        %v5983 = vld [vmem:[%s3 + $0xf0] sm:$0xff]
        %v5984 = vld [vmem:[%s3 + $0xf8] sm:$0xff]
        %s5985 = scalar_lea.vmem %s3, 256
        %v5986 = vld [vmem:[%s5985] sm:$0xff]
        %v5987 = vld [vmem:[%s5985 + $0x8] sm:$0xff]
        %v5988 = vld [vmem:[%s5985 + $0x10] sm:$0xff]
        %v5989 = vld [vmem:[%s5985 + $0x18] sm:$0xff]
        %v5990 = vld [vmem:[%s5985 + $0x20] sm:$0xff]
        %v5991 = vld [vmem:[%s5985 + $0x28] sm:$0xff]
        %v5992 = vld [vmem:[%s5985 + $0x30] sm:$0xff]
        %v5993 = vld [vmem:[%s5985 + $0x38] sm:$0xff]
        %v5994 = vld [vmem:[%s5985 + $0x40] sm:$0xff]
        %v5995 = vld [vmem:[%s5985 + $0x48] sm:$0xff]
        %v5996 = vld [vmem:[%s5985 + $0x50] sm:$0xff]
        %v5997 = vld [vmem:[%s5985 + $0x58] sm:$0xff]
        %v5998 = vld [vmem:[%s5985 + $0x60] sm:$0xff]
        %v5999 = vld [vmem:[%s5985 + $0x68] sm:$0xff]
        %v6000 = vld [vmem:[%s5985 + $0x70] sm:$0xff]
        %v6001 = vld [vmem:[%s5985 + $0x78] sm:$0xff]
        %v6002 = vld [vmem:[%s5985 + $0x80] sm:$0xff]
        %v6003 = vld [vmem:[%s5985 + $0x88] sm:$0xff]
        %v6004 = vld [vmem:[%s5985 + $0x90] sm:$0xff]
        %v6005 = vld [vmem:[%s5985 + $0x98] sm:$0xff]
        %v6006 = vld [vmem:[%s5985 + $0xa0] sm:$0xff]
        %v6007 = vld [vmem:[%s5985 + $0xa8] sm:$0xff]
        %v6008 = vld [vmem:[%s5985 + $0xb0] sm:$0xff]
        %v6009 = vld [vmem:[%s5985 + $0xb8] sm:$0xff]
        %v6010 = vld [vmem:[%s5985 + $0xc0] sm:$0xff]
        %v6011 = vld [vmem:[%s5985 + $0xc8] sm:$0xff]
        %v6012 = vld [vmem:[%s5985 + $0xd0] sm:$0xff]
        %v6013 = vld [vmem:[%s5985 + $0xd8] sm:$0xff]
        %v6014 = vld [vmem:[%s5985 + $0xe0] sm:$0xff]
        %v6015 = vld [vmem:[%s5985 + $0xe8] sm:$0xff]
        %v6016 = vld [vmem:[%s5985 + $0xf0] sm:$0xff]
        %v6017 = vld [vmem:[%s5985 + $0xf8] sm:$0xff]
        %v6022 = vrot.slane %v5949, 1
        %v6023 = vrot.slane %v5940, 1
        %v6024 = vsel %vm1220, %v6022, %v6023
        %v6025 = vrot.slane %v5950, 1
        %v6026 = vrot.slane %v5942, 1
        %v6027 = vsel %vm1220, %v6025, %v6026
        %v6028 = vrot.slane %v5951, 1
        %v6029 = vsel %vm1220, %v6023, %v6028
        %v6030 = vrot.slane %v5952, 1
        %v6031 = vsel %vm1220, %v6026, %v6030
        %6036 = vmatprep.subr.mxu0 0.0
        %6037 = vmatpush1.msra.mxu0 %v5986
        %6038 = vmatprep.subr.mxu0 0.0
        %6039 = vmatpush1.msra.mxu0 %v5987
        %6040 = vmatprep.subr.mxu0 0.0
        %6041 = vmatpush1.msra.mxu0 %v5988
        %6042 = vmatprep.subr.mxu0 0.0
        %6043 = vmatpush1.msra.mxu0 %v5989
        %6044 = vmatprep.subr.mxu0 0.0
        %6045 = vmatpush1.msra.mxu0 %v5990
        %6046 = vmatprep.subr.mxu0 0.0
        %6047 = vmatpush1.msra.mxu0 %v5991
        %6048 = vmatprep.subr.mxu0 0.0
        %6049 = vmatpush1.msra.mxu0 %v5992
        %6050 = vmatprep.subr.mxu0 0.0
        %6051 = vmatpush1.msra.mxu0 %v5993
        %6052 = vmatprep.subr.mxu0 0.0
        %6053 = vmatpush1.msra.mxu0 %v5994
        %6054 = vmatprep.subr.mxu0 0.0
        %6055 = vmatpush1.msra.mxu0 %v5995
        %6056 = vmatprep.subr.mxu0 0.0
        %6057 = vmatpush1.msra.mxu0 %v5996
        %6058 = vmatprep.subr.mxu0 0.0
        %6059 = vmatpush1.msra.mxu0 %v5997
        %6060 = vmatprep.subr.mxu0 0.0
        %6061 = vmatpush1.msra.mxu0 %v5998
        %6062 = vmatprep.subr.mxu0 0.0
        %6063 = vmatpush1.msra.mxu0 %v5999
        %6064 = vmatprep.subr.mxu0 0.0
        %6065 = vmatpush1.msra.mxu0 %v6000
        %6066 = vmatprep.subr.mxu0 0.0
        %6067 = vmatpush1.msra.mxu0 %v6001
        %6068 = vmatprep.subr.mxu0 0.0
        %6069 = vmatpush1.msra.mxu0 %v6002
        %6070 = vmatprep.subr.mxu0 0.0
        %6071 = vmatpush1.msra.mxu0 %v6003
        %6072 = vmatprep.subr.mxu0 0.0
        %6073 = vmatpush1.msra.mxu0 %v6004
        %6074 = vmatprep.subr.mxu0 0.0
        %6075 = vmatpush1.msra.mxu0 %v6005
        %6076 = vmatprep.subr.mxu0 0.0
        %6077 = vmatpush1.msra.mxu0 %v6006
        %6078 = vmatprep.subr.mxu0 0.0
        %6079 = vmatpush1.msra.mxu0 %v6007
        %6080 = vmatprep.subr.mxu0 0.0
        %6081 = vmatpush1.msra.mxu0 %v6008
        %6082 = vmatprep.subr.mxu0 0.0
        %6083 = vmatpush1.msra.mxu0 %v6009
        %6084 = vmatprep.subr.mxu0 0.0
        %6085 = vmatpush1.msra.mxu0 %v6010
        %6086 = vmatprep.subr.mxu0 0.0
        %6087 = vmatpush1.msra.mxu0 %v6011
        %6088 = vmatprep.subr.mxu0 0.0
        %6089 = vmatpush1.msra.mxu0 %v6012
        %6090 = vmatprep.subr.mxu0 0.0
        %6091 = vmatpush1.msra.mxu0 %v6013
        %6092 = vmatprep.subr.mxu0 0.0
        %6093 = vmatpush1.msra.mxu0 %v6014
        %6094 = vmatprep.subr.mxu0 0.0
        %6095 = vmatpush1.msra.mxu0 %v6015
        %6096 = vmatprep.subr.mxu0 0.0
        %6097 = vmatpush1.msra.mxu0 %v6016
        %6098 = vmatprep.subr.mxu0 0.0
        %6099 = vmatpush1.msra.mxu0 %v6017
        %6100 = vmatprep.mubr.f32.mxu0 %v6027
        %6101 = vmatmul.mubr.f32.gmra.mrb[0].mxu0 %v6024
        %v6102 = vpop.f32.mrb[0].mxu0
        %v6103 = vadd.f32 0.0, %v6102
        %v6104 = vpop.f32.mrb[0].mxu0
        %6105 = vmatprep.mubr.f32.mxu0 %v6031
        %6106 = vmatmul.mubr.f32.gmra.mrb[0].mxu0 %v6029
        %v6107 = vpop.f32.mrb[0].mxu0
        %v6108 = vadd.f32 0.0, %v6107
        %v6109 = vpop.f32.mrb[0].mxu0
        %6110 = vdwg.mxu0
        %6111 = vmatprep.subr.mxu0 0.0
        %6112 = vmatpush1.msra.mxu0 %v5953
        %6113 = vmatprep.subr.mxu0 0.0
        %6114 = vmatpush1.msra.mxu0 %v5954
        %6115 = vmatprep.subr.mxu0 0.0
        %6116 = vmatpush1.msra.mxu0 %v5955
        %6117 = vmatprep.subr.mxu0 0.0
        %6118 = vmatpush1.msra.mxu0 %v5956
        %6119 = vmatprep.subr.mxu0 0.0
        %6120 = vmatpush1.msra.mxu0 %v5957
        %6121 = vmatprep.subr.mxu0 0.0
        %6122 = vmatpush1.msra.mxu0 %v5958
        %6123 = vmatprep.subr.mxu0 0.0
        %6124 = vmatpush1.msra.mxu0 %v5959
        %6125 = vmatprep.subr.mxu0 0.0
        %6126 = vmatpush1.msra.mxu0 %v5960
        %6127 = vmatprep.subr.mxu0 0.0
        %6128 = vmatpush1.msra.mxu0 %v5961
        %6129 = vmatprep.subr.mxu0 0.0
        %6130 = vmatpush1.msra.mxu0 %v5962
        %6131 = vmatprep.subr.mxu0 0.0
        %6132 = vmatpush1.msra.mxu0 %v5963
        %6133 = vmatprep.subr.mxu0 0.0
        %6134 = vmatpush1.msra.mxu0 %v5964
        %6135 = vmatprep.subr.mxu0 0.0
        %6136 = vmatpush1.msra.mxu0 %v5965
        %6137 = vmatprep.subr.mxu0 0.0
        %6138 = vmatpush1.msra.mxu0 %v5966
        %6139 = vmatprep.subr.mxu0 0.0
        %6140 = vmatpush1.msra.mxu0 %v5967
        %6141 = vmatprep.subr.mxu0 0.0
        %6142 = vmatpush1.msra.mxu0 %v5968
        %6143 = vmatprep.subr.mxu0 0.0
        %6144 = vmatpush1.msra.mxu0 %v5969
        %6145 = vmatprep.subr.mxu0 0.0
        %6146 = vmatpush1.msra.mxu0 %v5970
        %6147 = vmatprep.subr.mxu0 0.0
        %6148 = vmatpush1.msra.mxu0 %v5971
        %6149 = vmatprep.subr.mxu0 0.0
        %6150 = vmatpush1.msra.mxu0 %v5972
        %6151 = vmatprep.subr.mxu0 0.0
        %6152 = vmatpush1.msra.mxu0 %v5973
        %6153 = vmatprep.subr.mxu0 0.0
        %6154 = vmatpush1.msra.mxu0 %v5974
        %6155 = vmatprep.subr.mxu0 0.0
        %6156 = vmatpush1.msra.mxu0 %v5975
        %6157 = vmatprep.subr.mxu0 0.0
        %6158 = vmatpush1.msra.mxu0 %v5976
        %6159 = vmatprep.subr.mxu0 0.0
        %6160 = vmatpush1.msra.mxu0 %v5977
        %6161 = vmatprep.subr.mxu0 0.0
        %6162 = vmatpush1.msra.mxu0 %v5978
        %6163 = vmatprep.subr.mxu0 0.0
        %6164 = vmatpush1.msra.mxu0 %v5979
        %6165 = vmatprep.subr.mxu0 0.0
        %6166 = vmatpush1.msra.mxu0 %v5980
        %6167 = vmatprep.subr.mxu0 0.0
        %6168 = vmatpush1.msra.mxu0 %v5981
        %6169 = vmatprep.subr.mxu0 0.0
        %6170 = vmatpush1.msra.mxu0 %v5982
        %6171 = vmatprep.subr.mxu0 0.0
        %6172 = vmatpush1.msra.mxu0 %v5983
        %6173 = vmatprep.subr.mxu0 0.0
        %6174 = vmatpush1.msra.mxu0 %v5984
        %6175 = vmatprep.mubr.f32.mxu0 %v5950
        %6176 = vmatmul.mubr.f32.gmra.mrb[0].mxu0 %v5949
        %v6177 = vpop.f32.mrb[0].mxu0
        %v6178 = vadd.f32 %v6103, %v6177
        %v6179 = vpop.f32.mrb[0].mxu0
        %6180 = vmatprep.mubr.f32.mxu0 %v5942
        %6181 = vmatmul.mubr.f32.gmra.mrb[0].mxu0 %v5940
        %v6182 = vpop.f32.mrb[0].mxu0
        %v6183 = vadd.f32 %v6108, %v6182
        %v6184 = vpop.f32.mrb[0].mxu0
        %6185 = vdwg.mxu0
        %s6186 = scalar_lea.vmem %s3, 512
        %v6187 = vld [vmem:[%s6186] sm:$0xff]
        %v6188 = vld [vmem:[%s6186 + $0x8] sm:$0xff]
        %v6189 = vld [vmem:[%s6186 + $0x10] sm:$0xff]
        %v6190 = vld [vmem:[%s6186 + $0x18] sm:$0xff]
        %v6191 = vld [vmem:[%s6186 + $0x20] sm:$0xff]
        %v6192 = vld [vmem:[%s6186 + $0x28] sm:$0xff]
        %v6193 = vld [vmem:[%s6186 + $0x30] sm:$0xff]
        %v6194 = vld [vmem:[%s6186 + $0x38] sm:$0xff]
        %v6195 = vld [vmem:[%s6186 + $0x40] sm:$0xff]
        %v6196 = vld [vmem:[%s6186 + $0x48] sm:$0xff]
        %v6197 = vld [vmem:[%s6186 + $0x50] sm:$0xff]
        %v6198 = vld [vmem:[%s6186 + $0x58] sm:$0xff]
        %v6199 = vld [vmem:[%s6186 + $0x60] sm:$0xff]
        %v6200 = vld [vmem:[%s6186 + $0x68] sm:$0xff]
        %v6201 = vld [vmem:[%s6186 + $0x70] sm:$0xff]
        %v6202 = vld [vmem:[%s6186 + $0x78] sm:$0xff]
        %v6203 = vld [vmem:[%s6186 + $0x80] sm:$0xff]
        %v6204 = vld [vmem:[%s6186 + $0x88] sm:$0xff]
        %v6205 = vld [vmem:[%s6186 + $0x90] sm:$0xff]
        %v6206 = vld [vmem:[%s6186 + $0x98] sm:$0xff]
        %v6207 = vld [vmem:[%s6186 + $0xa0] sm:$0xff]
        %v6208 = vld [vmem:[%s6186 + $0xa8] sm:$0xff]
        %v6209 = vld [vmem:[%s6186 + $0xb0] sm:$0xff]
        %v6210 = vld [vmem:[%s6186 + $0xb8] sm:$0xff]
        %v6211 = vld [vmem:[%s6186 + $0xc0] sm:$0xff]
        %v6212 = vld [vmem:[%s6186 + $0xc8] sm:$0xff]
        %v6213 = vld [vmem:[%s6186 + $0xd0] sm:$0xff]
        %v6214 = vld [vmem:[%s6186 + $0xd8] sm:$0xff]
        %v6215 = vld [vmem:[%s6186 + $0xe0] sm:$0xff]
        %v6216 = vld [vmem:[%s6186 + $0xe8] sm:$0xff]
        %v6217 = vld [vmem:[%s6186 + $0xf0] sm:$0xff]
        %v6218 = vld [vmem:[%s6186 + $0xf8] sm:$0xff]
        %v6219 = vrot.slane %v5949, 2
        %v6220 = vrot.slane %v5940, 2
        %v6221 = vsel %vm1402, %v6219, %v6220
        %v6222 = vrot.slane %v5950, 2
        %v6223 = vrot.slane %v5942, 2
        %v6224 = vsel %vm1402, %v6222, %v6223
        %v6225 = vrot.slane %v5951, 2
        %v6226 = vsel %vm1402, %v6220, %v6225
        %v6227 = vrot.slane %v5952, 2
        %v6228 = vsel %vm1402, %v6223, %v6227
        %6233 = vmatprep.subr.mxu0 0.0
        %6234 = vmatpush1.msra.mxu0 %v6187
        %6235 = vmatprep.subr.mxu0 0.0
        %6236 = vmatpush1.msra.mxu0 %v6188
        %6237 = vmatprep.subr.mxu0 0.0
        %6238 = vmatpush1.msra.mxu0 %v6189
        %6239 = vmatprep.subr.mxu0 0.0
        %6240 = vmatpush1.msra.mxu0 %v6190
        %6241 = vmatprep.subr.mxu0 0.0
        %6242 = vmatpush1.msra.mxu0 %v6191
        %6243 = vmatprep.subr.mxu0 0.0
        %6244 = vmatpush1.msra.mxu0 %v6192
        %6245 = vmatprep.subr.mxu0 0.0
        %6246 = vmatpush1.msra.mxu0 %v6193
        %6247 = vmatprep.subr.mxu0 0.0
        %6248 = vmatpush1.msra.mxu0 %v6194
        %6249 = vmatprep.subr.mxu0 0.0
        %6250 = vmatpush1.msra.mxu0 %v6195
        %6251 = vmatprep.subr.mxu0 0.0
        %6252 = vmatpush1.msra.mxu0 %v6196
        %6253 = vmatprep.subr.mxu0 0.0
        %6254 = vmatpush1.msra.mxu0 %v6197
        %6255 = vmatprep.subr.mxu0 0.0
        %6256 = vmatpush1.msra.mxu0 %v6198
        %6257 = vmatprep.subr.mxu0 0.0
        %6258 = vmatpush1.msra.mxu0 %v6199
        %6259 = vmatprep.subr.mxu0 0.0
        %6260 = vmatpush1.msra.mxu0 %v6200
        %6261 = vmatprep.subr.mxu0 0.0
        %6262 = vmatpush1.msra.mxu0 %v6201
        %6263 = vmatprep.subr.mxu0 0.0
        %6264 = vmatpush1.msra.mxu0 %v6202
        %6265 = vmatprep.subr.mxu0 0.0
        %6266 = vmatpush1.msra.mxu0 %v6203
        %6267 = vmatprep.subr.mxu0 0.0
        %6268 = vmatpush1.msra.mxu0 %v6204
        %6269 = vmatprep.subr.mxu0 0.0
        %6270 = vmatpush1.msra.mxu0 %v6205
        %6271 = vmatprep.subr.mxu0 0.0
        %6272 = vmatpush1.msra.mxu0 %v6206
        %6273 = vmatprep.subr.mxu0 0.0
        %6274 = vmatpush1.msra.mxu0 %v6207
        %6275 = vmatprep.subr.mxu0 0.0
        %6276 = vmatpush1.msra.mxu0 %v6208
        %6277 = vmatprep.subr.mxu0 0.0
        %6278 = vmatpush1.msra.mxu0 %v6209
        %6279 = vmatprep.subr.mxu0 0.0
        %6280 = vmatpush1.msra.mxu0 %v6210
        %6281 = vmatprep.subr.mxu0 0.0
        %6282 = vmatpush1.msra.mxu0 %v6211
        %6283 = vmatprep.subr.mxu0 0.0
        %6284 = vmatpush1.msra.mxu0 %v6212
        %6285 = vmatprep.subr.mxu0 0.0
        %6286 = vmatpush1.msra.mxu0 %v6213
        %6287 = vmatprep.subr.mxu0 0.0
        %6288 = vmatpush1.msra.mxu0 %v6214
        %6289 = vmatprep.subr.mxu0 0.0
        %6290 = vmatpush1.msra.mxu0 %v6215
        %6291 = vmatprep.subr.mxu0 0.0
        %6292 = vmatpush1.msra.mxu0 %v6216
        %6293 = vmatprep.subr.mxu0 0.0
        %6294 = vmatpush1.msra.mxu0 %v6217
        %6295 = vmatprep.subr.mxu0 0.0
        %6296 = vmatpush1.msra.mxu0 %v6218
        %6297 = vmatprep.mubr.f32.mxu0 %v6224
        %6298 = vmatmul.mubr.f32.gmra.mrb[0].mxu0 %v6221
        %v6299 = vpop.f32.mrb[0].mxu0
        %v6300 = vadd.f32 0.0, %v6299
        %v6301 = vpop.f32.mrb[0].mxu0
        %6302 = vmatprep.mubr.f32.mxu0 %v6228
        %6303 = vmatmul.mubr.f32.gmra.mrb[0].mxu0 %v6226
        %v6304 = vpop.f32.mrb[0].mxu0
        %v6305 = vadd.f32 0.0, %v6304
        %v6306 = vpop.f32.mrb[0].mxu0
        %6307 = vdwg.mxu0
        %v6308 = vadd.f32 %v6178, %v6300
        %v6309 = vadd.f32 %v6183, %v6305
        %v6310 = vld [vmem:[#allocation6] sm:$0x1]
        %v6312 = vlaneseq
        %v6313 = vshrl.u32 %v6312, 7
        %v6314 = vsub.s32 0, %v6313
        %v6315 = vrot.slane %v6310, %v6314
        %v6317 = vadd.f32 %v6308, %v6315
        %v6318 = vadd.f32 %v6309, %v6315
        %v6319 = vadd.f32 %v6317, %v1181
        %v6320 = vadd.f32 %v6318, %v1182
        %6321 = vst.msk [vmem:[%s1180] sm:$0xff] %vm1226, %v6319
        %6322 = vst.msk [vmem:[%s1180 + $0x8] sm:$0xff] %vm1226, %v6320
        %p6323 = scmp.lt.s32.totalorder %s52, 1
        %s6324 = scalar_select %p6323, %s52, 1
        %s6325 = smul.addr %s6324, 2
        %s6326 = smul.addr %s6325, 8
        %s6327 = scalar_lea.vmem %s28, %s6326
        // Predicated region
        $region233: #{nafnet_forward.1} parent=131 // pred_check
          %p6328 = pneg %p663
        $region234: #{nafnet_forward.1} parent=131 // pred_check_branch
          %6330 = sbr.rel (%p6328) target = $region236
        $region235: #{nafnet_forward.1} parent=131 // pred_region
          _
        $region236: #{nafnet_forward.1} parent=131 // pred_fallthru
          _
      $region132: #{nafnet_forward.1} parent=5 // pred_fallthru
        _
      %p6331 = scmp.le.s32.totalorder 2, %s47
      // Predicated region
      $region237: #{nafnet_forward.1} parent=5 // pred_check
        %p6332 = pneg %p6331
      $region238: #{nafnet_forward.1} parent=5 // pred_check_branch
        %6334 = sbr.rel (%p6332) target = $region240
      $region239: #{nafnet_forward.1} parent=5 // pred_region
        %s6335 = ssub.s32 %s47, 2
        // Predicated region
        $region241: #{nafnet_forward.1} parent=239 // pred_check
          %p6336 = pneg %p669
        $region242: #{nafnet_forward.1} parent=239 // pred_check_branch
          %6338 = sbr.rel (%p6336) target = $region244
        $region243: #{nafnet_forward.1} parent=239 // pred_region
          %p6339 = scmp.lt.s32.totalorder %s53, 1
          %s6340 = scalar_select %p6339, %s53, 1
          %s6341 = smul.addr %s6340, 2
          %s6342 = smul.addr %s6341, 8
          %s6343 = scalar_lea.vmem %s28, %s6342
        $region244: #{nafnet_forward.1} parent=239 // pred_fallthru
          _
      $region240: #{nafnet_forward.1} parent=5 // pred_fallthru
        _
    $region6: #{nafnet_forward.1} parent=1 // loop_footer
      %s51 = sadd.s32 1, %s47
    $region7: #{nafnet_forward.1} parent=1 // loop_footer_branch
      %46 = sbr.rel target = $region3
    $region8: #{nafnet_forward.1} parent=1 // loop_exit
      _
    %6344 = vsyncpa [#allocation3], 1
    %s6345 = scalar_lea.sflag [#allocation3], 1
    %6346 = vsyncpa %s6345, 1
    %6347 = vsyncpa [#allocation5], 1
    %6348 = vsyncpa [#allocation8], 1
    %6349 = vsyncpa [#allocation11], 1
    %6350 = vsyncpa [#allocation14], 1
    %6351 = vsyncpa [#allocation17], 1
    %6352 = vsyncpa [#allocation20], 1
    %6353 = vsyncpa [#allocation23], 1
    %6354 = vsyncpa [#allocation26], 1
    %6355 = vsyncpa [#allocation29], 1
    %6356 = vsyncpa [#allocation32], 1
    %6357 = vsyncpa [#allocation35], 1
    %6358 = vsyncpa [#allocation38], 1

</llo_original>
